<compile_context>
chip_gen: v7x
topology: tpu7x:2x2x1
jax: 0.10.0
libtpu: 0.0.40
codegen_flags: <defaults>
</compile_context>

<pallas_src>
import functools

import jax
import jax.numpy as jnp
from jax.experimental import pallas as pl
from jax.experimental.pallas import tpu as pltpu

_LANE = 128
_MAX_BATCH_TILE = 256  # MXU height on v6e/v7x; also fine on v5e.


def _round_up(n, m):
    return ((n + m - 1) // m) * m


def _mlp_kernel(x_ref,
                w1_ref, b1_ref,
                w2_ref, b2_ref,
                w3_ref, b3_ref,
                w4_ref, b4_ref,
                o_ref):
    """One batch tile through the whole 4-layer MLP (weights resident in VMEM)."""

    def layer(h, w_ref, b_ref, relu):
        # bf16 x bf16 on the MXU, f32 accumulation; bias-add / ReLU kept in f32.
        y = jnp.dot(h.astype(jnp.bfloat16), w_ref[...],
                    preferred_element_type=jnp.float32) + b_ref[...]
        return jnp.maximum(y, 0.0) if relu else y

    h = x_ref[...]
    h = layer(h, w1_ref, b1_ref, relu=True)
    h = layer(h, w2_ref, b2_ref, relu=True)
    h = layer(h, w3_ref, b3_ref, relu=True)
    h = layer(h, w4_ref, b4_ref, relu=False)
    o_ref[...] = h.astype(o_ref.dtype)


@functools.partial(jax.jit, static_argnames=("action_size",))
def _dqn_forward_pallas(x, params, *, action_size):
    """x: (B, state_size) f32; params: (w1,b1,...,w4,b4), weights bf16 (in, out)."""
    b, state_size = x.shape
    n_pad = params[-1].shape[1]  # lane-padded output width (multiple of 128)

    # Batch tile: pad tiny batches to a sublane multiple of 8; cap large
    # batches at 256 rows per grid step so the ~5 MB of bf16 weights are
    # amortized across many MXU passes.
    tm = min(_MAX_BATCH_TILE, _round_up(max(b, 8), 8))
    b_pad = _round_up(b, tm)
    if b_pad != b:
        x = jnp.pad(x, ((0, b_pad - b), (0, 0)))

    grid = (b_pad // tm,)

    # Weights / biases: full block, constant index_map -> fetched once and kept
    # resident across all batch tiles.
    def _resident(p):
        return pl.BlockSpec(p.shape, lambda i: (0, 0))

    out = pl.pallas_call(
        _mlp_kernel,
        out_shape=jax.ShapeDtypeStruct((b_pad, n_pad), jnp.float32),
        grid=grid,
        in_specs=[pl.BlockSpec((tm, state_size), lambda i: (i, 0))]
                 + [_resident(p) for p in params],
        out_specs=pl.BlockSpec((tm, n_pad), lambda i: (i, 0)),
        compiler_params=pltpu.CompilerParams(
            dimension_semantics=("parallel",),
            vmem_limit_bytes=48 << 20,
        ),
    )(x, *params)

    return out[:b, :action_size]


class DQNNeuralNetworkPallas:
    """JAX/Pallas re-implementation of DQN_neural_network's forward pass."""

    def __init__(self, state_size, action_size, key):
        dims = [state_size, 2048, 1024, 512, action_size]
        self.state_size = state_size
        self.action_size = action_size
        n_pad = _round_up(action_size, _LANE)

        params = []
        for i in range(4):
            fan_in, fan_out = dims[i], dims[i + 1]
            key, kw, kb = jax.random.split(key, 3)
            # PyTorch nn.Linear default init: U(-1/sqrt(fan_in), 1/sqrt(fan_in)).
            bound = 1.0 / (fan_in ** 0.5)
            w = jax.random.uniform(kw, (fan_in, fan_out), jnp.float32, -bound, bound)
            bvec = jax.random.uniform(kb, (1, fan_out), jnp.float32, -bound, bound)
            if i == 3 and fan_out != n_pad:  # lane-dense output padding
                w = jnp.pad(w, ((0, 0), (0, n_pad - fan_out)))
                bvec = jnp.pad(bvec, ((0, 0), (0, n_pad - fan_out)))
            # Weights live in HBM as bf16 (halves the dominant DMA cost);
            # biases stay f32.
            params += [w.astype(jnp.bfloat16), bvec]

        self.online = tuple(params)
        # target = copy.deepcopy(online) (frozen; gradients irrelevant here).
        self.target = tuple(jnp.array(p) for p in params)

        # TODO(synk): int8 (v5e/v6e) / fp8 (v7x) quantization of W2/W3 and
        # cross-pallas_call weight residency (keep frozen weights in VMEM
        # between steps) would remove most remaining HBM traffic; omitted to
        # keep a single portable kernel.

    def forward(self, x, model):
        if model == 'online':
            params = self.online
        elif model == 'target':
            params = self.target
        else:
            raise ValueError(f"unknown model: {model}")
        return _dqn_forward_pallas(x, params, action_size=self.action_size)

    # TODO(synk): load_model (torch.load of a checkpoint) has no Pallas
    # equivalent; parameters are initialized deterministically in-script.


def _reference_forward(x, params, action_size):
    """Pure-JAX reference doing the identical mixed-precision math."""
    w1, b1, w2, b2, w3, b3, w4, b4 = params

    def layer(h, w, b, relu):
        y = jnp.dot(h.astype(jnp.bfloat16), w,
                    preferred_element_type=jnp.float32) + b
        return jnp.maximum(y, 0.0) if relu else y

    h = layer(x, w1, b1, True)
    h = layer(h, w2, b2, True)
    h = layer(h, w3, b3, True)
    h = layer(h, w4, b4, False)
    return h[:, :action_size]


if __name__ == "__main__":
    key = jax.random.PRNGKey(0)
    state_size, action_size = 32, 8

    k_param, k_x1, k_x2 = jax.random.split(key, 3)
    net = DQNNeuralNetworkPallas(state_size, action_size, k_param)

    # Small (latency-path) batch: 2 states.
    x_small = jax.random.normal(k_x1, (2, state_size), jnp.float32)
    out_online = jax.block_until_ready(net.forward(x_small, 'online'))
    out_target = jax.block_until_ready(net.forward(x_small, 'target'))
    ref_small = _reference_forward(x_small, net.online, action_size)

    assert out_online.shape == (2, action_size)
    assert jnp.allclose(out_online, ref_small, atol=1e-3, rtol=1e-3)
    assert jnp.allclose(out_target, out_online, atol=1e-3, rtol=1e-3)

    # Replay-buffer sized batch: exercises the multi-tile batch grid
    # (300 rows -> padded to 512, grid=(2,), weights fetched once and reused).
    x_big = jax.random.normal(k_x2, (300, state_size), jnp.float32)
    out_big = jax.block_until_ready(net.forward(x_big, 'online'))
    ref_big = _reference_forward(x_big, net.online, action_size)

    assert out_big.shape == (300, action_size)
    assert jnp.allclose(out_big, ref_big, atol=1e-3, rtol=1e-3)

    print("KERNEL_OK")
</pallas_src>

<mosaic_0001>
module attributes {stable_mosaic.version = 11 : i64} {
  func.func @_mlp_kernel(%arg0: i32, %arg1: memref<8x32xf32, #tpu.memory_space<vmem>>, %arg2: memref<32x2048xbf16, #tpu.memory_space<vmem>>, %arg3: memref<1x2048xf32, #tpu.memory_space<vmem>>, %arg4: memref<2048x1024xbf16, #tpu.memory_space<vmem>>, %arg5: memref<1x1024xf32, #tpu.memory_space<vmem>>, %arg6: memref<1024x512xbf16, #tpu.memory_space<vmem>>, %arg7: memref<1x512xf32, #tpu.memory_space<vmem>>, %arg8: memref<512x128xbf16, #tpu.memory_space<vmem>>, %arg9: memref<1x128xf32, #tpu.memory_space<vmem>>, %arg10: memref<8x128xf32, #tpu.memory_space<vmem>>) attributes {dimension_semantics = [#tpu.dimension_semantics<parallel>], iteration_bounds = array<i64: 1>, scalar_prefetch = 0 : i64, scratch_operands = 0 : i64, tpu.core_type = #tpu.core_type<tc>, window_params = [{transform_indices = @transform_0, window_bounds = array<i64: 8, 32>}, {pipeline_mode = #tpu.pipeline_mode<synchronous>, transform_indices = @transform_1, window_bounds = array<i64: 32, 2048>}, {pipeline_mode = #tpu.pipeline_mode<synchronous>, transform_indices = @transform_2, window_bounds = array<i64: 1, 2048>}, {pipeline_mode = #tpu.pipeline_mode<synchronous>, transform_indices = @transform_3, window_bounds = array<i64: 2048, 1024>}, {pipeline_mode = #tpu.pipeline_mode<synchronous>, transform_indices = @transform_4, window_bounds = array<i64: 1, 1024>}, {pipeline_mode = #tpu.pipeline_mode<synchronous>, transform_indices = @transform_5, window_bounds = array<i64: 1024, 512>}, {pipeline_mode = #tpu.pipeline_mode<synchronous>, transform_indices = @transform_6, window_bounds = array<i64: 1, 512>}, {pipeline_mode = #tpu.pipeline_mode<synchronous>, transform_indices = @transform_7, window_bounds = array<i64: 512, 128>}, {pipeline_mode = #tpu.pipeline_mode<synchronous>, transform_indices = @transform_8, window_bounds = array<i64: 1, 128>}, {transform_indices = @transform_9, window_bounds = array<i64: 8, 128>}]} {
    %c0 = arith.constant 0 : index
    %c0_0 = arith.constant 0 : index
    %0 = vector.load %arg1[%c0, %c0_0] : memref<8x32xf32, #tpu.memory_space<vmem>>, vector<8x32xf32>
    %1 = arith.truncf %0 : vector<8x32xf32> to vector<8x32xbf16>
    %c0_1 = arith.constant 0 : index
    %c0_2 = arith.constant 0 : index
    %2 = vector.load %arg2[%c0_1, %c0_2] : memref<32x2048xbf16, #tpu.memory_space<vmem>>, vector<32x2048xbf16>
    %cst = arith.constant dense<0.000000e+00> : vector<8x2048xf32>
    %3 = tpu.matmul %1, %2, %cst {dimension_numbers = #tpu.dot_dimension_numbers<[1], [0], [0], [1], [0, 0, 1, 1], [], []>} : vector<8x32xbf16>, vector<32x2048xbf16>, vector<8x2048xf32> -> vector<8x2048xf32>
    %c0_3 = arith.constant 0 : index
    %c0_4 = arith.constant 0 : index
    %4 = vector.load %arg3[%c0_3, %c0_4] : memref<1x2048xf32, #tpu.memory_space<vmem>>, vector<1x2048xf32>
    %5 = vector.broadcast %4 : vector<1x2048xf32> to vector<8x2048xf32>
    %6 = arith.addf %3, %5 : vector<8x2048xf32>
    %cst_5 = arith.constant 0.000000e+00 : f32
    %7 = vector.broadcast %cst_5 : f32 to vector<8x2048xf32>
    %8 = arith.maximumf %6, %7 : vector<8x2048xf32>
    %9 = arith.truncf %8 : vector<8x2048xf32> to vector<8x2048xbf16>
    %c0_6 = arith.constant 0 : index
    %c0_7 = arith.constant 0 : index
    %10 = vector.load %arg4[%c0_6, %c0_7] : memref<2048x1024xbf16, #tpu.memory_space<vmem>>, vector<2048x1024xbf16>
    %cst_8 = arith.constant dense<0.000000e+00> : vector<8x1024xf32>
    %11 = tpu.matmul %9, %10, %cst_8 {dimension_numbers = #tpu.dot_dimension_numbers<[1], [0], [0], [1], [0, 0, 1, 1], [], []>} : vector<8x2048xbf16>, vector<2048x1024xbf16>, vector<8x1024xf32> -> vector<8x1024xf32>
    %c0_9 = arith.constant 0 : index
    %c0_10 = arith.constant 0 : index
    %12 = vector.load %arg5[%c0_9, %c0_10] : memref<1x1024xf32, #tpu.memory_space<vmem>>, vector<1x1024xf32>
    %13 = vector.broadcast %12 : vector<1x1024xf32> to vector<8x1024xf32>
    %14 = arith.addf %11, %13 : vector<8x1024xf32>
    %cst_11 = arith.constant 0.000000e+00 : f32
    %15 = vector.broadcast %cst_11 : f32 to vector<8x1024xf32>
    %16 = arith.maximumf %14, %15 : vector<8x1024xf32>
    %17 = arith.truncf %16 : vector<8x1024xf32> to vector<8x1024xbf16>
    %c0_12 = arith.constant 0 : index
    %c0_13 = arith.constant 0 : index
    %18 = vector.load %arg6[%c0_12, %c0_13] : memref<1024x512xbf16, #tpu.memory_space<vmem>>, vector<1024x512xbf16>
    %cst_14 = arith.constant dense<0.000000e+00> : vector<8x512xf32>
    %19 = tpu.matmul %17, %18, %cst_14 {dimension_numbers = #tpu.dot_dimension_numbers<[1], [0], [0], [1], [0, 0, 1, 1], [], []>} : vector<8x1024xbf16>, vector<1024x512xbf16>, vector<8x512xf32> -> vector<8x512xf32>
    %c0_15 = arith.constant 0 : index
    %c0_16 = arith.constant 0 : index
    %20 = vector.load %arg7[%c0_15, %c0_16] : memref<1x512xf32, #tpu.memory_space<vmem>>, vector<1x512xf32>
    %21 = vector.broadcast %20 : vector<1x512xf32> to vector<8x512xf32>
    %22 = arith.addf %19, %21 : vector<8x512xf32>
    %cst_17 = arith.constant 0.000000e+00 : f32
    %23 = vector.broadcast %cst_17 : f32 to vector<8x512xf32>
    %24 = arith.maximumf %22, %23 : vector<8x512xf32>
    %25 = arith.truncf %24 : vector<8x512xf32> to vector<8x512xbf16>
    %c0_18 = arith.constant 0 : index
    %c0_19 = arith.constant 0 : index
    %26 = vector.load %arg8[%c0_18, %c0_19] : memref<512x128xbf16, #tpu.memory_space<vmem>>, vector<512x128xbf16>
    %cst_20 = arith.constant dense<0.000000e+00> : vector<8x128xf32>
    %27 = tpu.matmul %25, %26, %cst_20 {dimension_numbers = #tpu.dot_dimension_numbers<[1], [0], [0], [1], [0, 0, 1, 1], [], []>} : vector<8x512xbf16>, vector<512x128xbf16>, vector<8x128xf32> -> vector<8x128xf32>
    %c0_21 = arith.constant 0 : index
    %c0_22 = arith.constant 0 : index
    %28 = vector.load %arg9[%c0_21, %c0_22] : memref<1x128xf32, #tpu.memory_space<vmem>>, vector<1x128xf32>
    %29 = vector.broadcast %28 : vector<1x128xf32> to vector<8x128xf32>
    %30 = arith.addf %27, %29 : vector<8x128xf32>
    %c0_23 = arith.constant 0 : index
    %c0_24 = arith.constant 0 : index
    %31 = vector.load %arg10[%c0_23, %c0_24] : memref<8x128xf32, #tpu.memory_space<vmem>>, vector<8x128xf32>
    tpu.vector_store %arg10[%c0_23, %c0_24], %30 {strides = array<i32>} : memref<8x128xf32, #tpu.memory_space<vmem>>, vector<8x128xf32>,
    return
  }
  func.func @transform_0(%arg0: i32) -> (i32, i32) {
    %c0_i32 = arith.constant 0 : i32
    %c0_i32_0 = arith.constant 0 : i32
    return %arg0, %c0_i32 : i32, i32
  }
  func.func @transform_1(%arg0: i32) -> (i32, i32) {
    %c0_i32 = arith.constant 0 : i32
    %c0_i32_0 = arith.constant 0 : i32
    %c0_i32_1 = arith.constant 0 : i32
    return %c0_i32, %c0_i32_0 : i32, i32
  }
  func.func @transform_2(%arg0: i32) -> (i32, i32) {
    %c0_i32 = arith.constant 0 : i32
    %c0_i32_0 = arith.constant 0 : i32
    %c0_i32_1 = arith.constant 0 : i32
    return %c0_i32, %c0_i32_0 : i32, i32
  }
  func.func @transform_3(%arg0: i32) -> (i32, i32) {
    %c0_i32 = arith.constant 0 : i32
    %c0_i32_0 = arith.constant 0 : i32
    %c0_i32_1 = arith.constant 0 : i32
    return %c0_i32, %c0_i32_0 : i32, i32
  }
  func.func @transform_4(%arg0: i32) -> (i32, i32) {
    %c0_i32 = arith.constant 0 : i32
    %c0_i32_0 = arith.constant 0 : i32
    %c0_i32_1 = arith.constant 0 : i32
    return %c0_i32, %c0_i32_0 : i32, i32
  }
  func.func @transform_5(%arg0: i32) -> (i32, i32) {
    %c0_i32 = arith.constant 0 : i32
    %c0_i32_0 = arith.constant 0 : i32
    %c0_i32_1 = arith.constant 0 : i32
    return %c0_i32, %c0_i32_0 : i32, i32
  }
  func.func @transform_6(%arg0: i32) -> (i32, i32) {
    %c0_i32 = arith.constant 0 : i32
    %c0_i32_0 = arith.constant 0 : i32
    %c0_i32_1 = arith.constant 0 : i32
    return %c0_i32, %c0_i32_0 : i32, i32
  }
  func.func @transform_7(%arg0: i32) -> (i32, i32) {
    %c0_i32 = arith.constant 0 : i32
    %c0_i32_0 = arith.constant 0 : i32
    %c0_i32_1 = arith.constant 0 : i32
    return %c0_i32, %c0_i32_0 : i32, i32
  }
  func.func @transform_8(%arg0: i32) -> (i32, i32) {
    %c0_i32 = arith.constant 0 : i32
    %c0_i32_0 = arith.constant 0 : i32
    %c0_i32_1 = arith.constant 0 : i32
    return %c0_i32, %c0_i32_0 : i32, i32
  }
  func.func @transform_9(%arg0: i32) -> (i32, i32) {
    %c0_i32 = arith.constant 0 : i32
    %c0_i32_0 = arith.constant 0 : i32
    return %arg0, %c0_i32 : i32, i32
  }
}

</mosaic_0001>

<llo_original>
// kernel: _dqn_forward_pallas.1
$region0: #{_dqn_forward_pallas.1}
  #allocation0 [shape = 'u32[]', space=smem, size = 0x4, offset = 0x4, fixed_abs, tag = 'smem constant byte address 0x4 - core index']
  #allocation1 [shape = 'u32[144,128]{1,0:T(1,128)}', space=vmem, size = 0x12000, scoped, tag = 'internal scratch']
  %s0 = inlined_call_operand.vmem [shape: f32[8,32], index: 0, kind: input, shape index: {}]
  %s1 = inlined_call_operand.hbm [shape: bf16[32,2048], index: 1, kind: input, shape index: {}]
  %s2 = inlined_call_operand.hbm [shape: f32[1,2048], index: 2, kind: input, shape index: {}]
  %s3 = inlined_call_operand.hbm [shape: bf16[2048,1024], index: 3, kind: input, shape index: {}]
  %s4 = inlined_call_operand.hbm [shape: f32[1,1024], index: 4, kind: input, shape index: {}]
  %s5 = inlined_call_operand.hbm [shape: bf16[1024,512], index: 5, kind: input, shape index: {}]
  %s6 = inlined_call_operand.hbm [shape: f32[1,512], index: 6, kind: input, shape index: {}]
  %s7 = inlined_call_operand.hbm [shape: bf16[512,128], index: 7, kind: input, shape index: {}]
  %s8 = inlined_call_operand.hbm [shape: f32[1,128], index: 8, kind: input, shape index: {}]
  %s9 = inlined_call_operand.vmem [shape: f32[8,128], index: 9, kind: output, shape index: {}]
  %s10 = sld [smem:[#allocation0]]
  $region78: #{_dqn_forward_pallas.1} parent=0
    _
  %s12 = ssub.s32 1, %s10
  %s13 = scalar_select 0, %s12, %s10
  $region1: #{_dqn_forward_pallas.1} parent=0
    #allocation2 [shape = 'u8[131072]{0}', space=vmem, size = 0x20000, scoped, tag = 'input window, operand 1, single buffered']
    #allocation3 [shape = 's32[1]{0}', space=sflag, size = 0x4, scoped, tag = 'scoped memory for _dqn_forward_pallas.1']
    #allocation4 [shape = 'u8[8192]{0}', space=vmem, size = 0x2000, scoped, tag = 'input window, operand 2, single buffered']
    #allocation5 [shape = 's32[1]{0}', space=sflag, size = 0x4, scoped, tag = 'scoped memory for _dqn_forward_pallas.1']
    #allocation6 [shape = 'u8[4194304]{0}', space=vmem, size = 0x400000, scoped, tag = 'input window, operand 3, single buffered']
    #allocation7 [shape = 'u8[4096]{0}', space=vmem, size = 0x1000, scoped, tag = 'input window, operand 4, single buffered']
    #allocation8 [shape = 's32[1]{0}', space=sflag, size = 0x4, scoped, tag = 'scoped memory for _dqn_forward_pallas.1']
    #allocation9 [shape = 'u8[1048576]{0}', space=vmem, size = 0x100000, scoped, tag = 'input window, operand 5, single buffered']
    #allocation10 [shape = 'u8[2048]{0}', space=vmem, size = 0x800, scoped, tag = 'input window, operand 6, single buffered']
    #allocation11 [shape = 's32[1]{0}', space=sflag, size = 0x4, scoped, tag = 'scoped memory for _dqn_forward_pallas.1']
    #allocation12 [shape = 'u8[131072]{0}', space=vmem, size = 0x20000, scoped, tag = 'input window, operand 7, single buffered']
    #allocation13 [shape = 'u8[512]{0}', space=vmem, size = 0x400, scoped, tag = 'input window, operand 8, single buffered']
    #allocation14 [shape = 's32[1]{0}', space=sflag, size = 0x4, scoped, tag = 'scoped memory for _dqn_forward_pallas.1']
    %14 = vsyncpa [#allocation3], 0
    %15 = vsyncpa [#allocation5], 0
    %16 = vsyncpa [#allocation8], 0
    %17 = vsyncpa [#allocation11], 0
    %18 = vsyncpa [#allocation14], 0
    // Predicated region
    $region2: #{_dqn_forward_pallas.1} parent=1 // pred_check
      _
    $region3: #{_dqn_forward_pallas.1} parent=1 // pred_check_branch
      %20 = sbr.rel (0) target = $region5
    $region4: #{_dqn_forward_pallas.1} parent=1 // pred_region
      _
    $region5: #{_dqn_forward_pallas.1} parent=1 // pred_fallthru
      _
    // Predicated region
    $region6: #{_dqn_forward_pallas.1} parent=1 // pred_check
      _
    $region7: #{_dqn_forward_pallas.1} parent=1 // pred_check_branch
      %22 = sbr.rel (0) target = $region9
    $region8: #{_dqn_forward_pallas.1} parent=1 // pred_region
      %s24 = ssub.s32 4096, 4096
      %25 = vsyncadd [#allocation3], %s24
      %s26 = sshll.u32 [#allocation2], 4
      %s27 = int_to_ptr.vmem [resolvable:$true] %s26
      %32 = dma.hbm_to_vmem [thread:$0]  %s1, 4096, %s27, [#allocation3], 1024, 1024, 64
    $region9: #{_dqn_forward_pallas.1} parent=1 // pred_fallthru
      _
    // Predicated region
    $region10: #{_dqn_forward_pallas.1} parent=1 // pred_check
      _
    $region11: #{_dqn_forward_pallas.1} parent=1 // pred_check_branch
      %34 = sbr.rel (0) target = $region13
    $region12: #{_dqn_forward_pallas.1} parent=1 // pred_region
      %s36 = ssub.s32 256, 256
      %37 = vsyncadd [#allocation5], %s36
      %s39 = sshll.u32 [#allocation4], 4
      %s40 = int_to_ptr.vmem [resolvable:$true] %s39
      %42 = dma.hbm_to_vmem [thread:$0]  %s2, 256, %s40, [#allocation5]
    $region13: #{_dqn_forward_pallas.1} parent=1 // pred_fallthru
      _
    // Predicated region
    $region14: #{_dqn_forward_pallas.1} parent=1 // pred_check
      _
    $region15: #{_dqn_forward_pallas.1} parent=1 // pred_check_branch
      %44 = sbr.rel (0) target = $region17
    $region16: #{_dqn_forward_pallas.1} parent=1 // pred_region
      %s46 = ssub.s32 131072, 131072
      %47 = vsyncadd [#allocation5], %s46
      %s48 = sshll.u32 [#allocation6], 4
      %s49 = int_to_ptr.vmem [resolvable:$true] %s48
      %54 = dma.hbm_to_vmem [thread:$0]  %s3, 131072, %s49, [#allocation5], 512, 512, 32
    $region17: #{_dqn_forward_pallas.1} parent=1 // pred_fallthru
      _
    // Predicated region
    $region18: #{_dqn_forward_pallas.1} parent=1 // pred_check
      _
    $region19: #{_dqn_forward_pallas.1} parent=1 // pred_check_branch
      %56 = sbr.rel (0) target = $region21
    $region20: #{_dqn_forward_pallas.1} parent=1 // pred_region
      %s58 = ssub.s32 128, 128
      %59 = vsyncadd [#allocation8], %s58
      %s61 = sshll.u32 [#allocation7], 4
      %s62 = int_to_ptr.vmem [resolvable:$true] %s61
      %64 = dma.hbm_to_vmem [thread:$0]  %s4, 128, %s62, [#allocation8]
    $region21: #{_dqn_forward_pallas.1} parent=1 // pred_fallthru
      _
    // Predicated region
    $region22: #{_dqn_forward_pallas.1} parent=1 // pred_check
      _
    $region23: #{_dqn_forward_pallas.1} parent=1 // pred_check_branch
      %66 = sbr.rel (0) target = $region25
    $region24: #{_dqn_forward_pallas.1} parent=1 // pred_region
      %s68 = ssub.s32 32768, 32768
      %69 = vsyncadd [#allocation8], %s68
      %s70 = sshll.u32 [#allocation9], 4
      %s71 = int_to_ptr.vmem [resolvable:$true] %s70
      %76 = dma.hbm_to_vmem [thread:$0]  %s5, 32768, %s71, [#allocation8], 256, 256, 16
    $region25: #{_dqn_forward_pallas.1} parent=1 // pred_fallthru
      _
    // Predicated region
    $region26: #{_dqn_forward_pallas.1} parent=1 // pred_check
      _
    $region27: #{_dqn_forward_pallas.1} parent=1 // pred_check_branch
      %78 = sbr.rel (0) target = $region29
    $region28: #{_dqn_forward_pallas.1} parent=1 // pred_region
      %s80 = ssub.s32 64, 64
      %81 = vsyncadd [#allocation11], %s80
      %s83 = sshll.u32 [#allocation10], 4
      %s84 = int_to_ptr.vmem [resolvable:$true] %s83
      %86 = dma.hbm_to_vmem [thread:$0]  %s6, 64, %s84, [#allocation11]
    $region29: #{_dqn_forward_pallas.1} parent=1 // pred_fallthru
      _
    // Predicated region
    $region30: #{_dqn_forward_pallas.1} parent=1 // pred_check
      _
    $region31: #{_dqn_forward_pallas.1} parent=1 // pred_check_branch
      %88 = sbr.rel (0) target = $region33
    $region32: #{_dqn_forward_pallas.1} parent=1 // pred_region
      %s90 = ssub.s32 4096, 4096
      %91 = vsyncadd [#allocation11], %s90
      %s92 = sshll.u32 [#allocation12], 4
      %s93 = int_to_ptr.vmem [resolvable:$true] %s92
      %98 = dma.hbm_to_vmem [thread:$0]  %s7, 4096, %s93, [#allocation11], 64, 64, 4
    $region33: #{_dqn_forward_pallas.1} parent=1 // pred_fallthru
      _
    // Predicated region
    $region34: #{_dqn_forward_pallas.1} parent=1 // pred_check
      _
    $region35: #{_dqn_forward_pallas.1} parent=1 // pred_check_branch
      %100 = sbr.rel (0) target = $region37
    $region36: #{_dqn_forward_pallas.1} parent=1 // pred_region
      %s102 = ssub.s32 16, 16
      %103 = vsyncadd [#allocation14], %s102
      %s105 = sshll.u32 [#allocation13], 4
      %s106 = int_to_ptr.vmem [resolvable:$true] %s105
      %108 = dma.hbm_to_vmem [thread:$0]  %s8, 16, %s106, [#allocation14]
    $region37: #{_dqn_forward_pallas.1} parent=1 // pred_fallthru
      _
    // Predicated region
    $region38: #{_dqn_forward_pallas.1} parent=1 // pred_check
      _
    $region39: #{_dqn_forward_pallas.1} parent=1 // pred_check_branch
      %110 = sbr.rel (0) target = $region41
    $region40: #{_dqn_forward_pallas.1} parent=1 // pred_region
      %111 = dma.done [#allocation3], 4096
    $region41: #{_dqn_forward_pallas.1} parent=1 // pred_fallthru
      _
    // Predicated region
    $region42: #{_dqn_forward_pallas.1} parent=1 // pred_check
      _
    $region43: #{_dqn_forward_pallas.1} parent=1 // pred_check_branch
      %113 = sbr.rel (0) target = $region45
    $region44: #{_dqn_forward_pallas.1} parent=1 // pred_region
      %114 = dma.done [#allocation5], 256
    $region45: #{_dqn_forward_pallas.1} parent=1 // pred_fallthru
      _
    // Predicated region
    $region46: #{_dqn_forward_pallas.1} parent=1 // pred_check
      _
    $region47: #{_dqn_forward_pallas.1} parent=1 // pred_check_branch
      %116 = sbr.rel (0) target = $region49
    $region48: #{_dqn_forward_pallas.1} parent=1 // pred_region
      %117 = dma.done [#allocation5], 131072
    $region49: #{_dqn_forward_pallas.1} parent=1 // pred_fallthru
      _
    // Predicated region
    $region50: #{_dqn_forward_pallas.1} parent=1 // pred_check
      _
    $region51: #{_dqn_forward_pallas.1} parent=1 // pred_check_branch
      %119 = sbr.rel (0) target = $region53
    $region52: #{_dqn_forward_pallas.1} parent=1 // pred_region
      %120 = dma.done [#allocation8], 128
    $region53: #{_dqn_forward_pallas.1} parent=1 // pred_fallthru
      _
    // Predicated region
    $region54: #{_dqn_forward_pallas.1} parent=1 // pred_check
      _
    $region55: #{_dqn_forward_pallas.1} parent=1 // pred_check_branch
      %122 = sbr.rel (0) target = $region57
    $region56: #{_dqn_forward_pallas.1} parent=1 // pred_region
      %123 = dma.done [#allocation8], 32768
    $region57: #{_dqn_forward_pallas.1} parent=1 // pred_fallthru
      _
    // Predicated region
    $region58: #{_dqn_forward_pallas.1} parent=1 // pred_check
      _
    $region59: #{_dqn_forward_pallas.1} parent=1 // pred_check_branch
      %125 = sbr.rel (0) target = $region61
    $region60: #{_dqn_forward_pallas.1} parent=1 // pred_region
      %126 = dma.done [#allocation11], 64
    $region61: #{_dqn_forward_pallas.1} parent=1 // pred_fallthru
      _
    // Predicated region
    $region62: #{_dqn_forward_pallas.1} parent=1 // pred_check
      _
    $region63: #{_dqn_forward_pallas.1} parent=1 // pred_check_branch
      %128 = sbr.rel (0) target = $region65
    $region64: #{_dqn_forward_pallas.1} parent=1 // pred_region
      %129 = dma.done [#allocation11], 4096
    $region65: #{_dqn_forward_pallas.1} parent=1 // pred_fallthru
      _
    // Predicated region
    $region66: #{_dqn_forward_pallas.1} parent=1 // pred_check
      _
    $region67: #{_dqn_forward_pallas.1} parent=1 // pred_check_branch
      %131 = sbr.rel (0) target = $region69
    $region68: #{_dqn_forward_pallas.1} parent=1 // pred_region
      %132 = dma.done [#allocation14], 16
    $region69: #{_dqn_forward_pallas.1} parent=1 // pred_fallthru
      _
    %v134 = vld [vmem:[%s0] sm:$0xff]
    %v135 = vpack.c.bf16 %v134, %v134
    %v136 = vld [vmem:[#allocation2] sm:$0xff]
    %v137 = vld [vmem:[#allocation2 + $0x8] sm:$0xff]
    %v138 = vld [vmem:[#allocation2 + $0x10] sm:$0xff]
    %v139 = vld [vmem:[#allocation2 + $0x18] sm:$0xff]
    %v140 = vld [vmem:[#allocation2 + $0x20] sm:$0xff]
    %v141 = vld [vmem:[#allocation2 + $0x28] sm:$0xff]
    %v142 = vld [vmem:[#allocation2 + $0x30] sm:$0xff]
    %v143 = vld [vmem:[#allocation2 + $0x38] sm:$0xff]
    %v144 = vld [vmem:[#allocation2 + $0x40] sm:$0xff]
    %v145 = vld [vmem:[#allocation2 + $0x48] sm:$0xff]
    %v146 = vld [vmem:[#allocation2 + $0x50] sm:$0xff]
    %v147 = vld [vmem:[#allocation2 + $0x58] sm:$0xff]
    %v148 = vld [vmem:[#allocation2 + $0x60] sm:$0xff]
    %v149 = vld [vmem:[#allocation2 + $0x68] sm:$0xff]
    %v150 = vld [vmem:[#allocation2 + $0x70] sm:$0xff]
    %v151 = vld [vmem:[#allocation2 + $0x78] sm:$0xff]
    %v152 = vld [vmem:[#allocation2 + $0x80] sm:$0xff]
    %v153 = vld [vmem:[#allocation2 + $0x88] sm:$0xff]
    %v154 = vld [vmem:[#allocation2 + $0x90] sm:$0xff]
    %v155 = vld [vmem:[#allocation2 + $0x98] sm:$0xff]
    %v156 = vld [vmem:[#allocation2 + $0xa0] sm:$0xff]
    %v157 = vld [vmem:[#allocation2 + $0xa8] sm:$0xff]
    %v158 = vld [vmem:[#allocation2 + $0xb0] sm:$0xff]
    %v159 = vld [vmem:[#allocation2 + $0xb8] sm:$0xff]
    %v160 = vld [vmem:[#allocation2 + $0xc0] sm:$0xff]
    %v161 = vld [vmem:[#allocation2 + $0xc8] sm:$0xff]
    %v162 = vld [vmem:[#allocation2 + $0xd0] sm:$0xff]
    %v163 = vld [vmem:[#allocation2 + $0xd8] sm:$0xff]
    %v164 = vld [vmem:[#allocation2 + $0xe0] sm:$0xff]
    %v165 = vld [vmem:[#allocation2 + $0xe8] sm:$0xff]
    %v166 = vld [vmem:[#allocation2 + $0xf0] sm:$0xff]
    %v167 = vld [vmem:[#allocation2 + $0xf8] sm:$0xff]
    %v168 = vld [vmem:[#allocation4] sm:$0xff]
    %v169 = vld [vmem:[#allocation4 + $0x8] sm:$0xff]
    %v172 = vlaneseq
    %v173 = vshrl.u32 %v172, 7
    %v174 = vsub.s32 0, %v173
    %v175 = vrot.slane %v168, %v174
    %v176 = vlaneseq
    %v177 = vshrl.u32 %v176, 7
    %v178 = vsub.s32 1, %v177
    %v179 = vrot.slane %v168, %v178
    %v180 = vlaneseq
    %v181 = vshrl.u32 %v180, 7
    %v182 = vsub.s32 2, %v181
    %v183 = vrot.slane %v168, %v182
    %v184 = vlaneseq
    %v185 = vshrl.u32 %v184, 7
    %v186 = vsub.s32 3, %v185
    %v187 = vrot.slane %v168, %v186
    %v188 = vlaneseq
    %v189 = vshrl.u32 %v188, 7
    %v190 = vsub.s32 4, %v189
    %v191 = vrot.slane %v168, %v190
    %v192 = vlaneseq
    %v193 = vshrl.u32 %v192, 7
    %v194 = vsub.s32 5, %v193
    %v195 = vrot.slane %v168, %v194
    %v196 = vlaneseq
    %v197 = vshrl.u32 %v196, 7
    %v198 = vsub.s32 6, %v197
    %v199 = vrot.slane %v168, %v198
    %v200 = vlaneseq
    %v201 = vshrl.u32 %v200, 7
    %v202 = vsub.s32 7, %v201
    %v203 = vrot.slane %v168, %v202
    %v204 = vlaneseq
    %v205 = vshrl.u32 %v204, 7
    %v206 = vsub.s32 0, %v205
    %v207 = vrot.slane %v169, %v206
    %v208 = vlaneseq
    %v209 = vshrl.u32 %v208, 7
    %v210 = vsub.s32 1, %v209
    %v211 = vrot.slane %v169, %v210
    %v212 = vlaneseq
    %v213 = vshrl.u32 %v212, 7
    %v214 = vsub.s32 2, %v213
    %v215 = vrot.slane %v169, %v214
    %v216 = vlaneseq
    %v217 = vshrl.u32 %v216, 7
    %v218 = vsub.s32 3, %v217
    %v219 = vrot.slane %v169, %v218
    %v220 = vlaneseq
    %v221 = vshrl.u32 %v220, 7
    %v222 = vsub.s32 4, %v221
    %v223 = vrot.slane %v169, %v222
    %v224 = vlaneseq
    %v225 = vshrl.u32 %v224, 7
    %v226 = vsub.s32 5, %v225
    %v227 = vrot.slane %v169, %v226
    %v228 = vlaneseq
    %v229 = vshrl.u32 %v228, 7
    %v230 = vsub.s32 6, %v229
    %v231 = vrot.slane %v169, %v230
    %v232 = vlaneseq
    %v233 = vshrl.u32 %v232, 7
    %v234 = vsub.s32 7, %v233
    %v235 = vrot.slane %v169, %v234
    %v284 = vunpack.c.l.b16 %v136
    %v285 = vunpack.c.h.b16 %v136
    %v286 = vunpack.c.l.b16 %v137
    %v287 = vunpack.c.h.b16 %v137
    %v288 = vunpack.c.l.b16 %v138
    %v289 = vunpack.c.h.b16 %v138
    %v290 = vunpack.c.l.b16 %v139
    %v291 = vunpack.c.h.b16 %v139
    %v292 = vunpack.c.l.b16 %v140
    %v293 = vunpack.c.h.b16 %v140
    %v294 = vunpack.c.l.b16 %v141
    %v295 = vunpack.c.h.b16 %v141
    %v296 = vunpack.c.l.b16 %v142
    %v297 = vunpack.c.h.b16 %v142
    %v298 = vunpack.c.l.b16 %v143
    %v299 = vunpack.c.h.b16 %v143
    %v300 = vunpack.c.l.b16 %v144
    %v301 = vunpack.c.h.b16 %v144
    %v302 = vunpack.c.l.b16 %v145
    %v303 = vunpack.c.h.b16 %v145
    %v304 = vunpack.c.l.b16 %v146
    %v305 = vunpack.c.h.b16 %v146
    %v306 = vunpack.c.l.b16 %v147
    %v307 = vunpack.c.h.b16 %v147
    %v308 = vunpack.c.l.b16 %v148
    %v309 = vunpack.c.h.b16 %v148
    %v310 = vunpack.c.l.b16 %v149
    %v311 = vunpack.c.h.b16 %v149
    %v312 = vunpack.c.l.b16 %v150
    %v313 = vunpack.c.h.b16 %v150
    %v314 = vunpack.c.l.b16 %v151
    %v315 = vunpack.c.h.b16 %v151
    %v316 = vunpack.c.l.b16 %v152
    %v317 = vunpack.c.h.b16 %v152
    %v318 = vunpack.c.l.b16 %v153
    %v319 = vunpack.c.h.b16 %v153
    %v320 = vunpack.c.l.b16 %v154
    %v321 = vunpack.c.h.b16 %v154
    %v322 = vunpack.c.l.b16 %v155
    %v323 = vunpack.c.h.b16 %v155
    %v324 = vunpack.c.l.b16 %v156
    %v325 = vunpack.c.h.b16 %v156
    %v326 = vunpack.c.l.b16 %v157
    %v327 = vunpack.c.h.b16 %v157
    %v328 = vunpack.c.l.b16 %v158
    %v329 = vunpack.c.h.b16 %v158
    %v330 = vunpack.c.l.b16 %v159
    %v331 = vunpack.c.h.b16 %v159
    %v332 = vunpack.c.l.b16 %v160
    %v333 = vunpack.c.h.b16 %v160
    %v334 = vunpack.c.l.b16 %v161
    %v335 = vunpack.c.h.b16 %v161
    %v336 = vunpack.c.l.b16 %v162
    %v337 = vunpack.c.h.b16 %v162
    %v338 = vunpack.c.l.b16 %v163
    %v339 = vunpack.c.h.b16 %v163
    %v340 = vunpack.c.l.b16 %v164
    %v341 = vunpack.c.h.b16 %v164
    %v342 = vunpack.c.l.b16 %v165
    %v343 = vunpack.c.h.b16 %v165
    %v344 = vunpack.c.l.b16 %v166
    %v345 = vunpack.c.h.b16 %v166
    %v346 = vunpack.c.l.b16 %v167
    %v347 = vunpack.c.h.b16 %v167
    %v348 = vpack.c.b16 %v300, %v284
    %v349 = vpack.c.b16 %v301, %v285
    %v350 = vpack.c.b16 %v302, %v286
    %v351 = vpack.c.b16 %v303, %v287
    %v352 = vpack.c.b16 %v304, %v288
    %v353 = vpack.c.b16 %v305, %v289
    %v354 = vpack.c.b16 %v306, %v290
    %v355 = vpack.c.b16 %v307, %v291
    %v356 = vpack.c.b16 %v308, %v292
    %v357 = vpack.c.b16 %v309, %v293
    %v358 = vpack.c.b16 %v310, %v294
    %v359 = vpack.c.b16 %v311, %v295
    %v360 = vpack.c.b16 %v312, %v296
    %v361 = vpack.c.b16 %v313, %v297
    %v362 = vpack.c.b16 %v314, %v298
    %v363 = vpack.c.b16 %v315, %v299
    %v364 = vpack.c.b16 %v332, %v316
    %v365 = vpack.c.b16 %v333, %v317
    %v366 = vpack.c.b16 %v334, %v318
    %v367 = vpack.c.b16 %v335, %v319
    %v368 = vpack.c.b16 %v336, %v320
    %v369 = vpack.c.b16 %v337, %v321
    %v370 = vpack.c.b16 %v338, %v322
    %v371 = vpack.c.b16 %v339, %v323
    %v372 = vpack.c.b16 %v340, %v324
    %v373 = vpack.c.b16 %v341, %v325
    %v374 = vpack.c.b16 %v342, %v326
    %v375 = vpack.c.b16 %v343, %v327
    %v376 = vpack.c.b16 %v344, %v328
    %v377 = vpack.c.b16 %v345, %v329
    %v378 = vpack.c.b16 %v346, %v330
    %v379 = vpack.c.b16 %v347, %v331
    %vm412 = vcmask 261120
    %v414 = vsel %vm412, %v135, 0
    %416 = vmatprep.subr.bf16.mxu0 %v349
    %417 = vmatpush1.bf16.msra.mxu0 %v348
    %418 = vmatprep.subr.bf16.mxu0 %v365
    %419 = vmatpush1.bf16.msra.mxu0 %v364
    %420 = vmatprep.subr.bf16.mxu0 0
    %421 = vmatpush1.bf16.msra.mxu0 0
    %422 = vmatprep.subr.bf16.mxu0 0
    %423 = vmatpush1.bf16.msra.mxu0 0
    %424 = vmatprep.subr.bf16.mxu0 0
    %425 = vmatpush1.bf16.msra.mxu0 0
    %426 = vmatprep.subr.bf16.mxu0 0
    %427 = vmatpush1.bf16.msra.mxu0 0
    %428 = vmatprep.subr.bf16.mxu0 0
    %429 = vmatpush1.bf16.msra.mxu0 0
    %430 = vmatprep.subr.bf16.mxu0 0
    %431 = vmatpush1.bf16.msra.mxu0 0
    %432 = vmatprep.subr.bf16.mxu0 0
    %433 = vmatpush1.bf16.msra.mxu0 0
    %434 = vmatprep.subr.bf16.mxu0 0
    %435 = vmatpush1.bf16.msra.mxu0 0
    %436 = vmatprep.subr.bf16.mxu0 0
    %437 = vmatpush1.bf16.msra.mxu0 0
    %438 = vmatprep.subr.bf16.mxu0 0
    %439 = vmatpush1.bf16.msra.mxu0 0
    %440 = vmatprep.subr.bf16.mxu0 0
    %441 = vmatpush1.bf16.msra.mxu0 0
    %442 = vmatprep.subr.bf16.mxu0 0
    %443 = vmatpush1.bf16.msra.mxu0 0
    %444 = vmatprep.subr.bf16.mxu0 0
    %445 = vmatpush1.bf16.msra.mxu0 0
    %446 = vmatprep.subr.bf16.mxu0 0
    %447 = vmatpush1.bf16.msra.mxu0 0
    %448 = vmatprep.mubr.bf16.mxu0 0
    %449 = vmatmul.mubr.bf16.gmra.mrb[0].mxu0 %v414
    %v450 = vpop.f32.mrb[0].mxu0
    %v451 = vadd.f32 %v175, %v450
    %v452 = vpop.f32.mrb[0].mxu0
    %v453 = vadd.f32 %v179, %v452
    %v454 = vpop.f32.mrb[0].mxu0
    %v455 = vpop.f32.mrb[0].mxu0
    %456 = vdwg.mxu0
    %457 = vmatprep.subr.bf16.mxu0 %v351
    %458 = vmatpush1.bf16.msra.mxu0 %v350
    %459 = vmatprep.subr.bf16.mxu0 %v367
    %460 = vmatpush1.bf16.msra.mxu0 %v366
    %461 = vmatprep.subr.bf16.mxu0 0
    %462 = vmatpush1.bf16.msra.mxu0 0
    %463 = vmatprep.subr.bf16.mxu0 0
    %464 = vmatpush1.bf16.msra.mxu0 0
    %465 = vmatprep.subr.bf16.mxu0 0
    %466 = vmatpush1.bf16.msra.mxu0 0
    %467 = vmatprep.subr.bf16.mxu0 0
    %468 = vmatpush1.bf16.msra.mxu0 0
    %469 = vmatprep.subr.bf16.mxu0 0
    %470 = vmatpush1.bf16.msra.mxu0 0
    %471 = vmatprep.subr.bf16.mxu0 0
    %472 = vmatpush1.bf16.msra.mxu0 0
    %473 = vmatprep.subr.bf16.mxu0 0
    %474 = vmatpush1.bf16.msra.mxu0 0
    %475 = vmatprep.subr.bf16.mxu0 0
    %476 = vmatpush1.bf16.msra.mxu0 0
    %477 = vmatprep.subr.bf16.mxu0 0
    %478 = vmatpush1.bf16.msra.mxu0 0
    %479 = vmatprep.subr.bf16.mxu0 0
    %480 = vmatpush1.bf16.msra.mxu0 0
    %481 = vmatprep.subr.bf16.mxu0 0
    %482 = vmatpush1.bf16.msra.mxu0 0
    %483 = vmatprep.subr.bf16.mxu0 0
    %484 = vmatpush1.bf16.msra.mxu0 0
    %485 = vmatprep.subr.bf16.mxu0 0
    %486 = vmatpush1.bf16.msra.mxu0 0
    %487 = vmatprep.subr.bf16.mxu0 0
    %488 = vmatpush1.bf16.msra.mxu0 0
    %489 = vmatprep.mubr.bf16.mxu0 0
    %490 = vmatmul.mubr.bf16.gmra.mrb[0].mxu0 %v414
    %v491 = vpop.f32.mrb[0].mxu0
    %v492 = vadd.f32 %v183, %v491
    %v493 = vpop.f32.mrb[0].mxu0
    %v494 = vadd.f32 %v187, %v493
    %v495 = vpop.f32.mrb[0].mxu0
    %v496 = vpop.f32.mrb[0].mxu0
    %497 = vdwg.mxu0
    %498 = vmatprep.subr.bf16.mxu0 %v353
    %499 = vmatpush1.bf16.msra.mxu0 %v352
    %500 = vmatprep.subr.bf16.mxu0 %v369
    %501 = vmatpush1.bf16.msra.mxu0 %v368
    %502 = vmatprep.subr.bf16.mxu0 0
    %503 = vmatpush1.bf16.msra.mxu0 0
    %504 = vmatprep.subr.bf16.mxu0 0
    %505 = vmatpush1.bf16.msra.mxu0 0
    %506 = vmatprep.subr.bf16.mxu0 0
    %507 = vmatpush1.bf16.msra.mxu0 0
    %508 = vmatprep.subr.bf16.mxu0 0
    %509 = vmatpush1.bf16.msra.mxu0 0
    %510 = vmatprep.subr.bf16.mxu0 0
    %511 = vmatpush1.bf16.msra.mxu0 0
    %512 = vmatprep.subr.bf16.mxu0 0
    %513 = vmatpush1.bf16.msra.mxu0 0
    %514 = vmatprep.subr.bf16.mxu0 0
    %515 = vmatpush1.bf16.msra.mxu0 0
    %516 = vmatprep.subr.bf16.mxu0 0
    %517 = vmatpush1.bf16.msra.mxu0 0
    %518 = vmatprep.subr.bf16.mxu0 0
    %519 = vmatpush1.bf16.msra.mxu0 0
    %520 = vmatprep.subr.bf16.mxu0 0
    %521 = vmatpush1.bf16.msra.mxu0 0
    %522 = vmatprep.subr.bf16.mxu0 0
    %523 = vmatpush1.bf16.msra.mxu0 0
    %524 = vmatprep.subr.bf16.mxu0 0
    %525 = vmatpush1.bf16.msra.mxu0 0
    %526 = vmatprep.subr.bf16.mxu0 0
    %527 = vmatpush1.bf16.msra.mxu0 0
    %528 = vmatprep.subr.bf16.mxu0 0
    %529 = vmatpush1.bf16.msra.mxu0 0
    %530 = vmatprep.mubr.bf16.mxu0 0
    %531 = vmatmul.mubr.bf16.gmra.mrb[0].mxu0 %v414
    %v532 = vpop.f32.mrb[0].mxu0
    %v533 = vadd.f32 %v191, %v532
    %v534 = vpop.f32.mrb[0].mxu0
    %v535 = vadd.f32 %v195, %v534
    %v536 = vpop.f32.mrb[0].mxu0
    %v537 = vpop.f32.mrb[0].mxu0
    %538 = vdwg.mxu0
    %539 = vmatprep.subr.bf16.mxu0 %v355
    %540 = vmatpush1.bf16.msra.mxu0 %v354
    %541 = vmatprep.subr.bf16.mxu0 %v371
    %542 = vmatpush1.bf16.msra.mxu0 %v370
    %543 = vmatprep.subr.bf16.mxu0 0
    %544 = vmatpush1.bf16.msra.mxu0 0
    %545 = vmatprep.subr.bf16.mxu0 0
    %546 = vmatpush1.bf16.msra.mxu0 0
    %547 = vmatprep.subr.bf16.mxu0 0
    %548 = vmatpush1.bf16.msra.mxu0 0
    %549 = vmatprep.subr.bf16.mxu0 0
    %550 = vmatpush1.bf16.msra.mxu0 0
    %551 = vmatprep.subr.bf16.mxu0 0
    %552 = vmatpush1.bf16.msra.mxu0 0
    %553 = vmatprep.subr.bf16.mxu0 0
    %554 = vmatpush1.bf16.msra.mxu0 0
    %555 = vmatprep.subr.bf16.mxu0 0
    %556 = vmatpush1.bf16.msra.mxu0 0
    %557 = vmatprep.subr.bf16.mxu0 0
    %558 = vmatpush1.bf16.msra.mxu0 0
    %559 = vmatprep.subr.bf16.mxu0 0
    %560 = vmatpush1.bf16.msra.mxu0 0
    %561 = vmatprep.subr.bf16.mxu0 0
    %562 = vmatpush1.bf16.msra.mxu0 0
    %563 = vmatprep.subr.bf16.mxu0 0
    %564 = vmatpush1.bf16.msra.mxu0 0
    %565 = vmatprep.subr.bf16.mxu0 0
    %566 = vmatpush1.bf16.msra.mxu0 0
    %567 = vmatprep.subr.bf16.mxu0 0
    %568 = vmatpush1.bf16.msra.mxu0 0
    %569 = vmatprep.subr.bf16.mxu0 0
    %570 = vmatpush1.bf16.msra.mxu0 0
    %571 = vmatprep.mubr.bf16.mxu0 0
    %572 = vmatmul.mubr.bf16.gmra.mrb[0].mxu0 %v414
    %v573 = vpop.f32.mrb[0].mxu0
    %v574 = vadd.f32 %v199, %v573
    %v575 = vpop.f32.mrb[0].mxu0
    %v576 = vadd.f32 %v203, %v575
    %v577 = vpop.f32.mrb[0].mxu0
    %v578 = vpop.f32.mrb[0].mxu0
    %579 = vdwg.mxu0
    %580 = vmatprep.subr.bf16.mxu0 %v357
    %581 = vmatpush1.bf16.msra.mxu0 %v356
    %582 = vmatprep.subr.bf16.mxu0 %v373
    %583 = vmatpush1.bf16.msra.mxu0 %v372
    %584 = vmatprep.subr.bf16.mxu0 0
    %585 = vmatpush1.bf16.msra.mxu0 0
    %586 = vmatprep.subr.bf16.mxu0 0
    %587 = vmatpush1.bf16.msra.mxu0 0
    %588 = vmatprep.subr.bf16.mxu0 0
    %589 = vmatpush1.bf16.msra.mxu0 0
    %590 = vmatprep.subr.bf16.mxu0 0
    %591 = vmatpush1.bf16.msra.mxu0 0
    %592 = vmatprep.subr.bf16.mxu0 0
    %593 = vmatpush1.bf16.msra.mxu0 0
    %594 = vmatprep.subr.bf16.mxu0 0
    %595 = vmatpush1.bf16.msra.mxu0 0
    %596 = vmatprep.subr.bf16.mxu0 0
    %597 = vmatpush1.bf16.msra.mxu0 0
    %598 = vmatprep.subr.bf16.mxu0 0
    %599 = vmatpush1.bf16.msra.mxu0 0
    %600 = vmatprep.subr.bf16.mxu0 0
    %601 = vmatpush1.bf16.msra.mxu0 0
    %602 = vmatprep.subr.bf16.mxu0 0
    %603 = vmatpush1.bf16.msra.mxu0 0
    %604 = vmatprep.subr.bf16.mxu0 0
    %605 = vmatpush1.bf16.msra.mxu0 0
    %606 = vmatprep.subr.bf16.mxu0 0
    %607 = vmatpush1.bf16.msra.mxu0 0
    %608 = vmatprep.subr.bf16.mxu0 0
    %609 = vmatpush1.bf16.msra.mxu0 0
    %610 = vmatprep.subr.bf16.mxu0 0
    %611 = vmatpush1.bf16.msra.mxu0 0
    %612 = vmatprep.mubr.bf16.mxu0 0
    %613 = vmatmul.mubr.bf16.gmra.mrb[0].mxu0 %v414
    %v614 = vpop.f32.mrb[0].mxu0
    %v615 = vadd.f32 %v207, %v614
    %v616 = vpop.f32.mrb[0].mxu0
    %v617 = vadd.f32 %v211, %v616
    %v618 = vpop.f32.mrb[0].mxu0
    %v619 = vpop.f32.mrb[0].mxu0
    %620 = vdwg.mxu0
    %621 = vmatprep.subr.bf16.mxu0 %v359
    %622 = vmatpush1.bf16.msra.mxu0 %v358
    %623 = vmatprep.subr.bf16.mxu0 %v375
    %624 = vmatpush1.bf16.msra.mxu0 %v374
    %625 = vmatprep.subr.bf16.mxu0 0
    %626 = vmatpush1.bf16.msra.mxu0 0
    %627 = vmatprep.subr.bf16.mxu0 0
    %628 = vmatpush1.bf16.msra.mxu0 0
    %629 = vmatprep.subr.bf16.mxu0 0
    %630 = vmatpush1.bf16.msra.mxu0 0
    %631 = vmatprep.subr.bf16.mxu0 0
    %632 = vmatpush1.bf16.msra.mxu0 0
    %633 = vmatprep.subr.bf16.mxu0 0
    %634 = vmatpush1.bf16.msra.mxu0 0
    %635 = vmatprep.subr.bf16.mxu0 0
    %636 = vmatpush1.bf16.msra.mxu0 0
    %637 = vmatprep.subr.bf16.mxu0 0
    %638 = vmatpush1.bf16.msra.mxu0 0
    %639 = vmatprep.subr.bf16.mxu0 0
    %640 = vmatpush1.bf16.msra.mxu0 0
    %641 = vmatprep.subr.bf16.mxu0 0
    %642 = vmatpush1.bf16.msra.mxu0 0
    %643 = vmatprep.subr.bf16.mxu0 0
    %644 = vmatpush1.bf16.msra.mxu0 0
    %645 = vmatprep.subr.bf16.mxu0 0
    %646 = vmatpush1.bf16.msra.mxu0 0
    %647 = vmatprep.subr.bf16.mxu0 0
    %648 = vmatpush1.bf16.msra.mxu0 0
    %649 = vmatprep.subr.bf16.mxu0 0
    %650 = vmatpush1.bf16.msra.mxu0 0
    %651 = vmatprep.subr.bf16.mxu0 0
    %652 = vmatpush1.bf16.msra.mxu0 0
    %653 = vmatprep.mubr.bf16.mxu0 0
    %654 = vmatmul.mubr.bf16.gmra.mrb[0].mxu0 %v414
    %v655 = vpop.f32.mrb[0].mxu0
    %v656 = vadd.f32 %v215, %v655
    %v657 = vpop.f32.mrb[0].mxu0
    %v658 = vadd.f32 %v219, %v657
    %v659 = vpop.f32.mrb[0].mxu0
    %v660 = vpop.f32.mrb[0].mxu0
    %661 = vdwg.mxu0
    %662 = vmatprep.subr.bf16.mxu0 %v361
    %663 = vmatpush1.bf16.msra.mxu0 %v360
    %664 = vmatprep.subr.bf16.mxu0 %v377
    %665 = vmatpush1.bf16.msra.mxu0 %v376
    %666 = vmatprep.subr.bf16.mxu0 0
    %667 = vmatpush1.bf16.msra.mxu0 0
    %668 = vmatprep.subr.bf16.mxu0 0
    %669 = vmatpush1.bf16.msra.mxu0 0
    %670 = vmatprep.subr.bf16.mxu0 0
    %671 = vmatpush1.bf16.msra.mxu0 0
    %672 = vmatprep.subr.bf16.mxu0 0
    %673 = vmatpush1.bf16.msra.mxu0 0
    %674 = vmatprep.subr.bf16.mxu0 0
    %675 = vmatpush1.bf16.msra.mxu0 0
    %676 = vmatprep.subr.bf16.mxu0 0
    %677 = vmatpush1.bf16.msra.mxu0 0
    %678 = vmatprep.subr.bf16.mxu0 0
    %679 = vmatpush1.bf16.msra.mxu0 0
    %680 = vmatprep.subr.bf16.mxu0 0
    %681 = vmatpush1.bf16.msra.mxu0 0
    %682 = vmatprep.subr.bf16.mxu0 0
    %683 = vmatpush1.bf16.msra.mxu0 0
    %684 = vmatprep.subr.bf16.mxu0 0
    %685 = vmatpush1.bf16.msra.mxu0 0
    %686 = vmatprep.subr.bf16.mxu0 0
    %687 = vmatpush1.bf16.msra.mxu0 0
    %688 = vmatprep.subr.bf16.mxu0 0
    %689 = vmatpush1.bf16.msra.mxu0 0
    %690 = vmatprep.subr.bf16.mxu0 0
    %691 = vmatpush1.bf16.msra.mxu0 0
    %692 = vmatprep.subr.bf16.mxu0 0
    %693 = vmatpush1.bf16.msra.mxu0 0
    %694 = vmatprep.mubr.bf16.mxu0 0
    %695 = vmatmul.mubr.bf16.gmra.mrb[0].mxu0 %v414
    %v696 = vpop.f32.mrb[0].mxu0
    %v697 = vadd.f32 %v223, %v696
    %v698 = vpop.f32.mrb[0].mxu0
    %v699 = vadd.f32 %v227, %v698
    %v700 = vpop.f32.mrb[0].mxu0
    %v701 = vpop.f32.mrb[0].mxu0
    %702 = vdwg.mxu0
    %703 = vmatprep.subr.bf16.mxu0 %v363
    %704 = vmatpush1.bf16.msra.mxu0 %v362
    %705 = vmatprep.subr.bf16.mxu0 %v379
    %706 = vmatpush1.bf16.msra.mxu0 %v378
    %707 = vmatprep.subr.bf16.mxu0 0
    %708 = vmatpush1.bf16.msra.mxu0 0
    %709 = vmatprep.subr.bf16.mxu0 0
    %710 = vmatpush1.bf16.msra.mxu0 0
    %711 = vmatprep.subr.bf16.mxu0 0
    %712 = vmatpush1.bf16.msra.mxu0 0
    %713 = vmatprep.subr.bf16.mxu0 0
    %714 = vmatpush1.bf16.msra.mxu0 0
    %715 = vmatprep.subr.bf16.mxu0 0
    %716 = vmatpush1.bf16.msra.mxu0 0
    %717 = vmatprep.subr.bf16.mxu0 0
    %718 = vmatpush1.bf16.msra.mxu0 0
    %719 = vmatprep.subr.bf16.mxu0 0
    %720 = vmatpush1.bf16.msra.mxu0 0
    %721 = vmatprep.subr.bf16.mxu0 0
    %722 = vmatpush1.bf16.msra.mxu0 0
    %723 = vmatprep.subr.bf16.mxu0 0
    %724 = vmatpush1.bf16.msra.mxu0 0
    %725 = vmatprep.subr.bf16.mxu0 0
    %726 = vmatpush1.bf16.msra.mxu0 0
    %727 = vmatprep.subr.bf16.mxu0 0
    %728 = vmatpush1.bf16.msra.mxu0 0
    %729 = vmatprep.subr.bf16.mxu0 0
    %730 = vmatpush1.bf16.msra.mxu0 0
    %731 = vmatprep.subr.bf16.mxu0 0
    %732 = vmatpush1.bf16.msra.mxu0 0
    %733 = vmatprep.subr.bf16.mxu0 0
    %734 = vmatpush1.bf16.msra.mxu0 0
    %735 = vmatprep.mubr.bf16.mxu0 0
    %736 = vmatmul.mubr.bf16.gmra.mrb[0].mxu0 %v414
    %v737 = vpop.f32.mrb[0].mxu0
    %v738 = vadd.f32 %v231, %v737
    %v739 = vpop.f32.mrb[0].mxu0
    %v740 = vadd.f32 %v235, %v739
    %v741 = vpop.f32.mrb[0].mxu0
    %v742 = vpop.f32.mrb[0].mxu0
    %743 = vdwg.mxu0
    %v744 = vmax.f32 %v451, 0.0
    %v745 = vmax.f32 %v453, 0.0
    %v746 = vmax.f32 %v492, 0.0
    %v747 = vmax.f32 %v494, 0.0
    %v748 = vmax.f32 %v533, 0.0
    %v749 = vmax.f32 %v535, 0.0
    %v750 = vmax.f32 %v574, 0.0
    %v751 = vmax.f32 %v576, 0.0
    %v752 = vmax.f32 %v615, 0.0
    %v753 = vmax.f32 %v617, 0.0
    %v754 = vmax.f32 %v656, 0.0
    %v755 = vmax.f32 %v658, 0.0
    %v756 = vmax.f32 %v697, 0.0
    %v757 = vmax.f32 %v699, 0.0
    %v758 = vmax.f32 %v738, 0.0
    %v759 = vmax.f32 %v740, 0.0
    %v760 = vpack.c.bf16 %v744, %v744
    %v761 = vpack.c.bf16 %v745, %v745
    %v762 = vpack.c.bf16 %v746, %v746
    %v763 = vpack.c.bf16 %v747, %v747
    %v764 = vpack.c.bf16 %v748, %v748
    %v765 = vpack.c.bf16 %v749, %v749
    %v766 = vpack.c.bf16 %v750, %v750
    %v767 = vpack.c.bf16 %v751, %v751
    %v768 = vpack.c.bf16 %v752, %v752
    %v769 = vpack.c.bf16 %v753, %v753
    %v770 = vpack.c.bf16 %v754, %v754
    %v771 = vpack.c.bf16 %v755, %v755
    %v772 = vpack.c.bf16 %v756, %v756
    %v773 = vpack.c.bf16 %v757, %v757
    %v774 = vpack.c.bf16 %v758, %v758
    %v775 = vpack.c.bf16 %v759, %v759
    %v776 = vld [vmem:[#allocation6] sm:$0xff]
    %v777 = vld [vmem:[#allocation6 + $0x8] sm:$0xff]
    %v778 = vld [vmem:[#allocation6 + $0x10] sm:$0xff]
    %v779 = vld [vmem:[#allocation6 + $0x18] sm:$0xff]
    %v780 = vld [vmem:[#allocation6 + $0x20] sm:$0xff]
    %v781 = vld [vmem:[#allocation6 + $0x28] sm:$0xff]
    %v782 = vld [vmem:[#allocation6 + $0x30] sm:$0xff]
    %v783 = vld [vmem:[#allocation6 + $0x38] sm:$0xff]
    %v784 = vld [vmem:[#allocation6 + $0x40] sm:$0xff]
    %v785 = vld [vmem:[#allocation6 + $0x48] sm:$0xff]
    %v786 = vld [vmem:[#allocation6 + $0x50] sm:$0xff]
    %v787 = vld [vmem:[#allocation6 + $0x58] sm:$0xff]
    %v788 = vld [vmem:[#allocation6 + $0x60] sm:$0xff]
    %v789 = vld [vmem:[#allocation6 + $0x68] sm:$0xff]
    %v790 = vld [vmem:[#allocation6 + $0x70] sm:$0xff]
    %v791 = vld [vmem:[#allocation6 + $0x78] sm:$0xff]
    %v792 = vld [vmem:[#allocation6 + $0x80] sm:$0xff]
    %v793 = vld [vmem:[#allocation6 + $0x88] sm:$0xff]
    %v794 = vld [vmem:[#allocation6 + $0x90] sm:$0xff]
    %v795 = vld [vmem:[#allocation6 + $0x98] sm:$0xff]
    %v796 = vld [vmem:[#allocation6 + $0xa0] sm:$0xff]
    %v797 = vld [vmem:[#allocation6 + $0xa8] sm:$0xff]
    %v798 = vld [vmem:[#allocation6 + $0xb0] sm:$0xff]
    %v799 = vld [vmem:[#allocation6 + $0xb8] sm:$0xff]
    %v800 = vld [vmem:[#allocation6 + $0xc0] sm:$0xff]
    %v801 = vld [vmem:[#allocation6 + $0xc8] sm:$0xff]
    %v802 = vld [vmem:[#allocation6 + $0xd0] sm:$0xff]
    %v803 = vld [vmem:[#allocation6 + $0xd8] sm:$0xff]
    %v804 = vld [vmem:[#allocation6 + $0xe0] sm:$0xff]
    %v805 = vld [vmem:[#allocation6 + $0xe8] sm:$0xff]
    %v806 = vld [vmem:[#allocation6 + $0xf0] sm:$0xff]
    %v807 = vld [vmem:[#allocation6 + $0xf8] sm:$0xff]
    %v808 = vld [vmem:[#allocation6 + $0x100] sm:$0xff]
    %v809 = vld [vmem:[#allocation6 + $0x108] sm:$0xff]
    %v810 = vld [vmem:[#allocation6 + $0x110] sm:$0xff]
    %v811 = vld [vmem:[#allocation6 + $0x118] sm:$0xff]
    %v812 = vld [vmem:[#allocation6 + $0x120] sm:$0xff]
    %v813 = vld [vmem:[#allocation6 + $0x128] sm:$0xff]
    %v814 = vld [vmem:[#allocation6 + $0x130] sm:$0xff]
    %v815 = vld [vmem:[#allocation6 + $0x138] sm:$0xff]
    %v816 = vld [vmem:[#allocation6 + $0x140] sm:$0xff]
    %v817 = vld [vmem:[#allocation6 + $0x148] sm:$0xff]
    %v818 = vld [vmem:[#allocation6 + $0x150] sm:$0xff]
    %v819 = vld [vmem:[#allocation6 + $0x158] sm:$0xff]
    %v820 = vld [vmem:[#allocation6 + $0x160] sm:$0xff]
    %v821 = vld [vmem:[#allocation6 + $0x168] sm:$0xff]
    %v822 = vld [vmem:[#allocation6 + $0x170] sm:$0xff]
    %v823 = vld [vmem:[#allocation6 + $0x178] sm:$0xff]
    %v824 = vld [vmem:[#allocation6 + $0x180] sm:$0xff]
    %v825 = vld [vmem:[#allocation6 + $0x188] sm:$0xff]
    %v826 = vld [vmem:[#allocation6 + $0x190] sm:$0xff]
    %v827 = vld [vmem:[#allocation6 + $0x198] sm:$0xff]
    %v828 = vld [vmem:[#allocation6 + $0x1a0] sm:$0xff]
    %v829 = vld [vmem:[#allocation6 + $0x1a8] sm:$0xff]
    %v830 = vld [vmem:[#allocation6 + $0x1b0] sm:$0xff]
    %v831 = vld [vmem:[#allocation6 + $0x1b8] sm:$0xff]
    %v832 = vld [vmem:[#allocation6 + $0x1c0] sm:$0xff]
    %v833 = vld [vmem:[#allocation6 + $0x1c8] sm:$0xff]
    %v834 = vld [vmem:[#allocation6 + $0x1d0] sm:$0xff]
    %v835 = vld [vmem:[#allocation6 + $0x1d8] sm:$0xff]
    %v836 = vld [vmem:[#allocation6 + $0x1e0] sm:$0xff]
    %v837 = vld [vmem:[#allocation6 + $0x1e8] sm:$0xff]
    %v838 = vld [vmem:[#allocation6 + $0x1f0] sm:$0xff]
    %v839 = vld [vmem:[#allocation6 + $0x1f8] sm:$0xff]
    %v840 = vld [vmem:[#allocation6 + $0x200] sm:$0xff]
    %v841 = vld [vmem:[#allocation6 + $0x208] sm:$0xff]
    %v842 = vld [vmem:[#allocation6 + $0x210] sm:$0xff]
    %v843 = vld [vmem:[#allocation6 + $0x218] sm:$0xff]
    %v844 = vld [vmem:[#allocation6 + $0x220] sm:$0xff]
    %v845 = vld [vmem:[#allocation6 + $0x228] sm:$0xff]
    %v846 = vld [vmem:[#allocation6 + $0x230] sm:$0xff]
    %v847 = vld [vmem:[#allocation6 + $0x238] sm:$0xff]
    %v848 = vld [vmem:[#allocation6 + $0x240] sm:$0xff]
    %v849 = vld [vmem:[#allocation6 + $0x248] sm:$0xff]
    %v850 = vld [vmem:[#allocation6 + $0x250] sm:$0xff]
    %v851 = vld [vmem:[#allocation6 + $0x258] sm:$0xff]
    %v852 = vld [vmem:[#allocation6 + $0x260] sm:$0xff]
    %v853 = vld [vmem:[#allocation6 + $0x268] sm:$0xff]
    %v854 = vld [vmem:[#allocation6 + $0x270] sm:$0xff]
    %v855 = vld [vmem:[#allocation6 + $0x278] sm:$0xff]
    %v856 = vld [vmem:[#allocation6 + $0x280] sm:$0xff]
    %v857 = vld [vmem:[#allocation6 + $0x288] sm:$0xff]
    %v858 = vld [vmem:[#allocation6 + $0x290] sm:$0xff]
    %v859 = vld [vmem:[#allocation6 + $0x298] sm:$0xff]
    %v860 = vld [vmem:[#allocation6 + $0x2a0] sm:$0xff]
    %v861 = vld [vmem:[#allocation6 + $0x2a8] sm:$0xff]
    %v862 = vld [vmem:[#allocation6 + $0x2b0] sm:$0xff]
    %v863 = vld [vmem:[#allocation6 + $0x2b8] sm:$0xff]
    %v864 = vld [vmem:[#allocation6 + $0x2c0] sm:$0xff]
    %v865 = vld [vmem:[#allocation6 + $0x2c8] sm:$0xff]
    %v866 = vld [vmem:[#allocation6 + $0x2d0] sm:$0xff]
    %v867 = vld [vmem:[#allocation6 + $0x2d8] sm:$0xff]
    %v868 = vld [vmem:[#allocation6 + $0x2e0] sm:$0xff]
    %v869 = vld [vmem:[#allocation6 + $0x2e8] sm:$0xff]
    %v870 = vld [vmem:[#allocation6 + $0x2f0] sm:$0xff]
    %v871 = vld [vmem:[#allocation6 + $0x2f8] sm:$0xff]
    %v872 = vld [vmem:[#allocation6 + $0x300] sm:$0xff]
    %v873 = vld [vmem:[#allocation6 + $0x308] sm:$0xff]
    %v874 = vld [vmem:[#allocation6 + $0x310] sm:$0xff]
    %v875 = vld [vmem:[#allocation6 + $0x318] sm:$0xff]
    %v876 = vld [vmem:[#allocation6 + $0x320] sm:$0xff]
    %v877 = vld [vmem:[#allocation6 + $0x328] sm:$0xff]
    %v878 = vld [vmem:[#allocation6 + $0x330] sm:$0xff]
    %v879 = vld [vmem:[#allocation6 + $0x338] sm:$0xff]
    %v880 = vld [vmem:[#allocation6 + $0x340] sm:$0xff]
    %v881 = vld [vmem:[#allocation6 + $0x348] sm:$0xff]
    %v882 = vld [vmem:[#allocation6 + $0x350] sm:$0xff]
    %v883 = vld [vmem:[#allocation6 + $0x358] sm:$0xff]
    %v884 = vld [vmem:[#allocation6 + $0x360] sm:$0xff]
    %v885 = vld [vmem:[#allocation6 + $0x368] sm:$0xff]
    %v886 = vld [vmem:[#allocation6 + $0x370] sm:$0xff]
    %v887 = vld [vmem:[#allocation6 + $0x378] sm:$0xff]
    %v888 = vld [vmem:[#allocation6 + $0x380] sm:$0xff]
    %v889 = vld [vmem:[#allocation6 + $0x388] sm:$0xff]
    %v890 = vld [vmem:[#allocation6 + $0x390] sm:$0xff]
    %v891 = vld [vmem:[#allocation6 + $0x398] sm:$0xff]
    %v892 = vld [vmem:[#allocation6 + $0x3a0] sm:$0xff]
    %v893 = vld [vmem:[#allocation6 + $0x3a8] sm:$0xff]
    %v894 = vld [vmem:[#allocation6 + $0x3b0] sm:$0xff]
    %v895 = vld [vmem:[#allocation6 + $0x3b8] sm:$0xff]
    %v896 = vld [vmem:[#allocation6 + $0x3c0] sm:$0xff]
    %v897 = vld [vmem:[#allocation6 + $0x3c8] sm:$0xff]
    %v898 = vld [vmem:[#allocation6 + $0x3d0] sm:$0xff]
    %v899 = vld [vmem:[#allocation6 + $0x3d8] sm:$0xff]
    %v900 = vld [vmem:[#allocation6 + $0x3e0] sm:$0xff]
    %v901 = vld [vmem:[#allocation6 + $0x3e8] sm:$0xff]
    %v902 = vld [vmem:[#allocation6 + $0x3f0] sm:$0xff]
    %v903 = vld [vmem:[#allocation6 + $0x3f8] sm:$0xff]
    %v904 = vld [vmem:[#allocation6 + $0x400] sm:$0xff]
    %v905 = vld [vmem:[#allocation6 + $0x408] sm:$0xff]
    %v906 = vld [vmem:[#allocation6 + $0x410] sm:$0xff]
    %v907 = vld [vmem:[#allocation6 + $0x418] sm:$0xff]
    %v908 = vld [vmem:[#allocation6 + $0x420] sm:$0xff]
    %v909 = vld [vmem:[#allocation6 + $0x428] sm:$0xff]
    %v910 = vld [vmem:[#allocation6 + $0x430] sm:$0xff]
    %v911 = vld [vmem:[#allocation6 + $0x438] sm:$0xff]
    %v912 = vld [vmem:[#allocation6 + $0x440] sm:$0xff]
    %v913 = vld [vmem:[#allocation6 + $0x448] sm:$0xff]
    %v914 = vld [vmem:[#allocation6 + $0x450] sm:$0xff]
    %v915 = vld [vmem:[#allocation6 + $0x458] sm:$0xff]
    %v916 = vld [vmem:[#allocation6 + $0x460] sm:$0xff]
    %v917 = vld [vmem:[#allocation6 + $0x468] sm:$0xff]
    %v918 = vld [vmem:[#allocation6 + $0x470] sm:$0xff]
    %v919 = vld [vmem:[#allocation6 + $0x478] sm:$0xff]
    %v920 = vld [vmem:[#allocation6 + $0x480] sm:$0xff]
    %v921 = vld [vmem:[#allocation6 + $0x488] sm:$0xff]
    %v922 = vld [vmem:[#allocation6 + $0x490] sm:$0xff]
    %v923 = vld [vmem:[#allocation6 + $0x498] sm:$0xff]
    %v924 = vld [vmem:[#allocation6 + $0x4a0] sm:$0xff]
    %v925 = vld [vmem:[#allocation6 + $0x4a8] sm:$0xff]
    %v926 = vld [vmem:[#allocation6 + $0x4b0] sm:$0xff]
    %v927 = vld [vmem:[#allocation6 + $0x4b8] sm:$0xff]
    %v928 = vld [vmem:[#allocation6 + $0x4c0] sm:$0xff]
    %v929 = vld [vmem:[#allocation6 + $0x4c8] sm:$0xff]
    %v930 = vld [vmem:[#allocation6 + $0x4d0] sm:$0xff]
    %v931 = vld [vmem:[#allocation6 + $0x4d8] sm:$0xff]
    %v932 = vld [vmem:[#allocation6 + $0x4e0] sm:$0xff]
    %v933 = vld [vmem:[#allocation6 + $0x4e8] sm:$0xff]
    %v934 = vld [vmem:[#allocation6 + $0x4f0] sm:$0xff]
    %v935 = vld [vmem:[#allocation6 + $0x4f8] sm:$0xff]
    %v936 = vld [vmem:[#allocation6 + $0x500] sm:$0xff]
    %v937 = vld [vmem:[#allocation6 + $0x508] sm:$0xff]
    %v938 = vld [vmem:[#allocation6 + $0x510] sm:$0xff]
    %v939 = vld [vmem:[#allocation6 + $0x518] sm:$0xff]
    %v940 = vld [vmem:[#allocation6 + $0x520] sm:$0xff]
    %v941 = vld [vmem:[#allocation6 + $0x528] sm:$0xff]
    %v942 = vld [vmem:[#allocation6 + $0x530] sm:$0xff]
    %v943 = vld [vmem:[#allocation6 + $0x538] sm:$0xff]
    %v944 = vld [vmem:[#allocation6 + $0x540] sm:$0xff]
    %v945 = vld [vmem:[#allocation6 + $0x548] sm:$0xff]
    %v946 = vld [vmem:[#allocation6 + $0x550] sm:$0xff]
    %v947 = vld [vmem:[#allocation6 + $0x558] sm:$0xff]
    %v948 = vld [vmem:[#allocation6 + $0x560] sm:$0xff]
    %v949 = vld [vmem:[#allocation6 + $0x568] sm:$0xff]
    %v950 = vld [vmem:[#allocation6 + $0x570] sm:$0xff]
    %v951 = vld [vmem:[#allocation6 + $0x578] sm:$0xff]
    %v952 = vld [vmem:[#allocation6 + $0x580] sm:$0xff]
    %v953 = vld [vmem:[#allocation6 + $0x588] sm:$0xff]
    %v954 = vld [vmem:[#allocation6 + $0x590] sm:$0xff]
    %v955 = vld [vmem:[#allocation6 + $0x598] sm:$0xff]
    %v956 = vld [vmem:[#allocation6 + $0x5a0] sm:$0xff]
    %v957 = vld [vmem:[#allocation6 + $0x5a8] sm:$0xff]
    %v958 = vld [vmem:[#allocation6 + $0x5b0] sm:$0xff]
    %v959 = vld [vmem:[#allocation6 + $0x5b8] sm:$0xff]
    %v960 = vld [vmem:[#allocation6 + $0x5c0] sm:$0xff]
    %v961 = vld [vmem:[#allocation6 + $0x5c8] sm:$0xff]
    %v962 = vld [vmem:[#allocation6 + $0x5d0] sm:$0xff]
    %v963 = vld [vmem:[#allocation6 + $0x5d8] sm:$0xff]
    %v964 = vld [vmem:[#allocation6 + $0x5e0] sm:$0xff]
    %v965 = vld [vmem:[#allocation6 + $0x5e8] sm:$0xff]
    %v966 = vld [vmem:[#allocation6 + $0x5f0] sm:$0xff]
    %v967 = vld [vmem:[#allocation6 + $0x5f8] sm:$0xff]
    %v968 = vld [vmem:[#allocation6 + $0x600] sm:$0xff]
    %v969 = vld [vmem:[#allocation6 + $0x608] sm:$0xff]
    %v970 = vld [vmem:[#allocation6 + $0x610] sm:$0xff]
    %v971 = vld [vmem:[#allocation6 + $0x618] sm:$0xff]
    %v972 = vld [vmem:[#allocation6 + $0x620] sm:$0xff]
    %v973 = vld [vmem:[#allocation6 + $0x628] sm:$0xff]
    %v974 = vld [vmem:[#allocation6 + $0x630] sm:$0xff]
    %v975 = vld [vmem:[#allocation6 + $0x638] sm:$0xff]
    %v976 = vld [vmem:[#allocation6 + $0x640] sm:$0xff]
    %v977 = vld [vmem:[#allocation6 + $0x648] sm:$0xff]
    %v978 = vld [vmem:[#allocation6 + $0x650] sm:$0xff]
    %v979 = vld [vmem:[#allocation6 + $0x658] sm:$0xff]
    %v980 = vld [vmem:[#allocation6 + $0x660] sm:$0xff]
    %v981 = vld [vmem:[#allocation6 + $0x668] sm:$0xff]
    %v982 = vld [vmem:[#allocation6 + $0x670] sm:$0xff]
    %v983 = vld [vmem:[#allocation6 + $0x678] sm:$0xff]
    %v984 = vld [vmem:[#allocation6 + $0x680] sm:$0xff]
    %v985 = vld [vmem:[#allocation6 + $0x688] sm:$0xff]
    %v986 = vld [vmem:[#allocation6 + $0x690] sm:$0xff]
    %v987 = vld [vmem:[#allocation6 + $0x698] sm:$0xff]
    %v988 = vld [vmem:[#allocation6 + $0x6a0] sm:$0xff]
    %v989 = vld [vmem:[#allocation6 + $0x6a8] sm:$0xff]
    %v990 = vld [vmem:[#allocation6 + $0x6b0] sm:$0xff]
    %v991 = vld [vmem:[#allocation6 + $0x6b8] sm:$0xff]
    %v992 = vld [vmem:[#allocation6 + $0x6c0] sm:$0xff]
    %v993 = vld [vmem:[#allocation6 + $0x6c8] sm:$0xff]
    %v994 = vld [vmem:[#allocation6 + $0x6d0] sm:$0xff]
    %v995 = vld [vmem:[#allocation6 + $0x6d8] sm:$0xff]
    %v996 = vld [vmem:[#allocation6 + $0x6e0] sm:$0xff]
    %v997 = vld [vmem:[#allocation6 + $0x6e8] sm:$0xff]
    %v998 = vld [vmem:[#allocation6 + $0x6f0] sm:$0xff]
    %v999 = vld [vmem:[#allocation6 + $0x6f8] sm:$0xff]
    %v1000 = vld [vmem:[#allocation6 + $0x700] sm:$0xff]
    %v1001 = vld [vmem:[#allocation6 + $0x708] sm:$0xff]
    %v1002 = vld [vmem:[#allocation6 + $0x710] sm:$0xff]
    %v1003 = vld [vmem:[#allocation6 + $0x718] sm:$0xff]
    %v1004 = vld [vmem:[#allocation6 + $0x720] sm:$0xff]
    %v1005 = vld [vmem:[#allocation6 + $0x728] sm:$0xff]
    %v1006 = vld [vmem:[#allocation6 + $0x730] sm:$0xff]
    %v1007 = vld [vmem:[#allocation6 + $0x738] sm:$0xff]
    %v1008 = vld [vmem:[#allocation6 + $0x740] sm:$0xff]
    %v1009 = vld [vmem:[#allocation6 + $0x748] sm:$0xff]
    %v1010 = vld [vmem:[#allocation6 + $0x750] sm:$0xff]
    %v1011 = vld [vmem:[#allocation6 + $0x758] sm:$0xff]
    %v1012 = vld [vmem:[#allocation6 + $0x760] sm:$0xff]
    %v1013 = vld [vmem:[#allocation6 + $0x768] sm:$0xff]
    %v1014 = vld [vmem:[#allocation6 + $0x770] sm:$0xff]
    %v1015 = vld [vmem:[#allocation6 + $0x778] sm:$0xff]
    %v1016 = vld [vmem:[#allocation6 + $0x780] sm:$0xff]
    %v1017 = vld [vmem:[#allocation6 + $0x788] sm:$0xff]
    %v1018 = vld [vmem:[#allocation6 + $0x790] sm:$0xff]
    %v1019 = vld [vmem:[#allocation6 + $0x798] sm:$0xff]
    %v1020 = vld [vmem:[#allocation6 + $0x7a0] sm:$0xff]
    %v1021 = vld [vmem:[#allocation6 + $0x7a8] sm:$0xff]
    %v1022 = vld [vmem:[#allocation6 + $0x7b0] sm:$0xff]
    %v1023 = vld [vmem:[#allocation6 + $0x7b8] sm:$0xff]
    %v1024 = vld [vmem:[#allocation6 + $0x7c0] sm:$0xff]
    %v1025 = vld [vmem:[#allocation6 + $0x7c8] sm:$0xff]
    %v1026 = vld [vmem:[#allocation6 + $0x7d0] sm:$0xff]
    %v1027 = vld [vmem:[#allocation6 + $0x7d8] sm:$0xff]
    %v1028 = vld [vmem:[#allocation6 + $0x7e0] sm:$0xff]
    %v1029 = vld [vmem:[#allocation6 + $0x7e8] sm:$0xff]
    %v1030 = vld [vmem:[#allocation6 + $0x7f0] sm:$0xff]
    %v1031 = vld [vmem:[#allocation6 + $0x7f8] sm:$0xff]
    %v1032 = vld [vmem:[#allocation6 + $0x800] sm:$0xff]
    %v1033 = vld [vmem:[#allocation6 + $0x808] sm:$0xff]
    %v1034 = vld [vmem:[#allocation6 + $0x810] sm:$0xff]
    %v1035 = vld [vmem:[#allocation6 + $0x818] sm:$0xff]
    %v1036 = vld [vmem:[#allocation6 + $0x820] sm:$0xff]
    %v1037 = vld [vmem:[#allocation6 + $0x828] sm:$0xff]
    %v1038 = vld [vmem:[#allocation6 + $0x830] sm:$0xff]
    %v1039 = vld [vmem:[#allocation6 + $0x838] sm:$0xff]
    %v1040 = vld [vmem:[#allocation6 + $0x840] sm:$0xff]
    %v1041 = vld [vmem:[#allocation6 + $0x848] sm:$0xff]
    %v1042 = vld [vmem:[#allocation6 + $0x850] sm:$0xff]
    %v1043 = vld [vmem:[#allocation6 + $0x858] sm:$0xff]
    %v1044 = vld [vmem:[#allocation6 + $0x860] sm:$0xff]
    %v1045 = vld [vmem:[#allocation6 + $0x868] sm:$0xff]
    %v1046 = vld [vmem:[#allocation6 + $0x870] sm:$0xff]
    %v1047 = vld [vmem:[#allocation6 + $0x878] sm:$0xff]
    %v1048 = vld [vmem:[#allocation6 + $0x880] sm:$0xff]
    %v1049 = vld [vmem:[#allocation6 + $0x888] sm:$0xff]
    %v1050 = vld [vmem:[#allocation6 + $0x890] sm:$0xff]
    %v1051 = vld [vmem:[#allocation6 + $0x898] sm:$0xff]
    %v1052 = vld [vmem:[#allocation6 + $0x8a0] sm:$0xff]
    %v1053 = vld [vmem:[#allocation6 + $0x8a8] sm:$0xff]
    %v1054 = vld [vmem:[#allocation6 + $0x8b0] sm:$0xff]
    %v1055 = vld [vmem:[#allocation6 + $0x8b8] sm:$0xff]
    %v1056 = vld [vmem:[#allocation6 + $0x8c0] sm:$0xff]
    %v1057 = vld [vmem:[#allocation6 + $0x8c8] sm:$0xff]
    %v1058 = vld [vmem:[#allocation6 + $0x8d0] sm:$0xff]
    %v1059 = vld [vmem:[#allocation6 + $0x8d8] sm:$0xff]
    %v1060 = vld [vmem:[#allocation6 + $0x8e0] sm:$0xff]
    %v1061 = vld [vmem:[#allocation6 + $0x8e8] sm:$0xff]
    %v1062 = vld [vmem:[#allocation6 + $0x8f0] sm:$0xff]
    %v1063 = vld [vmem:[#allocation6 + $0x8f8] sm:$0xff]
    %v1064 = vld [vmem:[#allocation6 + $0x900] sm:$0xff]
    %v1065 = vld [vmem:[#allocation6 + $0x908] sm:$0xff]
    %v1066 = vld [vmem:[#allocation6 + $0x910] sm:$0xff]
    %v1067 = vld [vmem:[#allocation6 + $0x918] sm:$0xff]
    %v1068 = vld [vmem:[#allocation6 + $0x920] sm:$0xff]
    %v1069 = vld [vmem:[#allocation6 + $0x928] sm:$0xff]
    %v1070 = vld [vmem:[#allocation6 + $0x930] sm:$0xff]
    %v1071 = vld [vmem:[#allocation6 + $0x938] sm:$0xff]
    %v1072 = vld [vmem:[#allocation6 + $0x940] sm:$0xff]
    %v1073 = vld [vmem:[#allocation6 + $0x948] sm:$0xff]
    %v1074 = vld [vmem:[#allocation6 + $0x950] sm:$0xff]
    %v1075 = vld [vmem:[#allocation6 + $0x958] sm:$0xff]
    %v1076 = vld [vmem:[#allocation6 + $0x960] sm:$0xff]
    %v1077 = vld [vmem:[#allocation6 + $0x968] sm:$0xff]
    %v1078 = vld [vmem:[#allocation6 + $0x970] sm:$0xff]
    %v1079 = vld [vmem:[#allocation6 + $0x978] sm:$0xff]
    %v1080 = vld [vmem:[#allocation6 + $0x980] sm:$0xff]
    %v1081 = vld [vmem:[#allocation6 + $0x988] sm:$0xff]
    %v1082 = vld [vmem:[#allocation6 + $0x990] sm:$0xff]
    %v1083 = vld [vmem:[#allocation6 + $0x998] sm:$0xff]
    %v1084 = vld [vmem:[#allocation6 + $0x9a0] sm:$0xff]
    %v1085 = vld [vmem:[#allocation6 + $0x9a8] sm:$0xff]
    %v1086 = vld [vmem:[#allocation6 + $0x9b0] sm:$0xff]
    %v1087 = vld [vmem:[#allocation6 + $0x9b8] sm:$0xff]
    %v1088 = vld [vmem:[#allocation6 + $0x9c0] sm:$0xff]
    %v1089 = vld [vmem:[#allocation6 + $0x9c8] sm:$0xff]
    %v1090 = vld [vmem:[#allocation6 + $0x9d0] sm:$0xff]
    %v1091 = vld [vmem:[#allocation6 + $0x9d8] sm:$0xff]
    %v1092 = vld [vmem:[#allocation6 + $0x9e0] sm:$0xff]
    %v1093 = vld [vmem:[#allocation6 + $0x9e8] sm:$0xff]
    %v1094 = vld [vmem:[#allocation6 + $0x9f0] sm:$0xff]
    %v1095 = vld [vmem:[#allocation6 + $0x9f8] sm:$0xff]
    %v1096 = vld [vmem:[#allocation6 + $0xa00] sm:$0xff]
    %v1097 = vld [vmem:[#allocation6 + $0xa08] sm:$0xff]
    %v1098 = vld [vmem:[#allocation6 + $0xa10] sm:$0xff]
    %v1099 = vld [vmem:[#allocation6 + $0xa18] sm:$0xff]
    %v1100 = vld [vmem:[#allocation6 + $0xa20] sm:$0xff]
    %v1101 = vld [vmem:[#allocation6 + $0xa28] sm:$0xff]
    %v1102 = vld [vmem:[#allocation6 + $0xa30] sm:$0xff]
    %v1103 = vld [vmem:[#allocation6 + $0xa38] sm:$0xff]
    %v1104 = vld [vmem:[#allocation6 + $0xa40] sm:$0xff]
    %v1105 = vld [vmem:[#allocation6 + $0xa48] sm:$0xff]
    %v1106 = vld [vmem:[#allocation6 + $0xa50] sm:$0xff]
    %v1107 = vld [vmem:[#allocation6 + $0xa58] sm:$0xff]
    %v1108 = vld [vmem:[#allocation6 + $0xa60] sm:$0xff]
    %v1109 = vld [vmem:[#allocation6 + $0xa68] sm:$0xff]
    %v1110 = vld [vmem:[#allocation6 + $0xa70] sm:$0xff]
    %v1111 = vld [vmem:[#allocation6 + $0xa78] sm:$0xff]
    %v1112 = vld [vmem:[#allocation6 + $0xa80] sm:$0xff]
    %v1113 = vld [vmem:[#allocation6 + $0xa88] sm:$0xff]
    %v1114 = vld [vmem:[#allocation6 + $0xa90] sm:$0xff]
    %v1115 = vld [vmem:[#allocation6 + $0xa98] sm:$0xff]
    %v1116 = vld [vmem:[#allocation6 + $0xaa0] sm:$0xff]
    %v1117 = vld [vmem:[#allocation6 + $0xaa8] sm:$0xff]
    %v1118 = vld [vmem:[#allocation6 + $0xab0] sm:$0xff]
    %v1119 = vld [vmem:[#allocation6 + $0xab8] sm:$0xff]
    %v1120 = vld [vmem:[#allocation6 + $0xac0] sm:$0xff]
    %v1121 = vld [vmem:[#allocation6 + $0xac8] sm:$0xff]
    %v1122 = vld [vmem:[#allocation6 + $0xad0] sm:$0xff]
    %v1123 = vld [vmem:[#allocation6 + $0xad8] sm:$0xff]
    %v1124 = vld [vmem:[#allocation6 + $0xae0] sm:$0xff]
    %v1125 = vld [vmem:[#allocation6 + $0xae8] sm:$0xff]
    %v1126 = vld [vmem:[#allocation6 + $0xaf0] sm:$0xff]
    %v1127 = vld [vmem:[#allocation6 + $0xaf8] sm:$0xff]
    %v1128 = vld [vmem:[#allocation6 + $0xb00] sm:$0xff]
    %v1129 = vld [vmem:[#allocation6 + $0xb08] sm:$0xff]
    %v1130 = vld [vmem:[#allocation6 + $0xb10] sm:$0xff]
    %v1131 = vld [vmem:[#allocation6 + $0xb18] sm:$0xff]
    %v1132 = vld [vmem:[#allocation6 + $0xb20] sm:$0xff]
    %v1133 = vld [vmem:[#allocation6 + $0xb28] sm:$0xff]
    %v1134 = vld [vmem:[#allocation6 + $0xb30] sm:$0xff]
    %v1135 = vld [vmem:[#allocation6 + $0xb38] sm:$0xff]
    %v1136 = vld [vmem:[#allocation6 + $0xb40] sm:$0xff]
    %v1137 = vld [vmem:[#allocation6 + $0xb48] sm:$0xff]
    %v1138 = vld [vmem:[#allocation6 + $0xb50] sm:$0xff]
    %v1139 = vld [vmem:[#allocation6 + $0xb58] sm:$0xff]
    %v1140 = vld [vmem:[#allocation6 + $0xb60] sm:$0xff]
    %v1141 = vld [vmem:[#allocation6 + $0xb68] sm:$0xff]
    %v1142 = vld [vmem:[#allocation6 + $0xb70] sm:$0xff]
    %v1143 = vld [vmem:[#allocation6 + $0xb78] sm:$0xff]
    %v1144 = vld [vmem:[#allocation6 + $0xb80] sm:$0xff]
    %v1145 = vld [vmem:[#allocation6 + $0xb88] sm:$0xff]
    %v1146 = vld [vmem:[#allocation6 + $0xb90] sm:$0xff]
    %v1147 = vld [vmem:[#allocation6 + $0xb98] sm:$0xff]
    %v1148 = vld [vmem:[#allocation6 + $0xba0] sm:$0xff]
    %v1149 = vld [vmem:[#allocation6 + $0xba8] sm:$0xff]
    %v1150 = vld [vmem:[#allocation6 + $0xbb0] sm:$0xff]
    %v1151 = vld [vmem:[#allocation6 + $0xbb8] sm:$0xff]
    %v1152 = vld [vmem:[#allocation6 + $0xbc0] sm:$0xff]
    %v1153 = vld [vmem:[#allocation6 + $0xbc8] sm:$0xff]
    %v1154 = vld [vmem:[#allocation6 + $0xbd0] sm:$0xff]
    %v1155 = vld [vmem:[#allocation6 + $0xbd8] sm:$0xff]
    %v1156 = vld [vmem:[#allocation6 + $0xbe0] sm:$0xff]
    %v1157 = vld [vmem:[#allocation6 + $0xbe8] sm:$0xff]
    %v1158 = vld [vmem:[#allocation6 + $0xbf0] sm:$0xff]
    %v1159 = vld [vmem:[#allocation6 + $0xbf8] sm:$0xff]
    %v1160 = vld [vmem:[#allocation6 + $0xc00] sm:$0xff]
    %v1161 = vld [vmem:[#allocation6 + $0xc08] sm:$0xff]
    %v1162 = vld [vmem:[#allocation6 + $0xc10] sm:$0xff]
    %v1163 = vld [vmem:[#allocation6 + $0xc18] sm:$0xff]
    %v1164 = vld [vmem:[#allocation6 + $0xc20] sm:$0xff]
    %v1165 = vld [vmem:[#allocation6 + $0xc28] sm:$0xff]
    %v1166 = vld [vmem:[#allocation6 + $0xc30] sm:$0xff]
    %v1167 = vld [vmem:[#allocation6 + $0xc38] sm:$0xff]
    %v1168 = vld [vmem:[#allocation6 + $0xc40] sm:$0xff]
    %v1169 = vld [vmem:[#allocation6 + $0xc48] sm:$0xff]
    %v1170 = vld [vmem:[#allocation6 + $0xc50] sm:$0xff]
    %v1171 = vld [vmem:[#allocation6 + $0xc58] sm:$0xff]
    %v1172 = vld [vmem:[#allocation6 + $0xc60] sm:$0xff]
    %v1173 = vld [vmem:[#allocation6 + $0xc68] sm:$0xff]
    %v1174 = vld [vmem:[#allocation6 + $0xc70] sm:$0xff]
    %v1175 = vld [vmem:[#allocation6 + $0xc78] sm:$0xff]
    %v1176 = vld [vmem:[#allocation6 + $0xc80] sm:$0xff]
    %v1177 = vld [vmem:[#allocation6 + $0xc88] sm:$0xff]
    %v1178 = vld [vmem:[#allocation6 + $0xc90] sm:$0xff]
    %v1179 = vld [vmem:[#allocation6 + $0xc98] sm:$0xff]
    %v1180 = vld [vmem:[#allocation6 + $0xca0] sm:$0xff]
    %v1181 = vld [vmem:[#allocation6 + $0xca8] sm:$0xff]
    %v1182 = vld [vmem:[#allocation6 + $0xcb0] sm:$0xff]
    %v1183 = vld [vmem:[#allocation6 + $0xcb8] sm:$0xff]
    %v1184 = vld [vmem:[#allocation6 + $0xcc0] sm:$0xff]
    %v1185 = vld [vmem:[#allocation6 + $0xcc8] sm:$0xff]
    %v1186 = vld [vmem:[#allocation6 + $0xcd0] sm:$0xff]
    %v1187 = vld [vmem:[#allocation6 + $0xcd8] sm:$0xff]
    %v1188 = vld [vmem:[#allocation6 + $0xce0] sm:$0xff]
    %v1189 = vld [vmem:[#allocation6 + $0xce8] sm:$0xff]
    %v1190 = vld [vmem:[#allocation6 + $0xcf0] sm:$0xff]
    %v1191 = vld [vmem:[#allocation6 + $0xcf8] sm:$0xff]
    %v1192 = vld [vmem:[#allocation6 + $0xd00] sm:$0xff]
    %v1193 = vld [vmem:[#allocation6 + $0xd08] sm:$0xff]
    %v1194 = vld [vmem:[#allocation6 + $0xd10] sm:$0xff]
    %v1195 = vld [vmem:[#allocation6 + $0xd18] sm:$0xff]
    %v1196 = vld [vmem:[#allocation6 + $0xd20] sm:$0xff]
    %v1197 = vld [vmem:[#allocation6 + $0xd28] sm:$0xff]
    %v1198 = vld [vmem:[#allocation6 + $0xd30] sm:$0xff]
    %v1199 = vld [vmem:[#allocation6 + $0xd38] sm:$0xff]
    %v1200 = vld [vmem:[#allocation6 + $0xd40] sm:$0xff]
    %v1201 = vld [vmem:[#allocation6 + $0xd48] sm:$0xff]
    %v1202 = vld [vmem:[#allocation6 + $0xd50] sm:$0xff]
    %v1203 = vld [vmem:[#allocation6 + $0xd58] sm:$0xff]
    %v1204 = vld [vmem:[#allocation6 + $0xd60] sm:$0xff]
    %v1205 = vld [vmem:[#allocation6 + $0xd68] sm:$0xff]
    %v1206 = vld [vmem:[#allocation6 + $0xd70] sm:$0xff]
    %v1207 = vld [vmem:[#allocation6 + $0xd78] sm:$0xff]
    %v1208 = vld [vmem:[#allocation6 + $0xd80] sm:$0xff]
    %v1209 = vld [vmem:[#allocation6 + $0xd88] sm:$0xff]
    %v1210 = vld [vmem:[#allocation6 + $0xd90] sm:$0xff]
    %v1211 = vld [vmem:[#allocation6 + $0xd98] sm:$0xff]
    %v1212 = vld [vmem:[#allocation6 + $0xda0] sm:$0xff]
    %v1213 = vld [vmem:[#allocation6 + $0xda8] sm:$0xff]
    %v1214 = vld [vmem:[#allocation6 + $0xdb0] sm:$0xff]
    %v1215 = vld [vmem:[#allocation6 + $0xdb8] sm:$0xff]
    %v1216 = vld [vmem:[#allocation6 + $0xdc0] sm:$0xff]
    %v1217 = vld [vmem:[#allocation6 + $0xdc8] sm:$0xff]
    %v1218 = vld [vmem:[#allocation6 + $0xdd0] sm:$0xff]
    %v1219 = vld [vmem:[#allocation6 + $0xdd8] sm:$0xff]
    %v1220 = vld [vmem:[#allocation6 + $0xde0] sm:$0xff]
    %v1221 = vld [vmem:[#allocation6 + $0xde8] sm:$0xff]
    %v1222 = vld [vmem:[#allocation6 + $0xdf0] sm:$0xff]
    %v1223 = vld [vmem:[#allocation6 + $0xdf8] sm:$0xff]
    %v1224 = vld [vmem:[#allocation6 + $0xe00] sm:$0xff]
    %v1225 = vld [vmem:[#allocation6 + $0xe08] sm:$0xff]
    %v1226 = vld [vmem:[#allocation6 + $0xe10] sm:$0xff]
    %v1227 = vld [vmem:[#allocation6 + $0xe18] sm:$0xff]
    %v1228 = vld [vmem:[#allocation6 + $0xe20] sm:$0xff]
    %v1229 = vld [vmem:[#allocation6 + $0xe28] sm:$0xff]
    %v1230 = vld [vmem:[#allocation6 + $0xe30] sm:$0xff]
    %v1231 = vld [vmem:[#allocation6 + $0xe38] sm:$0xff]
    %v1232 = vld [vmem:[#allocation6 + $0xe40] sm:$0xff]
    %v1233 = vld [vmem:[#allocation6 + $0xe48] sm:$0xff]
    %v1234 = vld [vmem:[#allocation6 + $0xe50] sm:$0xff]
    %v1235 = vld [vmem:[#allocation6 + $0xe58] sm:$0xff]
    %v1236 = vld [vmem:[#allocation6 + $0xe60] sm:$0xff]
    %v1237 = vld [vmem:[#allocation6 + $0xe68] sm:$0xff]
    %v1238 = vld [vmem:[#allocation6 + $0xe70] sm:$0xff]
    %v1239 = vld [vmem:[#allocation6 + $0xe78] sm:$0xff]
    %v1240 = vld [vmem:[#allocation6 + $0xe80] sm:$0xff]
    %v1241 = vld [vmem:[#allocation6 + $0xe88] sm:$0xff]
    %v1242 = vld [vmem:[#allocation6 + $0xe90] sm:$0xff]
    %v1243 = vld [vmem:[#allocation6 + $0xe98] sm:$0xff]
    %v1244 = vld [vmem:[#allocation6 + $0xea0] sm:$0xff]
    %v1245 = vld [vmem:[#allocation6 + $0xea8] sm:$0xff]
    %v1246 = vld [vmem:[#allocation6 + $0xeb0] sm:$0xff]
    %v1247 = vld [vmem:[#allocation6 + $0xeb8] sm:$0xff]
    %v1248 = vld [vmem:[#allocation6 + $0xec0] sm:$0xff]
    %v1249 = vld [vmem:[#allocation6 + $0xec8] sm:$0xff]
    %v1250 = vld [vmem:[#allocation6 + $0xed0] sm:$0xff]
    %v1251 = vld [vmem:[#allocation6 + $0xed8] sm:$0xff]
    %v1252 = vld [vmem:[#allocation6 + $0xee0] sm:$0xff]
    %v1253 = vld [vmem:[#allocation6 + $0xee8] sm:$0xff]
    %v1254 = vld [vmem:[#allocation6 + $0xef0] sm:$0xff]
    %v1255 = vld [vmem:[#allocation6 + $0xef8] sm:$0xff]
    %v1256 = vld [vmem:[#allocation6 + $0xf00] sm:$0xff]
    %v1257 = vld [vmem:[#allocation6 + $0xf08] sm:$0xff]
    %v1258 = vld [vmem:[#allocation6 + $0xf10] sm:$0xff]
    %v1259 = vld [vmem:[#allocation6 + $0xf18] sm:$0xff]
    %v1260 = vld [vmem:[#allocation6 + $0xf20] sm:$0xff]
    %v1261 = vld [vmem:[#allocation6 + $0xf28] sm:$0xff]
    %v1262 = vld [vmem:[#allocation6 + $0xf30] sm:$0xff]
    %v1263 = vld [vmem:[#allocation6 + $0xf38] sm:$0xff]
    %v1264 = vld [vmem:[#allocation6 + $0xf40] sm:$0xff]
    %v1265 = vld [vmem:[#allocation6 + $0xf48] sm:$0xff]
    %v1266 = vld [vmem:[#allocation6 + $0xf50] sm:$0xff]
    %v1267 = vld [vmem:[#allocation6 + $0xf58] sm:$0xff]
    %v1268 = vld [vmem:[#allocation6 + $0xf60] sm:$0xff]
    %v1269 = vld [vmem:[#allocation6 + $0xf68] sm:$0xff]
    %v1270 = vld [vmem:[#allocation6 + $0xf70] sm:$0xff]
    %v1271 = vld [vmem:[#allocation6 + $0xf78] sm:$0xff]
    %v1272 = vld [vmem:[#allocation6 + $0xf80] sm:$0xff]
    %v1273 = vld [vmem:[#allocation6 + $0xf88] sm:$0xff]
    %v1274 = vld [vmem:[#allocation6 + $0xf90] sm:$0xff]
    %v1275 = vld [vmem:[#allocation6 + $0xf98] sm:$0xff]
    %v1276 = vld [vmem:[#allocation6 + $0xfa0] sm:$0xff]
    %v1277 = vld [vmem:[#allocation6 + $0xfa8] sm:$0xff]
    %v1278 = vld [vmem:[#allocation6 + $0xfb0] sm:$0xff]
    %v1279 = vld [vmem:[#allocation6 + $0xfb8] sm:$0xff]
    %v1280 = vld [vmem:[#allocation6 + $0xfc0] sm:$0xff]
    %v1281 = vld [vmem:[#allocation6 + $0xfc8] sm:$0xff]
    %v1282 = vld [vmem:[#allocation6 + $0xfd0] sm:$0xff]
    %v1283 = vld [vmem:[#allocation6 + $0xfd8] sm:$0xff]
    %v1284 = vld [vmem:[#allocation6 + $0xfe0] sm:$0xff]
    %v1285 = vld [vmem:[#allocation6 + $0xfe8] sm:$0xff]
    %v1286 = vld [vmem:[#allocation6 + $0xff0] sm:$0xff]
    %v1287 = vld [vmem:[#allocation6 + $0xff8] sm:$0xff]
    %v1288 = vld [vmem:[#allocation6 + $0x1000] sm:$0xff]
    %v1289 = vld [vmem:[#allocation6 + $0x1008] sm:$0xff]
    %v1290 = vld [vmem:[#allocation6 + $0x1010] sm:$0xff]
    %v1291 = vld [vmem:[#allocation6 + $0x1018] sm:$0xff]
    %v1292 = vld [vmem:[#allocation6 + $0x1020] sm:$0xff]
    %v1293 = vld [vmem:[#allocation6 + $0x1028] sm:$0xff]
    %v1294 = vld [vmem:[#allocation6 + $0x1030] sm:$0xff]
    %v1295 = vld [vmem:[#allocation6 + $0x1038] sm:$0xff]
    %v1296 = vld [vmem:[#allocation6 + $0x1040] sm:$0xff]
    %v1297 = vld [vmem:[#allocation6 + $0x1048] sm:$0xff]
    %v1298 = vld [vmem:[#allocation6 + $0x1050] sm:$0xff]
    %v1299 = vld [vmem:[#allocation6 + $0x1058] sm:$0xff]
    %v1300 = vld [vmem:[#allocation6 + $0x1060] sm:$0xff]
    %v1301 = vld [vmem:[#allocation6 + $0x1068] sm:$0xff]
    %v1302 = vld [vmem:[#allocation6 + $0x1070] sm:$0xff]
    %v1303 = vld [vmem:[#allocation6 + $0x1078] sm:$0xff]
    %v1304 = vld [vmem:[#allocation6 + $0x1080] sm:$0xff]
    %v1305 = vld [vmem:[#allocation6 + $0x1088] sm:$0xff]
    %v1306 = vld [vmem:[#allocation6 + $0x1090] sm:$0xff]
    %v1307 = vld [vmem:[#allocation6 + $0x1098] sm:$0xff]
    %v1308 = vld [vmem:[#allocation6 + $0x10a0] sm:$0xff]
    %v1309 = vld [vmem:[#allocation6 + $0x10a8] sm:$0xff]
    %v1310 = vld [vmem:[#allocation6 + $0x10b0] sm:$0xff]
    %v1311 = vld [vmem:[#allocation6 + $0x10b8] sm:$0xff]
    %v1312 = vld [vmem:[#allocation6 + $0x10c0] sm:$0xff]
    %v1313 = vld [vmem:[#allocation6 + $0x10c8] sm:$0xff]
    %v1314 = vld [vmem:[#allocation6 + $0x10d0] sm:$0xff]
    %v1315 = vld [vmem:[#allocation6 + $0x10d8] sm:$0xff]
    %v1316 = vld [vmem:[#allocation6 + $0x10e0] sm:$0xff]
    %v1317 = vld [vmem:[#allocation6 + $0x10e8] sm:$0xff]
    %v1318 = vld [vmem:[#allocation6 + $0x10f0] sm:$0xff]
    %v1319 = vld [vmem:[#allocation6 + $0x10f8] sm:$0xff]
    %v1320 = vld [vmem:[#allocation6 + $0x1100] sm:$0xff]
    %v1321 = vld [vmem:[#allocation6 + $0x1108] sm:$0xff]
    %v1322 = vld [vmem:[#allocation6 + $0x1110] sm:$0xff]
    %v1323 = vld [vmem:[#allocation6 + $0x1118] sm:$0xff]
    %v1324 = vld [vmem:[#allocation6 + $0x1120] sm:$0xff]
    %v1325 = vld [vmem:[#allocation6 + $0x1128] sm:$0xff]
    %v1326 = vld [vmem:[#allocation6 + $0x1130] sm:$0xff]
    %v1327 = vld [vmem:[#allocation6 + $0x1138] sm:$0xff]
    %v1328 = vld [vmem:[#allocation6 + $0x1140] sm:$0xff]
    %v1329 = vld [vmem:[#allocation6 + $0x1148] sm:$0xff]
    %v1330 = vld [vmem:[#allocation6 + $0x1150] sm:$0xff]
    %v1331 = vld [vmem:[#allocation6 + $0x1158] sm:$0xff]
    %v1332 = vld [vmem:[#allocation6 + $0x1160] sm:$0xff]
    %v1333 = vld [vmem:[#allocation6 + $0x1168] sm:$0xff]
    %v1334 = vld [vmem:[#allocation6 + $0x1170] sm:$0xff]
    %v1335 = vld [vmem:[#allocation6 + $0x1178] sm:$0xff]
    %v1336 = vld [vmem:[#allocation6 + $0x1180] sm:$0xff]
    %v1337 = vld [vmem:[#allocation6 + $0x1188] sm:$0xff]
    %v1338 = vld [vmem:[#allocation6 + $0x1190] sm:$0xff]
    %v1339 = vld [vmem:[#allocation6 + $0x1198] sm:$0xff]
    %v1340 = vld [vmem:[#allocation6 + $0x11a0] sm:$0xff]
    %v1341 = vld [vmem:[#allocation6 + $0x11a8] sm:$0xff]
    %v1342 = vld [vmem:[#allocation6 + $0x11b0] sm:$0xff]
    %v1343 = vld [vmem:[#allocation6 + $0x11b8] sm:$0xff]
    %v1344 = vld [vmem:[#allocation6 + $0x11c0] sm:$0xff]
    %v1345 = vld [vmem:[#allocation6 + $0x11c8] sm:$0xff]
    %v1346 = vld [vmem:[#allocation6 + $0x11d0] sm:$0xff]
    %v1347 = vld [vmem:[#allocation6 + $0x11d8] sm:$0xff]
    %v1348 = vld [vmem:[#allocation6 + $0x11e0] sm:$0xff]
    %v1349 = vld [vmem:[#allocation6 + $0x11e8] sm:$0xff]
    %v1350 = vld [vmem:[#allocation6 + $0x11f0] sm:$0xff]
    %v1351 = vld [vmem:[#allocation6 + $0x11f8] sm:$0xff]
    %v1352 = vld [vmem:[#allocation6 + $0x1200] sm:$0xff]
    %v1353 = vld [vmem:[#allocation6 + $0x1208] sm:$0xff]
    %v1354 = vld [vmem:[#allocation6 + $0x1210] sm:$0xff]
    %v1355 = vld [vmem:[#allocation6 + $0x1218] sm:$0xff]
    %v1356 = vld [vmem:[#allocation6 + $0x1220] sm:$0xff]
    %v1357 = vld [vmem:[#allocation6 + $0x1228] sm:$0xff]
    %v1358 = vld [vmem:[#allocation6 + $0x1230] sm:$0xff]
    %v1359 = vld [vmem:[#allocation6 + $0x1238] sm:$0xff]
    %v1360 = vld [vmem:[#allocation6 + $0x1240] sm:$0xff]
    %v1361 = vld [vmem:[#allocation6 + $0x1248] sm:$0xff]
    %v1362 = vld [vmem:[#allocation6 + $0x1250] sm:$0xff]
    %v1363 = vld [vmem:[#allocation6 + $0x1258] sm:$0xff]
    %v1364 = vld [vmem:[#allocation6 + $0x1260] sm:$0xff]
    %v1365 = vld [vmem:[#allocation6 + $0x1268] sm:$0xff]
    %v1366 = vld [vmem:[#allocation6 + $0x1270] sm:$0xff]
    %v1367 = vld [vmem:[#allocation6 + $0x1278] sm:$0xff]
    %v1368 = vld [vmem:[#allocation6 + $0x1280] sm:$0xff]
    %v1369 = vld [vmem:[#allocation6 + $0x1288] sm:$0xff]
    %v1370 = vld [vmem:[#allocation6 + $0x1290] sm:$0xff]
    %v1371 = vld [vmem:[#allocation6 + $0x1298] sm:$0xff]
    %v1372 = vld [vmem:[#allocation6 + $0x12a0] sm:$0xff]
    %v1373 = vld [vmem:[#allocation6 + $0x12a8] sm:$0xff]
    %v1374 = vld [vmem:[#allocation6 + $0x12b0] sm:$0xff]
    %v1375 = vld [vmem:[#allocation6 + $0x12b8] sm:$0xff]
    %v1376 = vld [vmem:[#allocation6 + $0x12c0] sm:$0xff]
    %v1377 = vld [vmem:[#allocation6 + $0x12c8] sm:$0xff]
    %v1378 = vld [vmem:[#allocation6 + $0x12d0] sm:$0xff]
    %v1379 = vld [vmem:[#allocation6 + $0x12d8] sm:$0xff]
    %v1380 = vld [vmem:[#allocation6 + $0x12e0] sm:$0xff]
    %v1381 = vld [vmem:[#allocation6 + $0x12e8] sm:$0xff]
    %v1382 = vld [vmem:[#allocation6 + $0x12f0] sm:$0xff]
    %v1383 = vld [vmem:[#allocation6 + $0x12f8] sm:$0xff]
    %v1384 = vld [vmem:[#allocation6 + $0x1300] sm:$0xff]
    %v1385 = vld [vmem:[#allocation6 + $0x1308] sm:$0xff]
    %v1386 = vld [vmem:[#allocation6 + $0x1310] sm:$0xff]
    %v1387 = vld [vmem:[#allocation6 + $0x1318] sm:$0xff]
    %v1388 = vld [vmem:[#allocation6 + $0x1320] sm:$0xff]
    %v1389 = vld [vmem:[#allocation6 + $0x1328] sm:$0xff]
    %v1390 = vld [vmem:[#allocation6 + $0x1330] sm:$0xff]
    %v1391 = vld [vmem:[#allocation6 + $0x1338] sm:$0xff]
    %v1392 = vld [vmem:[#allocation6 + $0x1340] sm:$0xff]
    %v1393 = vld [vmem:[#allocation6 + $0x1348] sm:$0xff]
    %v1394 = vld [vmem:[#allocation6 + $0x1350] sm:$0xff]
    %v1395 = vld [vmem:[#allocation6 + $0x1358] sm:$0xff]
    %v1396 = vld [vmem:[#allocation6 + $0x1360] sm:$0xff]
    %v1397 = vld [vmem:[#allocation6 + $0x1368] sm:$0xff]
    %v1398 = vld [vmem:[#allocation6 + $0x1370] sm:$0xff]
    %v1399 = vld [vmem:[#allocation6 + $0x1378] sm:$0xff]
    %v1400 = vld [vmem:[#allocation6 + $0x1380] sm:$0xff]
    %v1401 = vld [vmem:[#allocation6 + $0x1388] sm:$0xff]
    %v1402 = vld [vmem:[#allocation6 + $0x1390] sm:$0xff]
    %v1403 = vld [vmem:[#allocation6 + $0x1398] sm:$0xff]
    %v1404 = vld [vmem:[#allocation6 + $0x13a0] sm:$0xff]
    %v1405 = vld [vmem:[#allocation6 + $0x13a8] sm:$0xff]
    %v1406 = vld [vmem:[#allocation6 + $0x13b0] sm:$0xff]
    %v1407 = vld [vmem:[#allocation6 + $0x13b8] sm:$0xff]
    %v1408 = vld [vmem:[#allocation6 + $0x13c0] sm:$0xff]
    %v1409 = vld [vmem:[#allocation6 + $0x13c8] sm:$0xff]
    %v1410 = vld [vmem:[#allocation6 + $0x13d0] sm:$0xff]
    %v1411 = vld [vmem:[#allocation6 + $0x13d8] sm:$0xff]
    %v1412 = vld [vmem:[#allocation6 + $0x13e0] sm:$0xff]
    %v1413 = vld [vmem:[#allocation6 + $0x13e8] sm:$0xff]
    %v1414 = vld [vmem:[#allocation6 + $0x13f0] sm:$0xff]
    %v1415 = vld [vmem:[#allocation6 + $0x13f8] sm:$0xff]
    %v1416 = vld [vmem:[#allocation6 + $0x1400] sm:$0xff]
    %v1417 = vld [vmem:[#allocation6 + $0x1408] sm:$0xff]
    %v1418 = vld [vmem:[#allocation6 + $0x1410] sm:$0xff]
    %v1419 = vld [vmem:[#allocation6 + $0x1418] sm:$0xff]
    %v1420 = vld [vmem:[#allocation6 + $0x1420] sm:$0xff]
    %v1421 = vld [vmem:[#allocation6 + $0x1428] sm:$0xff]
    %v1422 = vld [vmem:[#allocation6 + $0x1430] sm:$0xff]
    %v1423 = vld [vmem:[#allocation6 + $0x1438] sm:$0xff]
    %v1424 = vld [vmem:[#allocation6 + $0x1440] sm:$0xff]
    %v1425 = vld [vmem:[#allocation6 + $0x1448] sm:$0xff]
    %v1426 = vld [vmem:[#allocation6 + $0x1450] sm:$0xff]
    %v1427 = vld [vmem:[#allocation6 + $0x1458] sm:$0xff]
    %v1428 = vld [vmem:[#allocation6 + $0x1460] sm:$0xff]
    %v1429 = vld [vmem:[#allocation6 + $0x1468] sm:$0xff]
    %v1430 = vld [vmem:[#allocation6 + $0x1470] sm:$0xff]
    %v1431 = vld [vmem:[#allocation6 + $0x1478] sm:$0xff]
    %v1432 = vld [vmem:[#allocation6 + $0x1480] sm:$0xff]
    %v1433 = vld [vmem:[#allocation6 + $0x1488] sm:$0xff]
    %v1434 = vld [vmem:[#allocation6 + $0x1490] sm:$0xff]
    %v1435 = vld [vmem:[#allocation6 + $0x1498] sm:$0xff]
    %v1436 = vld [vmem:[#allocation6 + $0x14a0] sm:$0xff]
    %v1437 = vld [vmem:[#allocation6 + $0x14a8] sm:$0xff]
    %v1438 = vld [vmem:[#allocation6 + $0x14b0] sm:$0xff]
    %v1439 = vld [vmem:[#allocation6 + $0x14b8] sm:$0xff]
    %v1440 = vld [vmem:[#allocation6 + $0x14c0] sm:$0xff]
    %v1441 = vld [vmem:[#allocation6 + $0x14c8] sm:$0xff]
    %v1442 = vld [vmem:[#allocation6 + $0x14d0] sm:$0xff]
    %v1443 = vld [vmem:[#allocation6 + $0x14d8] sm:$0xff]
    %v1444 = vld [vmem:[#allocation6 + $0x14e0] sm:$0xff]
    %v1445 = vld [vmem:[#allocation6 + $0x14e8] sm:$0xff]
    %v1446 = vld [vmem:[#allocation6 + $0x14f0] sm:$0xff]
    %v1447 = vld [vmem:[#allocation6 + $0x14f8] sm:$0xff]
    %v1448 = vld [vmem:[#allocation6 + $0x1500] sm:$0xff]
    %v1449 = vld [vmem:[#allocation6 + $0x1508] sm:$0xff]
    %v1450 = vld [vmem:[#allocation6 + $0x1510] sm:$0xff]
    %v1451 = vld [vmem:[#allocation6 + $0x1518] sm:$0xff]
    %v1452 = vld [vmem:[#allocation6 + $0x1520] sm:$0xff]
    %v1453 = vld [vmem:[#allocation6 + $0x1528] sm:$0xff]
    %v1454 = vld [vmem:[#allocation6 + $0x1530] sm:$0xff]
    %v1455 = vld [vmem:[#allocation6 + $0x1538] sm:$0xff]
    %v1456 = vld [vmem:[#allocation6 + $0x1540] sm:$0xff]
    %v1457 = vld [vmem:[#allocation6 + $0x1548] sm:$0xff]
    %v1458 = vld [vmem:[#allocation6 + $0x1550] sm:$0xff]
    %v1459 = vld [vmem:[#allocation6 + $0x1558] sm:$0xff]
    %v1460 = vld [vmem:[#allocation6 + $0x1560] sm:$0xff]
    %v1461 = vld [vmem:[#allocation6 + $0x1568] sm:$0xff]
    %v1462 = vld [vmem:[#allocation6 + $0x1570] sm:$0xff]
    %v1463 = vld [vmem:[#allocation6 + $0x1578] sm:$0xff]
    %v1464 = vld [vmem:[#allocation6 + $0x1580] sm:$0xff]
    %v1465 = vld [vmem:[#allocation6 + $0x1588] sm:$0xff]
    %v1466 = vld [vmem:[#allocation6 + $0x1590] sm:$0xff]
    %v1467 = vld [vmem:[#allocation6 + $0x1598] sm:$0xff]
    %v1468 = vld [vmem:[#allocation6 + $0x15a0] sm:$0xff]
    %v1469 = vld [vmem:[#allocation6 + $0x15a8] sm:$0xff]
    %v1470 = vld [vmem:[#allocation6 + $0x15b0] sm:$0xff]
    %v1471 = vld [vmem:[#allocation6 + $0x15b8] sm:$0xff]
    %v1472 = vld [vmem:[#allocation6 + $0x15c0] sm:$0xff]
    %v1473 = vld [vmem:[#allocation6 + $0x15c8] sm:$0xff]
    %v1474 = vld [vmem:[#allocation6 + $0x15d0] sm:$0xff]
    %v1475 = vld [vmem:[#allocation6 + $0x15d8] sm:$0xff]
    %v1476 = vld [vmem:[#allocation6 + $0x15e0] sm:$0xff]
    %v1477 = vld [vmem:[#allocation6 + $0x15e8] sm:$0xff]
    %v1478 = vld [vmem:[#allocation6 + $0x15f0] sm:$0xff]
    %v1479 = vld [vmem:[#allocation6 + $0x15f8] sm:$0xff]
    %v1480 = vld [vmem:[#allocation6 + $0x1600] sm:$0xff]
    %v1481 = vld [vmem:[#allocation6 + $0x1608] sm:$0xff]
    %v1482 = vld [vmem:[#allocation6 + $0x1610] sm:$0xff]
    %v1483 = vld [vmem:[#allocation6 + $0x1618] sm:$0xff]
    %v1484 = vld [vmem:[#allocation6 + $0x1620] sm:$0xff]
    %v1485 = vld [vmem:[#allocation6 + $0x1628] sm:$0xff]
    %v1486 = vld [vmem:[#allocation6 + $0x1630] sm:$0xff]
    %v1487 = vld [vmem:[#allocation6 + $0x1638] sm:$0xff]
    %v1488 = vld [vmem:[#allocation6 + $0x1640] sm:$0xff]
    %v1489 = vld [vmem:[#allocation6 + $0x1648] sm:$0xff]
    %v1490 = vld [vmem:[#allocation6 + $0x1650] sm:$0xff]
    %v1491 = vld [vmem:[#allocation6 + $0x1658] sm:$0xff]
    %v1492 = vld [vmem:[#allocation6 + $0x1660] sm:$0xff]
    %v1493 = vld [vmem:[#allocation6 + $0x1668] sm:$0xff]
    %v1494 = vld [vmem:[#allocation6 + $0x1670] sm:$0xff]
    %v1495 = vld [vmem:[#allocation6 + $0x1678] sm:$0xff]
    %v1496 = vld [vmem:[#allocation6 + $0x1680] sm:$0xff]
    %v1497 = vld [vmem:[#allocation6 + $0x1688] sm:$0xff]
    %v1498 = vld [vmem:[#allocation6 + $0x1690] sm:$0xff]
    %v1499 = vld [vmem:[#allocation6 + $0x1698] sm:$0xff]
    %v1500 = vld [vmem:[#allocation6 + $0x16a0] sm:$0xff]
    %v1501 = vld [vmem:[#allocation6 + $0x16a8] sm:$0xff]
    %v1502 = vld [vmem:[#allocation6 + $0x16b0] sm:$0xff]
    %v1503 = vld [vmem:[#allocation6 + $0x16b8] sm:$0xff]
    %v1504 = vld [vmem:[#allocation6 + $0x16c0] sm:$0xff]
    %v1505 = vld [vmem:[#allocation6 + $0x16c8] sm:$0xff]
    %v1506 = vld [vmem:[#allocation6 + $0x16d0] sm:$0xff]
    %v1507 = vld [vmem:[#allocation6 + $0x16d8] sm:$0xff]
    %v1508 = vld [vmem:[#allocation6 + $0x16e0] sm:$0xff]
    %v1509 = vld [vmem:[#allocation6 + $0x16e8] sm:$0xff]
    %v1510 = vld [vmem:[#allocation6 + $0x16f0] sm:$0xff]
    %v1511 = vld [vmem:[#allocation6 + $0x16f8] sm:$0xff]
    %v1512 = vld [vmem:[#allocation6 + $0x1700] sm:$0xff]
    %v1513 = vld [vmem:[#allocation6 + $0x1708] sm:$0xff]
    %v1514 = vld [vmem:[#allocation6 + $0x1710] sm:$0xff]
    %v1515 = vld [vmem:[#allocation6 + $0x1718] sm:$0xff]
    %v1516 = vld [vmem:[#allocation6 + $0x1720] sm:$0xff]
    %v1517 = vld [vmem:[#allocation6 + $0x1728] sm:$0xff]
    %v1518 = vld [vmem:[#allocation6 + $0x1730] sm:$0xff]
    %v1519 = vld [vmem:[#allocation6 + $0x1738] sm:$0xff]
    %v1520 = vld [vmem:[#allocation6 + $0x1740] sm:$0xff]
    %v1521 = vld [vmem:[#allocation6 + $0x1748] sm:$0xff]
    %v1522 = vld [vmem:[#allocation6 + $0x1750] sm:$0xff]
    %v1523 = vld [vmem:[#allocation6 + $0x1758] sm:$0xff]
    %v1524 = vld [vmem:[#allocation6 + $0x1760] sm:$0xff]
    %v1525 = vld [vmem:[#allocation6 + $0x1768] sm:$0xff]
    %v1526 = vld [vmem:[#allocation6 + $0x1770] sm:$0xff]
    %v1527 = vld [vmem:[#allocation6 + $0x1778] sm:$0xff]
    %v1528 = vld [vmem:[#allocation6 + $0x1780] sm:$0xff]
    %v1529 = vld [vmem:[#allocation6 + $0x1788] sm:$0xff]
    %v1530 = vld [vmem:[#allocation6 + $0x1790] sm:$0xff]
    %v1531 = vld [vmem:[#allocation6 + $0x1798] sm:$0xff]
    %v1532 = vld [vmem:[#allocation6 + $0x17a0] sm:$0xff]
    %v1533 = vld [vmem:[#allocation6 + $0x17a8] sm:$0xff]
    %v1534 = vld [vmem:[#allocation6 + $0x17b0] sm:$0xff]
    %v1535 = vld [vmem:[#allocation6 + $0x17b8] sm:$0xff]
    %v1536 = vld [vmem:[#allocation6 + $0x17c0] sm:$0xff]
    %v1537 = vld [vmem:[#allocation6 + $0x17c8] sm:$0xff]
    %v1538 = vld [vmem:[#allocation6 + $0x17d0] sm:$0xff]
    %v1539 = vld [vmem:[#allocation6 + $0x17d8] sm:$0xff]
    %v1540 = vld [vmem:[#allocation6 + $0x17e0] sm:$0xff]
    %v1541 = vld [vmem:[#allocation6 + $0x17e8] sm:$0xff]
    %v1542 = vld [vmem:[#allocation6 + $0x17f0] sm:$0xff]
    %v1543 = vld [vmem:[#allocation6 + $0x17f8] sm:$0xff]
    %v1544 = vld [vmem:[#allocation6 + $0x1800] sm:$0xff]
    %v1545 = vld [vmem:[#allocation6 + $0x1808] sm:$0xff]
    %v1546 = vld [vmem:[#allocation6 + $0x1810] sm:$0xff]
    %v1547 = vld [vmem:[#allocation6 + $0x1818] sm:$0xff]
    %v1548 = vld [vmem:[#allocation6 + $0x1820] sm:$0xff]
    %v1549 = vld [vmem:[#allocation6 + $0x1828] sm:$0xff]
    %v1550 = vld [vmem:[#allocation6 + $0x1830] sm:$0xff]
    %v1551 = vld [vmem:[#allocation6 + $0x1838] sm:$0xff]
    %v1552 = vld [vmem:[#allocation6 + $0x1840] sm:$0xff]
    %v1553 = vld [vmem:[#allocation6 + $0x1848] sm:$0xff]
    %v1554 = vld [vmem:[#allocation6 + $0x1850] sm:$0xff]
    %v1555 = vld [vmem:[#allocation6 + $0x1858] sm:$0xff]
    %v1556 = vld [vmem:[#allocation6 + $0x1860] sm:$0xff]
    %v1557 = vld [vmem:[#allocation6 + $0x1868] sm:$0xff]
    %v1558 = vld [vmem:[#allocation6 + $0x1870] sm:$0xff]
    %v1559 = vld [vmem:[#allocation6 + $0x1878] sm:$0xff]
    %v1560 = vld [vmem:[#allocation6 + $0x1880] sm:$0xff]
    %v1561 = vld [vmem:[#allocation6 + $0x1888] sm:$0xff]
    %v1562 = vld [vmem:[#allocation6 + $0x1890] sm:$0xff]
    %v1563 = vld [vmem:[#allocation6 + $0x1898] sm:$0xff]
    %v1564 = vld [vmem:[#allocation6 + $0x18a0] sm:$0xff]
    %v1565 = vld [vmem:[#allocation6 + $0x18a8] sm:$0xff]
    %v1566 = vld [vmem:[#allocation6 + $0x18b0] sm:$0xff]
    %v1567 = vld [vmem:[#allocation6 + $0x18b8] sm:$0xff]
    %v1568 = vld [vmem:[#allocation6 + $0x18c0] sm:$0xff]
    %v1569 = vld [vmem:[#allocation6 + $0x18c8] sm:$0xff]
    %v1570 = vld [vmem:[#allocation6 + $0x18d0] sm:$0xff]
    %v1571 = vld [vmem:[#allocation6 + $0x18d8] sm:$0xff]
    %v1572 = vld [vmem:[#allocation6 + $0x18e0] sm:$0xff]
    %v1573 = vld [vmem:[#allocation6 + $0x18e8] sm:$0xff]
    %v1574 = vld [vmem:[#allocation6 + $0x18f0] sm:$0xff]
    %v1575 = vld [vmem:[#allocation6 + $0x18f8] sm:$0xff]
    %v1576 = vld [vmem:[#allocation6 + $0x1900] sm:$0xff]
    %v1577 = vld [vmem:[#allocation6 + $0x1908] sm:$0xff]
    %v1578 = vld [vmem:[#allocation6 + $0x1910] sm:$0xff]
    %v1579 = vld [vmem:[#allocation6 + $0x1918] sm:$0xff]
    %v1580 = vld [vmem:[#allocation6 + $0x1920] sm:$0xff]
    %v1581 = vld [vmem:[#allocation6 + $0x1928] sm:$0xff]
    %v1582 = vld [vmem:[#allocation6 + $0x1930] sm:$0xff]
    %v1583 = vld [vmem:[#allocation6 + $0x1938] sm:$0xff]
    %v1584 = vld [vmem:[#allocation6 + $0x1940] sm:$0xff]
    %v1585 = vld [vmem:[#allocation6 + $0x1948] sm:$0xff]
    %v1586 = vld [vmem:[#allocation6 + $0x1950] sm:$0xff]
    %v1587 = vld [vmem:[#allocation6 + $0x1958] sm:$0xff]
    %v1588 = vld [vmem:[#allocation6 + $0x1960] sm:$0xff]
    %v1589 = vld [vmem:[#allocation6 + $0x1968] sm:$0xff]
    %v1590 = vld [vmem:[#allocation6 + $0x1970] sm:$0xff]
    %v1591 = vld [vmem:[#allocation6 + $0x1978] sm:$0xff]
    %v1592 = vld [vmem:[#allocation6 + $0x1980] sm:$0xff]
    %v1593 = vld [vmem:[#allocation6 + $0x1988] sm:$0xff]
    %v1594 = vld [vmem:[#allocation6 + $0x1990] sm:$0xff]
    %v1595 = vld [vmem:[#allocation6 + $0x1998] sm:$0xff]
    %v1596 = vld [vmem:[#allocation6 + $0x19a0] sm:$0xff]
    %v1597 = vld [vmem:[#allocation6 + $0x19a8] sm:$0xff]
    %v1598 = vld [vmem:[#allocation6 + $0x19b0] sm:$0xff]
    %v1599 = vld [vmem:[#allocation6 + $0x19b8] sm:$0xff]
    %v1600 = vld [vmem:[#allocation6 + $0x19c0] sm:$0xff]
    %v1601 = vld [vmem:[#allocation6 + $0x19c8] sm:$0xff]
    %v1602 = vld [vmem:[#allocation6 + $0x19d0] sm:$0xff]
    %v1603 = vld [vmem:[#allocation6 + $0x19d8] sm:$0xff]
    %v1604 = vld [vmem:[#allocation6 + $0x19e0] sm:$0xff]
    %v1605 = vld [vmem:[#allocation6 + $0x19e8] sm:$0xff]
    %v1606 = vld [vmem:[#allocation6 + $0x19f0] sm:$0xff]
    %v1607 = vld [vmem:[#allocation6 + $0x19f8] sm:$0xff]
    %v1608 = vld [vmem:[#allocation6 + $0x1a00] sm:$0xff]
    %v1609 = vld [vmem:[#allocation6 + $0x1a08] sm:$0xff]
    %v1610 = vld [vmem:[#allocation6 + $0x1a10] sm:$0xff]
    %v1611 = vld [vmem:[#allocation6 + $0x1a18] sm:$0xff]
    %v1612 = vld [vmem:[#allocation6 + $0x1a20] sm:$0xff]
    %v1613 = vld [vmem:[#allocation6 + $0x1a28] sm:$0xff]
    %v1614 = vld [vmem:[#allocation6 + $0x1a30] sm:$0xff]
    %v1615 = vld [vmem:[#allocation6 + $0x1a38] sm:$0xff]
    %v1616 = vld [vmem:[#allocation6 + $0x1a40] sm:$0xff]
    %v1617 = vld [vmem:[#allocation6 + $0x1a48] sm:$0xff]
    %v1618 = vld [vmem:[#allocation6 + $0x1a50] sm:$0xff]
    %v1619 = vld [vmem:[#allocation6 + $0x1a58] sm:$0xff]
    %v1620 = vld [vmem:[#allocation6 + $0x1a60] sm:$0xff]
    %v1621 = vld [vmem:[#allocation6 + $0x1a68] sm:$0xff]
    %v1622 = vld [vmem:[#allocation6 + $0x1a70] sm:$0xff]
    %v1623 = vld [vmem:[#allocation6 + $0x1a78] sm:$0xff]
    %v1624 = vld [vmem:[#allocation6 + $0x1a80] sm:$0xff]
    %v1625 = vld [vmem:[#allocation6 + $0x1a88] sm:$0xff]
    %v1626 = vld [vmem:[#allocation6 + $0x1a90] sm:$0xff]
    %v1627 = vld [vmem:[#allocation6 + $0x1a98] sm:$0xff]
    %v1628 = vld [vmem:[#allocation6 + $0x1aa0] sm:$0xff]
    %v1629 = vld [vmem:[#allocation6 + $0x1aa8] sm:$0xff]
    %v1630 = vld [vmem:[#allocation6 + $0x1ab0] sm:$0xff]
    %v1631 = vld [vmem:[#allocation6 + $0x1ab8] sm:$0xff]
    %v1632 = vld [vmem:[#allocation6 + $0x1ac0] sm:$0xff]
    %v1633 = vld [vmem:[#allocation6 + $0x1ac8] sm:$0xff]
    %v1634 = vld [vmem:[#allocation6 + $0x1ad0] sm:$0xff]
    %v1635 = vld [vmem:[#allocation6 + $0x1ad8] sm:$0xff]
    %v1636 = vld [vmem:[#allocation6 + $0x1ae0] sm:$0xff]
    %v1637 = vld [vmem:[#allocation6 + $0x1ae8] sm:$0xff]
    %v1638 = vld [vmem:[#allocation6 + $0x1af0] sm:$0xff]
    %v1639 = vld [vmem:[#allocation6 + $0x1af8] sm:$0xff]
    %v1640 = vld [vmem:[#allocation6 + $0x1b00] sm:$0xff]
    %v1641 = vld [vmem:[#allocation6 + $0x1b08] sm:$0xff]
    %v1642 = vld [vmem:[#allocation6 + $0x1b10] sm:$0xff]
    %v1643 = vld [vmem:[#allocation6 + $0x1b18] sm:$0xff]
    %v1644 = vld [vmem:[#allocation6 + $0x1b20] sm:$0xff]
    %v1645 = vld [vmem:[#allocation6 + $0x1b28] sm:$0xff]
    %v1646 = vld [vmem:[#allocation6 + $0x1b30] sm:$0xff]
    %v1647 = vld [vmem:[#allocation6 + $0x1b38] sm:$0xff]
    %v1648 = vld [vmem:[#allocation6 + $0x1b40] sm:$0xff]
    %v1649 = vld [vmem:[#allocation6 + $0x1b48] sm:$0xff]
    %v1650 = vld [vmem:[#allocation6 + $0x1b50] sm:$0xff]
    %v1651 = vld [vmem:[#allocation6 + $0x1b58] sm:$0xff]
    %v1652 = vld [vmem:[#allocation6 + $0x1b60] sm:$0xff]
    %v1653 = vld [vmem:[#allocation6 + $0x1b68] sm:$0xff]
    %v1654 = vld [vmem:[#allocation6 + $0x1b70] sm:$0xff]
    %v1655 = vld [vmem:[#allocation6 + $0x1b78] sm:$0xff]
    %v1656 = vld [vmem:[#allocation6 + $0x1b80] sm:$0xff]
    %v1657 = vld [vmem:[#allocation6 + $0x1b88] sm:$0xff]
    %v1658 = vld [vmem:[#allocation6 + $0x1b90] sm:$0xff]
    %v1659 = vld [vmem:[#allocation6 + $0x1b98] sm:$0xff]
    %v1660 = vld [vmem:[#allocation6 + $0x1ba0] sm:$0xff]
    %v1661 = vld [vmem:[#allocation6 + $0x1ba8] sm:$0xff]
    %v1662 = vld [vmem:[#allocation6 + $0x1bb0] sm:$0xff]
    %v1663 = vld [vmem:[#allocation6 + $0x1bb8] sm:$0xff]
    %v1664 = vld [vmem:[#allocation6 + $0x1bc0] sm:$0xff]
    %v1665 = vld [vmem:[#allocation6 + $0x1bc8] sm:$0xff]
    %v1666 = vld [vmem:[#allocation6 + $0x1bd0] sm:$0xff]
    %v1667 = vld [vmem:[#allocation6 + $0x1bd8] sm:$0xff]
    %v1668 = vld [vmem:[#allocation6 + $0x1be0] sm:$0xff]
    %v1669 = vld [vmem:[#allocation6 + $0x1be8] sm:$0xff]
    %v1670 = vld [vmem:[#allocation6 + $0x1bf0] sm:$0xff]
    %v1671 = vld [vmem:[#allocation6 + $0x1bf8] sm:$0xff]
    %v1672 = vld [vmem:[#allocation6 + $0x1c00] sm:$0xff]
    %v1673 = vld [vmem:[#allocation6 + $0x1c08] sm:$0xff]
    %v1674 = vld [vmem:[#allocation6 + $0x1c10] sm:$0xff]
    %v1675 = vld [vmem:[#allocation6 + $0x1c18] sm:$0xff]
    %v1676 = vld [vmem:[#allocation6 + $0x1c20] sm:$0xff]
    %v1677 = vld [vmem:[#allocation6 + $0x1c28] sm:$0xff]
    %v1678 = vld [vmem:[#allocation6 + $0x1c30] sm:$0xff]
    %v1679 = vld [vmem:[#allocation6 + $0x1c38] sm:$0xff]
    %v1680 = vld [vmem:[#allocation6 + $0x1c40] sm:$0xff]
    %v1681 = vld [vmem:[#allocation6 + $0x1c48] sm:$0xff]
    %v1682 = vld [vmem:[#allocation6 + $0x1c50] sm:$0xff]
    %v1683 = vld [vmem:[#allocation6 + $0x1c58] sm:$0xff]
    %v1684 = vld [vmem:[#allocation6 + $0x1c60] sm:$0xff]
    %v1685 = vld [vmem:[#allocation6 + $0x1c68] sm:$0xff]
    %v1686 = vld [vmem:[#allocation6 + $0x1c70] sm:$0xff]
    %v1687 = vld [vmem:[#allocation6 + $0x1c78] sm:$0xff]
    %v1688 = vld [vmem:[#allocation6 + $0x1c80] sm:$0xff]
    %v1689 = vld [vmem:[#allocation6 + $0x1c88] sm:$0xff]
    %v1690 = vld [vmem:[#allocation6 + $0x1c90] sm:$0xff]
    %v1691 = vld [vmem:[#allocation6 + $0x1c98] sm:$0xff]
    %v1692 = vld [vmem:[#allocation6 + $0x1ca0] sm:$0xff]
    %v1693 = vld [vmem:[#allocation6 + $0x1ca8] sm:$0xff]
    %v1694 = vld [vmem:[#allocation6 + $0x1cb0] sm:$0xff]
    %v1695 = vld [vmem:[#allocation6 + $0x1cb8] sm:$0xff]
    %v1696 = vld [vmem:[#allocation6 + $0x1cc0] sm:$0xff]
    %v1697 = vld [vmem:[#allocation6 + $0x1cc8] sm:$0xff]
    %v1698 = vld [vmem:[#allocation6 + $0x1cd0] sm:$0xff]
    %v1699 = vld [vmem:[#allocation6 + $0x1cd8] sm:$0xff]
    %v1700 = vld [vmem:[#allocation6 + $0x1ce0] sm:$0xff]
    %v1701 = vld [vmem:[#allocation6 + $0x1ce8] sm:$0xff]
    %v1702 = vld [vmem:[#allocation6 + $0x1cf0] sm:$0xff]
    %v1703 = vld [vmem:[#allocation6 + $0x1cf8] sm:$0xff]
    %v1704 = vld [vmem:[#allocation6 + $0x1d00] sm:$0xff]
    %v1705 = vld [vmem:[#allocation6 + $0x1d08] sm:$0xff]
    %v1706 = vld [vmem:[#allocation6 + $0x1d10] sm:$0xff]
    %v1707 = vld [vmem:[#allocation6 + $0x1d18] sm:$0xff]
    %v1708 = vld [vmem:[#allocation6 + $0x1d20] sm:$0xff]
    %v1709 = vld [vmem:[#allocation6 + $0x1d28] sm:$0xff]
    %v1710 = vld [vmem:[#allocation6 + $0x1d30] sm:$0xff]
    %v1711 = vld [vmem:[#allocation6 + $0x1d38] sm:$0xff]
    %v1712 = vld [vmem:[#allocation6 + $0x1d40] sm:$0xff]
    %v1713 = vld [vmem:[#allocation6 + $0x1d48] sm:$0xff]
    %v1714 = vld [vmem:[#allocation6 + $0x1d50] sm:$0xff]
    %v1715 = vld [vmem:[#allocation6 + $0x1d58] sm:$0xff]
    %v1716 = vld [vmem:[#allocation6 + $0x1d60] sm:$0xff]
    %v1717 = vld [vmem:[#allocation6 + $0x1d68] sm:$0xff]
    %v1718 = vld [vmem:[#allocation6 + $0x1d70] sm:$0xff]
    %v1719 = vld [vmem:[#allocation6 + $0x1d78] sm:$0xff]
    %v1720 = vld [vmem:[#allocation6 + $0x1d80] sm:$0xff]
    %v1721 = vld [vmem:[#allocation6 + $0x1d88] sm:$0xff]
    %v1722 = vld [vmem:[#allocation6 + $0x1d90] sm:$0xff]
    %v1723 = vld [vmem:[#allocation6 + $0x1d98] sm:$0xff]
    %v1724 = vld [vmem:[#allocation6 + $0x1da0] sm:$0xff]
    %v1725 = vld [vmem:[#allocation6 + $0x1da8] sm:$0xff]
    %v1726 = vld [vmem:[#allocation6 + $0x1db0] sm:$0xff]
    %v1727 = vld [vmem:[#allocation6 + $0x1db8] sm:$0xff]
    %v1728 = vld [vmem:[#allocation6 + $0x1dc0] sm:$0xff]
    %v1729 = vld [vmem:[#allocation6 + $0x1dc8] sm:$0xff]
    %v1730 = vld [vmem:[#allocation6 + $0x1dd0] sm:$0xff]
    %v1731 = vld [vmem:[#allocation6 + $0x1dd8] sm:$0xff]
    %v1732 = vld [vmem:[#allocation6 + $0x1de0] sm:$0xff]
    %v1733 = vld [vmem:[#allocation6 + $0x1de8] sm:$0xff]
    %v1734 = vld [vmem:[#allocation6 + $0x1df0] sm:$0xff]
    %v1735 = vld [vmem:[#allocation6 + $0x1df8] sm:$0xff]
    %v1736 = vld [vmem:[#allocation6 + $0x1e00] sm:$0xff]
    %v1737 = vld [vmem:[#allocation6 + $0x1e08] sm:$0xff]
    %v1738 = vld [vmem:[#allocation6 + $0x1e10] sm:$0xff]
    %v1739 = vld [vmem:[#allocation6 + $0x1e18] sm:$0xff]
    %v1740 = vld [vmem:[#allocation6 + $0x1e20] sm:$0xff]
    %v1741 = vld [vmem:[#allocation6 + $0x1e28] sm:$0xff]
    %v1742 = vld [vmem:[#allocation6 + $0x1e30] sm:$0xff]
    %v1743 = vld [vmem:[#allocation6 + $0x1e38] sm:$0xff]
    %v1744 = vld [vmem:[#allocation6 + $0x1e40] sm:$0xff]
    %v1745 = vld [vmem:[#allocation6 + $0x1e48] sm:$0xff]
    %v1746 = vld [vmem:[#allocation6 + $0x1e50] sm:$0xff]
    %v1747 = vld [vmem:[#allocation6 + $0x1e58] sm:$0xff]
    %v1748 = vld [vmem:[#allocation6 + $0x1e60] sm:$0xff]
    %v1749 = vld [vmem:[#allocation6 + $0x1e68] sm:$0xff]
    %v1750 = vld [vmem:[#allocation6 + $0x1e70] sm:$0xff]
    %v1751 = vld [vmem:[#allocation6 + $0x1e78] sm:$0xff]
    %v1752 = vld [vmem:[#allocation6 + $0x1e80] sm:$0xff]
    %v1753 = vld [vmem:[#allocation6 + $0x1e88] sm:$0xff]
    %v1754 = vld [vmem:[#allocation6 + $0x1e90] sm:$0xff]
    %v1755 = vld [vmem:[#allocation6 + $0x1e98] sm:$0xff]
    %v1756 = vld [vmem:[#allocation6 + $0x1ea0] sm:$0xff]
    %v1757 = vld [vmem:[#allocation6 + $0x1ea8] sm:$0xff]
    %v1758 = vld [vmem:[#allocation6 + $0x1eb0] sm:$0xff]
    %v1759 = vld [vmem:[#allocation6 + $0x1eb8] sm:$0xff]
    %v1760 = vld [vmem:[#allocation6 + $0x1ec0] sm:$0xff]
    %v1761 = vld [vmem:[#allocation6 + $0x1ec8] sm:$0xff]
    %v1762 = vld [vmem:[#allocation6 + $0x1ed0] sm:$0xff]
    %v1763 = vld [vmem:[#allocation6 + $0x1ed8] sm:$0xff]
    %v1764 = vld [vmem:[#allocation6 + $0x1ee0] sm:$0xff]
    %v1765 = vld [vmem:[#allocation6 + $0x1ee8] sm:$0xff]
    %v1766 = vld [vmem:[#allocation6 + $0x1ef0] sm:$0xff]
    %v1767 = vld [vmem:[#allocation6 + $0x1ef8] sm:$0xff]
    %v1768 = vld [vmem:[#allocation6 + $0x1f00] sm:$0xff]
    %v1769 = vld [vmem:[#allocation6 + $0x1f08] sm:$0xff]
    %v1770 = vld [vmem:[#allocation6 + $0x1f10] sm:$0xff]
    %v1771 = vld [vmem:[#allocation6 + $0x1f18] sm:$0xff]
    %v1772 = vld [vmem:[#allocation6 + $0x1f20] sm:$0xff]
    %v1773 = vld [vmem:[#allocation6 + $0x1f28] sm:$0xff]
    %v1774 = vld [vmem:[#allocation6 + $0x1f30] sm:$0xff]
    %v1775 = vld [vmem:[#allocation6 + $0x1f38] sm:$0xff]
    %v1776 = vld [vmem:[#allocation6 + $0x1f40] sm:$0xff]
    %v1777 = vld [vmem:[#allocation6 + $0x1f48] sm:$0xff]
    %v1778 = vld [vmem:[#allocation6 + $0x1f50] sm:$0xff]
    %v1779 = vld [vmem:[#allocation6 + $0x1f58] sm:$0xff]
    %v1780 = vld [vmem:[#allocation6 + $0x1f60] sm:$0xff]
    %v1781 = vld [vmem:[#allocation6 + $0x1f68] sm:$0xff]
    %v1782 = vld [vmem:[#allocation6 + $0x1f70] sm:$0xff]
    %v1783 = vld [vmem:[#allocation6 + $0x1f78] sm:$0xff]
    %v1784 = vld [vmem:[#allocation6 + $0x1f80] sm:$0xff]
    %v1785 = vld [vmem:[#allocation6 + $0x1f88] sm:$0xff]
    %v1786 = vld [vmem:[#allocation6 + $0x1f90] sm:$0xff]
    %v1787 = vld [vmem:[#allocation6 + $0x1f98] sm:$0xff]
    %v1788 = vld [vmem:[#allocation6 + $0x1fa0] sm:$0xff]
    %v1789 = vld [vmem:[#allocation6 + $0x1fa8] sm:$0xff]
    %v1790 = vld [vmem:[#allocation6 + $0x1fb0] sm:$0xff]
    %v1791 = vld [vmem:[#allocation6 + $0x1fb8] sm:$0xff]
    %v1792 = vld [vmem:[#allocation6 + $0x1fc0] sm:$0xff]
    %v1793 = vld [vmem:[#allocation6 + $0x1fc8] sm:$0xff]
    %v1794 = vld [vmem:[#allocation6 + $0x1fd0] sm:$0xff]
    %v1795 = vld [vmem:[#allocation6 + $0x1fd8] sm:$0xff]
    %v1796 = vld [vmem:[#allocation6 + $0x1fe0] sm:$0xff]
    %v1797 = vld [vmem:[#allocation6 + $0x1fe8] sm:$0xff]
    %v1798 = vld [vmem:[#allocation6 + $0x1ff0] sm:$0xff]
    %v1799 = vld [vmem:[#allocation6 + $0x1ff8] sm:$0xff]
    %v1800 = vld [vmem:[#allocation7] sm:$0xff]
    %v1802 = vlaneseq
    %v1803 = vshrl.u32 %v1802, 7
    %v1804 = vsub.s32 0, %v1803
    %v1805 = vrot.slane %v1800, %v1804
    %v1806 = vlaneseq
    %v1807 = vshrl.u32 %v1806, 7
    %v1808 = vsub.s32 1, %v1807
    %v1809 = vrot.slane %v1800, %v1808
    %v1810 = vlaneseq
    %v1811 = vshrl.u32 %v1810, 7
    %v1812 = vsub.s32 2, %v1811
    %v1813 = vrot.slane %v1800, %v1812
    %v1814 = vlaneseq
    %v1815 = vshrl.u32 %v1814, 7
    %v1816 = vsub.s32 3, %v1815
    %v1817 = vrot.slane %v1800, %v1816
    %v1818 = vlaneseq
    %v1819 = vshrl.u32 %v1818, 7
    %v1820 = vsub.s32 4, %v1819
    %v1821 = vrot.slane %v1800, %v1820
    %v1822 = vlaneseq
    %v1823 = vshrl.u32 %v1822, 7
    %v1824 = vsub.s32 5, %v1823
    %v1825 = vrot.slane %v1800, %v1824
    %v1826 = vlaneseq
    %v1827 = vshrl.u32 %v1826, 7
    %v1828 = vsub.s32 6, %v1827
    %v1829 = vrot.slane %v1800, %v1828
    %v1830 = vlaneseq
    %v1831 = vshrl.u32 %v1830, 7
    %v1832 = vsub.s32 7, %v1831
    %v1833 = vrot.slane %v1800, %v1832
    %v2866 = vunpack.c.l.b16 %v776
    %v2867 = vunpack.c.h.b16 %v776
    %v2868 = vunpack.c.l.b16 %v777
    %v2869 = vunpack.c.h.b16 %v777
    %v2870 = vunpack.c.l.b16 %v778
    %v2871 = vunpack.c.h.b16 %v778
    %v2872 = vunpack.c.l.b16 %v779
    %v2873 = vunpack.c.h.b16 %v779
    %v2874 = vunpack.c.l.b16 %v780
    %v2875 = vunpack.c.h.b16 %v780
    %v2876 = vunpack.c.l.b16 %v781
    %v2877 = vunpack.c.h.b16 %v781
    %v2878 = vunpack.c.l.b16 %v782
    %v2879 = vunpack.c.h.b16 %v782
    %v2880 = vunpack.c.l.b16 %v783
    %v2881 = vunpack.c.h.b16 %v783
    %v2882 = vunpack.c.l.b16 %v784
    %v2883 = vunpack.c.h.b16 %v784
    %v2884 = vunpack.c.l.b16 %v785
    %v2885 = vunpack.c.h.b16 %v785
    %v2886 = vunpack.c.l.b16 %v786
    %v2887 = vunpack.c.h.b16 %v786
    %v2888 = vunpack.c.l.b16 %v787
    %v2889 = vunpack.c.h.b16 %v787
    %v2890 = vunpack.c.l.b16 %v788
    %v2891 = vunpack.c.h.b16 %v788
    %v2892 = vunpack.c.l.b16 %v789
    %v2893 = vunpack.c.h.b16 %v789
    %v2894 = vunpack.c.l.b16 %v790
    %v2895 = vunpack.c.h.b16 %v790
    %v2896 = vunpack.c.l.b16 %v791
    %v2897 = vunpack.c.h.b16 %v791
    %v2898 = vunpack.c.l.b16 %v792
    %v2899 = vunpack.c.h.b16 %v792
    %v2900 = vunpack.c.l.b16 %v793
    %v2901 = vunpack.c.h.b16 %v793
    %v2902 = vunpack.c.l.b16 %v794
    %v2903 = vunpack.c.h.b16 %v794
    %v2904 = vunpack.c.l.b16 %v795
    %v2905 = vunpack.c.h.b16 %v795
    %v2906 = vunpack.c.l.b16 %v796
    %v2907 = vunpack.c.h.b16 %v796
    %v2908 = vunpack.c.l.b16 %v797
    %v2909 = vunpack.c.h.b16 %v797
    %v2910 = vunpack.c.l.b16 %v798
    %v2911 = vunpack.c.h.b16 %v798
    %v2912 = vunpack.c.l.b16 %v799
    %v2913 = vunpack.c.h.b16 %v799
    %v2914 = vunpack.c.l.b16 %v800
    %v2915 = vunpack.c.h.b16 %v800
    %v2916 = vunpack.c.l.b16 %v801
    %v2917 = vunpack.c.h.b16 %v801
    %v2918 = vunpack.c.l.b16 %v802
    %v2919 = vunpack.c.h.b16 %v802
    %v2920 = vunpack.c.l.b16 %v803
    %v2921 = vunpack.c.h.b16 %v803
    %v2922 = vunpack.c.l.b16 %v804
    %v2923 = vunpack.c.h.b16 %v804
    %v2924 = vunpack.c.l.b16 %v805
    %v2925 = vunpack.c.h.b16 %v805
    %v2926 = vunpack.c.l.b16 %v806
    %v2927 = vunpack.c.h.b16 %v806
    %v2928 = vunpack.c.l.b16 %v807
    %v2929 = vunpack.c.h.b16 %v807
    %v2930 = vunpack.c.l.b16 %v808
    %v2931 = vunpack.c.h.b16 %v808
    %v2932 = vunpack.c.l.b16 %v809
    %v2933 = vunpack.c.h.b16 %v809
    %v2934 = vunpack.c.l.b16 %v810
    %v2935 = vunpack.c.h.b16 %v810
    %v2936 = vunpack.c.l.b16 %v811
    %v2937 = vunpack.c.h.b16 %v811
    %v2938 = vunpack.c.l.b16 %v812
    %v2939 = vunpack.c.h.b16 %v812
    %v2940 = vunpack.c.l.b16 %v813
    %v2941 = vunpack.c.h.b16 %v813
    %v2942 = vunpack.c.l.b16 %v814
    %v2943 = vunpack.c.h.b16 %v814
    %v2944 = vunpack.c.l.b16 %v815
    %v2945 = vunpack.c.h.b16 %v815
    %v2946 = vunpack.c.l.b16 %v816
    %v2947 = vunpack.c.h.b16 %v816
    %v2948 = vunpack.c.l.b16 %v817
    %v2949 = vunpack.c.h.b16 %v817
    %v2950 = vunpack.c.l.b16 %v818
    %v2951 = vunpack.c.h.b16 %v818
    %v2952 = vunpack.c.l.b16 %v819
    %v2953 = vunpack.c.h.b16 %v819
    %v2954 = vunpack.c.l.b16 %v820
    %v2955 = vunpack.c.h.b16 %v820
    %v2956 = vunpack.c.l.b16 %v821
    %v2957 = vunpack.c.h.b16 %v821
    %v2958 = vunpack.c.l.b16 %v822
    %v2959 = vunpack.c.h.b16 %v822
    %v2960 = vunpack.c.l.b16 %v823
    %v2961 = vunpack.c.h.b16 %v823
    %v2962 = vunpack.c.l.b16 %v824
    %v2963 = vunpack.c.h.b16 %v824
    %v2964 = vunpack.c.l.b16 %v825
    %v2965 = vunpack.c.h.b16 %v825
    %v2966 = vunpack.c.l.b16 %v826
    %v2967 = vunpack.c.h.b16 %v826
    %v2968 = vunpack.c.l.b16 %v827
    %v2969 = vunpack.c.h.b16 %v827
    %v2970 = vunpack.c.l.b16 %v828
    %v2971 = vunpack.c.h.b16 %v828
    %v2972 = vunpack.c.l.b16 %v829
    %v2973 = vunpack.c.h.b16 %v829
    %v2974 = vunpack.c.l.b16 %v830
    %v2975 = vunpack.c.h.b16 %v830
    %v2976 = vunpack.c.l.b16 %v831
    %v2977 = vunpack.c.h.b16 %v831
    %v2978 = vunpack.c.l.b16 %v832
    %v2979 = vunpack.c.h.b16 %v832
    %v2980 = vunpack.c.l.b16 %v833
    %v2981 = vunpack.c.h.b16 %v833
    %v2982 = vunpack.c.l.b16 %v834
    %v2983 = vunpack.c.h.b16 %v834
    %v2984 = vunpack.c.l.b16 %v835
    %v2985 = vunpack.c.h.b16 %v835
    %v2986 = vunpack.c.l.b16 %v836
    %v2987 = vunpack.c.h.b16 %v836
    %v2988 = vunpack.c.l.b16 %v837
    %v2989 = vunpack.c.h.b16 %v837
    %v2990 = vunpack.c.l.b16 %v838
    %v2991 = vunpack.c.h.b16 %v838
    %v2992 = vunpack.c.l.b16 %v839
    %v2993 = vunpack.c.h.b16 %v839
    %v2994 = vunpack.c.l.b16 %v840
    %v2995 = vunpack.c.h.b16 %v840
    %v2996 = vunpack.c.l.b16 %v841
    %v2997 = vunpack.c.h.b16 %v841
    %v2998 = vunpack.c.l.b16 %v842
    %v2999 = vunpack.c.h.b16 %v842
    %v3000 = vunpack.c.l.b16 %v843
    %v3001 = vunpack.c.h.b16 %v843
    %v3002 = vunpack.c.l.b16 %v844
    %v3003 = vunpack.c.h.b16 %v844
    %v3004 = vunpack.c.l.b16 %v845
    %v3005 = vunpack.c.h.b16 %v845
    %v3006 = vunpack.c.l.b16 %v846
    %v3007 = vunpack.c.h.b16 %v846
    %v3008 = vunpack.c.l.b16 %v847
    %v3009 = vunpack.c.h.b16 %v847
    %v3010 = vunpack.c.l.b16 %v848
    %v3011 = vunpack.c.h.b16 %v848
    %v3012 = vunpack.c.l.b16 %v849
    %v3013 = vunpack.c.h.b16 %v849
    %v3014 = vunpack.c.l.b16 %v850
    %v3015 = vunpack.c.h.b16 %v850
    %v3016 = vunpack.c.l.b16 %v851
    %v3017 = vunpack.c.h.b16 %v851
    %v3018 = vunpack.c.l.b16 %v852
    %v3019 = vunpack.c.h.b16 %v852
    %v3020 = vunpack.c.l.b16 %v853
    %v3021 = vunpack.c.h.b16 %v853
    %v3022 = vunpack.c.l.b16 %v854
    %v3023 = vunpack.c.h.b16 %v854
    %v3024 = vunpack.c.l.b16 %v855
    %v3025 = vunpack.c.h.b16 %v855
    %v3026 = vunpack.c.l.b16 %v856
    %v3027 = vunpack.c.h.b16 %v856
    %v3028 = vunpack.c.l.b16 %v857
    %v3029 = vunpack.c.h.b16 %v857
    %v3030 = vunpack.c.l.b16 %v858
    %v3031 = vunpack.c.h.b16 %v858
    %v3032 = vunpack.c.l.b16 %v859
    %v3033 = vunpack.c.h.b16 %v859
    %v3034 = vunpack.c.l.b16 %v860
    %v3035 = vunpack.c.h.b16 %v860
    %v3036 = vunpack.c.l.b16 %v861
    %v3037 = vunpack.c.h.b16 %v861
    %v3038 = vunpack.c.l.b16 %v862
    %v3039 = vunpack.c.h.b16 %v862
    %v3040 = vunpack.c.l.b16 %v863
    %v3041 = vunpack.c.h.b16 %v863
    %v3042 = vunpack.c.l.b16 %v864
    %v3043 = vunpack.c.h.b16 %v864
    %v3044 = vunpack.c.l.b16 %v865
    %v3045 = vunpack.c.h.b16 %v865
    %v3046 = vunpack.c.l.b16 %v866
    %v3047 = vunpack.c.h.b16 %v866
    %v3048 = vunpack.c.l.b16 %v867
    %v3049 = vunpack.c.h.b16 %v867
    %v3050 = vunpack.c.l.b16 %v868
    %v3051 = vunpack.c.h.b16 %v868
    %v3052 = vunpack.c.l.b16 %v869
    %v3053 = vunpack.c.h.b16 %v869
    %v3054 = vunpack.c.l.b16 %v870
    %v3055 = vunpack.c.h.b16 %v870
    %v3056 = vunpack.c.l.b16 %v871
    %v3057 = vunpack.c.h.b16 %v871
    %v3058 = vunpack.c.l.b16 %v872
    %v3059 = vunpack.c.h.b16 %v872
    %v3060 = vunpack.c.l.b16 %v873
    %v3061 = vunpack.c.h.b16 %v873
    %v3062 = vunpack.c.l.b16 %v874
    %v3063 = vunpack.c.h.b16 %v874
    %v3064 = vunpack.c.l.b16 %v875
    %v3065 = vunpack.c.h.b16 %v875
    %v3066 = vunpack.c.l.b16 %v876
    %v3067 = vunpack.c.h.b16 %v876
    %v3068 = vunpack.c.l.b16 %v877
    %v3069 = vunpack.c.h.b16 %v877
    %v3070 = vunpack.c.l.b16 %v878
    %v3071 = vunpack.c.h.b16 %v878
    %v3072 = vunpack.c.l.b16 %v879
    %v3073 = vunpack.c.h.b16 %v879
    %v3074 = vunpack.c.l.b16 %v880
    %v3075 = vunpack.c.h.b16 %v880
    %v3076 = vunpack.c.l.b16 %v881
    %v3077 = vunpack.c.h.b16 %v881
    %v3078 = vunpack.c.l.b16 %v882
    %v3079 = vunpack.c.h.b16 %v882
    %v3080 = vunpack.c.l.b16 %v883
    %v3081 = vunpack.c.h.b16 %v883
    %v3082 = vunpack.c.l.b16 %v884
    %v3083 = vunpack.c.h.b16 %v884
    %v3084 = vunpack.c.l.b16 %v885
    %v3085 = vunpack.c.h.b16 %v885
    %v3086 = vunpack.c.l.b16 %v886
    %v3087 = vunpack.c.h.b16 %v886
    %v3088 = vunpack.c.l.b16 %v887
    %v3089 = vunpack.c.h.b16 %v887
    %v3090 = vunpack.c.l.b16 %v888
    %v3091 = vunpack.c.h.b16 %v888
    %v3092 = vunpack.c.l.b16 %v889
    %v3093 = vunpack.c.h.b16 %v889
    %v3094 = vunpack.c.l.b16 %v890
    %v3095 = vunpack.c.h.b16 %v890
    %v3096 = vunpack.c.l.b16 %v891
    %v3097 = vunpack.c.h.b16 %v891
    %v3098 = vunpack.c.l.b16 %v892
    %v3099 = vunpack.c.h.b16 %v892
    %v3100 = vunpack.c.l.b16 %v893
    %v3101 = vunpack.c.h.b16 %v893
    %v3102 = vunpack.c.l.b16 %v894
    %v3103 = vunpack.c.h.b16 %v894
    %v3104 = vunpack.c.l.b16 %v895
    %v3105 = vunpack.c.h.b16 %v895
    %v3106 = vunpack.c.l.b16 %v896
    %v3107 = vunpack.c.h.b16 %v896
    %v3108 = vunpack.c.l.b16 %v897
    %v3109 = vunpack.c.h.b16 %v897
    %v3110 = vunpack.c.l.b16 %v898
    %v3111 = vunpack.c.h.b16 %v898
    %v3112 = vunpack.c.l.b16 %v899
    %v3113 = vunpack.c.h.b16 %v899
    %v3114 = vunpack.c.l.b16 %v900
    %v3115 = vunpack.c.h.b16 %v900
    %v3116 = vunpack.c.l.b16 %v901
    %v3117 = vunpack.c.h.b16 %v901
    %v3118 = vunpack.c.l.b16 %v902
    %v3119 = vunpack.c.h.b16 %v902
    %v3120 = vunpack.c.l.b16 %v903
    %v3121 = vunpack.c.h.b16 %v903
    %v3122 = vunpack.c.l.b16 %v904
    %v3123 = vunpack.c.h.b16 %v904
    %v3124 = vunpack.c.l.b16 %v905
    %v3125 = vunpack.c.h.b16 %v905
    %v3126 = vunpack.c.l.b16 %v906
    %v3127 = vunpack.c.h.b16 %v906
    %v3128 = vunpack.c.l.b16 %v907
    %v3129 = vunpack.c.h.b16 %v907
    %v3130 = vunpack.c.l.b16 %v908
    %v3131 = vunpack.c.h.b16 %v908
    %v3132 = vunpack.c.l.b16 %v909
    %v3133 = vunpack.c.h.b16 %v909
    %v3134 = vunpack.c.l.b16 %v910
    %v3135 = vunpack.c.h.b16 %v910
    %v3136 = vunpack.c.l.b16 %v911
    %v3137 = vunpack.c.h.b16 %v911
    %v3138 = vunpack.c.l.b16 %v912
    %v3139 = vunpack.c.h.b16 %v912
    %v3140 = vunpack.c.l.b16 %v913
    %v3141 = vunpack.c.h.b16 %v913
    %v3142 = vunpack.c.l.b16 %v914
    %v3143 = vunpack.c.h.b16 %v914
    %v3144 = vunpack.c.l.b16 %v915
    %v3145 = vunpack.c.h.b16 %v915
    %v3146 = vunpack.c.l.b16 %v916
    %v3147 = vunpack.c.h.b16 %v916
    %v3148 = vunpack.c.l.b16 %v917
    %v3149 = vunpack.c.h.b16 %v917
    %v3150 = vunpack.c.l.b16 %v918
    %v3151 = vunpack.c.h.b16 %v918
    %v3152 = vunpack.c.l.b16 %v919
    %v3153 = vunpack.c.h.b16 %v919
    %v3154 = vunpack.c.l.b16 %v920
    %v3155 = vunpack.c.h.b16 %v920
    %v3156 = vunpack.c.l.b16 %v921
    %v3157 = vunpack.c.h.b16 %v921
    %v3158 = vunpack.c.l.b16 %v922
    %v3159 = vunpack.c.h.b16 %v922
    %v3160 = vunpack.c.l.b16 %v923
    %v3161 = vunpack.c.h.b16 %v923
    %v3162 = vunpack.c.l.b16 %v924
    %v3163 = vunpack.c.h.b16 %v924
    %v3164 = vunpack.c.l.b16 %v925
    %v3165 = vunpack.c.h.b16 %v925
    %v3166 = vunpack.c.l.b16 %v926
    %v3167 = vunpack.c.h.b16 %v926
    %v3168 = vunpack.c.l.b16 %v927
    %v3169 = vunpack.c.h.b16 %v927
    %v3170 = vunpack.c.l.b16 %v928
    %v3171 = vunpack.c.h.b16 %v928
    %v3172 = vunpack.c.l.b16 %v929
    %v3173 = vunpack.c.h.b16 %v929
    %v3174 = vunpack.c.l.b16 %v930
    %v3175 = vunpack.c.h.b16 %v930
    %v3176 = vunpack.c.l.b16 %v931
    %v3177 = vunpack.c.h.b16 %v931
    %v3178 = vunpack.c.l.b16 %v932
    %v3179 = vunpack.c.h.b16 %v932
    %v3180 = vunpack.c.l.b16 %v933
    %v3181 = vunpack.c.h.b16 %v933
    %v3182 = vunpack.c.l.b16 %v934
    %v3183 = vunpack.c.h.b16 %v934
    %v3184 = vunpack.c.l.b16 %v935
    %v3185 = vunpack.c.h.b16 %v935
    %v3186 = vunpack.c.l.b16 %v936
    %v3187 = vunpack.c.h.b16 %v936
    %v3188 = vunpack.c.l.b16 %v937
    %v3189 = vunpack.c.h.b16 %v937
    %v3190 = vunpack.c.l.b16 %v938
    %v3191 = vunpack.c.h.b16 %v938
    %v3192 = vunpack.c.l.b16 %v939
    %v3193 = vunpack.c.h.b16 %v939
    %v3194 = vunpack.c.l.b16 %v940
    %v3195 = vunpack.c.h.b16 %v940
    %v3196 = vunpack.c.l.b16 %v941
    %v3197 = vunpack.c.h.b16 %v941
    %v3198 = vunpack.c.l.b16 %v942
    %v3199 = vunpack.c.h.b16 %v942
    %v3200 = vunpack.c.l.b16 %v943
    %v3201 = vunpack.c.h.b16 %v943
    %v3202 = vunpack.c.l.b16 %v944
    %v3203 = vunpack.c.h.b16 %v944
    %v3204 = vunpack.c.l.b16 %v945
    %v3205 = vunpack.c.h.b16 %v945
    %v3206 = vunpack.c.l.b16 %v946
    %v3207 = vunpack.c.h.b16 %v946
    %v3208 = vunpack.c.l.b16 %v947
    %v3209 = vunpack.c.h.b16 %v947
    %v3210 = vunpack.c.l.b16 %v948
    %v3211 = vunpack.c.h.b16 %v948
    %v3212 = vunpack.c.l.b16 %v949
    %v3213 = vunpack.c.h.b16 %v949
    %v3214 = vunpack.c.l.b16 %v950
    %v3215 = vunpack.c.h.b16 %v950
    %v3216 = vunpack.c.l.b16 %v951
    %v3217 = vunpack.c.h.b16 %v951
    %v3218 = vunpack.c.l.b16 %v952
    %v3219 = vunpack.c.h.b16 %v952
    %v3220 = vunpack.c.l.b16 %v953
    %v3221 = vunpack.c.h.b16 %v953
    %v3222 = vunpack.c.l.b16 %v954
    %v3223 = vunpack.c.h.b16 %v954
    %v3224 = vunpack.c.l.b16 %v955
    %v3225 = vunpack.c.h.b16 %v955
    %v3226 = vunpack.c.l.b16 %v956
    %v3227 = vunpack.c.h.b16 %v956
    %v3228 = vunpack.c.l.b16 %v957
    %v3229 = vunpack.c.h.b16 %v957
    %v3230 = vunpack.c.l.b16 %v958
    %v3231 = vunpack.c.h.b16 %v958
    %v3232 = vunpack.c.l.b16 %v959
    %v3233 = vunpack.c.h.b16 %v959
    %v3234 = vunpack.c.l.b16 %v960
    %v3235 = vunpack.c.h.b16 %v960
    %v3236 = vunpack.c.l.b16 %v961
    %v3237 = vunpack.c.h.b16 %v961
    %v3238 = vunpack.c.l.b16 %v962
    %v3239 = vunpack.c.h.b16 %v962
    %v3240 = vunpack.c.l.b16 %v963
    %v3241 = vunpack.c.h.b16 %v963
    %v3242 = vunpack.c.l.b16 %v964
    %v3243 = vunpack.c.h.b16 %v964
    %v3244 = vunpack.c.l.b16 %v965
    %v3245 = vunpack.c.h.b16 %v965
    %v3246 = vunpack.c.l.b16 %v966
    %v3247 = vunpack.c.h.b16 %v966
    %v3248 = vunpack.c.l.b16 %v967
    %v3249 = vunpack.c.h.b16 %v967
    %v3250 = vunpack.c.l.b16 %v968
    %v3251 = vunpack.c.h.b16 %v968
    %v3252 = vunpack.c.l.b16 %v969
    %v3253 = vunpack.c.h.b16 %v969
    %v3254 = vunpack.c.l.b16 %v970
    %v3255 = vunpack.c.h.b16 %v970
    %v3256 = vunpack.c.l.b16 %v971
    %v3257 = vunpack.c.h.b16 %v971
    %v3258 = vunpack.c.l.b16 %v972
    %v3259 = vunpack.c.h.b16 %v972
    %v3260 = vunpack.c.l.b16 %v973
    %v3261 = vunpack.c.h.b16 %v973
    %v3262 = vunpack.c.l.b16 %v974
    %v3263 = vunpack.c.h.b16 %v974
    %v3264 = vunpack.c.l.b16 %v975
    %v3265 = vunpack.c.h.b16 %v975
    %v3266 = vunpack.c.l.b16 %v976
    %v3267 = vunpack.c.h.b16 %v976
    %v3268 = vunpack.c.l.b16 %v977
    %v3269 = vunpack.c.h.b16 %v977
    %v3270 = vunpack.c.l.b16 %v978
    %v3271 = vunpack.c.h.b16 %v978
    %v3272 = vunpack.c.l.b16 %v979
    %v3273 = vunpack.c.h.b16 %v979
    %v3274 = vunpack.c.l.b16 %v980
    %v3275 = vunpack.c.h.b16 %v980
    %v3276 = vunpack.c.l.b16 %v981
    %v3277 = vunpack.c.h.b16 %v981
    %v3278 = vunpack.c.l.b16 %v982
    %v3279 = vunpack.c.h.b16 %v982
    %v3280 = vunpack.c.l.b16 %v983
    %v3281 = vunpack.c.h.b16 %v983
    %v3282 = vunpack.c.l.b16 %v984
    %v3283 = vunpack.c.h.b16 %v984
    %v3284 = vunpack.c.l.b16 %v985
    %v3285 = vunpack.c.h.b16 %v985
    %v3286 = vunpack.c.l.b16 %v986
    %v3287 = vunpack.c.h.b16 %v986
    %v3288 = vunpack.c.l.b16 %v987
    %v3289 = vunpack.c.h.b16 %v987
    %v3290 = vunpack.c.l.b16 %v988
    %v3291 = vunpack.c.h.b16 %v988
    %v3292 = vunpack.c.l.b16 %v989
    %v3293 = vunpack.c.h.b16 %v989
    %v3294 = vunpack.c.l.b16 %v990
    %v3295 = vunpack.c.h.b16 %v990
    %v3296 = vunpack.c.l.b16 %v991
    %v3297 = vunpack.c.h.b16 %v991
    %v3298 = vunpack.c.l.b16 %v992
    %v3299 = vunpack.c.h.b16 %v992
    %v3300 = vunpack.c.l.b16 %v993
    %v3301 = vunpack.c.h.b16 %v993
    %v3302 = vunpack.c.l.b16 %v994
    %v3303 = vunpack.c.h.b16 %v994
    %v3304 = vunpack.c.l.b16 %v995
    %v3305 = vunpack.c.h.b16 %v995
    %v3306 = vunpack.c.l.b16 %v996
    %v3307 = vunpack.c.h.b16 %v996
    %v3308 = vunpack.c.l.b16 %v997
    %v3309 = vunpack.c.h.b16 %v997
    %v3310 = vunpack.c.l.b16 %v998
    %v3311 = vunpack.c.h.b16 %v998
    %v3312 = vunpack.c.l.b16 %v999
    %v3313 = vunpack.c.h.b16 %v999
    %v3314 = vunpack.c.l.b16 %v1000
    %v3315 = vunpack.c.h.b16 %v1000
    %v3316 = vunpack.c.l.b16 %v1001
    %v3317 = vunpack.c.h.b16 %v1001
    %v3318 = vunpack.c.l.b16 %v1002
    %v3319 = vunpack.c.h.b16 %v1002
    %v3320 = vunpack.c.l.b16 %v1003
    %v3321 = vunpack.c.h.b16 %v1003
    %v3322 = vunpack.c.l.b16 %v1004
    %v3323 = vunpack.c.h.b16 %v1004
    %v3324 = vunpack.c.l.b16 %v1005
    %v3325 = vunpack.c.h.b16 %v1005
    %v3326 = vunpack.c.l.b16 %v1006
    %v3327 = vunpack.c.h.b16 %v1006
    %v3328 = vunpack.c.l.b16 %v1007
    %v3329 = vunpack.c.h.b16 %v1007
    %v3330 = vunpack.c.l.b16 %v1008
    %v3331 = vunpack.c.h.b16 %v1008
    %v3332 = vunpack.c.l.b16 %v1009
    %v3333 = vunpack.c.h.b16 %v1009
    %v3334 = vunpack.c.l.b16 %v1010
    %v3335 = vunpack.c.h.b16 %v1010
    %v3336 = vunpack.c.l.b16 %v1011
    %v3337 = vunpack.c.h.b16 %v1011
    %v3338 = vunpack.c.l.b16 %v1012
    %v3339 = vunpack.c.h.b16 %v1012
    %v3340 = vunpack.c.l.b16 %v1013
    %v3341 = vunpack.c.h.b16 %v1013
    %v3342 = vunpack.c.l.b16 %v1014
    %v3343 = vunpack.c.h.b16 %v1014
    %v3344 = vunpack.c.l.b16 %v1015
    %v3345 = vunpack.c.h.b16 %v1015
    %v3346 = vunpack.c.l.b16 %v1016
    %v3347 = vunpack.c.h.b16 %v1016
    %v3348 = vunpack.c.l.b16 %v1017
    %v3349 = vunpack.c.h.b16 %v1017
    %v3350 = vunpack.c.l.b16 %v1018
    %v3351 = vunpack.c.h.b16 %v1018
    %v3352 = vunpack.c.l.b16 %v1019
    %v3353 = vunpack.c.h.b16 %v1019
    %v3354 = vunpack.c.l.b16 %v1020
    %v3355 = vunpack.c.h.b16 %v1020
    %v3356 = vunpack.c.l.b16 %v1021
    %v3357 = vunpack.c.h.b16 %v1021
    %v3358 = vunpack.c.l.b16 %v1022
    %v3359 = vunpack.c.h.b16 %v1022
    %v3360 = vunpack.c.l.b16 %v1023
    %v3361 = vunpack.c.h.b16 %v1023
    %v3362 = vunpack.c.l.b16 %v1024
    %v3363 = vunpack.c.h.b16 %v1024
    %v3364 = vunpack.c.l.b16 %v1025
    %v3365 = vunpack.c.h.b16 %v1025
    %v3366 = vunpack.c.l.b16 %v1026
    %v3367 = vunpack.c.h.b16 %v1026
    %v3368 = vunpack.c.l.b16 %v1027
    %v3369 = vunpack.c.h.b16 %v1027
    %v3370 = vunpack.c.l.b16 %v1028
    %v3371 = vunpack.c.h.b16 %v1028
    %v3372 = vunpack.c.l.b16 %v1029
    %v3373 = vunpack.c.h.b16 %v1029
    %v3374 = vunpack.c.l.b16 %v1030
    %v3375 = vunpack.c.h.b16 %v1030
    %v3376 = vunpack.c.l.b16 %v1031
    %v3377 = vunpack.c.h.b16 %v1031
    %v3378 = vunpack.c.l.b16 %v1032
    %v3379 = vunpack.c.h.b16 %v1032
    %v3380 = vunpack.c.l.b16 %v1033
    %v3381 = vunpack.c.h.b16 %v1033
    %v3382 = vunpack.c.l.b16 %v1034
    %v3383 = vunpack.c.h.b16 %v1034
    %v3384 = vunpack.c.l.b16 %v1035
    %v3385 = vunpack.c.h.b16 %v1035
    %v3386 = vunpack.c.l.b16 %v1036
    %v3387 = vunpack.c.h.b16 %v1036
    %v3388 = vunpack.c.l.b16 %v1037
    %v3389 = vunpack.c.h.b16 %v1037
    %v3390 = vunpack.c.l.b16 %v1038
    %v3391 = vunpack.c.h.b16 %v1038
    %v3392 = vunpack.c.l.b16 %v1039
    %v3393 = vunpack.c.h.b16 %v1039
    %v3394 = vunpack.c.l.b16 %v1040
    %v3395 = vunpack.c.h.b16 %v1040
    %v3396 = vunpack.c.l.b16 %v1041
    %v3397 = vunpack.c.h.b16 %v1041
    %v3398 = vunpack.c.l.b16 %v1042
    %v3399 = vunpack.c.h.b16 %v1042
    %v3400 = vunpack.c.l.b16 %v1043
    %v3401 = vunpack.c.h.b16 %v1043
    %v3402 = vunpack.c.l.b16 %v1044
    %v3403 = vunpack.c.h.b16 %v1044
    %v3404 = vunpack.c.l.b16 %v1045
    %v3405 = vunpack.c.h.b16 %v1045
    %v3406 = vunpack.c.l.b16 %v1046
    %v3407 = vunpack.c.h.b16 %v1046
    %v3408 = vunpack.c.l.b16 %v1047
    %v3409 = vunpack.c.h.b16 %v1047
    %v3410 = vunpack.c.l.b16 %v1048
    %v3411 = vunpack.c.h.b16 %v1048
    %v3412 = vunpack.c.l.b16 %v1049
    %v3413 = vunpack.c.h.b16 %v1049
    %v3414 = vunpack.c.l.b16 %v1050
    %v3415 = vunpack.c.h.b16 %v1050
    %v3416 = vunpack.c.l.b16 %v1051
    %v3417 = vunpack.c.h.b16 %v1051
    %v3418 = vunpack.c.l.b16 %v1052
    %v3419 = vunpack.c.h.b16 %v1052
    %v3420 = vunpack.c.l.b16 %v1053
    %v3421 = vunpack.c.h.b16 %v1053
    %v3422 = vunpack.c.l.b16 %v1054
    %v3423 = vunpack.c.h.b16 %v1054
    %v3424 = vunpack.c.l.b16 %v1055
    %v3425 = vunpack.c.h.b16 %v1055
    %v3426 = vunpack.c.l.b16 %v1056
    %v3427 = vunpack.c.h.b16 %v1056
    %v3428 = vunpack.c.l.b16 %v1057
    %v3429 = vunpack.c.h.b16 %v1057
    %v3430 = vunpack.c.l.b16 %v1058
    %v3431 = vunpack.c.h.b16 %v1058
    %v3432 = vunpack.c.l.b16 %v1059
    %v3433 = vunpack.c.h.b16 %v1059
    %v3434 = vunpack.c.l.b16 %v1060
    %v3435 = vunpack.c.h.b16 %v1060
    %v3436 = vunpack.c.l.b16 %v1061
    %v3437 = vunpack.c.h.b16 %v1061
    %v3438 = vunpack.c.l.b16 %v1062
    %v3439 = vunpack.c.h.b16 %v1062
    %v3440 = vunpack.c.l.b16 %v1063
    %v3441 = vunpack.c.h.b16 %v1063
    %v3442 = vunpack.c.l.b16 %v1064
    %v3443 = vunpack.c.h.b16 %v1064
    %v3444 = vunpack.c.l.b16 %v1065
    %v3445 = vunpack.c.h.b16 %v1065
    %v3446 = vunpack.c.l.b16 %v1066
    %v3447 = vunpack.c.h.b16 %v1066
    %v3448 = vunpack.c.l.b16 %v1067
    %v3449 = vunpack.c.h.b16 %v1067
    %v3450 = vunpack.c.l.b16 %v1068
    %v3451 = vunpack.c.h.b16 %v1068
    %v3452 = vunpack.c.l.b16 %v1069
    %v3453 = vunpack.c.h.b16 %v1069
    %v3454 = vunpack.c.l.b16 %v1070
    %v3455 = vunpack.c.h.b16 %v1070
    %v3456 = vunpack.c.l.b16 %v1071
    %v3457 = vunpack.c.h.b16 %v1071
    %v3458 = vunpack.c.l.b16 %v1072
    %v3459 = vunpack.c.h.b16 %v1072
    %v3460 = vunpack.c.l.b16 %v1073
    %v3461 = vunpack.c.h.b16 %v1073
    %v3462 = vunpack.c.l.b16 %v1074
    %v3463 = vunpack.c.h.b16 %v1074
    %v3464 = vunpack.c.l.b16 %v1075
    %v3465 = vunpack.c.h.b16 %v1075
    %v3466 = vunpack.c.l.b16 %v1076
    %v3467 = vunpack.c.h.b16 %v1076
    %v3468 = vunpack.c.l.b16 %v1077
    %v3469 = vunpack.c.h.b16 %v1077
    %v3470 = vunpack.c.l.b16 %v1078
    %v3471 = vunpack.c.h.b16 %v1078
    %v3472 = vunpack.c.l.b16 %v1079
    %v3473 = vunpack.c.h.b16 %v1079
    %v3474 = vunpack.c.l.b16 %v1080
    %v3475 = vunpack.c.h.b16 %v1080
    %v3476 = vunpack.c.l.b16 %v1081
    %v3477 = vunpack.c.h.b16 %v1081
    %v3478 = vunpack.c.l.b16 %v1082
    %v3479 = vunpack.c.h.b16 %v1082
    %v3480 = vunpack.c.l.b16 %v1083
    %v3481 = vunpack.c.h.b16 %v1083
    %v3482 = vunpack.c.l.b16 %v1084
    %v3483 = vunpack.c.h.b16 %v1084
    %v3484 = vunpack.c.l.b16 %v1085
    %v3485 = vunpack.c.h.b16 %v1085
    %v3486 = vunpack.c.l.b16 %v1086
    %v3487 = vunpack.c.h.b16 %v1086
    %v3488 = vunpack.c.l.b16 %v1087
    %v3489 = vunpack.c.h.b16 %v1087
    %v3490 = vunpack.c.l.b16 %v1088
    %v3491 = vunpack.c.h.b16 %v1088
    %v3492 = vunpack.c.l.b16 %v1089
    %v3493 = vunpack.c.h.b16 %v1089
    %v3494 = vunpack.c.l.b16 %v1090
    %v3495 = vunpack.c.h.b16 %v1090
    %v3496 = vunpack.c.l.b16 %v1091
    %v3497 = vunpack.c.h.b16 %v1091
    %v3498 = vunpack.c.l.b16 %v1092
    %v3499 = vunpack.c.h.b16 %v1092
    %v3500 = vunpack.c.l.b16 %v1093
    %v3501 = vunpack.c.h.b16 %v1093
    %v3502 = vunpack.c.l.b16 %v1094
    %v3503 = vunpack.c.h.b16 %v1094
    %v3504 = vunpack.c.l.b16 %v1095
    %v3505 = vunpack.c.h.b16 %v1095
    %v3506 = vunpack.c.l.b16 %v1096
    %v3507 = vunpack.c.h.b16 %v1096
    %v3508 = vunpack.c.l.b16 %v1097
    %v3509 = vunpack.c.h.b16 %v1097
    %v3510 = vunpack.c.l.b16 %v1098
    %v3511 = vunpack.c.h.b16 %v1098
    %v3512 = vunpack.c.l.b16 %v1099
    %v3513 = vunpack.c.h.b16 %v1099
    %v3514 = vunpack.c.l.b16 %v1100
    %v3515 = vunpack.c.h.b16 %v1100
    %v3516 = vunpack.c.l.b16 %v1101
    %v3517 = vunpack.c.h.b16 %v1101
    %v3518 = vunpack.c.l.b16 %v1102
    %v3519 = vunpack.c.h.b16 %v1102
    %v3520 = vunpack.c.l.b16 %v1103
    %v3521 = vunpack.c.h.b16 %v1103
    %v3522 = vunpack.c.l.b16 %v1104
    %v3523 = vunpack.c.h.b16 %v1104
    %v3524 = vunpack.c.l.b16 %v1105
    %v3525 = vunpack.c.h.b16 %v1105
    %v3526 = vunpack.c.l.b16 %v1106
    %v3527 = vunpack.c.h.b16 %v1106
    %v3528 = vunpack.c.l.b16 %v1107
    %v3529 = vunpack.c.h.b16 %v1107
    %v3530 = vunpack.c.l.b16 %v1108
    %v3531 = vunpack.c.h.b16 %v1108
    %v3532 = vunpack.c.l.b16 %v1109
    %v3533 = vunpack.c.h.b16 %v1109
    %v3534 = vunpack.c.l.b16 %v1110
    %v3535 = vunpack.c.h.b16 %v1110
    %v3536 = vunpack.c.l.b16 %v1111
    %v3537 = vunpack.c.h.b16 %v1111
    %v3538 = vunpack.c.l.b16 %v1112
    %v3539 = vunpack.c.h.b16 %v1112
    %v3540 = vunpack.c.l.b16 %v1113
    %v3541 = vunpack.c.h.b16 %v1113
    %v3542 = vunpack.c.l.b16 %v1114
    %v3543 = vunpack.c.h.b16 %v1114
    %v3544 = vunpack.c.l.b16 %v1115
    %v3545 = vunpack.c.h.b16 %v1115
    %v3546 = vunpack.c.l.b16 %v1116
    %v3547 = vunpack.c.h.b16 %v1116
    %v3548 = vunpack.c.l.b16 %v1117
    %v3549 = vunpack.c.h.b16 %v1117
    %v3550 = vunpack.c.l.b16 %v1118
    %v3551 = vunpack.c.h.b16 %v1118
    %v3552 = vunpack.c.l.b16 %v1119
    %v3553 = vunpack.c.h.b16 %v1119
    %v3554 = vunpack.c.l.b16 %v1120
    %v3555 = vunpack.c.h.b16 %v1120
    %v3556 = vunpack.c.l.b16 %v1121
    %v3557 = vunpack.c.h.b16 %v1121
    %v3558 = vunpack.c.l.b16 %v1122
    %v3559 = vunpack.c.h.b16 %v1122
    %v3560 = vunpack.c.l.b16 %v1123
    %v3561 = vunpack.c.h.b16 %v1123
    %v3562 = vunpack.c.l.b16 %v1124
    %v3563 = vunpack.c.h.b16 %v1124
    %v3564 = vunpack.c.l.b16 %v1125
    %v3565 = vunpack.c.h.b16 %v1125
    %v3566 = vunpack.c.l.b16 %v1126
    %v3567 = vunpack.c.h.b16 %v1126
    %v3568 = vunpack.c.l.b16 %v1127
    %v3569 = vunpack.c.h.b16 %v1127
    %v3570 = vunpack.c.l.b16 %v1128
    %v3571 = vunpack.c.h.b16 %v1128
    %v3572 = vunpack.c.l.b16 %v1129
    %v3573 = vunpack.c.h.b16 %v1129
    %v3574 = vunpack.c.l.b16 %v1130
    %v3575 = vunpack.c.h.b16 %v1130
    %v3576 = vunpack.c.l.b16 %v1131
    %v3577 = vunpack.c.h.b16 %v1131
    %v3578 = vunpack.c.l.b16 %v1132
    %v3579 = vunpack.c.h.b16 %v1132
    %v3580 = vunpack.c.l.b16 %v1133
    %v3581 = vunpack.c.h.b16 %v1133
    %v3582 = vunpack.c.l.b16 %v1134
    %v3583 = vunpack.c.h.b16 %v1134
    %v3584 = vunpack.c.l.b16 %v1135
    %v3585 = vunpack.c.h.b16 %v1135
    %v3586 = vunpack.c.l.b16 %v1136
    %v3587 = vunpack.c.h.b16 %v1136
    %v3588 = vunpack.c.l.b16 %v1137
    %v3589 = vunpack.c.h.b16 %v1137
    %v3590 = vunpack.c.l.b16 %v1138
    %v3591 = vunpack.c.h.b16 %v1138
    %v3592 = vunpack.c.l.b16 %v1139
    %v3593 = vunpack.c.h.b16 %v1139
    %v3594 = vunpack.c.l.b16 %v1140
    %v3595 = vunpack.c.h.b16 %v1140
    %v3596 = vunpack.c.l.b16 %v1141
    %v3597 = vunpack.c.h.b16 %v1141
    %v3598 = vunpack.c.l.b16 %v1142
    %v3599 = vunpack.c.h.b16 %v1142
    %v3600 = vunpack.c.l.b16 %v1143
    %v3601 = vunpack.c.h.b16 %v1143
    %v3602 = vunpack.c.l.b16 %v1144
    %v3603 = vunpack.c.h.b16 %v1144
    %v3604 = vunpack.c.l.b16 %v1145
    %v3605 = vunpack.c.h.b16 %v1145
    %v3606 = vunpack.c.l.b16 %v1146
    %v3607 = vunpack.c.h.b16 %v1146
    %v3608 = vunpack.c.l.b16 %v1147
    %v3609 = vunpack.c.h.b16 %v1147
    %v3610 = vunpack.c.l.b16 %v1148
    %v3611 = vunpack.c.h.b16 %v1148
    %v3612 = vunpack.c.l.b16 %v1149
    %v3613 = vunpack.c.h.b16 %v1149
    %v3614 = vunpack.c.l.b16 %v1150
    %v3615 = vunpack.c.h.b16 %v1150
    %v3616 = vunpack.c.l.b16 %v1151
    %v3617 = vunpack.c.h.b16 %v1151
    %v3618 = vunpack.c.l.b16 %v1152
    %v3619 = vunpack.c.h.b16 %v1152
    %v3620 = vunpack.c.l.b16 %v1153
    %v3621 = vunpack.c.h.b16 %v1153
    %v3622 = vunpack.c.l.b16 %v1154
    %v3623 = vunpack.c.h.b16 %v1154
    %v3624 = vunpack.c.l.b16 %v1155
    %v3625 = vunpack.c.h.b16 %v1155
    %v3626 = vunpack.c.l.b16 %v1156
    %v3627 = vunpack.c.h.b16 %v1156
    %v3628 = vunpack.c.l.b16 %v1157
    %v3629 = vunpack.c.h.b16 %v1157
    %v3630 = vunpack.c.l.b16 %v1158
    %v3631 = vunpack.c.h.b16 %v1158
    %v3632 = vunpack.c.l.b16 %v1159
    %v3633 = vunpack.c.h.b16 %v1159
    %v3634 = vunpack.c.l.b16 %v1160
    %v3635 = vunpack.c.h.b16 %v1160
    %v3636 = vunpack.c.l.b16 %v1161
    %v3637 = vunpack.c.h.b16 %v1161
    %v3638 = vunpack.c.l.b16 %v1162
    %v3639 = vunpack.c.h.b16 %v1162
    %v3640 = vunpack.c.l.b16 %v1163
    %v3641 = vunpack.c.h.b16 %v1163
    %v3642 = vunpack.c.l.b16 %v1164
    %v3643 = vunpack.c.h.b16 %v1164
    %v3644 = vunpack.c.l.b16 %v1165
    %v3645 = vunpack.c.h.b16 %v1165
    %v3646 = vunpack.c.l.b16 %v1166
    %v3647 = vunpack.c.h.b16 %v1166
    %v3648 = vunpack.c.l.b16 %v1167
    %v3649 = vunpack.c.h.b16 %v1167
    %v3650 = vunpack.c.l.b16 %v1168
    %v3651 = vunpack.c.h.b16 %v1168
    %v3652 = vunpack.c.l.b16 %v1169
    %v3653 = vunpack.c.h.b16 %v1169
    %v3654 = vunpack.c.l.b16 %v1170
    %v3655 = vunpack.c.h.b16 %v1170
    %v3656 = vunpack.c.l.b16 %v1171
    %v3657 = vunpack.c.h.b16 %v1171
    %v3658 = vunpack.c.l.b16 %v1172
    %v3659 = vunpack.c.h.b16 %v1172
    %v3660 = vunpack.c.l.b16 %v1173
    %v3661 = vunpack.c.h.b16 %v1173
    %v3662 = vunpack.c.l.b16 %v1174
    %v3663 = vunpack.c.h.b16 %v1174
    %v3664 = vunpack.c.l.b16 %v1175
    %v3665 = vunpack.c.h.b16 %v1175
    %v3666 = vunpack.c.l.b16 %v1176
    %v3667 = vunpack.c.h.b16 %v1176
    %v3668 = vunpack.c.l.b16 %v1177
    %v3669 = vunpack.c.h.b16 %v1177
    %v3670 = vunpack.c.l.b16 %v1178
    %v3671 = vunpack.c.h.b16 %v1178
    %v3672 = vunpack.c.l.b16 %v1179
    %v3673 = vunpack.c.h.b16 %v1179
    %v3674 = vunpack.c.l.b16 %v1180
    %v3675 = vunpack.c.h.b16 %v1180
    %v3676 = vunpack.c.l.b16 %v1181
    %v3677 = vunpack.c.h.b16 %v1181
    %v3678 = vunpack.c.l.b16 %v1182
    %v3679 = vunpack.c.h.b16 %v1182
    %v3680 = vunpack.c.l.b16 %v1183
    %v3681 = vunpack.c.h.b16 %v1183
    %v3682 = vunpack.c.l.b16 %v1184
    %v3683 = vunpack.c.h.b16 %v1184
    %v3684 = vunpack.c.l.b16 %v1185
    %v3685 = vunpack.c.h.b16 %v1185
    %v3686 = vunpack.c.l.b16 %v1186
    %v3687 = vunpack.c.h.b16 %v1186
    %v3688 = vunpack.c.l.b16 %v1187
    %v3689 = vunpack.c.h.b16 %v1187
    %v3690 = vunpack.c.l.b16 %v1188
    %v3691 = vunpack.c.h.b16 %v1188
    %v3692 = vunpack.c.l.b16 %v1189
    %v3693 = vunpack.c.h.b16 %v1189
    %v3694 = vunpack.c.l.b16 %v1190
    %v3695 = vunpack.c.h.b16 %v1190
    %v3696 = vunpack.c.l.b16 %v1191
    %v3697 = vunpack.c.h.b16 %v1191
    %v3698 = vunpack.c.l.b16 %v1192
    %v3699 = vunpack.c.h.b16 %v1192
    %v3700 = vunpack.c.l.b16 %v1193
    %v3701 = vunpack.c.h.b16 %v1193
    %v3702 = vunpack.c.l.b16 %v1194
    %v3703 = vunpack.c.h.b16 %v1194
    %v3704 = vunpack.c.l.b16 %v1195
    %v3705 = vunpack.c.h.b16 %v1195
    %v3706 = vunpack.c.l.b16 %v1196
    %v3707 = vunpack.c.h.b16 %v1196
    %v3708 = vunpack.c.l.b16 %v1197
    %v3709 = vunpack.c.h.b16 %v1197
    %v3710 = vunpack.c.l.b16 %v1198
    %v3711 = vunpack.c.h.b16 %v1198
    %v3712 = vunpack.c.l.b16 %v1199
    %v3713 = vunpack.c.h.b16 %v1199
    %v3714 = vunpack.c.l.b16 %v1200
    %v3715 = vunpack.c.h.b16 %v1200
    %v3716 = vunpack.c.l.b16 %v1201
    %v3717 = vunpack.c.h.b16 %v1201
    %v3718 = vunpack.c.l.b16 %v1202
    %v3719 = vunpack.c.h.b16 %v1202
    %v3720 = vunpack.c.l.b16 %v1203
    %v3721 = vunpack.c.h.b16 %v1203
    %v3722 = vunpack.c.l.b16 %v1204
    %v3723 = vunpack.c.h.b16 %v1204
    %v3724 = vunpack.c.l.b16 %v1205
    %v3725 = vunpack.c.h.b16 %v1205
    %v3726 = vunpack.c.l.b16 %v1206
    %v3727 = vunpack.c.h.b16 %v1206
    %v3728 = vunpack.c.l.b16 %v1207
    %v3729 = vunpack.c.h.b16 %v1207
    %v3730 = vunpack.c.l.b16 %v1208
    %v3731 = vunpack.c.h.b16 %v1208
    %v3732 = vunpack.c.l.b16 %v1209
    %v3733 = vunpack.c.h.b16 %v1209
    %v3734 = vunpack.c.l.b16 %v1210
    %v3735 = vunpack.c.h.b16 %v1210
    %v3736 = vunpack.c.l.b16 %v1211
    %v3737 = vunpack.c.h.b16 %v1211
    %v3738 = vunpack.c.l.b16 %v1212
    %v3739 = vunpack.c.h.b16 %v1212
    %v3740 = vunpack.c.l.b16 %v1213
    %v3741 = vunpack.c.h.b16 %v1213
    %v3742 = vunpack.c.l.b16 %v1214
    %v3743 = vunpack.c.h.b16 %v1214
    %v3744 = vunpack.c.l.b16 %v1215
    %v3745 = vunpack.c.h.b16 %v1215
    %v3746 = vunpack.c.l.b16 %v1216
    %v3747 = vunpack.c.h.b16 %v1216
    %v3748 = vunpack.c.l.b16 %v1217
    %v3749 = vunpack.c.h.b16 %v1217
    %v3750 = vunpack.c.l.b16 %v1218
    %v3751 = vunpack.c.h.b16 %v1218
    %v3752 = vunpack.c.l.b16 %v1219
    %v3753 = vunpack.c.h.b16 %v1219
    %v3754 = vunpack.c.l.b16 %v1220
    %v3755 = vunpack.c.h.b16 %v1220
    %v3756 = vunpack.c.l.b16 %v1221
    %v3757 = vunpack.c.h.b16 %v1221
    %v3758 = vunpack.c.l.b16 %v1222
    %v3759 = vunpack.c.h.b16 %v1222
    %v3760 = vunpack.c.l.b16 %v1223
    %v3761 = vunpack.c.h.b16 %v1223
    %v3762 = vunpack.c.l.b16 %v1224
    %v3763 = vunpack.c.h.b16 %v1224
    %v3764 = vunpack.c.l.b16 %v1225
    %v3765 = vunpack.c.h.b16 %v1225
    %v3766 = vunpack.c.l.b16 %v1226
    %v3767 = vunpack.c.h.b16 %v1226
    %v3768 = vunpack.c.l.b16 %v1227
    %v3769 = vunpack.c.h.b16 %v1227
    %v3770 = vunpack.c.l.b16 %v1228
    %v3771 = vunpack.c.h.b16 %v1228
    %v3772 = vunpack.c.l.b16 %v1229
    %v3773 = vunpack.c.h.b16 %v1229
    %v3774 = vunpack.c.l.b16 %v1230
    %v3775 = vunpack.c.h.b16 %v1230
    %v3776 = vunpack.c.l.b16 %v1231
    %v3777 = vunpack.c.h.b16 %v1231
    %v3778 = vunpack.c.l.b16 %v1232
    %v3779 = vunpack.c.h.b16 %v1232
    %v3780 = vunpack.c.l.b16 %v1233
    %v3781 = vunpack.c.h.b16 %v1233
    %v3782 = vunpack.c.l.b16 %v1234
    %v3783 = vunpack.c.h.b16 %v1234
    %v3784 = vunpack.c.l.b16 %v1235
    %v3785 = vunpack.c.h.b16 %v1235
    %v3786 = vunpack.c.l.b16 %v1236
    %v3787 = vunpack.c.h.b16 %v1236
    %v3788 = vunpack.c.l.b16 %v1237
    %v3789 = vunpack.c.h.b16 %v1237
    %v3790 = vunpack.c.l.b16 %v1238
    %v3791 = vunpack.c.h.b16 %v1238
    %v3792 = vunpack.c.l.b16 %v1239
    %v3793 = vunpack.c.h.b16 %v1239
    %v3794 = vunpack.c.l.b16 %v1240
    %v3795 = vunpack.c.h.b16 %v1240
    %v3796 = vunpack.c.l.b16 %v1241
    %v3797 = vunpack.c.h.b16 %v1241
    %v3798 = vunpack.c.l.b16 %v1242
    %v3799 = vunpack.c.h.b16 %v1242
    %v3800 = vunpack.c.l.b16 %v1243
    %v3801 = vunpack.c.h.b16 %v1243
    %v3802 = vunpack.c.l.b16 %v1244
    %v3803 = vunpack.c.h.b16 %v1244
    %v3804 = vunpack.c.l.b16 %v1245
    %v3805 = vunpack.c.h.b16 %v1245
    %v3806 = vunpack.c.l.b16 %v1246
    %v3807 = vunpack.c.h.b16 %v1246
    %v3808 = vunpack.c.l.b16 %v1247
    %v3809 = vunpack.c.h.b16 %v1247
    %v3810 = vunpack.c.l.b16 %v1248
    %v3811 = vunpack.c.h.b16 %v1248
    %v3812 = vunpack.c.l.b16 %v1249
    %v3813 = vunpack.c.h.b16 %v1249
    %v3814 = vunpack.c.l.b16 %v1250
    %v3815 = vunpack.c.h.b16 %v1250
    %v3816 = vunpack.c.l.b16 %v1251
    %v3817 = vunpack.c.h.b16 %v1251
    %v3818 = vunpack.c.l.b16 %v1252
    %v3819 = vunpack.c.h.b16 %v1252
    %v3820 = vunpack.c.l.b16 %v1253
    %v3821 = vunpack.c.h.b16 %v1253
    %v3822 = vunpack.c.l.b16 %v1254
    %v3823 = vunpack.c.h.b16 %v1254
    %v3824 = vunpack.c.l.b16 %v1255
    %v3825 = vunpack.c.h.b16 %v1255
    %v3826 = vunpack.c.l.b16 %v1256
    %v3827 = vunpack.c.h.b16 %v1256
    %v3828 = vunpack.c.l.b16 %v1257
    %v3829 = vunpack.c.h.b16 %v1257
    %v3830 = vunpack.c.l.b16 %v1258
    %v3831 = vunpack.c.h.b16 %v1258
    %v3832 = vunpack.c.l.b16 %v1259
    %v3833 = vunpack.c.h.b16 %v1259
    %v3834 = vunpack.c.l.b16 %v1260
    %v3835 = vunpack.c.h.b16 %v1260
    %v3836 = vunpack.c.l.b16 %v1261
    %v3837 = vunpack.c.h.b16 %v1261
    %v3838 = vunpack.c.l.b16 %v1262
    %v3839 = vunpack.c.h.b16 %v1262
    %v3840 = vunpack.c.l.b16 %v1263
    %v3841 = vunpack.c.h.b16 %v1263
    %v3842 = vunpack.c.l.b16 %v1264
    %v3843 = vunpack.c.h.b16 %v1264
    %v3844 = vunpack.c.l.b16 %v1265
    %v3845 = vunpack.c.h.b16 %v1265
    %v3846 = vunpack.c.l.b16 %v1266
    %v3847 = vunpack.c.h.b16 %v1266
    %v3848 = vunpack.c.l.b16 %v1267
    %v3849 = vunpack.c.h.b16 %v1267
    %v3850 = vunpack.c.l.b16 %v1268
    %v3851 = vunpack.c.h.b16 %v1268
    %v3852 = vunpack.c.l.b16 %v1269
    %v3853 = vunpack.c.h.b16 %v1269
    %v3854 = vunpack.c.l.b16 %v1270
    %v3855 = vunpack.c.h.b16 %v1270
    %v3856 = vunpack.c.l.b16 %v1271
    %v3857 = vunpack.c.h.b16 %v1271
    %v3858 = vunpack.c.l.b16 %v1272
    %v3859 = vunpack.c.h.b16 %v1272
    %v3860 = vunpack.c.l.b16 %v1273
    %v3861 = vunpack.c.h.b16 %v1273
    %v3862 = vunpack.c.l.b16 %v1274
    %v3863 = vunpack.c.h.b16 %v1274
    %v3864 = vunpack.c.l.b16 %v1275
    %v3865 = vunpack.c.h.b16 %v1275
    %v3866 = vunpack.c.l.b16 %v1276
    %v3867 = vunpack.c.h.b16 %v1276
    %v3868 = vunpack.c.l.b16 %v1277
    %v3869 = vunpack.c.h.b16 %v1277
    %v3870 = vunpack.c.l.b16 %v1278
    %v3871 = vunpack.c.h.b16 %v1278
    %v3872 = vunpack.c.l.b16 %v1279
    %v3873 = vunpack.c.h.b16 %v1279
    %v3874 = vunpack.c.l.b16 %v1280
    %v3875 = vunpack.c.h.b16 %v1280
    %v3876 = vunpack.c.l.b16 %v1281
    %v3877 = vunpack.c.h.b16 %v1281
    %v3878 = vunpack.c.l.b16 %v1282
    %v3879 = vunpack.c.h.b16 %v1282
    %v3880 = vunpack.c.l.b16 %v1283
    %v3881 = vunpack.c.h.b16 %v1283
    %v3882 = vunpack.c.l.b16 %v1284
    %v3883 = vunpack.c.h.b16 %v1284
    %v3884 = vunpack.c.l.b16 %v1285
    %v3885 = vunpack.c.h.b16 %v1285
    %v3886 = vunpack.c.l.b16 %v1286
    %v3887 = vunpack.c.h.b16 %v1286
    %v3888 = vunpack.c.l.b16 %v1287
    %v3889 = vunpack.c.h.b16 %v1287
    %v3890 = vunpack.c.l.b16 %v1288
    %v3891 = vunpack.c.h.b16 %v1288
    %v3892 = vunpack.c.l.b16 %v1289
    %v3893 = vunpack.c.h.b16 %v1289
    %v3894 = vunpack.c.l.b16 %v1290
    %v3895 = vunpack.c.h.b16 %v1290
    %v3896 = vunpack.c.l.b16 %v1291
    %v3897 = vunpack.c.h.b16 %v1291
    %v3898 = vunpack.c.l.b16 %v1292
    %v3899 = vunpack.c.h.b16 %v1292
    %v3900 = vunpack.c.l.b16 %v1293
    %v3901 = vunpack.c.h.b16 %v1293
    %v3902 = vunpack.c.l.b16 %v1294
    %v3903 = vunpack.c.h.b16 %v1294
    %v3904 = vunpack.c.l.b16 %v1295
    %v3905 = vunpack.c.h.b16 %v1295
    %v3906 = vunpack.c.l.b16 %v1296
    %v3907 = vunpack.c.h.b16 %v1296
    %v3908 = vunpack.c.l.b16 %v1297
    %v3909 = vunpack.c.h.b16 %v1297
    %v3910 = vunpack.c.l.b16 %v1298
    %v3911 = vunpack.c.h.b16 %v1298
    %v3912 = vunpack.c.l.b16 %v1299
    %v3913 = vunpack.c.h.b16 %v1299
    %v3914 = vunpack.c.l.b16 %v1300
    %v3915 = vunpack.c.h.b16 %v1300
    %v3916 = vunpack.c.l.b16 %v1301
    %v3917 = vunpack.c.h.b16 %v1301
    %v3918 = vunpack.c.l.b16 %v1302
    %v3919 = vunpack.c.h.b16 %v1302
    %v3920 = vunpack.c.l.b16 %v1303
    %v3921 = vunpack.c.h.b16 %v1303
    %v3922 = vunpack.c.l.b16 %v1304
    %v3923 = vunpack.c.h.b16 %v1304
    %v3924 = vunpack.c.l.b16 %v1305
    %v3925 = vunpack.c.h.b16 %v1305
    %v3926 = vunpack.c.l.b16 %v1306
    %v3927 = vunpack.c.h.b16 %v1306
    %v3928 = vunpack.c.l.b16 %v1307
    %v3929 = vunpack.c.h.b16 %v1307
    %v3930 = vunpack.c.l.b16 %v1308
    %v3931 = vunpack.c.h.b16 %v1308
    %v3932 = vunpack.c.l.b16 %v1309
    %v3933 = vunpack.c.h.b16 %v1309
    %v3934 = vunpack.c.l.b16 %v1310
    %v3935 = vunpack.c.h.b16 %v1310
    %v3936 = vunpack.c.l.b16 %v1311
    %v3937 = vunpack.c.h.b16 %v1311
    %v3938 = vunpack.c.l.b16 %v1312
    %v3939 = vunpack.c.h.b16 %v1312
    %v3940 = vunpack.c.l.b16 %v1313
    %v3941 = vunpack.c.h.b16 %v1313
    %v3942 = vunpack.c.l.b16 %v1314
    %v3943 = vunpack.c.h.b16 %v1314
    %v3944 = vunpack.c.l.b16 %v1315
    %v3945 = vunpack.c.h.b16 %v1315
    %v3946 = vunpack.c.l.b16 %v1316
    %v3947 = vunpack.c.h.b16 %v1316
    %v3948 = vunpack.c.l.b16 %v1317
    %v3949 = vunpack.c.h.b16 %v1317
    %v3950 = vunpack.c.l.b16 %v1318
    %v3951 = vunpack.c.h.b16 %v1318
    %v3952 = vunpack.c.l.b16 %v1319
    %v3953 = vunpack.c.h.b16 %v1319
    %v3954 = vunpack.c.l.b16 %v1320
    %v3955 = vunpack.c.h.b16 %v1320
    %v3956 = vunpack.c.l.b16 %v1321
    %v3957 = vunpack.c.h.b16 %v1321
    %v3958 = vunpack.c.l.b16 %v1322
    %v3959 = vunpack.c.h.b16 %v1322
    %v3960 = vunpack.c.l.b16 %v1323
    %v3961 = vunpack.c.h.b16 %v1323
    %v3962 = vunpack.c.l.b16 %v1324
    %v3963 = vunpack.c.h.b16 %v1324
    %v3964 = vunpack.c.l.b16 %v1325
    %v3965 = vunpack.c.h.b16 %v1325
    %v3966 = vunpack.c.l.b16 %v1326
    %v3967 = vunpack.c.h.b16 %v1326
    %v3968 = vunpack.c.l.b16 %v1327
    %v3969 = vunpack.c.h.b16 %v1327
    %v3970 = vunpack.c.l.b16 %v1328
    %v3971 = vunpack.c.h.b16 %v1328
    %v3972 = vunpack.c.l.b16 %v1329
    %v3973 = vunpack.c.h.b16 %v1329
    %v3974 = vunpack.c.l.b16 %v1330
    %v3975 = vunpack.c.h.b16 %v1330
    %v3976 = vunpack.c.l.b16 %v1331
    %v3977 = vunpack.c.h.b16 %v1331
    %v3978 = vunpack.c.l.b16 %v1332
    %v3979 = vunpack.c.h.b16 %v1332
    %v3980 = vunpack.c.l.b16 %v1333
    %v3981 = vunpack.c.h.b16 %v1333
    %v3982 = vunpack.c.l.b16 %v1334
    %v3983 = vunpack.c.h.b16 %v1334
    %v3984 = vunpack.c.l.b16 %v1335
    %v3985 = vunpack.c.h.b16 %v1335
    %v3986 = vunpack.c.l.b16 %v1336
    %v3987 = vunpack.c.h.b16 %v1336
    %v3988 = vunpack.c.l.b16 %v1337
    %v3989 = vunpack.c.h.b16 %v1337
    %v3990 = vunpack.c.l.b16 %v1338
    %v3991 = vunpack.c.h.b16 %v1338
    %v3992 = vunpack.c.l.b16 %v1339
    %v3993 = vunpack.c.h.b16 %v1339
    %v3994 = vunpack.c.l.b16 %v1340
    %v3995 = vunpack.c.h.b16 %v1340
    %v3996 = vunpack.c.l.b16 %v1341
    %v3997 = vunpack.c.h.b16 %v1341
    %v3998 = vunpack.c.l.b16 %v1342
    %v3999 = vunpack.c.h.b16 %v1342
    %v4000 = vunpack.c.l.b16 %v1343
    %v4001 = vunpack.c.h.b16 %v1343
    %v4002 = vunpack.c.l.b16 %v1344
    %v4003 = vunpack.c.h.b16 %v1344
    %v4004 = vunpack.c.l.b16 %v1345
    %v4005 = vunpack.c.h.b16 %v1345
    %v4006 = vunpack.c.l.b16 %v1346
    %v4007 = vunpack.c.h.b16 %v1346
    %v4008 = vunpack.c.l.b16 %v1347
    %v4009 = vunpack.c.h.b16 %v1347
    %v4010 = vunpack.c.l.b16 %v1348
    %v4011 = vunpack.c.h.b16 %v1348
    %v4012 = vunpack.c.l.b16 %v1349
    %v4013 = vunpack.c.h.b16 %v1349
    %v4014 = vunpack.c.l.b16 %v1350
    %v4015 = vunpack.c.h.b16 %v1350
    %v4016 = vunpack.c.l.b16 %v1351
    %v4017 = vunpack.c.h.b16 %v1351
    %v4018 = vunpack.c.l.b16 %v1352
    %v4019 = vunpack.c.h.b16 %v1352
    %v4020 = vunpack.c.l.b16 %v1353
    %v4021 = vunpack.c.h.b16 %v1353
    %v4022 = vunpack.c.l.b16 %v1354
    %v4023 = vunpack.c.h.b16 %v1354
    %v4024 = vunpack.c.l.b16 %v1355
    %v4025 = vunpack.c.h.b16 %v1355
    %v4026 = vunpack.c.l.b16 %v1356
    %v4027 = vunpack.c.h.b16 %v1356
    %v4028 = vunpack.c.l.b16 %v1357
    %v4029 = vunpack.c.h.b16 %v1357
    %v4030 = vunpack.c.l.b16 %v1358
    %v4031 = vunpack.c.h.b16 %v1358
    %v4032 = vunpack.c.l.b16 %v1359
    %v4033 = vunpack.c.h.b16 %v1359
    %v4034 = vunpack.c.l.b16 %v1360
    %v4035 = vunpack.c.h.b16 %v1360
    %v4036 = vunpack.c.l.b16 %v1361
    %v4037 = vunpack.c.h.b16 %v1361
    %v4038 = vunpack.c.l.b16 %v1362
    %v4039 = vunpack.c.h.b16 %v1362
    %v4040 = vunpack.c.l.b16 %v1363
    %v4041 = vunpack.c.h.b16 %v1363
    %v4042 = vunpack.c.l.b16 %v1364
    %v4043 = vunpack.c.h.b16 %v1364
    %v4044 = vunpack.c.l.b16 %v1365
    %v4045 = vunpack.c.h.b16 %v1365
    %v4046 = vunpack.c.l.b16 %v1366
    %v4047 = vunpack.c.h.b16 %v1366
    %v4048 = vunpack.c.l.b16 %v1367
    %v4049 = vunpack.c.h.b16 %v1367
    %v4050 = vunpack.c.l.b16 %v1368
    %v4051 = vunpack.c.h.b16 %v1368
    %v4052 = vunpack.c.l.b16 %v1369
    %v4053 = vunpack.c.h.b16 %v1369
    %v4054 = vunpack.c.l.b16 %v1370
    %v4055 = vunpack.c.h.b16 %v1370
    %v4056 = vunpack.c.l.b16 %v1371
    %v4057 = vunpack.c.h.b16 %v1371
    %v4058 = vunpack.c.l.b16 %v1372
    %v4059 = vunpack.c.h.b16 %v1372
    %v4060 = vunpack.c.l.b16 %v1373
    %v4061 = vunpack.c.h.b16 %v1373
    %v4062 = vunpack.c.l.b16 %v1374
    %v4063 = vunpack.c.h.b16 %v1374
    %v4064 = vunpack.c.l.b16 %v1375
    %v4065 = vunpack.c.h.b16 %v1375
    %v4066 = vunpack.c.l.b16 %v1376
    %v4067 = vunpack.c.h.b16 %v1376
    %v4068 = vunpack.c.l.b16 %v1377
    %v4069 = vunpack.c.h.b16 %v1377
    %v4070 = vunpack.c.l.b16 %v1378
    %v4071 = vunpack.c.h.b16 %v1378
    %v4072 = vunpack.c.l.b16 %v1379
    %v4073 = vunpack.c.h.b16 %v1379
    %v4074 = vunpack.c.l.b16 %v1380
    %v4075 = vunpack.c.h.b16 %v1380
    %v4076 = vunpack.c.l.b16 %v1381
    %v4077 = vunpack.c.h.b16 %v1381
    %v4078 = vunpack.c.l.b16 %v1382
    %v4079 = vunpack.c.h.b16 %v1382
    %v4080 = vunpack.c.l.b16 %v1383
    %v4081 = vunpack.c.h.b16 %v1383
    %v4082 = vunpack.c.l.b16 %v1384
    %v4083 = vunpack.c.h.b16 %v1384
    %v4084 = vunpack.c.l.b16 %v1385
    %v4085 = vunpack.c.h.b16 %v1385
    %v4086 = vunpack.c.l.b16 %v1386
    %v4087 = vunpack.c.h.b16 %v1386
    %v4088 = vunpack.c.l.b16 %v1387
    %v4089 = vunpack.c.h.b16 %v1387
    %v4090 = vunpack.c.l.b16 %v1388
    %v4091 = vunpack.c.h.b16 %v1388
    %v4092 = vunpack.c.l.b16 %v1389
    %v4093 = vunpack.c.h.b16 %v1389
    %v4094 = vunpack.c.l.b16 %v1390
    %v4095 = vunpack.c.h.b16 %v1390
    %v4096 = vunpack.c.l.b16 %v1391
    %v4097 = vunpack.c.h.b16 %v1391
    %v4098 = vunpack.c.l.b16 %v1392
    %v4099 = vunpack.c.h.b16 %v1392
    %v4100 = vunpack.c.l.b16 %v1393
    %v4101 = vunpack.c.h.b16 %v1393
    %v4102 = vunpack.c.l.b16 %v1394
    %v4103 = vunpack.c.h.b16 %v1394
    %v4104 = vunpack.c.l.b16 %v1395
    %v4105 = vunpack.c.h.b16 %v1395
    %v4106 = vunpack.c.l.b16 %v1396
    %v4107 = vunpack.c.h.b16 %v1396
    %v4108 = vunpack.c.l.b16 %v1397
    %v4109 = vunpack.c.h.b16 %v1397
    %v4110 = vunpack.c.l.b16 %v1398
    %v4111 = vunpack.c.h.b16 %v1398
    %v4112 = vunpack.c.l.b16 %v1399
    %v4113 = vunpack.c.h.b16 %v1399
    %v4114 = vunpack.c.l.b16 %v1400
    %v4115 = vunpack.c.h.b16 %v1400
    %v4116 = vunpack.c.l.b16 %v1401
    %v4117 = vunpack.c.h.b16 %v1401
    %v4118 = vunpack.c.l.b16 %v1402
    %v4119 = vunpack.c.h.b16 %v1402
    %v4120 = vunpack.c.l.b16 %v1403
    %v4121 = vunpack.c.h.b16 %v1403
    %v4122 = vunpack.c.l.b16 %v1404
    %v4123 = vunpack.c.h.b16 %v1404
    %v4124 = vunpack.c.l.b16 %v1405
    %v4125 = vunpack.c.h.b16 %v1405
    %v4126 = vunpack.c.l.b16 %v1406
    %v4127 = vunpack.c.h.b16 %v1406
    %v4128 = vunpack.c.l.b16 %v1407
    %v4129 = vunpack.c.h.b16 %v1407
    %v4130 = vunpack.c.l.b16 %v1408
    %v4131 = vunpack.c.h.b16 %v1408
    %v4132 = vunpack.c.l.b16 %v1409
    %v4133 = vunpack.c.h.b16 %v1409
    %v4134 = vunpack.c.l.b16 %v1410
    %v4135 = vunpack.c.h.b16 %v1410
    %v4136 = vunpack.c.l.b16 %v1411
    %v4137 = vunpack.c.h.b16 %v1411
    %v4138 = vunpack.c.l.b16 %v1412
    %v4139 = vunpack.c.h.b16 %v1412
    %v4140 = vunpack.c.l.b16 %v1413
    %v4141 = vunpack.c.h.b16 %v1413
    %v4142 = vunpack.c.l.b16 %v1414
    %v4143 = vunpack.c.h.b16 %v1414
    %v4144 = vunpack.c.l.b16 %v1415
    %v4145 = vunpack.c.h.b16 %v1415
    %v4146 = vunpack.c.l.b16 %v1416
    %v4147 = vunpack.c.h.b16 %v1416
    %v4148 = vunpack.c.l.b16 %v1417
    %v4149 = vunpack.c.h.b16 %v1417
    %v4150 = vunpack.c.l.b16 %v1418
    %v4151 = vunpack.c.h.b16 %v1418
    %v4152 = vunpack.c.l.b16 %v1419
    %v4153 = vunpack.c.h.b16 %v1419
    %v4154 = vunpack.c.l.b16 %v1420
    %v4155 = vunpack.c.h.b16 %v1420
    %v4156 = vunpack.c.l.b16 %v1421
    %v4157 = vunpack.c.h.b16 %v1421
    %v4158 = vunpack.c.l.b16 %v1422
    %v4159 = vunpack.c.h.b16 %v1422
    %v4160 = vunpack.c.l.b16 %v1423
    %v4161 = vunpack.c.h.b16 %v1423
    %v4162 = vunpack.c.l.b16 %v1424
    %v4163 = vunpack.c.h.b16 %v1424
    %v4164 = vunpack.c.l.b16 %v1425
    %v4165 = vunpack.c.h.b16 %v1425
    %v4166 = vunpack.c.l.b16 %v1426
    %v4167 = vunpack.c.h.b16 %v1426
    %v4168 = vunpack.c.l.b16 %v1427
    %v4169 = vunpack.c.h.b16 %v1427
    %v4170 = vunpack.c.l.b16 %v1428
    %v4171 = vunpack.c.h.b16 %v1428
    %v4172 = vunpack.c.l.b16 %v1429
    %v4173 = vunpack.c.h.b16 %v1429
    %v4174 = vunpack.c.l.b16 %v1430
    %v4175 = vunpack.c.h.b16 %v1430
    %v4176 = vunpack.c.l.b16 %v1431
    %v4177 = vunpack.c.h.b16 %v1431
    %v4178 = vunpack.c.l.b16 %v1432
    %v4179 = vunpack.c.h.b16 %v1432
    %v4180 = vunpack.c.l.b16 %v1433
    %v4181 = vunpack.c.h.b16 %v1433
    %v4182 = vunpack.c.l.b16 %v1434
    %v4183 = vunpack.c.h.b16 %v1434
    %v4184 = vunpack.c.l.b16 %v1435
    %v4185 = vunpack.c.h.b16 %v1435
    %v4186 = vunpack.c.l.b16 %v1436
    %v4187 = vunpack.c.h.b16 %v1436
    %v4188 = vunpack.c.l.b16 %v1437
    %v4189 = vunpack.c.h.b16 %v1437
    %v4190 = vunpack.c.l.b16 %v1438
    %v4191 = vunpack.c.h.b16 %v1438
    %v4192 = vunpack.c.l.b16 %v1439
    %v4193 = vunpack.c.h.b16 %v1439
    %v4194 = vunpack.c.l.b16 %v1440
    %v4195 = vunpack.c.h.b16 %v1440
    %v4196 = vunpack.c.l.b16 %v1441
    %v4197 = vunpack.c.h.b16 %v1441
    %v4198 = vunpack.c.l.b16 %v1442
    %v4199 = vunpack.c.h.b16 %v1442
    %v4200 = vunpack.c.l.b16 %v1443
    %v4201 = vunpack.c.h.b16 %v1443
    %v4202 = vunpack.c.l.b16 %v1444
    %v4203 = vunpack.c.h.b16 %v1444
    %v4204 = vunpack.c.l.b16 %v1445
    %v4205 = vunpack.c.h.b16 %v1445
    %v4206 = vunpack.c.l.b16 %v1446
    %v4207 = vunpack.c.h.b16 %v1446
    %v4208 = vunpack.c.l.b16 %v1447
    %v4209 = vunpack.c.h.b16 %v1447
    %v4210 = vunpack.c.l.b16 %v1448
    %v4211 = vunpack.c.h.b16 %v1448
    %v4212 = vunpack.c.l.b16 %v1449
    %v4213 = vunpack.c.h.b16 %v1449
    %v4214 = vunpack.c.l.b16 %v1450
    %v4215 = vunpack.c.h.b16 %v1450
    %v4216 = vunpack.c.l.b16 %v1451
    %v4217 = vunpack.c.h.b16 %v1451
    %v4218 = vunpack.c.l.b16 %v1452
    %v4219 = vunpack.c.h.b16 %v1452
    %v4220 = vunpack.c.l.b16 %v1453
    %v4221 = vunpack.c.h.b16 %v1453
    %v4222 = vunpack.c.l.b16 %v1454
    %v4223 = vunpack.c.h.b16 %v1454
    %v4224 = vunpack.c.l.b16 %v1455
    %v4225 = vunpack.c.h.b16 %v1455
    %v4226 = vunpack.c.l.b16 %v1456
    %v4227 = vunpack.c.h.b16 %v1456
    %v4228 = vunpack.c.l.b16 %v1457
    %v4229 = vunpack.c.h.b16 %v1457
    %v4230 = vunpack.c.l.b16 %v1458
    %v4231 = vunpack.c.h.b16 %v1458
    %v4232 = vunpack.c.l.b16 %v1459
    %v4233 = vunpack.c.h.b16 %v1459
    %v4234 = vunpack.c.l.b16 %v1460
    %v4235 = vunpack.c.h.b16 %v1460
    %v4236 = vunpack.c.l.b16 %v1461
    %v4237 = vunpack.c.h.b16 %v1461
    %v4238 = vunpack.c.l.b16 %v1462
    %v4239 = vunpack.c.h.b16 %v1462
    %v4240 = vunpack.c.l.b16 %v1463
    %v4241 = vunpack.c.h.b16 %v1463
    %v4242 = vunpack.c.l.b16 %v1464
    %v4243 = vunpack.c.h.b16 %v1464
    %v4244 = vunpack.c.l.b16 %v1465
    %v4245 = vunpack.c.h.b16 %v1465
    %v4246 = vunpack.c.l.b16 %v1466
    %v4247 = vunpack.c.h.b16 %v1466
    %v4248 = vunpack.c.l.b16 %v1467
    %v4249 = vunpack.c.h.b16 %v1467
    %v4250 = vunpack.c.l.b16 %v1468
    %v4251 = vunpack.c.h.b16 %v1468
    %v4252 = vunpack.c.l.b16 %v1469
    %v4253 = vunpack.c.h.b16 %v1469
    %v4254 = vunpack.c.l.b16 %v1470
    %v4255 = vunpack.c.h.b16 %v1470
    %v4256 = vunpack.c.l.b16 %v1471
    %v4257 = vunpack.c.h.b16 %v1471
    %v4258 = vunpack.c.l.b16 %v1472
    %v4259 = vunpack.c.h.b16 %v1472
    %v4260 = vunpack.c.l.b16 %v1473
    %v4261 = vunpack.c.h.b16 %v1473
    %v4262 = vunpack.c.l.b16 %v1474
    %v4263 = vunpack.c.h.b16 %v1474
    %v4264 = vunpack.c.l.b16 %v1475
    %v4265 = vunpack.c.h.b16 %v1475
    %v4266 = vunpack.c.l.b16 %v1476
    %v4267 = vunpack.c.h.b16 %v1476
    %v4268 = vunpack.c.l.b16 %v1477
    %v4269 = vunpack.c.h.b16 %v1477
    %v4270 = vunpack.c.l.b16 %v1478
    %v4271 = vunpack.c.h.b16 %v1478
    %v4272 = vunpack.c.l.b16 %v1479
    %v4273 = vunpack.c.h.b16 %v1479
    %v4274 = vunpack.c.l.b16 %v1480
    %v4275 = vunpack.c.h.b16 %v1480
    %v4276 = vunpack.c.l.b16 %v1481
    %v4277 = vunpack.c.h.b16 %v1481
    %v4278 = vunpack.c.l.b16 %v1482
    %v4279 = vunpack.c.h.b16 %v1482
    %v4280 = vunpack.c.l.b16 %v1483
    %v4281 = vunpack.c.h.b16 %v1483
    %v4282 = vunpack.c.l.b16 %v1484
    %v4283 = vunpack.c.h.b16 %v1484
    %v4284 = vunpack.c.l.b16 %v1485
    %v4285 = vunpack.c.h.b16 %v1485
    %v4286 = vunpack.c.l.b16 %v1486
    %v4287 = vunpack.c.h.b16 %v1486
    %v4288 = vunpack.c.l.b16 %v1487
    %v4289 = vunpack.c.h.b16 %v1487
    %v4290 = vunpack.c.l.b16 %v1488
    %v4291 = vunpack.c.h.b16 %v1488
    %v4292 = vunpack.c.l.b16 %v1489
    %v4293 = vunpack.c.h.b16 %v1489
    %v4294 = vunpack.c.l.b16 %v1490
    %v4295 = vunpack.c.h.b16 %v1490
    %v4296 = vunpack.c.l.b16 %v1491
    %v4297 = vunpack.c.h.b16 %v1491
    %v4298 = vunpack.c.l.b16 %v1492
    %v4299 = vunpack.c.h.b16 %v1492
    %v4300 = vunpack.c.l.b16 %v1493
    %v4301 = vunpack.c.h.b16 %v1493
    %v4302 = vunpack.c.l.b16 %v1494
    %v4303 = vunpack.c.h.b16 %v1494
    %v4304 = vunpack.c.l.b16 %v1495
    %v4305 = vunpack.c.h.b16 %v1495
    %v4306 = vunpack.c.l.b16 %v1496
    %v4307 = vunpack.c.h.b16 %v1496
    %v4308 = vunpack.c.l.b16 %v1497
    %v4309 = vunpack.c.h.b16 %v1497
    %v4310 = vunpack.c.l.b16 %v1498
    %v4311 = vunpack.c.h.b16 %v1498
    %v4312 = vunpack.c.l.b16 %v1499
    %v4313 = vunpack.c.h.b16 %v1499
    %v4314 = vunpack.c.l.b16 %v1500
    %v4315 = vunpack.c.h.b16 %v1500
    %v4316 = vunpack.c.l.b16 %v1501
    %v4317 = vunpack.c.h.b16 %v1501
    %v4318 = vunpack.c.l.b16 %v1502
    %v4319 = vunpack.c.h.b16 %v1502
    %v4320 = vunpack.c.l.b16 %v1503
    %v4321 = vunpack.c.h.b16 %v1503
    %v4322 = vunpack.c.l.b16 %v1504
    %v4323 = vunpack.c.h.b16 %v1504
    %v4324 = vunpack.c.l.b16 %v1505
    %v4325 = vunpack.c.h.b16 %v1505
    %v4326 = vunpack.c.l.b16 %v1506
    %v4327 = vunpack.c.h.b16 %v1506
    %v4328 = vunpack.c.l.b16 %v1507
    %v4329 = vunpack.c.h.b16 %v1507
    %v4330 = vunpack.c.l.b16 %v1508
    %v4331 = vunpack.c.h.b16 %v1508
    %v4332 = vunpack.c.l.b16 %v1509
    %v4333 = vunpack.c.h.b16 %v1509
    %v4334 = vunpack.c.l.b16 %v1510
    %v4335 = vunpack.c.h.b16 %v1510
    %v4336 = vunpack.c.l.b16 %v1511
    %v4337 = vunpack.c.h.b16 %v1511
    %v4338 = vunpack.c.l.b16 %v1512
    %v4339 = vunpack.c.h.b16 %v1512
    %v4340 = vunpack.c.l.b16 %v1513
    %v4341 = vunpack.c.h.b16 %v1513
    %v4342 = vunpack.c.l.b16 %v1514
    %v4343 = vunpack.c.h.b16 %v1514
    %v4344 = vunpack.c.l.b16 %v1515
    %v4345 = vunpack.c.h.b16 %v1515
    %v4346 = vunpack.c.l.b16 %v1516
    %v4347 = vunpack.c.h.b16 %v1516
    %v4348 = vunpack.c.l.b16 %v1517
    %v4349 = vunpack.c.h.b16 %v1517
    %v4350 = vunpack.c.l.b16 %v1518
    %v4351 = vunpack.c.h.b16 %v1518
    %v4352 = vunpack.c.l.b16 %v1519
    %v4353 = vunpack.c.h.b16 %v1519
    %v4354 = vunpack.c.l.b16 %v1520
    %v4355 = vunpack.c.h.b16 %v1520
    %v4356 = vunpack.c.l.b16 %v1521
    %v4357 = vunpack.c.h.b16 %v1521
    %v4358 = vunpack.c.l.b16 %v1522
    %v4359 = vunpack.c.h.b16 %v1522
    %v4360 = vunpack.c.l.b16 %v1523
    %v4361 = vunpack.c.h.b16 %v1523
    %v4362 = vunpack.c.l.b16 %v1524
    %v4363 = vunpack.c.h.b16 %v1524
    %v4364 = vunpack.c.l.b16 %v1525
    %v4365 = vunpack.c.h.b16 %v1525
    %v4366 = vunpack.c.l.b16 %v1526
    %v4367 = vunpack.c.h.b16 %v1526
    %v4368 = vunpack.c.l.b16 %v1527
    %v4369 = vunpack.c.h.b16 %v1527
    %v4370 = vunpack.c.l.b16 %v1528
    %v4371 = vunpack.c.h.b16 %v1528
    %v4372 = vunpack.c.l.b16 %v1529
    %v4373 = vunpack.c.h.b16 %v1529
    %v4374 = vunpack.c.l.b16 %v1530
    %v4375 = vunpack.c.h.b16 %v1530
    %v4376 = vunpack.c.l.b16 %v1531
    %v4377 = vunpack.c.h.b16 %v1531
    %v4378 = vunpack.c.l.b16 %v1532
    %v4379 = vunpack.c.h.b16 %v1532
    %v4380 = vunpack.c.l.b16 %v1533
    %v4381 = vunpack.c.h.b16 %v1533
    %v4382 = vunpack.c.l.b16 %v1534
    %v4383 = vunpack.c.h.b16 %v1534
    %v4384 = vunpack.c.l.b16 %v1535
    %v4385 = vunpack.c.h.b16 %v1535
    %v4386 = vunpack.c.l.b16 %v1536
    %v4387 = vunpack.c.h.b16 %v1536
    %v4388 = vunpack.c.l.b16 %v1537
    %v4389 = vunpack.c.h.b16 %v1537
    %v4390 = vunpack.c.l.b16 %v1538
    %v4391 = vunpack.c.h.b16 %v1538
    %v4392 = vunpack.c.l.b16 %v1539
    %v4393 = vunpack.c.h.b16 %v1539
    %v4394 = vunpack.c.l.b16 %v1540
    %v4395 = vunpack.c.h.b16 %v1540
    %v4396 = vunpack.c.l.b16 %v1541
    %v4397 = vunpack.c.h.b16 %v1541
    %v4398 = vunpack.c.l.b16 %v1542
    %v4399 = vunpack.c.h.b16 %v1542
    %v4400 = vunpack.c.l.b16 %v1543
    %v4401 = vunpack.c.h.b16 %v1543
    %v4402 = vunpack.c.l.b16 %v1544
    %v4403 = vunpack.c.h.b16 %v1544
    %v4404 = vunpack.c.l.b16 %v1545
    %v4405 = vunpack.c.h.b16 %v1545
    %v4406 = vunpack.c.l.b16 %v1546
    %v4407 = vunpack.c.h.b16 %v1546
    %v4408 = vunpack.c.l.b16 %v1547
    %v4409 = vunpack.c.h.b16 %v1547
    %v4410 = vunpack.c.l.b16 %v1548
    %v4411 = vunpack.c.h.b16 %v1548
    %v4412 = vunpack.c.l.b16 %v1549
    %v4413 = vunpack.c.h.b16 %v1549
    %v4414 = vunpack.c.l.b16 %v1550
    %v4415 = vunpack.c.h.b16 %v1550
    %v4416 = vunpack.c.l.b16 %v1551
    %v4417 = vunpack.c.h.b16 %v1551
    %v4418 = vunpack.c.l.b16 %v1552
    %v4419 = vunpack.c.h.b16 %v1552
    %v4420 = vunpack.c.l.b16 %v1553
    %v4421 = vunpack.c.h.b16 %v1553
    %v4422 = vunpack.c.l.b16 %v1554
    %v4423 = vunpack.c.h.b16 %v1554
    %v4424 = vunpack.c.l.b16 %v1555
    %v4425 = vunpack.c.h.b16 %v1555
    %v4426 = vunpack.c.l.b16 %v1556
    %v4427 = vunpack.c.h.b16 %v1556
    %v4428 = vunpack.c.l.b16 %v1557
    %v4429 = vunpack.c.h.b16 %v1557
    %v4430 = vunpack.c.l.b16 %v1558
    %v4431 = vunpack.c.h.b16 %v1558
    %v4432 = vunpack.c.l.b16 %v1559
    %v4433 = vunpack.c.h.b16 %v1559
    %v4434 = vunpack.c.l.b16 %v1560
    %v4435 = vunpack.c.h.b16 %v1560
    %v4436 = vunpack.c.l.b16 %v1561
    %v4437 = vunpack.c.h.b16 %v1561
    %v4438 = vunpack.c.l.b16 %v1562
    %v4439 = vunpack.c.h.b16 %v1562
    %v4440 = vunpack.c.l.b16 %v1563
    %v4441 = vunpack.c.h.b16 %v1563
    %v4442 = vunpack.c.l.b16 %v1564
    %v4443 = vunpack.c.h.b16 %v1564
    %v4444 = vunpack.c.l.b16 %v1565
    %v4445 = vunpack.c.h.b16 %v1565
    %v4446 = vunpack.c.l.b16 %v1566
    %v4447 = vunpack.c.h.b16 %v1566
    %v4448 = vunpack.c.l.b16 %v1567
    %v4449 = vunpack.c.h.b16 %v1567
    %v4450 = vunpack.c.l.b16 %v1568
    %v4451 = vunpack.c.h.b16 %v1568
    %v4452 = vunpack.c.l.b16 %v1569
    %v4453 = vunpack.c.h.b16 %v1569
    %v4454 = vunpack.c.l.b16 %v1570
    %v4455 = vunpack.c.h.b16 %v1570
    %v4456 = vunpack.c.l.b16 %v1571
    %v4457 = vunpack.c.h.b16 %v1571
    %v4458 = vunpack.c.l.b16 %v1572
    %v4459 = vunpack.c.h.b16 %v1572
    %v4460 = vunpack.c.l.b16 %v1573
    %v4461 = vunpack.c.h.b16 %v1573
    %v4462 = vunpack.c.l.b16 %v1574
    %v4463 = vunpack.c.h.b16 %v1574
    %v4464 = vunpack.c.l.b16 %v1575
    %v4465 = vunpack.c.h.b16 %v1575
    %v4466 = vunpack.c.l.b16 %v1576
    %v4467 = vunpack.c.h.b16 %v1576
    %v4468 = vunpack.c.l.b16 %v1577
    %v4469 = vunpack.c.h.b16 %v1577
    %v4470 = vunpack.c.l.b16 %v1578
    %v4471 = vunpack.c.h.b16 %v1578
    %v4472 = vunpack.c.l.b16 %v1579
    %v4473 = vunpack.c.h.b16 %v1579
    %v4474 = vunpack.c.l.b16 %v1580
    %v4475 = vunpack.c.h.b16 %v1580
    %v4476 = vunpack.c.l.b16 %v1581
    %v4477 = vunpack.c.h.b16 %v1581
    %v4478 = vunpack.c.l.b16 %v1582
    %v4479 = vunpack.c.h.b16 %v1582
    %v4480 = vunpack.c.l.b16 %v1583
    %v4481 = vunpack.c.h.b16 %v1583
    %v4482 = vunpack.c.l.b16 %v1584
    %v4483 = vunpack.c.h.b16 %v1584
    %v4484 = vunpack.c.l.b16 %v1585
    %v4485 = vunpack.c.h.b16 %v1585
    %v4486 = vunpack.c.l.b16 %v1586
    %v4487 = vunpack.c.h.b16 %v1586
    %v4488 = vunpack.c.l.b16 %v1587
    %v4489 = vunpack.c.h.b16 %v1587
    %v4490 = vunpack.c.l.b16 %v1588
    %v4491 = vunpack.c.h.b16 %v1588
    %v4492 = vunpack.c.l.b16 %v1589
    %v4493 = vunpack.c.h.b16 %v1589
    %v4494 = vunpack.c.l.b16 %v1590
    %v4495 = vunpack.c.h.b16 %v1590
    %v4496 = vunpack.c.l.b16 %v1591
    %v4497 = vunpack.c.h.b16 %v1591
    %v4498 = vunpack.c.l.b16 %v1592
    %v4499 = vunpack.c.h.b16 %v1592
    %v4500 = vunpack.c.l.b16 %v1593
    %v4501 = vunpack.c.h.b16 %v1593
    %v4502 = vunpack.c.l.b16 %v1594
    %v4503 = vunpack.c.h.b16 %v1594
    %v4504 = vunpack.c.l.b16 %v1595
    %v4505 = vunpack.c.h.b16 %v1595
    %v4506 = vunpack.c.l.b16 %v1596
    %v4507 = vunpack.c.h.b16 %v1596
    %v4508 = vunpack.c.l.b16 %v1597
    %v4509 = vunpack.c.h.b16 %v1597
    %v4510 = vunpack.c.l.b16 %v1598
    %v4511 = vunpack.c.h.b16 %v1598
    %v4512 = vunpack.c.l.b16 %v1599
    %v4513 = vunpack.c.h.b16 %v1599
    %v4514 = vunpack.c.l.b16 %v1600
    %v4515 = vunpack.c.h.b16 %v1600
    %v4516 = vunpack.c.l.b16 %v1601
    %v4517 = vunpack.c.h.b16 %v1601
    %v4518 = vunpack.c.l.b16 %v1602
    %v4519 = vunpack.c.h.b16 %v1602
    %v4520 = vunpack.c.l.b16 %v1603
    %v4521 = vunpack.c.h.b16 %v1603
    %v4522 = vunpack.c.l.b16 %v1604
    %v4523 = vunpack.c.h.b16 %v1604
    %v4524 = vunpack.c.l.b16 %v1605
    %v4525 = vunpack.c.h.b16 %v1605
    %v4526 = vunpack.c.l.b16 %v1606
    %v4527 = vunpack.c.h.b16 %v1606
    %v4528 = vunpack.c.l.b16 %v1607
    %v4529 = vunpack.c.h.b16 %v1607
    %v4530 = vunpack.c.l.b16 %v1608
    %v4531 = vunpack.c.h.b16 %v1608
    %v4532 = vunpack.c.l.b16 %v1609
    %v4533 = vunpack.c.h.b16 %v1609
    %v4534 = vunpack.c.l.b16 %v1610
    %v4535 = vunpack.c.h.b16 %v1610
    %v4536 = vunpack.c.l.b16 %v1611
    %v4537 = vunpack.c.h.b16 %v1611
    %v4538 = vunpack.c.l.b16 %v1612
    %v4539 = vunpack.c.h.b16 %v1612
    %v4540 = vunpack.c.l.b16 %v1613
    %v4541 = vunpack.c.h.b16 %v1613
    %v4542 = vunpack.c.l.b16 %v1614
    %v4543 = vunpack.c.h.b16 %v1614
    %v4544 = vunpack.c.l.b16 %v1615
    %v4545 = vunpack.c.h.b16 %v1615
    %v4546 = vunpack.c.l.b16 %v1616
    %v4547 = vunpack.c.h.b16 %v1616
    %v4548 = vunpack.c.l.b16 %v1617
    %v4549 = vunpack.c.h.b16 %v1617
    %v4550 = vunpack.c.l.b16 %v1618
    %v4551 = vunpack.c.h.b16 %v1618
    %v4552 = vunpack.c.l.b16 %v1619
    %v4553 = vunpack.c.h.b16 %v1619
    %v4554 = vunpack.c.l.b16 %v1620
    %v4555 = vunpack.c.h.b16 %v1620
    %v4556 = vunpack.c.l.b16 %v1621
    %v4557 = vunpack.c.h.b16 %v1621
    %v4558 = vunpack.c.l.b16 %v1622
    %v4559 = vunpack.c.h.b16 %v1622
    %v4560 = vunpack.c.l.b16 %v1623
    %v4561 = vunpack.c.h.b16 %v1623
    %v4562 = vunpack.c.l.b16 %v1624
    %v4563 = vunpack.c.h.b16 %v1624
    %v4564 = vunpack.c.l.b16 %v1625
    %v4565 = vunpack.c.h.b16 %v1625
    %v4566 = vunpack.c.l.b16 %v1626
    %v4567 = vunpack.c.h.b16 %v1626
    %v4568 = vunpack.c.l.b16 %v1627
    %v4569 = vunpack.c.h.b16 %v1627
    %v4570 = vunpack.c.l.b16 %v1628
    %v4571 = vunpack.c.h.b16 %v1628
    %v4572 = vunpack.c.l.b16 %v1629
    %v4573 = vunpack.c.h.b16 %v1629
    %v4574 = vunpack.c.l.b16 %v1630
    %v4575 = vunpack.c.h.b16 %v1630
    %v4576 = vunpack.c.l.b16 %v1631
    %v4577 = vunpack.c.h.b16 %v1631
    %v4578 = vunpack.c.l.b16 %v1632
    %v4579 = vunpack.c.h.b16 %v1632
    %v4580 = vunpack.c.l.b16 %v1633
    %v4581 = vunpack.c.h.b16 %v1633
    %v4582 = vunpack.c.l.b16 %v1634
    %v4583 = vunpack.c.h.b16 %v1634
    %v4584 = vunpack.c.l.b16 %v1635
    %v4585 = vunpack.c.h.b16 %v1635
    %v4586 = vunpack.c.l.b16 %v1636
    %v4587 = vunpack.c.h.b16 %v1636
    %v4588 = vunpack.c.l.b16 %v1637
    %v4589 = vunpack.c.h.b16 %v1637
    %v4590 = vunpack.c.l.b16 %v1638
    %v4591 = vunpack.c.h.b16 %v1638
    %v4592 = vunpack.c.l.b16 %v1639
    %v4593 = vunpack.c.h.b16 %v1639
    %v4594 = vunpack.c.l.b16 %v1640
    %v4595 = vunpack.c.h.b16 %v1640
    %v4596 = vunpack.c.l.b16 %v1641
    %v4597 = vunpack.c.h.b16 %v1641
    %v4598 = vunpack.c.l.b16 %v1642
    %v4599 = vunpack.c.h.b16 %v1642
    %v4600 = vunpack.c.l.b16 %v1643
    %v4601 = vunpack.c.h.b16 %v1643
    %v4602 = vunpack.c.l.b16 %v1644
    %v4603 = vunpack.c.h.b16 %v1644
    %v4604 = vunpack.c.l.b16 %v1645
    %v4605 = vunpack.c.h.b16 %v1645
    %v4606 = vunpack.c.l.b16 %v1646
    %v4607 = vunpack.c.h.b16 %v1646
    %v4608 = vunpack.c.l.b16 %v1647
    %v4609 = vunpack.c.h.b16 %v1647
    %v4610 = vunpack.c.l.b16 %v1648
    %v4611 = vunpack.c.h.b16 %v1648
    %v4612 = vunpack.c.l.b16 %v1649
    %v4613 = vunpack.c.h.b16 %v1649
    %v4614 = vunpack.c.l.b16 %v1650
    %v4615 = vunpack.c.h.b16 %v1650
    %v4616 = vunpack.c.l.b16 %v1651
    %v4617 = vunpack.c.h.b16 %v1651
    %v4618 = vunpack.c.l.b16 %v1652
    %v4619 = vunpack.c.h.b16 %v1652
    %v4620 = vunpack.c.l.b16 %v1653
    %v4621 = vunpack.c.h.b16 %v1653
    %v4622 = vunpack.c.l.b16 %v1654
    %v4623 = vunpack.c.h.b16 %v1654
    %v4624 = vunpack.c.l.b16 %v1655
    %v4625 = vunpack.c.h.b16 %v1655
    %v4626 = vunpack.c.l.b16 %v1656
    %v4627 = vunpack.c.h.b16 %v1656
    %v4628 = vunpack.c.l.b16 %v1657
    %v4629 = vunpack.c.h.b16 %v1657
    %v4630 = vunpack.c.l.b16 %v1658
    %v4631 = vunpack.c.h.b16 %v1658
    %v4632 = vunpack.c.l.b16 %v1659
    %v4633 = vunpack.c.h.b16 %v1659
    %v4634 = vunpack.c.l.b16 %v1660
    %v4635 = vunpack.c.h.b16 %v1660
    %v4636 = vunpack.c.l.b16 %v1661
    %v4637 = vunpack.c.h.b16 %v1661
    %v4638 = vunpack.c.l.b16 %v1662
    %v4639 = vunpack.c.h.b16 %v1662
    %v4640 = vunpack.c.l.b16 %v1663
    %v4641 = vunpack.c.h.b16 %v1663
    %v4642 = vunpack.c.l.b16 %v1664
    %v4643 = vunpack.c.h.b16 %v1664
    %v4644 = vunpack.c.l.b16 %v1665
    %v4645 = vunpack.c.h.b16 %v1665
    %v4646 = vunpack.c.l.b16 %v1666
    %v4647 = vunpack.c.h.b16 %v1666
    %v4648 = vunpack.c.l.b16 %v1667
    %v4649 = vunpack.c.h.b16 %v1667
    %v4650 = vunpack.c.l.b16 %v1668
    %v4651 = vunpack.c.h.b16 %v1668
    %v4652 = vunpack.c.l.b16 %v1669
    %v4653 = vunpack.c.h.b16 %v1669
    %v4654 = vunpack.c.l.b16 %v1670
    %v4655 = vunpack.c.h.b16 %v1670
    %v4656 = vunpack.c.l.b16 %v1671
    %v4657 = vunpack.c.h.b16 %v1671
    %v4658 = vunpack.c.l.b16 %v1672
    %v4659 = vunpack.c.h.b16 %v1672
    %v4660 = vunpack.c.l.b16 %v1673
    %v4661 = vunpack.c.h.b16 %v1673
    %v4662 = vunpack.c.l.b16 %v1674
    %v4663 = vunpack.c.h.b16 %v1674
    %v4664 = vunpack.c.l.b16 %v1675
    %v4665 = vunpack.c.h.b16 %v1675
    %v4666 = vunpack.c.l.b16 %v1676
    %v4667 = vunpack.c.h.b16 %v1676
    %v4668 = vunpack.c.l.b16 %v1677
    %v4669 = vunpack.c.h.b16 %v1677
    %v4670 = vunpack.c.l.b16 %v1678
    %v4671 = vunpack.c.h.b16 %v1678
    %v4672 = vunpack.c.l.b16 %v1679
    %v4673 = vunpack.c.h.b16 %v1679
    %v4674 = vunpack.c.l.b16 %v1680
    %v4675 = vunpack.c.h.b16 %v1680
    %v4676 = vunpack.c.l.b16 %v1681
    %v4677 = vunpack.c.h.b16 %v1681
    %v4678 = vunpack.c.l.b16 %v1682
    %v4679 = vunpack.c.h.b16 %v1682
    %v4680 = vunpack.c.l.b16 %v1683
    %v4681 = vunpack.c.h.b16 %v1683
    %v4682 = vunpack.c.l.b16 %v1684
    %v4683 = vunpack.c.h.b16 %v1684
    %v4684 = vunpack.c.l.b16 %v1685
    %v4685 = vunpack.c.h.b16 %v1685
    %v4686 = vunpack.c.l.b16 %v1686
    %v4687 = vunpack.c.h.b16 %v1686
    %v4688 = vunpack.c.l.b16 %v1687
    %v4689 = vunpack.c.h.b16 %v1687
    %v4690 = vunpack.c.l.b16 %v1688
    %v4691 = vunpack.c.h.b16 %v1688
    %v4692 = vunpack.c.l.b16 %v1689
    %v4693 = vunpack.c.h.b16 %v1689
    %v4694 = vunpack.c.l.b16 %v1690
    %v4695 = vunpack.c.h.b16 %v1690
    %v4696 = vunpack.c.l.b16 %v1691
    %v4697 = vunpack.c.h.b16 %v1691
    %v4698 = vunpack.c.l.b16 %v1692
    %v4699 = vunpack.c.h.b16 %v1692
    %v4700 = vunpack.c.l.b16 %v1693
    %v4701 = vunpack.c.h.b16 %v1693
    %v4702 = vunpack.c.l.b16 %v1694
    %v4703 = vunpack.c.h.b16 %v1694
    %v4704 = vunpack.c.l.b16 %v1695
    %v4705 = vunpack.c.h.b16 %v1695
    %v4706 = vunpack.c.l.b16 %v1696
    %v4707 = vunpack.c.h.b16 %v1696
    %v4708 = vunpack.c.l.b16 %v1697
    %v4709 = vunpack.c.h.b16 %v1697
    %v4710 = vunpack.c.l.b16 %v1698
    %v4711 = vunpack.c.h.b16 %v1698
    %v4712 = vunpack.c.l.b16 %v1699
    %v4713 = vunpack.c.h.b16 %v1699
    %v4714 = vunpack.c.l.b16 %v1700
    %v4715 = vunpack.c.h.b16 %v1700
    %v4716 = vunpack.c.l.b16 %v1701
    %v4717 = vunpack.c.h.b16 %v1701
    %v4718 = vunpack.c.l.b16 %v1702
    %v4719 = vunpack.c.h.b16 %v1702
    %v4720 = vunpack.c.l.b16 %v1703
    %v4721 = vunpack.c.h.b16 %v1703
    %v4722 = vunpack.c.l.b16 %v1704
    %v4723 = vunpack.c.h.b16 %v1704
    %v4724 = vunpack.c.l.b16 %v1705
    %v4725 = vunpack.c.h.b16 %v1705
    %v4726 = vunpack.c.l.b16 %v1706
    %v4727 = vunpack.c.h.b16 %v1706
    %v4728 = vunpack.c.l.b16 %v1707
    %v4729 = vunpack.c.h.b16 %v1707
    %v4730 = vunpack.c.l.b16 %v1708
    %v4731 = vunpack.c.h.b16 %v1708
    %v4732 = vunpack.c.l.b16 %v1709
    %v4733 = vunpack.c.h.b16 %v1709
    %v4734 = vunpack.c.l.b16 %v1710
    %v4735 = vunpack.c.h.b16 %v1710
    %v4736 = vunpack.c.l.b16 %v1711
    %v4737 = vunpack.c.h.b16 %v1711
    %v4738 = vunpack.c.l.b16 %v1712
    %v4739 = vunpack.c.h.b16 %v1712
    %v4740 = vunpack.c.l.b16 %v1713
    %v4741 = vunpack.c.h.b16 %v1713
    %v4742 = vunpack.c.l.b16 %v1714
    %v4743 = vunpack.c.h.b16 %v1714
    %v4744 = vunpack.c.l.b16 %v1715
    %v4745 = vunpack.c.h.b16 %v1715
    %v4746 = vunpack.c.l.b16 %v1716
    %v4747 = vunpack.c.h.b16 %v1716
    %v4748 = vunpack.c.l.b16 %v1717
    %v4749 = vunpack.c.h.b16 %v1717
    %v4750 = vunpack.c.l.b16 %v1718
    %v4751 = vunpack.c.h.b16 %v1718
    %v4752 = vunpack.c.l.b16 %v1719
    %v4753 = vunpack.c.h.b16 %v1719
    %v4754 = vunpack.c.l.b16 %v1720
    %v4755 = vunpack.c.h.b16 %v1720
    %v4756 = vunpack.c.l.b16 %v1721
    %v4757 = vunpack.c.h.b16 %v1721
    %v4758 = vunpack.c.l.b16 %v1722
    %v4759 = vunpack.c.h.b16 %v1722
    %v4760 = vunpack.c.l.b16 %v1723
    %v4761 = vunpack.c.h.b16 %v1723
    %v4762 = vunpack.c.l.b16 %v1724
    %v4763 = vunpack.c.h.b16 %v1724
    %v4764 = vunpack.c.l.b16 %v1725
    %v4765 = vunpack.c.h.b16 %v1725
    %v4766 = vunpack.c.l.b16 %v1726
    %v4767 = vunpack.c.h.b16 %v1726
    %v4768 = vunpack.c.l.b16 %v1727
    %v4769 = vunpack.c.h.b16 %v1727
    %v4770 = vunpack.c.l.b16 %v1728
    %v4771 = vunpack.c.h.b16 %v1728
    %v4772 = vunpack.c.l.b16 %v1729
    %v4773 = vunpack.c.h.b16 %v1729
    %v4774 = vunpack.c.l.b16 %v1730
    %v4775 = vunpack.c.h.b16 %v1730
    %v4776 = vunpack.c.l.b16 %v1731
    %v4777 = vunpack.c.h.b16 %v1731
    %v4778 = vunpack.c.l.b16 %v1732
    %v4779 = vunpack.c.h.b16 %v1732
    %v4780 = vunpack.c.l.b16 %v1733
    %v4781 = vunpack.c.h.b16 %v1733
    %v4782 = vunpack.c.l.b16 %v1734
    %v4783 = vunpack.c.h.b16 %v1734
    %v4784 = vunpack.c.l.b16 %v1735
    %v4785 = vunpack.c.h.b16 %v1735
    %v4786 = vunpack.c.l.b16 %v1736
    %v4787 = vunpack.c.h.b16 %v1736
    %v4788 = vunpack.c.l.b16 %v1737
    %v4789 = vunpack.c.h.b16 %v1737
    %v4790 = vunpack.c.l.b16 %v1738
    %v4791 = vunpack.c.h.b16 %v1738
    %v4792 = vunpack.c.l.b16 %v1739
    %v4793 = vunpack.c.h.b16 %v1739
    %v4794 = vunpack.c.l.b16 %v1740
    %v4795 = vunpack.c.h.b16 %v1740
    %v4796 = vunpack.c.l.b16 %v1741
    %v4797 = vunpack.c.h.b16 %v1741
    %v4798 = vunpack.c.l.b16 %v1742
    %v4799 = vunpack.c.h.b16 %v1742
    %v4800 = vunpack.c.l.b16 %v1743
    %v4801 = vunpack.c.h.b16 %v1743
    %v4802 = vunpack.c.l.b16 %v1744
    %v4803 = vunpack.c.h.b16 %v1744
    %v4804 = vunpack.c.l.b16 %v1745
    %v4805 = vunpack.c.h.b16 %v1745
    %v4806 = vunpack.c.l.b16 %v1746
    %v4807 = vunpack.c.h.b16 %v1746
    %v4808 = vunpack.c.l.b16 %v1747
    %v4809 = vunpack.c.h.b16 %v1747
    %v4810 = vunpack.c.l.b16 %v1748
    %v4811 = vunpack.c.h.b16 %v1748
    %v4812 = vunpack.c.l.b16 %v1749
    %v4813 = vunpack.c.h.b16 %v1749
    %v4814 = vunpack.c.l.b16 %v1750
    %v4815 = vunpack.c.h.b16 %v1750
    %v4816 = vunpack.c.l.b16 %v1751
    %v4817 = vunpack.c.h.b16 %v1751
    %v4818 = vunpack.c.l.b16 %v1752
    %v4819 = vunpack.c.h.b16 %v1752
    %v4820 = vunpack.c.l.b16 %v1753
    %v4821 = vunpack.c.h.b16 %v1753
    %v4822 = vunpack.c.l.b16 %v1754
    %v4823 = vunpack.c.h.b16 %v1754
    %v4824 = vunpack.c.l.b16 %v1755
    %v4825 = vunpack.c.h.b16 %v1755
    %v4826 = vunpack.c.l.b16 %v1756
    %v4827 = vunpack.c.h.b16 %v1756
    %v4828 = vunpack.c.l.b16 %v1757
    %v4829 = vunpack.c.h.b16 %v1757
    %v4830 = vunpack.c.l.b16 %v1758
    %v4831 = vunpack.c.h.b16 %v1758
    %v4832 = vunpack.c.l.b16 %v1759
    %v4833 = vunpack.c.h.b16 %v1759
    %v4834 = vunpack.c.l.b16 %v1760
    %v4835 = vunpack.c.h.b16 %v1760
    %v4836 = vunpack.c.l.b16 %v1761
    %v4837 = vunpack.c.h.b16 %v1761
    %v4838 = vunpack.c.l.b16 %v1762
    %v4839 = vunpack.c.h.b16 %v1762
    %v4840 = vunpack.c.l.b16 %v1763
    %v4841 = vunpack.c.h.b16 %v1763
    %v4842 = vunpack.c.l.b16 %v1764
    %v4843 = vunpack.c.h.b16 %v1764
    %v4844 = vunpack.c.l.b16 %v1765
    %v4845 = vunpack.c.h.b16 %v1765
    %v4846 = vunpack.c.l.b16 %v1766
    %v4847 = vunpack.c.h.b16 %v1766
    %v4848 = vunpack.c.l.b16 %v1767
    %v4849 = vunpack.c.h.b16 %v1767
    %v4850 = vunpack.c.l.b16 %v1768
    %v4851 = vunpack.c.h.b16 %v1768
    %v4852 = vunpack.c.l.b16 %v1769
    %v4853 = vunpack.c.h.b16 %v1769
    %v4854 = vunpack.c.l.b16 %v1770
    %v4855 = vunpack.c.h.b16 %v1770
    %v4856 = vunpack.c.l.b16 %v1771
    %v4857 = vunpack.c.h.b16 %v1771
    %v4858 = vunpack.c.l.b16 %v1772
    %v4859 = vunpack.c.h.b16 %v1772
    %v4860 = vunpack.c.l.b16 %v1773
    %v4861 = vunpack.c.h.b16 %v1773
    %v4862 = vunpack.c.l.b16 %v1774
    %v4863 = vunpack.c.h.b16 %v1774
    %v4864 = vunpack.c.l.b16 %v1775
    %v4865 = vunpack.c.h.b16 %v1775
    %v4866 = vunpack.c.l.b16 %v1776
    %v4867 = vunpack.c.h.b16 %v1776
    %v4868 = vunpack.c.l.b16 %v1777
    %v4869 = vunpack.c.h.b16 %v1777
    %v4870 = vunpack.c.l.b16 %v1778
    %v4871 = vunpack.c.h.b16 %v1778
    %v4872 = vunpack.c.l.b16 %v1779
    %v4873 = vunpack.c.h.b16 %v1779
    %v4874 = vunpack.c.l.b16 %v1780
    %v4875 = vunpack.c.h.b16 %v1780
    %v4876 = vunpack.c.l.b16 %v1781
    %v4877 = vunpack.c.h.b16 %v1781
    %v4878 = vunpack.c.l.b16 %v1782
    %v4879 = vunpack.c.h.b16 %v1782
    %v4880 = vunpack.c.l.b16 %v1783
    %v4881 = vunpack.c.h.b16 %v1783
    %v4882 = vunpack.c.l.b16 %v1784
    %v4883 = vunpack.c.h.b16 %v1784
    %v4884 = vunpack.c.l.b16 %v1785
    %v4885 = vunpack.c.h.b16 %v1785
    %v4886 = vunpack.c.l.b16 %v1786
    %v4887 = vunpack.c.h.b16 %v1786
    %v4888 = vunpack.c.l.b16 %v1787
    %v4889 = vunpack.c.h.b16 %v1787
    %v4890 = vunpack.c.l.b16 %v1788
    %v4891 = vunpack.c.h.b16 %v1788
    %v4892 = vunpack.c.l.b16 %v1789
    %v4893 = vunpack.c.h.b16 %v1789
    %v4894 = vunpack.c.l.b16 %v1790
    %v4895 = vunpack.c.h.b16 %v1790
    %v4896 = vunpack.c.l.b16 %v1791
    %v4897 = vunpack.c.h.b16 %v1791
    %v4898 = vunpack.c.l.b16 %v1792
    %v4899 = vunpack.c.h.b16 %v1792
    %v4900 = vunpack.c.l.b16 %v1793
    %v4901 = vunpack.c.h.b16 %v1793
    %v4902 = vunpack.c.l.b16 %v1794
    %v4903 = vunpack.c.h.b16 %v1794
    %v4904 = vunpack.c.l.b16 %v1795
    %v4905 = vunpack.c.h.b16 %v1795
    %v4906 = vunpack.c.l.b16 %v1796
    %v4907 = vunpack.c.h.b16 %v1796
    %v4908 = vunpack.c.l.b16 %v1797
    %v4909 = vunpack.c.h.b16 %v1797
    %v4910 = vunpack.c.l.b16 %v1798
    %v4911 = vunpack.c.h.b16 %v1798
    %v4912 = vunpack.c.l.b16 %v1799
    %v4913 = vunpack.c.h.b16 %v1799
    %v4914 = vpack.c.b16 %v2874, %v2866
    %v4915 = vpack.c.b16 %v2875, %v2867
    %v4916 = vpack.c.b16 %v2876, %v2868
    %v4917 = vpack.c.b16 %v2877, %v2869
    %v4918 = vpack.c.b16 %v2878, %v2870
    %v4919 = vpack.c.b16 %v2879, %v2871
    %v4920 = vpack.c.b16 %v2880, %v2872
    %v4921 = vpack.c.b16 %v2881, %v2873
    %v4922 = vpack.c.b16 %v2890, %v2882
    %v4923 = vpack.c.b16 %v2891, %v2883
    %v4924 = vpack.c.b16 %v2892, %v2884
    %v4925 = vpack.c.b16 %v2893, %v2885
    %v4926 = vpack.c.b16 %v2894, %v2886
    %v4927 = vpack.c.b16 %v2895, %v2887
    %v4928 = vpack.c.b16 %v2896, %v2888
    %v4929 = vpack.c.b16 %v2897, %v2889
    %v4930 = vpack.c.b16 %v2906, %v2898
    %v4931 = vpack.c.b16 %v2907, %v2899
    %v4932 = vpack.c.b16 %v2908, %v2900
    %v4933 = vpack.c.b16 %v2909, %v2901
    %v4934 = vpack.c.b16 %v2910, %v2902
    %v4935 = vpack.c.b16 %v2911, %v2903
    %v4936 = vpack.c.b16 %v2912, %v2904
    %v4937 = vpack.c.b16 %v2913, %v2905
    %v4938 = vpack.c.b16 %v2922, %v2914
    %v4939 = vpack.c.b16 %v2923, %v2915
    %v4940 = vpack.c.b16 %v2924, %v2916
    %v4941 = vpack.c.b16 %v2925, %v2917
    %v4942 = vpack.c.b16 %v2926, %v2918
    %v4943 = vpack.c.b16 %v2927, %v2919
    %v4944 = vpack.c.b16 %v2928, %v2920
    %v4945 = vpack.c.b16 %v2929, %v2921
    %v4946 = vpack.c.b16 %v2938, %v2930
    %v4947 = vpack.c.b16 %v2939, %v2931
    %v4948 = vpack.c.b16 %v2940, %v2932
    %v4949 = vpack.c.b16 %v2941, %v2933
    %v4950 = vpack.c.b16 %v2942, %v2934
    %v4951 = vpack.c.b16 %v2943, %v2935
    %v4952 = vpack.c.b16 %v2944, %v2936
    %v4953 = vpack.c.b16 %v2945, %v2937
    %v4954 = vpack.c.b16 %v2954, %v2946
    %v4955 = vpack.c.b16 %v2955, %v2947
    %v4956 = vpack.c.b16 %v2956, %v2948
    %v4957 = vpack.c.b16 %v2957, %v2949
    %v4958 = vpack.c.b16 %v2958, %v2950
    %v4959 = vpack.c.b16 %v2959, %v2951
    %v4960 = vpack.c.b16 %v2960, %v2952
    %v4961 = vpack.c.b16 %v2961, %v2953
    %v4962 = vpack.c.b16 %v2970, %v2962
    %v4963 = vpack.c.b16 %v2971, %v2963
    %v4964 = vpack.c.b16 %v2972, %v2964
    %v4965 = vpack.c.b16 %v2973, %v2965
    %v4966 = vpack.c.b16 %v2974, %v2966
    %v4967 = vpack.c.b16 %v2975, %v2967
    %v4968 = vpack.c.b16 %v2976, %v2968
    %v4969 = vpack.c.b16 %v2977, %v2969
    %v4970 = vpack.c.b16 %v2986, %v2978
    %v4971 = vpack.c.b16 %v2987, %v2979
    %v4972 = vpack.c.b16 %v2988, %v2980
    %v4973 = vpack.c.b16 %v2989, %v2981
    %v4974 = vpack.c.b16 %v2990, %v2982
    %v4975 = vpack.c.b16 %v2991, %v2983
    %v4976 = vpack.c.b16 %v2992, %v2984
    %v4977 = vpack.c.b16 %v2993, %v2985
    %v4978 = vpack.c.b16 %v3002, %v2994
    %v4979 = vpack.c.b16 %v3003, %v2995
    %v4980 = vpack.c.b16 %v3004, %v2996
    %v4981 = vpack.c.b16 %v3005, %v2997
    %v4982 = vpack.c.b16 %v3006, %v2998
    %v4983 = vpack.c.b16 %v3007, %v2999
    %v4984 = vpack.c.b16 %v3008, %v3000
    %v4985 = vpack.c.b16 %v3009, %v3001
    %v4986 = vpack.c.b16 %v3018, %v3010
    %v4987 = vpack.c.b16 %v3019, %v3011
    %v4988 = vpack.c.b16 %v3020, %v3012
    %v4989 = vpack.c.b16 %v3021, %v3013
    %v4990 = vpack.c.b16 %v3022, %v3014
    %v4991 = vpack.c.b16 %v3023, %v3015
    %v4992 = vpack.c.b16 %v3024, %v3016
    %v4993 = vpack.c.b16 %v3025, %v3017
    %v4994 = vpack.c.b16 %v3034, %v3026
    %v4995 = vpack.c.b16 %v3035, %v3027
    %v4996 = vpack.c.b16 %v3036, %v3028
    %v4997 = vpack.c.b16 %v3037, %v3029
    %v4998 = vpack.c.b16 %v3038, %v3030
    %v4999 = vpack.c.b16 %v3039, %v3031
    %v5000 = vpack.c.b16 %v3040, %v3032
    %v5001 = vpack.c.b16 %v3041, %v3033
    %v5002 = vpack.c.b16 %v3050, %v3042
    %v5003 = vpack.c.b16 %v3051, %v3043
    %v5004 = vpack.c.b16 %v3052, %v3044
    %v5005 = vpack.c.b16 %v3053, %v3045
    %v5006 = vpack.c.b16 %v3054, %v3046
    %v5007 = vpack.c.b16 %v3055, %v3047
    %v5008 = vpack.c.b16 %v3056, %v3048
    %v5009 = vpack.c.b16 %v3057, %v3049
    %v5010 = vpack.c.b16 %v3066, %v3058
    %v5011 = vpack.c.b16 %v3067, %v3059
    %v5012 = vpack.c.b16 %v3068, %v3060
    %v5013 = vpack.c.b16 %v3069, %v3061
    %v5014 = vpack.c.b16 %v3070, %v3062
    %v5015 = vpack.c.b16 %v3071, %v3063
    %v5016 = vpack.c.b16 %v3072, %v3064
    %v5017 = vpack.c.b16 %v3073, %v3065
    %v5018 = vpack.c.b16 %v3082, %v3074
    %v5019 = vpack.c.b16 %v3083, %v3075
    %v5020 = vpack.c.b16 %v3084, %v3076
    %v5021 = vpack.c.b16 %v3085, %v3077
    %v5022 = vpack.c.b16 %v3086, %v3078
    %v5023 = vpack.c.b16 %v3087, %v3079
    %v5024 = vpack.c.b16 %v3088, %v3080
    %v5025 = vpack.c.b16 %v3089, %v3081
    %v5026 = vpack.c.b16 %v3098, %v3090
    %v5027 = vpack.c.b16 %v3099, %v3091
    %v5028 = vpack.c.b16 %v3100, %v3092
    %v5029 = vpack.c.b16 %v3101, %v3093
    %v5030 = vpack.c.b16 %v3102, %v3094
    %v5031 = vpack.c.b16 %v3103, %v3095
    %v5032 = vpack.c.b16 %v3104, %v3096
    %v5033 = vpack.c.b16 %v3105, %v3097
    %v5034 = vpack.c.b16 %v3114, %v3106
    %v5035 = vpack.c.b16 %v3115, %v3107
    %v5036 = vpack.c.b16 %v3116, %v3108
    %v5037 = vpack.c.b16 %v3117, %v3109
    %v5038 = vpack.c.b16 %v3118, %v3110
    %v5039 = vpack.c.b16 %v3119, %v3111
    %v5040 = vpack.c.b16 %v3120, %v3112
    %v5041 = vpack.c.b16 %v3121, %v3113
    %v5042 = vpack.c.b16 %v3130, %v3122
    %v5043 = vpack.c.b16 %v3131, %v3123
    %v5044 = vpack.c.b16 %v3132, %v3124
    %v5045 = vpack.c.b16 %v3133, %v3125
    %v5046 = vpack.c.b16 %v3134, %v3126
    %v5047 = vpack.c.b16 %v3135, %v3127
    %v5048 = vpack.c.b16 %v3136, %v3128
    %v5049 = vpack.c.b16 %v3137, %v3129
    %v5050 = vpack.c.b16 %v3146, %v3138
    %v5051 = vpack.c.b16 %v3147, %v3139
    %v5052 = vpack.c.b16 %v3148, %v3140
    %v5053 = vpack.c.b16 %v3149, %v3141
    %v5054 = vpack.c.b16 %v3150, %v3142
    %v5055 = vpack.c.b16 %v3151, %v3143
    %v5056 = vpack.c.b16 %v3152, %v3144
    %v5057 = vpack.c.b16 %v3153, %v3145
    %v5058 = vpack.c.b16 %v3162, %v3154
    %v5059 = vpack.c.b16 %v3163, %v3155
    %v5060 = vpack.c.b16 %v3164, %v3156
    %v5061 = vpack.c.b16 %v3165, %v3157
    %v5062 = vpack.c.b16 %v3166, %v3158
    %v5063 = vpack.c.b16 %v3167, %v3159
    %v5064 = vpack.c.b16 %v3168, %v3160
    %v5065 = vpack.c.b16 %v3169, %v3161
    %v5066 = vpack.c.b16 %v3178, %v3170
    %v5067 = vpack.c.b16 %v3179, %v3171
    %v5068 = vpack.c.b16 %v3180, %v3172
    %v5069 = vpack.c.b16 %v3181, %v3173
    %v5070 = vpack.c.b16 %v3182, %v3174
    %v5071 = vpack.c.b16 %v3183, %v3175
    %v5072 = vpack.c.b16 %v3184, %v3176
    %v5073 = vpack.c.b16 %v3185, %v3177
    %v5074 = vpack.c.b16 %v3194, %v3186
    %v5075 = vpack.c.b16 %v3195, %v3187
    %v5076 = vpack.c.b16 %v3196, %v3188
    %v5077 = vpack.c.b16 %v3197, %v3189
    %v5078 = vpack.c.b16 %v3198, %v3190
    %v5079 = vpack.c.b16 %v3199, %v3191
    %v5080 = vpack.c.b16 %v3200, %v3192
    %v5081 = vpack.c.b16 %v3201, %v3193
    %v5082 = vpack.c.b16 %v3210, %v3202
    %v5083 = vpack.c.b16 %v3211, %v3203
    %v5084 = vpack.c.b16 %v3212, %v3204
    %v5085 = vpack.c.b16 %v3213, %v3205
    %v5086 = vpack.c.b16 %v3214, %v3206
    %v5087 = vpack.c.b16 %v3215, %v3207
    %v5088 = vpack.c.b16 %v3216, %v3208
    %v5089 = vpack.c.b16 %v3217, %v3209
    %v5090 = vpack.c.b16 %v3226, %v3218
    %v5091 = vpack.c.b16 %v3227, %v3219
    %v5092 = vpack.c.b16 %v3228, %v3220
    %v5093 = vpack.c.b16 %v3229, %v3221
    %v5094 = vpack.c.b16 %v3230, %v3222
    %v5095 = vpack.c.b16 %v3231, %v3223
    %v5096 = vpack.c.b16 %v3232, %v3224
    %v5097 = vpack.c.b16 %v3233, %v3225
    %v5098 = vpack.c.b16 %v3242, %v3234
    %v5099 = vpack.c.b16 %v3243, %v3235
    %v5100 = vpack.c.b16 %v3244, %v3236
    %v5101 = vpack.c.b16 %v3245, %v3237
    %v5102 = vpack.c.b16 %v3246, %v3238
    %v5103 = vpack.c.b16 %v3247, %v3239
    %v5104 = vpack.c.b16 %v3248, %v3240
    %v5105 = vpack.c.b16 %v3249, %v3241
    %v5106 = vpack.c.b16 %v3258, %v3250
    %v5107 = vpack.c.b16 %v3259, %v3251
    %v5108 = vpack.c.b16 %v3260, %v3252
    %v5109 = vpack.c.b16 %v3261, %v3253
    %v5110 = vpack.c.b16 %v3262, %v3254
    %v5111 = vpack.c.b16 %v3263, %v3255
    %v5112 = vpack.c.b16 %v3264, %v3256
    %v5113 = vpack.c.b16 %v3265, %v3257
    %v5114 = vpack.c.b16 %v3274, %v3266
    %v5115 = vpack.c.b16 %v3275, %v3267
    %v5116 = vpack.c.b16 %v3276, %v3268
    %v5117 = vpack.c.b16 %v3277, %v3269
    %v5118 = vpack.c.b16 %v3278, %v3270
    %v5119 = vpack.c.b16 %v3279, %v3271
    %v5120 = vpack.c.b16 %v3280, %v3272
    %v5121 = vpack.c.b16 %v3281, %v3273
    %v5122 = vpack.c.b16 %v3290, %v3282
    %v5123 = vpack.c.b16 %v3291, %v3283
    %v5124 = vpack.c.b16 %v3292, %v3284
    %v5125 = vpack.c.b16 %v3293, %v3285
    %v5126 = vpack.c.b16 %v3294, %v3286
    %v5127 = vpack.c.b16 %v3295, %v3287
    %v5128 = vpack.c.b16 %v3296, %v3288
    %v5129 = vpack.c.b16 %v3297, %v3289
    %v5130 = vpack.c.b16 %v3306, %v3298
    %v5131 = vpack.c.b16 %v3307, %v3299
    %v5132 = vpack.c.b16 %v3308, %v3300
    %v5133 = vpack.c.b16 %v3309, %v3301
    %v5134 = vpack.c.b16 %v3310, %v3302
    %v5135 = vpack.c.b16 %v3311, %v3303
    %v5136 = vpack.c.b16 %v3312, %v3304
    %v5137 = vpack.c.b16 %v3313, %v3305
    %v5138 = vpack.c.b16 %v3322, %v3314
    %v5139 = vpack.c.b16 %v3323, %v3315
    %v5140 = vpack.c.b16 %v3324, %v3316
    %v5141 = vpack.c.b16 %v3325, %v3317
    %v5142 = vpack.c.b16 %v3326, %v3318
    %v5143 = vpack.c.b16 %v3327, %v3319
    %v5144 = vpack.c.b16 %v3328, %v3320
    %v5145 = vpack.c.b16 %v3329, %v3321
    %v5146 = vpack.c.b16 %v3338, %v3330
    %v5147 = vpack.c.b16 %v3339, %v3331
    %v5148 = vpack.c.b16 %v3340, %v3332
    %v5149 = vpack.c.b16 %v3341, %v3333
    %v5150 = vpack.c.b16 %v3342, %v3334
    %v5151 = vpack.c.b16 %v3343, %v3335
    %v5152 = vpack.c.b16 %v3344, %v3336
    %v5153 = vpack.c.b16 %v3345, %v3337
    %v5154 = vpack.c.b16 %v3354, %v3346
    %v5155 = vpack.c.b16 %v3355, %v3347
    %v5156 = vpack.c.b16 %v3356, %v3348
    %v5157 = vpack.c.b16 %v3357, %v3349
    %v5158 = vpack.c.b16 %v3358, %v3350
    %v5159 = vpack.c.b16 %v3359, %v3351
    %v5160 = vpack.c.b16 %v3360, %v3352
    %v5161 = vpack.c.b16 %v3361, %v3353
    %v5162 = vpack.c.b16 %v3370, %v3362
    %v5163 = vpack.c.b16 %v3371, %v3363
    %v5164 = vpack.c.b16 %v3372, %v3364
    %v5165 = vpack.c.b16 %v3373, %v3365
    %v5166 = vpack.c.b16 %v3374, %v3366
    %v5167 = vpack.c.b16 %v3375, %v3367
    %v5168 = vpack.c.b16 %v3376, %v3368
    %v5169 = vpack.c.b16 %v3377, %v3369
    %v5170 = vpack.c.b16 %v3386, %v3378
    %v5171 = vpack.c.b16 %v3387, %v3379
    %v5172 = vpack.c.b16 %v3388, %v3380
    %v5173 = vpack.c.b16 %v3389, %v3381
    %v5174 = vpack.c.b16 %v3390, %v3382
    %v5175 = vpack.c.b16 %v3391, %v3383
    %v5176 = vpack.c.b16 %v3392, %v3384
    %v5177 = vpack.c.b16 %v3393, %v3385
    %v5178 = vpack.c.b16 %v3402, %v3394
    %v5179 = vpack.c.b16 %v3403, %v3395
    %v5180 = vpack.c.b16 %v3404, %v3396
    %v5181 = vpack.c.b16 %v3405, %v3397
    %v5182 = vpack.c.b16 %v3406, %v3398
    %v5183 = vpack.c.b16 %v3407, %v3399
    %v5184 = vpack.c.b16 %v3408, %v3400
    %v5185 = vpack.c.b16 %v3409, %v3401
    %v5186 = vpack.c.b16 %v3418, %v3410
    %v5187 = vpack.c.b16 %v3419, %v3411
    %v5188 = vpack.c.b16 %v3420, %v3412
    %v5189 = vpack.c.b16 %v3421, %v3413
    %v5190 = vpack.c.b16 %v3422, %v3414
    %v5191 = vpack.c.b16 %v3423, %v3415
    %v5192 = vpack.c.b16 %v3424, %v3416
    %v5193 = vpack.c.b16 %v3425, %v3417
    %v5194 = vpack.c.b16 %v3434, %v3426
    %v5195 = vpack.c.b16 %v3435, %v3427
    %v5196 = vpack.c.b16 %v3436, %v3428
    %v5197 = vpack.c.b16 %v3437, %v3429
    %v5198 = vpack.c.b16 %v3438, %v3430
    %v5199 = vpack.c.b16 %v3439, %v3431
    %v5200 = vpack.c.b16 %v3440, %v3432
    %v5201 = vpack.c.b16 %v3441, %v3433
    %v5202 = vpack.c.b16 %v3450, %v3442
    %v5203 = vpack.c.b16 %v3451, %v3443
    %v5204 = vpack.c.b16 %v3452, %v3444
    %v5205 = vpack.c.b16 %v3453, %v3445
    %v5206 = vpack.c.b16 %v3454, %v3446
    %v5207 = vpack.c.b16 %v3455, %v3447
    %v5208 = vpack.c.b16 %v3456, %v3448
    %v5209 = vpack.c.b16 %v3457, %v3449
    %v5210 = vpack.c.b16 %v3466, %v3458
    %v5211 = vpack.c.b16 %v3467, %v3459
    %v5212 = vpack.c.b16 %v3468, %v3460
    %v5213 = vpack.c.b16 %v3469, %v3461
    %v5214 = vpack.c.b16 %v3470, %v3462
    %v5215 = vpack.c.b16 %v3471, %v3463
    %v5216 = vpack.c.b16 %v3472, %v3464
    %v5217 = vpack.c.b16 %v3473, %v3465
    %v5218 = vpack.c.b16 %v3482, %v3474
    %v5219 = vpack.c.b16 %v3483, %v3475
    %v5220 = vpack.c.b16 %v3484, %v3476
    %v5221 = vpack.c.b16 %v3485, %v3477
    %v5222 = vpack.c.b16 %v3486, %v3478
    %v5223 = vpack.c.b16 %v3487, %v3479
    %v5224 = vpack.c.b16 %v3488, %v3480
    %v5225 = vpack.c.b16 %v3489, %v3481
    %v5226 = vpack.c.b16 %v3498, %v3490
    %v5227 = vpack.c.b16 %v3499, %v3491
    %v5228 = vpack.c.b16 %v3500, %v3492
    %v5229 = vpack.c.b16 %v3501, %v3493
    %v5230 = vpack.c.b16 %v3502, %v3494
    %v5231 = vpack.c.b16 %v3503, %v3495
    %v5232 = vpack.c.b16 %v3504, %v3496
    %v5233 = vpack.c.b16 %v3505, %v3497
    %v5234 = vpack.c.b16 %v3514, %v3506
    %v5235 = vpack.c.b16 %v3515, %v3507
    %v5236 = vpack.c.b16 %v3516, %v3508
    %v5237 = vpack.c.b16 %v3517, %v3509
    %v5238 = vpack.c.b16 %v3518, %v3510
    %v5239 = vpack.c.b16 %v3519, %v3511
    %v5240 = vpack.c.b16 %v3520, %v3512
    %v5241 = vpack.c.b16 %v3521, %v3513
    %v5242 = vpack.c.b16 %v3530, %v3522
    %v5243 = vpack.c.b16 %v3531, %v3523
    %v5244 = vpack.c.b16 %v3532, %v3524
    %v5245 = vpack.c.b16 %v3533, %v3525
    %v5246 = vpack.c.b16 %v3534, %v3526
    %v5247 = vpack.c.b16 %v3535, %v3527
    %v5248 = vpack.c.b16 %v3536, %v3528
    %v5249 = vpack.c.b16 %v3537, %v3529
    %v5250 = vpack.c.b16 %v3546, %v3538
    %v5251 = vpack.c.b16 %v3547, %v3539
    %v5252 = vpack.c.b16 %v3548, %v3540
    %v5253 = vpack.c.b16 %v3549, %v3541
    %v5254 = vpack.c.b16 %v3550, %v3542
    %v5255 = vpack.c.b16 %v3551, %v3543
    %v5256 = vpack.c.b16 %v3552, %v3544
    %v5257 = vpack.c.b16 %v3553, %v3545
    %v5258 = vpack.c.b16 %v3562, %v3554
    %v5259 = vpack.c.b16 %v3563, %v3555
    %v5260 = vpack.c.b16 %v3564, %v3556
    %v5261 = vpack.c.b16 %v3565, %v3557
    %v5262 = vpack.c.b16 %v3566, %v3558
    %v5263 = vpack.c.b16 %v3567, %v3559
    %v5264 = vpack.c.b16 %v3568, %v3560
    %v5265 = vpack.c.b16 %v3569, %v3561
    %v5266 = vpack.c.b16 %v3578, %v3570
    %v5267 = vpack.c.b16 %v3579, %v3571
    %v5268 = vpack.c.b16 %v3580, %v3572
    %v5269 = vpack.c.b16 %v3581, %v3573
    %v5270 = vpack.c.b16 %v3582, %v3574
    %v5271 = vpack.c.b16 %v3583, %v3575
    %v5272 = vpack.c.b16 %v3584, %v3576
    %v5273 = vpack.c.b16 %v3585, %v3577
    %v5274 = vpack.c.b16 %v3594, %v3586
    %v5275 = vpack.c.b16 %v3595, %v3587
    %v5276 = vpack.c.b16 %v3596, %v3588
    %v5277 = vpack.c.b16 %v3597, %v3589
    %v5278 = vpack.c.b16 %v3598, %v3590
    %v5279 = vpack.c.b16 %v3599, %v3591
    %v5280 = vpack.c.b16 %v3600, %v3592
    %v5281 = vpack.c.b16 %v3601, %v3593
    %v5282 = vpack.c.b16 %v3610, %v3602
    %v5283 = vpack.c.b16 %v3611, %v3603
    %v5284 = vpack.c.b16 %v3612, %v3604
    %v5285 = vpack.c.b16 %v3613, %v3605
    %v5286 = vpack.c.b16 %v3614, %v3606
    %v5287 = vpack.c.b16 %v3615, %v3607
    %v5288 = vpack.c.b16 %v3616, %v3608
    %v5289 = vpack.c.b16 %v3617, %v3609
    %v5290 = vpack.c.b16 %v3626, %v3618
    %v5291 = vpack.c.b16 %v3627, %v3619
    %v5292 = vpack.c.b16 %v3628, %v3620
    %v5293 = vpack.c.b16 %v3629, %v3621
    %v5294 = vpack.c.b16 %v3630, %v3622
    %v5295 = vpack.c.b16 %v3631, %v3623
    %v5296 = vpack.c.b16 %v3632, %v3624
    %v5297 = vpack.c.b16 %v3633, %v3625
    %v5298 = vpack.c.b16 %v3642, %v3634
    %v5299 = vpack.c.b16 %v3643, %v3635
    %v5300 = vpack.c.b16 %v3644, %v3636
    %v5301 = vpack.c.b16 %v3645, %v3637
    %v5302 = vpack.c.b16 %v3646, %v3638
    %v5303 = vpack.c.b16 %v3647, %v3639
    %v5304 = vpack.c.b16 %v3648, %v3640
    %v5305 = vpack.c.b16 %v3649, %v3641
    %v5306 = vpack.c.b16 %v3658, %v3650
    %v5307 = vpack.c.b16 %v3659, %v3651
    %v5308 = vpack.c.b16 %v3660, %v3652
    %v5309 = vpack.c.b16 %v3661, %v3653
    %v5310 = vpack.c.b16 %v3662, %v3654
    %v5311 = vpack.c.b16 %v3663, %v3655
    %v5312 = vpack.c.b16 %v3664, %v3656
    %v5313 = vpack.c.b16 %v3665, %v3657
    %v5314 = vpack.c.b16 %v3674, %v3666
    %v5315 = vpack.c.b16 %v3675, %v3667
    %v5316 = vpack.c.b16 %v3676, %v3668
    %v5317 = vpack.c.b16 %v3677, %v3669
    %v5318 = vpack.c.b16 %v3678, %v3670
    %v5319 = vpack.c.b16 %v3679, %v3671
    %v5320 = vpack.c.b16 %v3680, %v3672
    %v5321 = vpack.c.b16 %v3681, %v3673
    %v5322 = vpack.c.b16 %v3690, %v3682
    %v5323 = vpack.c.b16 %v3691, %v3683
    %v5324 = vpack.c.b16 %v3692, %v3684
    %v5325 = vpack.c.b16 %v3693, %v3685
    %v5326 = vpack.c.b16 %v3694, %v3686
    %v5327 = vpack.c.b16 %v3695, %v3687
    %v5328 = vpack.c.b16 %v3696, %v3688
    %v5329 = vpack.c.b16 %v3697, %v3689
    %v5330 = vpack.c.b16 %v3706, %v3698
    %v5331 = vpack.c.b16 %v3707, %v3699
    %v5332 = vpack.c.b16 %v3708, %v3700
    %v5333 = vpack.c.b16 %v3709, %v3701
    %v5334 = vpack.c.b16 %v3710, %v3702
    %v5335 = vpack.c.b16 %v3711, %v3703
    %v5336 = vpack.c.b16 %v3712, %v3704
    %v5337 = vpack.c.b16 %v3713, %v3705
    %v5338 = vpack.c.b16 %v3722, %v3714
    %v5339 = vpack.c.b16 %v3723, %v3715
    %v5340 = vpack.c.b16 %v3724, %v3716
    %v5341 = vpack.c.b16 %v3725, %v3717
    %v5342 = vpack.c.b16 %v3726, %v3718
    %v5343 = vpack.c.b16 %v3727, %v3719
    %v5344 = vpack.c.b16 %v3728, %v3720
    %v5345 = vpack.c.b16 %v3729, %v3721
    %v5346 = vpack.c.b16 %v3738, %v3730
    %v5347 = vpack.c.b16 %v3739, %v3731
    %v5348 = vpack.c.b16 %v3740, %v3732
    %v5349 = vpack.c.b16 %v3741, %v3733
    %v5350 = vpack.c.b16 %v3742, %v3734
    %v5351 = vpack.c.b16 %v3743, %v3735
    %v5352 = vpack.c.b16 %v3744, %v3736
    %v5353 = vpack.c.b16 %v3745, %v3737
    %v5354 = vpack.c.b16 %v3754, %v3746
    %v5355 = vpack.c.b16 %v3755, %v3747
    %v5356 = vpack.c.b16 %v3756, %v3748
    %v5357 = vpack.c.b16 %v3757, %v3749
    %v5358 = vpack.c.b16 %v3758, %v3750
    %v5359 = vpack.c.b16 %v3759, %v3751
    %v5360 = vpack.c.b16 %v3760, %v3752
    %v5361 = vpack.c.b16 %v3761, %v3753
    %v5362 = vpack.c.b16 %v3770, %v3762
    %v5363 = vpack.c.b16 %v3771, %v3763
    %v5364 = vpack.c.b16 %v3772, %v3764
    %v5365 = vpack.c.b16 %v3773, %v3765
    %v5366 = vpack.c.b16 %v3774, %v3766
    %v5367 = vpack.c.b16 %v3775, %v3767
    %v5368 = vpack.c.b16 %v3776, %v3768
    %v5369 = vpack.c.b16 %v3777, %v3769
    %v5370 = vpack.c.b16 %v3786, %v3778
    %v5371 = vpack.c.b16 %v3787, %v3779
    %v5372 = vpack.c.b16 %v3788, %v3780
    %v5373 = vpack.c.b16 %v3789, %v3781
    %v5374 = vpack.c.b16 %v3790, %v3782
    %v5375 = vpack.c.b16 %v3791, %v3783
    %v5376 = vpack.c.b16 %v3792, %v3784
    %v5377 = vpack.c.b16 %v3793, %v3785
    %v5378 = vpack.c.b16 %v3802, %v3794
    %v5379 = vpack.c.b16 %v3803, %v3795
    %v5380 = vpack.c.b16 %v3804, %v3796
    %v5381 = vpack.c.b16 %v3805, %v3797
    %v5382 = vpack.c.b16 %v3806, %v3798
    %v5383 = vpack.c.b16 %v3807, %v3799
    %v5384 = vpack.c.b16 %v3808, %v3800
    %v5385 = vpack.c.b16 %v3809, %v3801
    %v5386 = vpack.c.b16 %v3818, %v3810
    %v5387 = vpack.c.b16 %v3819, %v3811
    %v5388 = vpack.c.b16 %v3820, %v3812
    %v5389 = vpack.c.b16 %v3821, %v3813
    %v5390 = vpack.c.b16 %v3822, %v3814
    %v5391 = vpack.c.b16 %v3823, %v3815
    %v5392 = vpack.c.b16 %v3824, %v3816
    %v5393 = vpack.c.b16 %v3825, %v3817
    %v5394 = vpack.c.b16 %v3834, %v3826
    %v5395 = vpack.c.b16 %v3835, %v3827
    %v5396 = vpack.c.b16 %v3836, %v3828
    %v5397 = vpack.c.b16 %v3837, %v3829
    %v5398 = vpack.c.b16 %v3838, %v3830
    %v5399 = vpack.c.b16 %v3839, %v3831
    %v5400 = vpack.c.b16 %v3840, %v3832
    %v5401 = vpack.c.b16 %v3841, %v3833
    %v5402 = vpack.c.b16 %v3850, %v3842
    %v5403 = vpack.c.b16 %v3851, %v3843
    %v5404 = vpack.c.b16 %v3852, %v3844
    %v5405 = vpack.c.b16 %v3853, %v3845
    %v5406 = vpack.c.b16 %v3854, %v3846
    %v5407 = vpack.c.b16 %v3855, %v3847
    %v5408 = vpack.c.b16 %v3856, %v3848
    %v5409 = vpack.c.b16 %v3857, %v3849
    %v5410 = vpack.c.b16 %v3866, %v3858
    %v5411 = vpack.c.b16 %v3867, %v3859
    %v5412 = vpack.c.b16 %v3868, %v3860
    %v5413 = vpack.c.b16 %v3869, %v3861
    %v5414 = vpack.c.b16 %v3870, %v3862
    %v5415 = vpack.c.b16 %v3871, %v3863
    %v5416 = vpack.c.b16 %v3872, %v3864
    %v5417 = vpack.c.b16 %v3873, %v3865
    %v5418 = vpack.c.b16 %v3882, %v3874
    %v5419 = vpack.c.b16 %v3883, %v3875
    %v5420 = vpack.c.b16 %v3884, %v3876
    %v5421 = vpack.c.b16 %v3885, %v3877
    %v5422 = vpack.c.b16 %v3886, %v3878
    %v5423 = vpack.c.b16 %v3887, %v3879
    %v5424 = vpack.c.b16 %v3888, %v3880
    %v5425 = vpack.c.b16 %v3889, %v3881
    %v5426 = vpack.c.b16 %v3898, %v3890
    %v5427 = vpack.c.b16 %v3899, %v3891
    %v5428 = vpack.c.b16 %v3900, %v3892
    %v5429 = vpack.c.b16 %v3901, %v3893
    %v5430 = vpack.c.b16 %v3902, %v3894
    %v5431 = vpack.c.b16 %v3903, %v3895
    %v5432 = vpack.c.b16 %v3904, %v3896
    %v5433 = vpack.c.b16 %v3905, %v3897
    %v5434 = vpack.c.b16 %v3914, %v3906
    %v5435 = vpack.c.b16 %v3915, %v3907
    %v5436 = vpack.c.b16 %v3916, %v3908
    %v5437 = vpack.c.b16 %v3917, %v3909
    %v5438 = vpack.c.b16 %v3918, %v3910
    %v5439 = vpack.c.b16 %v3919, %v3911
    %v5440 = vpack.c.b16 %v3920, %v3912
    %v5441 = vpack.c.b16 %v3921, %v3913
    %v5442 = vpack.c.b16 %v3930, %v3922
    %v5443 = vpack.c.b16 %v3931, %v3923
    %v5444 = vpack.c.b16 %v3932, %v3924
    %v5445 = vpack.c.b16 %v3933, %v3925
    %v5446 = vpack.c.b16 %v3934, %v3926
    %v5447 = vpack.c.b16 %v3935, %v3927
    %v5448 = vpack.c.b16 %v3936, %v3928
    %v5449 = vpack.c.b16 %v3937, %v3929
    %v5450 = vpack.c.b16 %v3946, %v3938
    %v5451 = vpack.c.b16 %v3947, %v3939
    %v5452 = vpack.c.b16 %v3948, %v3940
    %v5453 = vpack.c.b16 %v3949, %v3941
    %v5454 = vpack.c.b16 %v3950, %v3942
    %v5455 = vpack.c.b16 %v3951, %v3943
    %v5456 = vpack.c.b16 %v3952, %v3944
    %v5457 = vpack.c.b16 %v3953, %v3945
    %v5458 = vpack.c.b16 %v3962, %v3954
    %v5459 = vpack.c.b16 %v3963, %v3955
    %v5460 = vpack.c.b16 %v3964, %v3956
    %v5461 = vpack.c.b16 %v3965, %v3957
    %v5462 = vpack.c.b16 %v3966, %v3958
    %v5463 = vpack.c.b16 %v3967, %v3959
    %v5464 = vpack.c.b16 %v3968, %v3960
    %v5465 = vpack.c.b16 %v3969, %v3961
    %v5466 = vpack.c.b16 %v3978, %v3970
    %v5467 = vpack.c.b16 %v3979, %v3971
    %v5468 = vpack.c.b16 %v3980, %v3972
    %v5469 = vpack.c.b16 %v3981, %v3973
    %v5470 = vpack.c.b16 %v3982, %v3974
    %v5471 = vpack.c.b16 %v3983, %v3975
    %v5472 = vpack.c.b16 %v3984, %v3976
    %v5473 = vpack.c.b16 %v3985, %v3977
    %v5474 = vpack.c.b16 %v3994, %v3986
    %v5475 = vpack.c.b16 %v3995, %v3987
    %v5476 = vpack.c.b16 %v3996, %v3988
    %v5477 = vpack.c.b16 %v3997, %v3989
    %v5478 = vpack.c.b16 %v3998, %v3990
    %v5479 = vpack.c.b16 %v3999, %v3991
    %v5480 = vpack.c.b16 %v4000, %v3992
    %v5481 = vpack.c.b16 %v4001, %v3993
    %v5482 = vpack.c.b16 %v4010, %v4002
    %v5483 = vpack.c.b16 %v4011, %v4003
    %v5484 = vpack.c.b16 %v4012, %v4004
    %v5485 = vpack.c.b16 %v4013, %v4005
    %v5486 = vpack.c.b16 %v4014, %v4006
    %v5487 = vpack.c.b16 %v4015, %v4007
    %v5488 = vpack.c.b16 %v4016, %v4008
    %v5489 = vpack.c.b16 %v4017, %v4009
    %v5490 = vpack.c.b16 %v4026, %v4018
    %v5491 = vpack.c.b16 %v4027, %v4019
    %v5492 = vpack.c.b16 %v4028, %v4020
    %v5493 = vpack.c.b16 %v4029, %v4021
    %v5494 = vpack.c.b16 %v4030, %v4022
    %v5495 = vpack.c.b16 %v4031, %v4023
    %v5496 = vpack.c.b16 %v4032, %v4024
    %v5497 = vpack.c.b16 %v4033, %v4025
    %v5498 = vpack.c.b16 %v4042, %v4034
    %v5499 = vpack.c.b16 %v4043, %v4035
    %v5500 = vpack.c.b16 %v4044, %v4036
    %v5501 = vpack.c.b16 %v4045, %v4037
    %v5502 = vpack.c.b16 %v4046, %v4038
    %v5503 = vpack.c.b16 %v4047, %v4039
    %v5504 = vpack.c.b16 %v4048, %v4040
    %v5505 = vpack.c.b16 %v4049, %v4041
    %v5506 = vpack.c.b16 %v4058, %v4050
    %v5507 = vpack.c.b16 %v4059, %v4051
    %v5508 = vpack.c.b16 %v4060, %v4052
    %v5509 = vpack.c.b16 %v4061, %v4053
    %v5510 = vpack.c.b16 %v4062, %v4054
    %v5511 = vpack.c.b16 %v4063, %v4055
    %v5512 = vpack.c.b16 %v4064, %v4056
    %v5513 = vpack.c.b16 %v4065, %v4057
    %v5514 = vpack.c.b16 %v4074, %v4066
    %v5515 = vpack.c.b16 %v4075, %v4067
    %v5516 = vpack.c.b16 %v4076, %v4068
    %v5517 = vpack.c.b16 %v4077, %v4069
    %v5518 = vpack.c.b16 %v4078, %v4070
    %v5519 = vpack.c.b16 %v4079, %v4071
    %v5520 = vpack.c.b16 %v4080, %v4072
    %v5521 = vpack.c.b16 %v4081, %v4073
    %v5522 = vpack.c.b16 %v4090, %v4082
    %v5523 = vpack.c.b16 %v4091, %v4083
    %v5524 = vpack.c.b16 %v4092, %v4084
    %v5525 = vpack.c.b16 %v4093, %v4085
    %v5526 = vpack.c.b16 %v4094, %v4086
    %v5527 = vpack.c.b16 %v4095, %v4087
    %v5528 = vpack.c.b16 %v4096, %v4088
    %v5529 = vpack.c.b16 %v4097, %v4089
    %v5530 = vpack.c.b16 %v4106, %v4098
    %v5531 = vpack.c.b16 %v4107, %v4099
    %v5532 = vpack.c.b16 %v4108, %v4100
    %v5533 = vpack.c.b16 %v4109, %v4101
    %v5534 = vpack.c.b16 %v4110, %v4102
    %v5535 = vpack.c.b16 %v4111, %v4103
    %v5536 = vpack.c.b16 %v4112, %v4104
    %v5537 = vpack.c.b16 %v4113, %v4105
    %v5538 = vpack.c.b16 %v4122, %v4114
    %v5539 = vpack.c.b16 %v4123, %v4115
    %v5540 = vpack.c.b16 %v4124, %v4116
    %v5541 = vpack.c.b16 %v4125, %v4117
    %v5542 = vpack.c.b16 %v4126, %v4118
    %v5543 = vpack.c.b16 %v4127, %v4119
    %v5544 = vpack.c.b16 %v4128, %v4120
    %v5545 = vpack.c.b16 %v4129, %v4121
    %v5546 = vpack.c.b16 %v4138, %v4130
    %v5547 = vpack.c.b16 %v4139, %v4131
    %v5548 = vpack.c.b16 %v4140, %v4132
    %v5549 = vpack.c.b16 %v4141, %v4133
    %v5550 = vpack.c.b16 %v4142, %v4134
    %v5551 = vpack.c.b16 %v4143, %v4135
    %v5552 = vpack.c.b16 %v4144, %v4136
    %v5553 = vpack.c.b16 %v4145, %v4137
    %v5554 = vpack.c.b16 %v4154, %v4146
    %v5555 = vpack.c.b16 %v4155, %v4147
    %v5556 = vpack.c.b16 %v4156, %v4148
    %v5557 = vpack.c.b16 %v4157, %v4149
    %v5558 = vpack.c.b16 %v4158, %v4150
    %v5559 = vpack.c.b16 %v4159, %v4151
    %v5560 = vpack.c.b16 %v4160, %v4152
    %v5561 = vpack.c.b16 %v4161, %v4153
    %v5562 = vpack.c.b16 %v4170, %v4162
    %v5563 = vpack.c.b16 %v4171, %v4163
    %v5564 = vpack.c.b16 %v4172, %v4164
    %v5565 = vpack.c.b16 %v4173, %v4165
    %v5566 = vpack.c.b16 %v4174, %v4166
    %v5567 = vpack.c.b16 %v4175, %v4167
    %v5568 = vpack.c.b16 %v4176, %v4168
    %v5569 = vpack.c.b16 %v4177, %v4169
    %v5570 = vpack.c.b16 %v4186, %v4178
    %v5571 = vpack.c.b16 %v4187, %v4179
    %v5572 = vpack.c.b16 %v4188, %v4180
    %v5573 = vpack.c.b16 %v4189, %v4181
    %v5574 = vpack.c.b16 %v4190, %v4182
    %v5575 = vpack.c.b16 %v4191, %v4183
    %v5576 = vpack.c.b16 %v4192, %v4184
    %v5577 = vpack.c.b16 %v4193, %v4185
    %v5578 = vpack.c.b16 %v4202, %v4194
    %v5579 = vpack.c.b16 %v4203, %v4195
    %v5580 = vpack.c.b16 %v4204, %v4196
    %v5581 = vpack.c.b16 %v4205, %v4197
    %v5582 = vpack.c.b16 %v4206, %v4198
    %v5583 = vpack.c.b16 %v4207, %v4199
    %v5584 = vpack.c.b16 %v4208, %v4200
    %v5585 = vpack.c.b16 %v4209, %v4201
    %v5586 = vpack.c.b16 %v4218, %v4210
    %v5587 = vpack.c.b16 %v4219, %v4211
    %v5588 = vpack.c.b16 %v4220, %v4212
    %v5589 = vpack.c.b16 %v4221, %v4213
    %v5590 = vpack.c.b16 %v4222, %v4214
    %v5591 = vpack.c.b16 %v4223, %v4215
    %v5592 = vpack.c.b16 %v4224, %v4216
    %v5593 = vpack.c.b16 %v4225, %v4217
    %v5594 = vpack.c.b16 %v4234, %v4226
    %v5595 = vpack.c.b16 %v4235, %v4227
    %v5596 = vpack.c.b16 %v4236, %v4228
    %v5597 = vpack.c.b16 %v4237, %v4229
    %v5598 = vpack.c.b16 %v4238, %v4230
    %v5599 = vpack.c.b16 %v4239, %v4231
    %v5600 = vpack.c.b16 %v4240, %v4232
    %v5601 = vpack.c.b16 %v4241, %v4233
    %v5602 = vpack.c.b16 %v4250, %v4242
    %v5603 = vpack.c.b16 %v4251, %v4243
    %v5604 = vpack.c.b16 %v4252, %v4244
    %v5605 = vpack.c.b16 %v4253, %v4245
    %v5606 = vpack.c.b16 %v4254, %v4246
    %v5607 = vpack.c.b16 %v4255, %v4247
    %v5608 = vpack.c.b16 %v4256, %v4248
    %v5609 = vpack.c.b16 %v4257, %v4249
    %v5610 = vpack.c.b16 %v4266, %v4258
    %v5611 = vpack.c.b16 %v4267, %v4259
    %v5612 = vpack.c.b16 %v4268, %v4260
    %v5613 = vpack.c.b16 %v4269, %v4261
    %v5614 = vpack.c.b16 %v4270, %v4262
    %v5615 = vpack.c.b16 %v4271, %v4263
    %v5616 = vpack.c.b16 %v4272, %v4264
    %v5617 = vpack.c.b16 %v4273, %v4265
    %v5618 = vpack.c.b16 %v4282, %v4274
    %v5619 = vpack.c.b16 %v4283, %v4275
    %v5620 = vpack.c.b16 %v4284, %v4276
    %v5621 = vpack.c.b16 %v4285, %v4277
    %v5622 = vpack.c.b16 %v4286, %v4278
    %v5623 = vpack.c.b16 %v4287, %v4279
    %v5624 = vpack.c.b16 %v4288, %v4280
    %v5625 = vpack.c.b16 %v4289, %v4281
    %v5626 = vpack.c.b16 %v4298, %v4290
    %v5627 = vpack.c.b16 %v4299, %v4291
    %v5628 = vpack.c.b16 %v4300, %v4292
    %v5629 = vpack.c.b16 %v4301, %v4293
    %v5630 = vpack.c.b16 %v4302, %v4294
    %v5631 = vpack.c.b16 %v4303, %v4295
    %v5632 = vpack.c.b16 %v4304, %v4296
    %v5633 = vpack.c.b16 %v4305, %v4297
    %v5634 = vpack.c.b16 %v4314, %v4306
    %v5635 = vpack.c.b16 %v4315, %v4307
    %v5636 = vpack.c.b16 %v4316, %v4308
    %v5637 = vpack.c.b16 %v4317, %v4309
    %v5638 = vpack.c.b16 %v4318, %v4310
    %v5639 = vpack.c.b16 %v4319, %v4311
    %v5640 = vpack.c.b16 %v4320, %v4312
    %v5641 = vpack.c.b16 %v4321, %v4313
    %v5642 = vpack.c.b16 %v4330, %v4322
    %v5643 = vpack.c.b16 %v4331, %v4323
    %v5644 = vpack.c.b16 %v4332, %v4324
    %v5645 = vpack.c.b16 %v4333, %v4325
    %v5646 = vpack.c.b16 %v4334, %v4326
    %v5647 = vpack.c.b16 %v4335, %v4327
    %v5648 = vpack.c.b16 %v4336, %v4328
    %v5649 = vpack.c.b16 %v4337, %v4329
    %v5650 = vpack.c.b16 %v4346, %v4338
    %v5651 = vpack.c.b16 %v4347, %v4339
    %v5652 = vpack.c.b16 %v4348, %v4340
    %v5653 = vpack.c.b16 %v4349, %v4341
    %v5654 = vpack.c.b16 %v4350, %v4342
    %v5655 = vpack.c.b16 %v4351, %v4343
    %v5656 = vpack.c.b16 %v4352, %v4344
    %v5657 = vpack.c.b16 %v4353, %v4345
    %v5658 = vpack.c.b16 %v4362, %v4354
    %v5659 = vpack.c.b16 %v4363, %v4355
    %v5660 = vpack.c.b16 %v4364, %v4356
    %v5661 = vpack.c.b16 %v4365, %v4357
    %v5662 = vpack.c.b16 %v4366, %v4358
    %v5663 = vpack.c.b16 %v4367, %v4359
    %v5664 = vpack.c.b16 %v4368, %v4360
    %v5665 = vpack.c.b16 %v4369, %v4361
    %v5666 = vpack.c.b16 %v4378, %v4370
    %v5667 = vpack.c.b16 %v4379, %v4371
    %v5668 = vpack.c.b16 %v4380, %v4372
    %v5669 = vpack.c.b16 %v4381, %v4373
    %v5670 = vpack.c.b16 %v4382, %v4374
    %v5671 = vpack.c.b16 %v4383, %v4375
    %v5672 = vpack.c.b16 %v4384, %v4376
    %v5673 = vpack.c.b16 %v4385, %v4377
    %v5674 = vpack.c.b16 %v4394, %v4386
    %v5675 = vpack.c.b16 %v4395, %v4387
    %v5676 = vpack.c.b16 %v4396, %v4388
    %v5677 = vpack.c.b16 %v4397, %v4389
    %v5678 = vpack.c.b16 %v4398, %v4390
    %v5679 = vpack.c.b16 %v4399, %v4391
    %v5680 = vpack.c.b16 %v4400, %v4392
    %v5681 = vpack.c.b16 %v4401, %v4393
    %v5682 = vpack.c.b16 %v4410, %v4402
    %v5683 = vpack.c.b16 %v4411, %v4403
    %v5684 = vpack.c.b16 %v4412, %v4404
    %v5685 = vpack.c.b16 %v4413, %v4405
    %v5686 = vpack.c.b16 %v4414, %v4406
    %v5687 = vpack.c.b16 %v4415, %v4407
    %v5688 = vpack.c.b16 %v4416, %v4408
    %v5689 = vpack.c.b16 %v4417, %v4409
    %v5690 = vpack.c.b16 %v4426, %v4418
    %v5691 = vpack.c.b16 %v4427, %v4419
    %v5692 = vpack.c.b16 %v4428, %v4420
    %v5693 = vpack.c.b16 %v4429, %v4421
    %v5694 = vpack.c.b16 %v4430, %v4422
    %v5695 = vpack.c.b16 %v4431, %v4423
    %v5696 = vpack.c.b16 %v4432, %v4424
    %v5697 = vpack.c.b16 %v4433, %v4425
    %v5698 = vpack.c.b16 %v4442, %v4434
    %v5699 = vpack.c.b16 %v4443, %v4435
    %v5700 = vpack.c.b16 %v4444, %v4436
    %v5701 = vpack.c.b16 %v4445, %v4437
    %v5702 = vpack.c.b16 %v4446, %v4438
    %v5703 = vpack.c.b16 %v4447, %v4439
    %v5704 = vpack.c.b16 %v4448, %v4440
    %v5705 = vpack.c.b16 %v4449, %v4441
    %v5706 = vpack.c.b16 %v4458, %v4450
    %v5707 = vpack.c.b16 %v4459, %v4451
    %v5708 = vpack.c.b16 %v4460, %v4452
    %v5709 = vpack.c.b16 %v4461, %v4453
    %v5710 = vpack.c.b16 %v4462, %v4454
    %v5711 = vpack.c.b16 %v4463, %v4455
    %v5712 = vpack.c.b16 %v4464, %v4456
    %v5713 = vpack.c.b16 %v4465, %v4457
    %v5714 = vpack.c.b16 %v4474, %v4466
    %v5715 = vpack.c.b16 %v4475, %v4467
    %v5716 = vpack.c.b16 %v4476, %v4468
    %v5717 = vpack.c.b16 %v4477, %v4469
    %v5718 = vpack.c.b16 %v4478, %v4470
    %v5719 = vpack.c.b16 %v4479, %v4471
    %v5720 = vpack.c.b16 %v4480, %v4472
    %v5721 = vpack.c.b16 %v4481, %v4473
    %v5722 = vpack.c.b16 %v4490, %v4482
    %v5723 = vpack.c.b16 %v4491, %v4483
    %v5724 = vpack.c.b16 %v4492, %v4484
    %v5725 = vpack.c.b16 %v4493, %v4485
    %v5726 = vpack.c.b16 %v4494, %v4486
    %v5727 = vpack.c.b16 %v4495, %v4487
    %v5728 = vpack.c.b16 %v4496, %v4488
    %v5729 = vpack.c.b16 %v4497, %v4489
    %v5730 = vpack.c.b16 %v4506, %v4498
    %v5731 = vpack.c.b16 %v4507, %v4499
    %v5732 = vpack.c.b16 %v4508, %v4500
    %v5733 = vpack.c.b16 %v4509, %v4501
    %v5734 = vpack.c.b16 %v4510, %v4502
    %v5735 = vpack.c.b16 %v4511, %v4503
    %v5736 = vpack.c.b16 %v4512, %v4504
    %v5737 = vpack.c.b16 %v4513, %v4505
    %v5738 = vpack.c.b16 %v4522, %v4514
    %v5739 = vpack.c.b16 %v4523, %v4515
    %v5740 = vpack.c.b16 %v4524, %v4516
    %v5741 = vpack.c.b16 %v4525, %v4517
    %v5742 = vpack.c.b16 %v4526, %v4518
    %v5743 = vpack.c.b16 %v4527, %v4519
    %v5744 = vpack.c.b16 %v4528, %v4520
    %v5745 = vpack.c.b16 %v4529, %v4521
    %v5746 = vpack.c.b16 %v4538, %v4530
    %v5747 = vpack.c.b16 %v4539, %v4531
    %v5748 = vpack.c.b16 %v4540, %v4532
    %v5749 = vpack.c.b16 %v4541, %v4533
    %v5750 = vpack.c.b16 %v4542, %v4534
    %v5751 = vpack.c.b16 %v4543, %v4535
    %v5752 = vpack.c.b16 %v4544, %v4536
    %v5753 = vpack.c.b16 %v4545, %v4537
    %v5754 = vpack.c.b16 %v4554, %v4546
    %v5755 = vpack.c.b16 %v4555, %v4547
    %v5756 = vpack.c.b16 %v4556, %v4548
    %v5757 = vpack.c.b16 %v4557, %v4549
    %v5758 = vpack.c.b16 %v4558, %v4550
    %v5759 = vpack.c.b16 %v4559, %v4551
    %v5760 = vpack.c.b16 %v4560, %v4552
    %v5761 = vpack.c.b16 %v4561, %v4553
    %v5762 = vpack.c.b16 %v4570, %v4562
    %v5763 = vpack.c.b16 %v4571, %v4563
    %v5764 = vpack.c.b16 %v4572, %v4564
    %v5765 = vpack.c.b16 %v4573, %v4565
    %v5766 = vpack.c.b16 %v4574, %v4566
    %v5767 = vpack.c.b16 %v4575, %v4567
    %v5768 = vpack.c.b16 %v4576, %v4568
    %v5769 = vpack.c.b16 %v4577, %v4569
    %v5770 = vpack.c.b16 %v4586, %v4578
    %v5771 = vpack.c.b16 %v4587, %v4579
    %v5772 = vpack.c.b16 %v4588, %v4580
    %v5773 = vpack.c.b16 %v4589, %v4581
    %v5774 = vpack.c.b16 %v4590, %v4582
    %v5775 = vpack.c.b16 %v4591, %v4583
    %v5776 = vpack.c.b16 %v4592, %v4584
    %v5777 = vpack.c.b16 %v4593, %v4585
    %v5778 = vpack.c.b16 %v4602, %v4594
    %v5779 = vpack.c.b16 %v4603, %v4595
    %v5780 = vpack.c.b16 %v4604, %v4596
    %v5781 = vpack.c.b16 %v4605, %v4597
    %v5782 = vpack.c.b16 %v4606, %v4598
    %v5783 = vpack.c.b16 %v4607, %v4599
    %v5784 = vpack.c.b16 %v4608, %v4600
    %v5785 = vpack.c.b16 %v4609, %v4601
    %v5786 = vpack.c.b16 %v4618, %v4610
    %v5787 = vpack.c.b16 %v4619, %v4611
    %v5788 = vpack.c.b16 %v4620, %v4612
    %v5789 = vpack.c.b16 %v4621, %v4613
    %v5790 = vpack.c.b16 %v4622, %v4614
    %v5791 = vpack.c.b16 %v4623, %v4615
    %v5792 = vpack.c.b16 %v4624, %v4616
    %v5793 = vpack.c.b16 %v4625, %v4617
    %v5794 = vpack.c.b16 %v4634, %v4626
    %v5795 = vpack.c.b16 %v4635, %v4627
    %v5796 = vpack.c.b16 %v4636, %v4628
    %v5797 = vpack.c.b16 %v4637, %v4629
    %v5798 = vpack.c.b16 %v4638, %v4630
    %v5799 = vpack.c.b16 %v4639, %v4631
    %v5800 = vpack.c.b16 %v4640, %v4632
    %v5801 = vpack.c.b16 %v4641, %v4633
    %v5802 = vpack.c.b16 %v4650, %v4642
    %v5803 = vpack.c.b16 %v4651, %v4643
    %v5804 = vpack.c.b16 %v4652, %v4644
    %v5805 = vpack.c.b16 %v4653, %v4645
    %v5806 = vpack.c.b16 %v4654, %v4646
    %v5807 = vpack.c.b16 %v4655, %v4647
    %v5808 = vpack.c.b16 %v4656, %v4648
    %v5809 = vpack.c.b16 %v4657, %v4649
    %v5810 = vpack.c.b16 %v4666, %v4658
    %v5811 = vpack.c.b16 %v4667, %v4659
    %v5812 = vpack.c.b16 %v4668, %v4660
    %v5813 = vpack.c.b16 %v4669, %v4661
    %v5814 = vpack.c.b16 %v4670, %v4662
    %v5815 = vpack.c.b16 %v4671, %v4663
    %v5816 = vpack.c.b16 %v4672, %v4664
    %v5817 = vpack.c.b16 %v4673, %v4665
    %v5818 = vpack.c.b16 %v4682, %v4674
    %v5819 = vpack.c.b16 %v4683, %v4675
    %v5820 = vpack.c.b16 %v4684, %v4676
    %v5821 = vpack.c.b16 %v4685, %v4677
    %v5822 = vpack.c.b16 %v4686, %v4678
    %v5823 = vpack.c.b16 %v4687, %v4679
    %v5824 = vpack.c.b16 %v4688, %v4680
    %v5825 = vpack.c.b16 %v4689, %v4681
    %v5826 = vpack.c.b16 %v4698, %v4690
    %v5827 = vpack.c.b16 %v4699, %v4691
    %v5828 = vpack.c.b16 %v4700, %v4692
    %v5829 = vpack.c.b16 %v4701, %v4693
    %v5830 = vpack.c.b16 %v4702, %v4694
    %v5831 = vpack.c.b16 %v4703, %v4695
    %v5832 = vpack.c.b16 %v4704, %v4696
    %v5833 = vpack.c.b16 %v4705, %v4697
    %v5834 = vpack.c.b16 %v4714, %v4706
    %v5835 = vpack.c.b16 %v4715, %v4707
    %v5836 = vpack.c.b16 %v4716, %v4708
    %v5837 = vpack.c.b16 %v4717, %v4709
    %v5838 = vpack.c.b16 %v4718, %v4710
    %v5839 = vpack.c.b16 %v4719, %v4711
    %v5840 = vpack.c.b16 %v4720, %v4712
    %v5841 = vpack.c.b16 %v4721, %v4713
    %v5842 = vpack.c.b16 %v4730, %v4722
    %v5843 = vpack.c.b16 %v4731, %v4723
    %v5844 = vpack.c.b16 %v4732, %v4724
    %v5845 = vpack.c.b16 %v4733, %v4725
    %v5846 = vpack.c.b16 %v4734, %v4726
    %v5847 = vpack.c.b16 %v4735, %v4727
    %v5848 = vpack.c.b16 %v4736, %v4728
    %v5849 = vpack.c.b16 %v4737, %v4729
    %v5850 = vpack.c.b16 %v4746, %v4738
    %v5851 = vpack.c.b16 %v4747, %v4739
    %v5852 = vpack.c.b16 %v4748, %v4740
    %v5853 = vpack.c.b16 %v4749, %v4741
    %v5854 = vpack.c.b16 %v4750, %v4742
    %v5855 = vpack.c.b16 %v4751, %v4743
    %v5856 = vpack.c.b16 %v4752, %v4744
    %v5857 = vpack.c.b16 %v4753, %v4745
    %v5858 = vpack.c.b16 %v4762, %v4754
    %v5859 = vpack.c.b16 %v4763, %v4755
    %v5860 = vpack.c.b16 %v4764, %v4756
    %v5861 = vpack.c.b16 %v4765, %v4757
    %v5862 = vpack.c.b16 %v4766, %v4758
    %v5863 = vpack.c.b16 %v4767, %v4759
    %v5864 = vpack.c.b16 %v4768, %v4760
    %v5865 = vpack.c.b16 %v4769, %v4761
    %v5866 = vpack.c.b16 %v4778, %v4770
    %v5867 = vpack.c.b16 %v4779, %v4771
    %v5868 = vpack.c.b16 %v4780, %v4772
    %v5869 = vpack.c.b16 %v4781, %v4773
    %v5870 = vpack.c.b16 %v4782, %v4774
    %v5871 = vpack.c.b16 %v4783, %v4775
    %v5872 = vpack.c.b16 %v4784, %v4776
    %v5873 = vpack.c.b16 %v4785, %v4777
    %v5874 = vpack.c.b16 %v4794, %v4786
    %v5875 = vpack.c.b16 %v4795, %v4787
    %v5876 = vpack.c.b16 %v4796, %v4788
    %v5877 = vpack.c.b16 %v4797, %v4789
    %v5878 = vpack.c.b16 %v4798, %v4790
    %v5879 = vpack.c.b16 %v4799, %v4791
    %v5880 = vpack.c.b16 %v4800, %v4792
    %v5881 = vpack.c.b16 %v4801, %v4793
    %v5882 = vpack.c.b16 %v4810, %v4802
    %v5883 = vpack.c.b16 %v4811, %v4803
    %v5884 = vpack.c.b16 %v4812, %v4804
    %v5885 = vpack.c.b16 %v4813, %v4805
    %v5886 = vpack.c.b16 %v4814, %v4806
    %v5887 = vpack.c.b16 %v4815, %v4807
    %v5888 = vpack.c.b16 %v4816, %v4808
    %v5889 = vpack.c.b16 %v4817, %v4809
    %v5890 = vpack.c.b16 %v4826, %v4818
    %v5891 = vpack.c.b16 %v4827, %v4819
    %v5892 = vpack.c.b16 %v4828, %v4820
    %v5893 = vpack.c.b16 %v4829, %v4821
    %v5894 = vpack.c.b16 %v4830, %v4822
    %v5895 = vpack.c.b16 %v4831, %v4823
    %v5896 = vpack.c.b16 %v4832, %v4824
    %v5897 = vpack.c.b16 %v4833, %v4825
    %v5898 = vpack.c.b16 %v4842, %v4834
    %v5899 = vpack.c.b16 %v4843, %v4835
    %v5900 = vpack.c.b16 %v4844, %v4836
    %v5901 = vpack.c.b16 %v4845, %v4837
    %v5902 = vpack.c.b16 %v4846, %v4838
    %v5903 = vpack.c.b16 %v4847, %v4839
    %v5904 = vpack.c.b16 %v4848, %v4840
    %v5905 = vpack.c.b16 %v4849, %v4841
    %v5906 = vpack.c.b16 %v4858, %v4850
    %v5907 = vpack.c.b16 %v4859, %v4851
    %v5908 = vpack.c.b16 %v4860, %v4852
    %v5909 = vpack.c.b16 %v4861, %v4853
    %v5910 = vpack.c.b16 %v4862, %v4854
    %v5911 = vpack.c.b16 %v4863, %v4855
    %v5912 = vpack.c.b16 %v4864, %v4856
    %v5913 = vpack.c.b16 %v4865, %v4857
    %v5914 = vpack.c.b16 %v4874, %v4866
    %v5915 = vpack.c.b16 %v4875, %v4867
    %v5916 = vpack.c.b16 %v4876, %v4868
    %v5917 = vpack.c.b16 %v4877, %v4869
    %v5918 = vpack.c.b16 %v4878, %v4870
    %v5919 = vpack.c.b16 %v4879, %v4871
    %v5920 = vpack.c.b16 %v4880, %v4872
    %v5921 = vpack.c.b16 %v4881, %v4873
    %v5922 = vpack.c.b16 %v4890, %v4882
    %v5923 = vpack.c.b16 %v4891, %v4883
    %v5924 = vpack.c.b16 %v4892, %v4884
    %v5925 = vpack.c.b16 %v4893, %v4885
    %v5926 = vpack.c.b16 %v4894, %v4886
    %v5927 = vpack.c.b16 %v4895, %v4887
    %v5928 = vpack.c.b16 %v4896, %v4888
    %v5929 = vpack.c.b16 %v4897, %v4889
    %v5930 = vpack.c.b16 %v4906, %v4898
    %v5931 = vpack.c.b16 %v4907, %v4899
    %v5932 = vpack.c.b16 %v4908, %v4900
    %v5933 = vpack.c.b16 %v4909, %v4901
    %v5934 = vpack.c.b16 %v4910, %v4902
    %v5935 = vpack.c.b16 %v4911, %v4903
    %v5936 = vpack.c.b16 %v4912, %v4904
    %v5937 = vpack.c.b16 %v4913, %v4905
    %6962 = vmatprep.subr.bf16.mxu0 %v4915
    %6963 = vmatpush1.bf16.msra.mxu0 %v4914
    %6964 = vmatprep.subr.bf16.mxu0 %v4923
    %6965 = vmatpush1.bf16.msra.mxu0 %v4922
    %6966 = vmatprep.subr.bf16.mxu0 %v4931
    %6967 = vmatpush1.bf16.msra.mxu0 %v4930
    %6968 = vmatprep.subr.bf16.mxu0 %v4939
    %6969 = vmatpush1.bf16.msra.mxu0 %v4938
    %6970 = vmatprep.subr.bf16.mxu0 %v4947
    %6971 = vmatpush1.bf16.msra.mxu0 %v4946
    %6972 = vmatprep.subr.bf16.mxu0 %v4955
    %6973 = vmatpush1.bf16.msra.mxu0 %v4954
    %6974 = vmatprep.subr.bf16.mxu0 %v4963
    %6975 = vmatpush1.bf16.msra.mxu0 %v4962
    %6976 = vmatprep.subr.bf16.mxu0 %v4971
    %6977 = vmatpush1.bf16.msra.mxu0 %v4970
    %6978 = vmatprep.subr.bf16.mxu0 %v4979
    %6979 = vmatpush1.bf16.msra.mxu0 %v4978
    %6980 = vmatprep.subr.bf16.mxu0 %v4987
    %6981 = vmatpush1.bf16.msra.mxu0 %v4986
    %6982 = vmatprep.subr.bf16.mxu0 %v4995
    %6983 = vmatpush1.bf16.msra.mxu0 %v4994
    %6984 = vmatprep.subr.bf16.mxu0 %v5003
    %6985 = vmatpush1.bf16.msra.mxu0 %v5002
    %6986 = vmatprep.subr.bf16.mxu0 %v5011
    %6987 = vmatpush1.bf16.msra.mxu0 %v5010
    %6988 = vmatprep.subr.bf16.mxu0 %v5019
    %6989 = vmatpush1.bf16.msra.mxu0 %v5018
    %6990 = vmatprep.subr.bf16.mxu0 %v5027
    %6991 = vmatpush1.bf16.msra.mxu0 %v5026
    %6992 = vmatprep.subr.bf16.mxu0 %v5035
    %6993 = vmatpush1.bf16.msra.mxu0 %v5034
    %6994 = vmatprep.mubr.bf16.mxu0 %v761
    %6995 = vmatmul.mubr.bf16.gmra.mrb[0].mxu0 %v760
    %v6996 = vpop.f32.mrb[0].mxu0
    %v6997 = vadd.f32 %v1805, %v6996
    %v6998 = vpop.f32.mrb[0].mxu0
    %v6999 = vadd.f32 %v1809, %v6998
    %v7000 = vpop.f32.mrb[0].mxu0
    %v7001 = vpop.f32.mrb[0].mxu0
    %7002 = vdwg.mxu0
    %7003 = vmatprep.subr.bf16.mxu0 %v5043
    %7004 = vmatpush1.bf16.msra.mxu0 %v5042
    %7005 = vmatprep.subr.bf16.mxu0 %v5051
    %7006 = vmatpush1.bf16.msra.mxu0 %v5050
    %7007 = vmatprep.subr.bf16.mxu0 %v5059
    %7008 = vmatpush1.bf16.msra.mxu0 %v5058
    %7009 = vmatprep.subr.bf16.mxu0 %v5067
    %7010 = vmatpush1.bf16.msra.mxu0 %v5066
    %7011 = vmatprep.subr.bf16.mxu0 %v5075
    %7012 = vmatpush1.bf16.msra.mxu0 %v5074
    %7013 = vmatprep.subr.bf16.mxu0 %v5083
    %7014 = vmatpush1.bf16.msra.mxu0 %v5082
    %7015 = vmatprep.subr.bf16.mxu0 %v5091
    %7016 = vmatpush1.bf16.msra.mxu0 %v5090
    %7017 = vmatprep.subr.bf16.mxu0 %v5099
    %7018 = vmatpush1.bf16.msra.mxu0 %v5098
    %7019 = vmatprep.subr.bf16.mxu0 %v5107
    %7020 = vmatpush1.bf16.msra.mxu0 %v5106
    %7021 = vmatprep.subr.bf16.mxu0 %v5115
    %7022 = vmatpush1.bf16.msra.mxu0 %v5114
    %7023 = vmatprep.subr.bf16.mxu0 %v5123
    %7024 = vmatpush1.bf16.msra.mxu0 %v5122
    %7025 = vmatprep.subr.bf16.mxu0 %v5131
    %7026 = vmatpush1.bf16.msra.mxu0 %v5130
    %7027 = vmatprep.subr.bf16.mxu0 %v5139
    %7028 = vmatpush1.bf16.msra.mxu0 %v5138
    %7029 = vmatprep.subr.bf16.mxu0 %v5147
    %7030 = vmatpush1.bf16.msra.mxu0 %v5146
    %7031 = vmatprep.subr.bf16.mxu0 %v5155
    %7032 = vmatpush1.bf16.msra.mxu0 %v5154
    %7033 = vmatprep.subr.bf16.mxu0 %v5163
    %7034 = vmatpush1.bf16.msra.mxu0 %v5162
    %7035 = vmatprep.mubr.bf16.mxu0 %v763
    %7036 = vmatmul.mubr.bf16.gmra.mrb[0].mxu0 %v762
    %v7037 = vpop.f32.mrb[0].mxu0
    %v7038 = vadd.f32 %v6997, %v7037
    %v7039 = vpop.f32.mrb[0].mxu0
    %v7040 = vadd.f32 %v6999, %v7039
    %v7041 = vpop.f32.mrb[0].mxu0
    %v7042 = vpop.f32.mrb[0].mxu0
    %7043 = vdwg.mxu0
    %7044 = vmatprep.subr.bf16.mxu0 %v5171
    %7045 = vmatpush1.bf16.msra.mxu0 %v5170
    %7046 = vmatprep.subr.bf16.mxu0 %v5179
    %7047 = vmatpush1.bf16.msra.mxu0 %v5178
    %7048 = vmatprep.subr.bf16.mxu0 %v5187
    %7049 = vmatpush1.bf16.msra.mxu0 %v5186
    %7050 = vmatprep.subr.bf16.mxu0 %v5195
    %7051 = vmatpush1.bf16.msra.mxu0 %v5194
    %7052 = vmatprep.subr.bf16.mxu0 %v5203
    %7053 = vmatpush1.bf16.msra.mxu0 %v5202
    %7054 = vmatprep.subr.bf16.mxu0 %v5211
    %7055 = vmatpush1.bf16.msra.mxu0 %v5210
    %7056 = vmatprep.subr.bf16.mxu0 %v5219
    %7057 = vmatpush1.bf16.msra.mxu0 %v5218
    %7058 = vmatprep.subr.bf16.mxu0 %v5227
    %7059 = vmatpush1.bf16.msra.mxu0 %v5226
    %7060 = vmatprep.subr.bf16.mxu0 %v5235
    %7061 = vmatpush1.bf16.msra.mxu0 %v5234
    %7062 = vmatprep.subr.bf16.mxu0 %v5243
    %7063 = vmatpush1.bf16.msra.mxu0 %v5242
    %7064 = vmatprep.subr.bf16.mxu0 %v5251
    %7065 = vmatpush1.bf16.msra.mxu0 %v5250
    %7066 = vmatprep.subr.bf16.mxu0 %v5259
    %7067 = vmatpush1.bf16.msra.mxu0 %v5258
    %7068 = vmatprep.subr.bf16.mxu0 %v5267
    %7069 = vmatpush1.bf16.msra.mxu0 %v5266
    %7070 = vmatprep.subr.bf16.mxu0 %v5275
    %7071 = vmatpush1.bf16.msra.mxu0 %v5274
    %7072 = vmatprep.subr.bf16.mxu0 %v5283
    %7073 = vmatpush1.bf16.msra.mxu0 %v5282
    %7074 = vmatprep.subr.bf16.mxu0 %v5291
    %7075 = vmatpush1.bf16.msra.mxu0 %v5290
    %7076 = vmatprep.mubr.bf16.mxu0 %v765
    %7077 = vmatmul.mubr.bf16.gmra.mrb[0].mxu0 %v764
    %v7078 = vpop.f32.mrb[0].mxu0
    %v7079 = vadd.f32 %v7038, %v7078
    %v7080 = vpop.f32.mrb[0].mxu0
    %v7081 = vadd.f32 %v7040, %v7080
    %v7082 = vpop.f32.mrb[0].mxu0
    %v7083 = vpop.f32.mrb[0].mxu0
    %7084 = vdwg.mxu0
    %7085 = vmatprep.subr.bf16.mxu0 %v5299
    %7086 = vmatpush1.bf16.msra.mxu0 %v5298
    %7087 = vmatprep.subr.bf16.mxu0 %v5307
    %7088 = vmatpush1.bf16.msra.mxu0 %v5306
    %7089 = vmatprep.subr.bf16.mxu0 %v5315
    %7090 = vmatpush1.bf16.msra.mxu0 %v5314
    %7091 = vmatprep.subr.bf16.mxu0 %v5323
    %7092 = vmatpush1.bf16.msra.mxu0 %v5322
    %7093 = vmatprep.subr.bf16.mxu0 %v5331
    %7094 = vmatpush1.bf16.msra.mxu0 %v5330
    %7095 = vmatprep.subr.bf16.mxu0 %v5339
    %7096 = vmatpush1.bf16.msra.mxu0 %v5338
    %7097 = vmatprep.subr.bf16.mxu0 %v5347
    %7098 = vmatpush1.bf16.msra.mxu0 %v5346
    %7099 = vmatprep.subr.bf16.mxu0 %v5355
    %7100 = vmatpush1.bf16.msra.mxu0 %v5354
    %7101 = vmatprep.subr.bf16.mxu0 %v5363
    %7102 = vmatpush1.bf16.msra.mxu0 %v5362
    %7103 = vmatprep.subr.bf16.mxu0 %v5371
    %7104 = vmatpush1.bf16.msra.mxu0 %v5370
    %7105 = vmatprep.subr.bf16.mxu0 %v5379
    %7106 = vmatpush1.bf16.msra.mxu0 %v5378
    %7107 = vmatprep.subr.bf16.mxu0 %v5387
    %7108 = vmatpush1.bf16.msra.mxu0 %v5386
    %7109 = vmatprep.subr.bf16.mxu0 %v5395
    %7110 = vmatpush1.bf16.msra.mxu0 %v5394
    %7111 = vmatprep.subr.bf16.mxu0 %v5403
    %7112 = vmatpush1.bf16.msra.mxu0 %v5402
    %7113 = vmatprep.subr.bf16.mxu0 %v5411
    %7114 = vmatpush1.bf16.msra.mxu0 %v5410
    %7115 = vmatprep.subr.bf16.mxu0 %v5419
    %7116 = vmatpush1.bf16.msra.mxu0 %v5418
    %7117 = vmatprep.mubr.bf16.mxu0 %v767
    %7118 = vmatmul.mubr.bf16.gmra.mrb[0].mxu0 %v766
    %v7119 = vpop.f32.mrb[0].mxu0
    %v7120 = vadd.f32 %v7079, %v7119
    %v7121 = vpop.f32.mrb[0].mxu0
    %v7122 = vadd.f32 %v7081, %v7121
    %v7123 = vpop.f32.mrb[0].mxu0
    %v7124 = vpop.f32.mrb[0].mxu0
    %7125 = vdwg.mxu0
    %7126 = vmatprep.subr.bf16.mxu0 %v5427
    %7127 = vmatpush1.bf16.msra.mxu0 %v5426
    %7128 = vmatprep.subr.bf16.mxu0 %v5435
    %7129 = vmatpush1.bf16.msra.mxu0 %v5434
    %7130 = vmatprep.subr.bf16.mxu0 %v5443
    %7131 = vmatpush1.bf16.msra.mxu0 %v5442
    %7132 = vmatprep.subr.bf16.mxu0 %v5451
    %7133 = vmatpush1.bf16.msra.mxu0 %v5450
    %7134 = vmatprep.subr.bf16.mxu0 %v5459
    %7135 = vmatpush1.bf16.msra.mxu0 %v5458
    %7136 = vmatprep.subr.bf16.mxu0 %v5467
    %7137 = vmatpush1.bf16.msra.mxu0 %v5466
    %7138 = vmatprep.subr.bf16.mxu0 %v5475
    %7139 = vmatpush1.bf16.msra.mxu0 %v5474
    %7140 = vmatprep.subr.bf16.mxu0 %v5483
    %7141 = vmatpush1.bf16.msra.mxu0 %v5482
    %7142 = vmatprep.subr.bf16.mxu0 %v5491
    %7143 = vmatpush1.bf16.msra.mxu0 %v5490
    %7144 = vmatprep.subr.bf16.mxu0 %v5499
    %7145 = vmatpush1.bf16.msra.mxu0 %v5498
    %7146 = vmatprep.subr.bf16.mxu0 %v5507
    %7147 = vmatpush1.bf16.msra.mxu0 %v5506
    %7148 = vmatprep.subr.bf16.mxu0 %v5515
    %7149 = vmatpush1.bf16.msra.mxu0 %v5514
    %7150 = vmatprep.subr.bf16.mxu0 %v5523
    %7151 = vmatpush1.bf16.msra.mxu0 %v5522
    %7152 = vmatprep.subr.bf16.mxu0 %v5531
    %7153 = vmatpush1.bf16.msra.mxu0 %v5530
    %7154 = vmatprep.subr.bf16.mxu0 %v5539
    %7155 = vmatpush1.bf16.msra.mxu0 %v5538
    %7156 = vmatprep.subr.bf16.mxu0 %v5547
    %7157 = vmatpush1.bf16.msra.mxu0 %v5546
    %7158 = vmatprep.mubr.bf16.mxu0 %v769
    %7159 = vmatmul.mubr.bf16.gmra.mrb[0].mxu0 %v768
    %v7160 = vpop.f32.mrb[0].mxu0
    %v7161 = vadd.f32 %v7120, %v7160
    %v7162 = vpop.f32.mrb[0].mxu0
    %v7163 = vadd.f32 %v7122, %v7162
    %v7164 = vpop.f32.mrb[0].mxu0
    %v7165 = vpop.f32.mrb[0].mxu0
    %7166 = vdwg.mxu0
    %7167 = vmatprep.subr.bf16.mxu0 %v5555
    %7168 = vmatpush1.bf16.msra.mxu0 %v5554
    %7169 = vmatprep.subr.bf16.mxu0 %v5563
    %7170 = vmatpush1.bf16.msra.mxu0 %v5562
    %7171 = vmatprep.subr.bf16.mxu0 %v5571
    %7172 = vmatpush1.bf16.msra.mxu0 %v5570
    %7173 = vmatprep.subr.bf16.mxu0 %v5579
    %7174 = vmatpush1.bf16.msra.mxu0 %v5578
    %7175 = vmatprep.subr.bf16.mxu0 %v5587
    %7176 = vmatpush1.bf16.msra.mxu0 %v5586
    %7177 = vmatprep.subr.bf16.mxu0 %v5595
    %7178 = vmatpush1.bf16.msra.mxu0 %v5594
    %7179 = vmatprep.subr.bf16.mxu0 %v5603
    %7180 = vmatpush1.bf16.msra.mxu0 %v5602
    %7181 = vmatprep.subr.bf16.mxu0 %v5611
    %7182 = vmatpush1.bf16.msra.mxu0 %v5610
    %7183 = vmatprep.subr.bf16.mxu0 %v5619
    %7184 = vmatpush1.bf16.msra.mxu0 %v5618
    %7185 = vmatprep.subr.bf16.mxu0 %v5627
    %7186 = vmatpush1.bf16.msra.mxu0 %v5626
    %7187 = vmatprep.subr.bf16.mxu0 %v5635
    %7188 = vmatpush1.bf16.msra.mxu0 %v5634
    %7189 = vmatprep.subr.bf16.mxu0 %v5643
    %7190 = vmatpush1.bf16.msra.mxu0 %v5642
    %7191 = vmatprep.subr.bf16.mxu0 %v5651
    %7192 = vmatpush1.bf16.msra.mxu0 %v5650
    %7193 = vmatprep.subr.bf16.mxu0 %v5659
    %7194 = vmatpush1.bf16.msra.mxu0 %v5658
    %7195 = vmatprep.subr.bf16.mxu0 %v5667
    %7196 = vmatpush1.bf16.msra.mxu0 %v5666
    %7197 = vmatprep.subr.bf16.mxu0 %v5675
    %7198 = vmatpush1.bf16.msra.mxu0 %v5674
    %7199 = vmatprep.mubr.bf16.mxu0 %v771
    %7200 = vmatmul.mubr.bf16.gmra.mrb[0].mxu0 %v770
    %v7201 = vpop.f32.mrb[0].mxu0
    %v7202 = vadd.f32 %v7161, %v7201
    %v7203 = vpop.f32.mrb[0].mxu0
    %v7204 = vadd.f32 %v7163, %v7203
    %v7205 = vpop.f32.mrb[0].mxu0
    %v7206 = vpop.f32.mrb[0].mxu0
    %7207 = vdwg.mxu0
    %7208 = vmatprep.subr.bf16.mxu0 %v5683
    %7209 = vmatpush1.bf16.msra.mxu0 %v5682
    %7210 = vmatprep.subr.bf16.mxu0 %v5691
    %7211 = vmatpush1.bf16.msra.mxu0 %v5690
    %7212 = vmatprep.subr.bf16.mxu0 %v5699
    %7213 = vmatpush1.bf16.msra.mxu0 %v5698
    %7214 = vmatprep.subr.bf16.mxu0 %v5707
    %7215 = vmatpush1.bf16.msra.mxu0 %v5706
    %7216 = vmatprep.subr.bf16.mxu0 %v5715
    %7217 = vmatpush1.bf16.msra.mxu0 %v5714
    %7218 = vmatprep.subr.bf16.mxu0 %v5723
    %7219 = vmatpush1.bf16.msra.mxu0 %v5722
    %7220 = vmatprep.subr.bf16.mxu0 %v5731
    %7221 = vmatpush1.bf16.msra.mxu0 %v5730
    %7222 = vmatprep.subr.bf16.mxu0 %v5739
    %7223 = vmatpush1.bf16.msra.mxu0 %v5738
    %7224 = vmatprep.subr.bf16.mxu0 %v5747
    %7225 = vmatpush1.bf16.msra.mxu0 %v5746
    %7226 = vmatprep.subr.bf16.mxu0 %v5755
    %7227 = vmatpush1.bf16.msra.mxu0 %v5754
    %7228 = vmatprep.subr.bf16.mxu0 %v5763
    %7229 = vmatpush1.bf16.msra.mxu0 %v5762
    %7230 = vmatprep.subr.bf16.mxu0 %v5771
    %7231 = vmatpush1.bf16.msra.mxu0 %v5770
    %7232 = vmatprep.subr.bf16.mxu0 %v5779
    %7233 = vmatpush1.bf16.msra.mxu0 %v5778
    %7234 = vmatprep.subr.bf16.mxu0 %v5787
    %7235 = vmatpush1.bf16.msra.mxu0 %v5786
    %7236 = vmatprep.subr.bf16.mxu0 %v5795
    %7237 = vmatpush1.bf16.msra.mxu0 %v5794
    %7238 = vmatprep.subr.bf16.mxu0 %v5803
    %7239 = vmatpush1.bf16.msra.mxu0 %v5802
    %7240 = vmatprep.mubr.bf16.mxu0 %v773
    %7241 = vmatmul.mubr.bf16.gmra.mrb[0].mxu0 %v772
    %v7242 = vpop.f32.mrb[0].mxu0
    %v7243 = vadd.f32 %v7202, %v7242
    %v7244 = vpop.f32.mrb[0].mxu0
    %v7245 = vadd.f32 %v7204, %v7244
    %v7246 = vpop.f32.mrb[0].mxu0
    %v7247 = vpop.f32.mrb[0].mxu0
    %7248 = vdwg.mxu0
    %7249 = vmatprep.subr.bf16.mxu0 %v5811
    %7250 = vmatpush1.bf16.msra.mxu0 %v5810
    %7251 = vmatprep.subr.bf16.mxu0 %v5819
    %7252 = vmatpush1.bf16.msra.mxu0 %v5818
    %7253 = vmatprep.subr.bf16.mxu0 %v5827
    %7254 = vmatpush1.bf16.msra.mxu0 %v5826
    %7255 = vmatprep.subr.bf16.mxu0 %v5835
    %7256 = vmatpush1.bf16.msra.mxu0 %v5834
    %7257 = vmatprep.subr.bf16.mxu0 %v5843
    %7258 = vmatpush1.bf16.msra.mxu0 %v5842
    %7259 = vmatprep.subr.bf16.mxu0 %v5851
    %7260 = vmatpush1.bf16.msra.mxu0 %v5850
    %7261 = vmatprep.subr.bf16.mxu0 %v5859
    %7262 = vmatpush1.bf16.msra.mxu0 %v5858
    %7263 = vmatprep.subr.bf16.mxu0 %v5867
    %7264 = vmatpush1.bf16.msra.mxu0 %v5866
    %7265 = vmatprep.subr.bf16.mxu0 %v5875
    %7266 = vmatpush1.bf16.msra.mxu0 %v5874
    %7267 = vmatprep.subr.bf16.mxu0 %v5883
    %7268 = vmatpush1.bf16.msra.mxu0 %v5882
    %7269 = vmatprep.subr.bf16.mxu0 %v5891
    %7270 = vmatpush1.bf16.msra.mxu0 %v5890
    %7271 = vmatprep.subr.bf16.mxu0 %v5899
    %7272 = vmatpush1.bf16.msra.mxu0 %v5898
    %7273 = vmatprep.subr.bf16.mxu0 %v5907
    %7274 = vmatpush1.bf16.msra.mxu0 %v5906
    %7275 = vmatprep.subr.bf16.mxu0 %v5915
    %7276 = vmatpush1.bf16.msra.mxu0 %v5914
    %7277 = vmatprep.subr.bf16.mxu0 %v5923
    %7278 = vmatpush1.bf16.msra.mxu0 %v5922
    %7279 = vmatprep.subr.bf16.mxu0 %v5931
    %7280 = vmatpush1.bf16.msra.mxu0 %v5930
    %7281 = vmatprep.mubr.bf16.mxu0 %v775
    %7282 = vmatmul.mubr.bf16.gmra.mrb[0].mxu0 %v774
    %v7283 = vpop.f32.mrb[0].mxu0
    %v7284 = vadd.f32 %v7243, %v7283
    %v7285 = vpop.f32.mrb[0].mxu0
    %v7286 = vadd.f32 %v7245, %v7285
    %v7287 = vpop.f32.mrb[0].mxu0
    %v7288 = vpop.f32.mrb[0].mxu0
    %7289 = vdwg.mxu0
    %7290 = vmatprep.subr.bf16.mxu0 %v4917
    %7291 = vmatpush1.bf16.msra.mxu0 %v4916
    %7292 = vmatprep.subr.bf16.mxu0 %v4925
    %7293 = vmatpush1.bf16.msra.mxu0 %v4924
    %7294 = vmatprep.subr.bf16.mxu0 %v4933
    %7295 = vmatpush1.bf16.msra.mxu0 %v4932
    %7296 = vmatprep.subr.bf16.mxu0 %v4941
    %7297 = vmatpush1.bf16.msra.mxu0 %v4940
    %7298 = vmatprep.subr.bf16.mxu0 %v4949
    %7299 = vmatpush1.bf16.msra.mxu0 %v4948
    %7300 = vmatprep.subr.bf16.mxu0 %v4957
    %7301 = vmatpush1.bf16.msra.mxu0 %v4956
    %7302 = vmatprep.subr.bf16.mxu0 %v4965
    %7303 = vmatpush1.bf16.msra.mxu0 %v4964
    %7304 = vmatprep.subr.bf16.mxu0 %v4973
    %7305 = vmatpush1.bf16.msra.mxu0 %v4972
    %7306 = vmatprep.subr.bf16.mxu0 %v4981
    %7307 = vmatpush1.bf16.msra.mxu0 %v4980
    %7308 = vmatprep.subr.bf16.mxu0 %v4989
    %7309 = vmatpush1.bf16.msra.mxu0 %v4988
    %7310 = vmatprep.subr.bf16.mxu0 %v4997
    %7311 = vmatpush1.bf16.msra.mxu0 %v4996
    %7312 = vmatprep.subr.bf16.mxu0 %v5005
    %7313 = vmatpush1.bf16.msra.mxu0 %v5004
    %7314 = vmatprep.subr.bf16.mxu0 %v5013
    %7315 = vmatpush1.bf16.msra.mxu0 %v5012
    %7316 = vmatprep.subr.bf16.mxu0 %v5021
    %7317 = vmatpush1.bf16.msra.mxu0 %v5020
    %7318 = vmatprep.subr.bf16.mxu0 %v5029
    %7319 = vmatpush1.bf16.msra.mxu0 %v5028
    %7320 = vmatprep.subr.bf16.mxu0 %v5037
    %7321 = vmatpush1.bf16.msra.mxu0 %v5036
    %7322 = vmatprep.mubr.bf16.mxu0 %v761
    %7323 = vmatmul.mubr.bf16.gmra.mrb[0].mxu0 %v760
    %v7324 = vpop.f32.mrb[0].mxu0
    %v7325 = vadd.f32 %v1813, %v7324
    %v7326 = vpop.f32.mrb[0].mxu0
    %v7327 = vadd.f32 %v1817, %v7326
    %v7328 = vpop.f32.mrb[0].mxu0
    %v7329 = vpop.f32.mrb[0].mxu0
    %7330 = vdwg.mxu0
    %7331 = vmatprep.subr.bf16.mxu0 %v5045
    %7332 = vmatpush1.bf16.msra.mxu0 %v5044
    %7333 = vmatprep.subr.bf16.mxu0 %v5053
    %7334 = vmatpush1.bf16.msra.mxu0 %v5052
    %7335 = vmatprep.subr.bf16.mxu0 %v5061
    %7336 = vmatpush1.bf16.msra.mxu0 %v5060
    %7337 = vmatprep.subr.bf16.mxu0 %v5069
    %7338 = vmatpush1.bf16.msra.mxu0 %v5068
    %7339 = vmatprep.subr.bf16.mxu0 %v5077
    %7340 = vmatpush1.bf16.msra.mxu0 %v5076
    %7341 = vmatprep.subr.bf16.mxu0 %v5085
    %7342 = vmatpush1.bf16.msra.mxu0 %v5084
    %7343 = vmatprep.subr.bf16.mxu0 %v5093
    %7344 = vmatpush1.bf16.msra.mxu0 %v5092
    %7345 = vmatprep.subr.bf16.mxu0 %v5101
    %7346 = vmatpush1.bf16.msra.mxu0 %v5100
    %7347 = vmatprep.subr.bf16.mxu0 %v5109
    %7348 = vmatpush1.bf16.msra.mxu0 %v5108
    %7349 = vmatprep.subr.bf16.mxu0 %v5117
    %7350 = vmatpush1.bf16.msra.mxu0 %v5116
    %7351 = vmatprep.subr.bf16.mxu0 %v5125
    %7352 = vmatpush1.bf16.msra.mxu0 %v5124
    %7353 = vmatprep.subr.bf16.mxu0 %v5133
    %7354 = vmatpush1.bf16.msra.mxu0 %v5132
    %7355 = vmatprep.subr.bf16.mxu0 %v5141
    %7356 = vmatpush1.bf16.msra.mxu0 %v5140
    %7357 = vmatprep.subr.bf16.mxu0 %v5149
    %7358 = vmatpush1.bf16.msra.mxu0 %v5148
    %7359 = vmatprep.subr.bf16.mxu0 %v5157
    %7360 = vmatpush1.bf16.msra.mxu0 %v5156
    %7361 = vmatprep.subr.bf16.mxu0 %v5165
    %7362 = vmatpush1.bf16.msra.mxu0 %v5164
    %7363 = vmatprep.mubr.bf16.mxu0 %v763
    %7364 = vmatmul.mubr.bf16.gmra.mrb[0].mxu0 %v762
    %v7365 = vpop.f32.mrb[0].mxu0
    %v7366 = vadd.f32 %v7325, %v7365
    %v7367 = vpop.f32.mrb[0].mxu0
    %v7368 = vadd.f32 %v7327, %v7367
    %v7369 = vpop.f32.mrb[0].mxu0
    %v7370 = vpop.f32.mrb[0].mxu0
    %7371 = vdwg.mxu0
    %7372 = vmatprep.subr.bf16.mxu0 %v5173
    %7373 = vmatpush1.bf16.msra.mxu0 %v5172
    %7374 = vmatprep.subr.bf16.mxu0 %v5181
    %7375 = vmatpush1.bf16.msra.mxu0 %v5180
    %7376 = vmatprep.subr.bf16.mxu0 %v5189
    %7377 = vmatpush1.bf16.msra.mxu0 %v5188
    %7378 = vmatprep.subr.bf16.mxu0 %v5197
    %7379 = vmatpush1.bf16.msra.mxu0 %v5196
    %7380 = vmatprep.subr.bf16.mxu0 %v5205
    %7381 = vmatpush1.bf16.msra.mxu0 %v5204
    %7382 = vmatprep.subr.bf16.mxu0 %v5213
    %7383 = vmatpush1.bf16.msra.mxu0 %v5212
    %7384 = vmatprep.subr.bf16.mxu0 %v5221
    %7385 = vmatpush1.bf16.msra.mxu0 %v5220
    %7386 = vmatprep.subr.bf16.mxu0 %v5229
    %7387 = vmatpush1.bf16.msra.mxu0 %v5228
    %7388 = vmatprep.subr.bf16.mxu0 %v5237
    %7389 = vmatpush1.bf16.msra.mxu0 %v5236
    %7390 = vmatprep.subr.bf16.mxu0 %v5245
    %7391 = vmatpush1.bf16.msra.mxu0 %v5244
    %7392 = vmatprep.subr.bf16.mxu0 %v5253
    %7393 = vmatpush1.bf16.msra.mxu0 %v5252
    %7394 = vmatprep.subr.bf16.mxu0 %v5261
    %7395 = vmatpush1.bf16.msra.mxu0 %v5260
    %7396 = vmatprep.subr.bf16.mxu0 %v5269
    %7397 = vmatpush1.bf16.msra.mxu0 %v5268
    %7398 = vmatprep.subr.bf16.mxu0 %v5277
    %7399 = vmatpush1.bf16.msra.mxu0 %v5276
    %7400 = vmatprep.subr.bf16.mxu0 %v5285
    %7401 = vmatpush1.bf16.msra.mxu0 %v5284
    %7402 = vmatprep.subr.bf16.mxu0 %v5293
    %7403 = vmatpush1.bf16.msra.mxu0 %v5292
    %7404 = vmatprep.mubr.bf16.mxu0 %v765
    %7405 = vmatmul.mubr.bf16.gmra.mrb[0].mxu0 %v764
    %v7406 = vpop.f32.mrb[0].mxu0
    %v7407 = vadd.f32 %v7366, %v7406
    %v7408 = vpop.f32.mrb[0].mxu0
    %v7409 = vadd.f32 %v7368, %v7408
    %v7410 = vpop.f32.mrb[0].mxu0
    %v7411 = vpop.f32.mrb[0].mxu0
    %7412 = vdwg.mxu0
    %7413 = vmatprep.subr.bf16.mxu0 %v5301
    %7414 = vmatpush1.bf16.msra.mxu0 %v5300
    %7415 = vmatprep.subr.bf16.mxu0 %v5309
    %7416 = vmatpush1.bf16.msra.mxu0 %v5308
    %7417 = vmatprep.subr.bf16.mxu0 %v5317
    %7418 = vmatpush1.bf16.msra.mxu0 %v5316
    %7419 = vmatprep.subr.bf16.mxu0 %v5325
    %7420 = vmatpush1.bf16.msra.mxu0 %v5324
    %7421 = vmatprep.subr.bf16.mxu0 %v5333
    %7422 = vmatpush1.bf16.msra.mxu0 %v5332
    %7423 = vmatprep.subr.bf16.mxu0 %v5341
    %7424 = vmatpush1.bf16.msra.mxu0 %v5340
    %7425 = vmatprep.subr.bf16.mxu0 %v5349
    %7426 = vmatpush1.bf16.msra.mxu0 %v5348
    %7427 = vmatprep.subr.bf16.mxu0 %v5357
    %7428 = vmatpush1.bf16.msra.mxu0 %v5356
    %7429 = vmatprep.subr.bf16.mxu0 %v5365
    %7430 = vmatpush1.bf16.msra.mxu0 %v5364
    %7431 = vmatprep.subr.bf16.mxu0 %v5373
    %7432 = vmatpush1.bf16.msra.mxu0 %v5372
    %7433 = vmatprep.subr.bf16.mxu0 %v5381
    %7434 = vmatpush1.bf16.msra.mxu0 %v5380
    %7435 = vmatprep.subr.bf16.mxu0 %v5389
    %7436 = vmatpush1.bf16.msra.mxu0 %v5388
    %7437 = vmatprep.subr.bf16.mxu0 %v5397
    %7438 = vmatpush1.bf16.msra.mxu0 %v5396
    %7439 = vmatprep.subr.bf16.mxu0 %v5405
    %7440 = vmatpush1.bf16.msra.mxu0 %v5404
    %7441 = vmatprep.subr.bf16.mxu0 %v5413
    %7442 = vmatpush1.bf16.msra.mxu0 %v5412
    %7443 = vmatprep.subr.bf16.mxu0 %v5421
    %7444 = vmatpush1.bf16.msra.mxu0 %v5420
    %7445 = vmatprep.mubr.bf16.mxu0 %v767
    %7446 = vmatmul.mubr.bf16.gmra.mrb[0].mxu0 %v766
    %v7447 = vpop.f32.mrb[0].mxu0
    %v7448 = vadd.f32 %v7407, %v7447
    %v7449 = vpop.f32.mrb[0].mxu0
    %v7450 = vadd.f32 %v7409, %v7449
    %v7451 = vpop.f32.mrb[0].mxu0
    %v7452 = vpop.f32.mrb[0].mxu0
    %7453 = vdwg.mxu0
    %7454 = vmatprep.subr.bf16.mxu0 %v5429
    %7455 = vmatpush1.bf16.msra.mxu0 %v5428
    %7456 = vmatprep.subr.bf16.mxu0 %v5437
    %7457 = vmatpush1.bf16.msra.mxu0 %v5436
    %7458 = vmatprep.subr.bf16.mxu0 %v5445
    %7459 = vmatpush1.bf16.msra.mxu0 %v5444
    %7460 = vmatprep.subr.bf16.mxu0 %v5453
    %7461 = vmatpush1.bf16.msra.mxu0 %v5452
    %7462 = vmatprep.subr.bf16.mxu0 %v5461
    %7463 = vmatpush1.bf16.msra.mxu0 %v5460
    %7464 = vmatprep.subr.bf16.mxu0 %v5469
    %7465 = vmatpush1.bf16.msra.mxu0 %v5468
    %7466 = vmatprep.subr.bf16.mxu0 %v5477
    %7467 = vmatpush1.bf16.msra.mxu0 %v5476
    %7468 = vmatprep.subr.bf16.mxu0 %v5485
    %7469 = vmatpush1.bf16.msra.mxu0 %v5484
    %7470 = vmatprep.subr.bf16.mxu0 %v5493
    %7471 = vmatpush1.bf16.msra.mxu0 %v5492
    %7472 = vmatprep.subr.bf16.mxu0 %v5501
    %7473 = vmatpush1.bf16.msra.mxu0 %v5500
    %7474 = vmatprep.subr.bf16.mxu0 %v5509
    %7475 = vmatpush1.bf16.msra.mxu0 %v5508
    %7476 = vmatprep.subr.bf16.mxu0 %v5517
    %7477 = vmatpush1.bf16.msra.mxu0 %v5516
    %7478 = vmatprep.subr.bf16.mxu0 %v5525
    %7479 = vmatpush1.bf16.msra.mxu0 %v5524
    %7480 = vmatprep.subr.bf16.mxu0 %v5533
    %7481 = vmatpush1.bf16.msra.mxu0 %v5532
    %7482 = vmatprep.subr.bf16.mxu0 %v5541
    %7483 = vmatpush1.bf16.msra.mxu0 %v5540
    %7484 = vmatprep.subr.bf16.mxu0 %v5549
    %7485 = vmatpush1.bf16.msra.mxu0 %v5548
    %7486 = vmatprep.mubr.bf16.mxu0 %v769
    %7487 = vmatmul.mubr.bf16.gmra.mrb[0].mxu0 %v768
    %v7488 = vpop.f32.mrb[0].mxu0
    %v7489 = vadd.f32 %v7448, %v7488
    %v7490 = vpop.f32.mrb[0].mxu0
    %v7491 = vadd.f32 %v7450, %v7490
    %v7492 = vpop.f32.mrb[0].mxu0
    %v7493 = vpop.f32.mrb[0].mxu0
    %7494 = vdwg.mxu0
    %7495 = vmatprep.subr.bf16.mxu0 %v5557
    %7496 = vmatpush1.bf16.msra.mxu0 %v5556
    %7497 = vmatprep.subr.bf16.mxu0 %v5565
    %7498 = vmatpush1.bf16.msra.mxu0 %v5564
    %7499 = vmatprep.subr.bf16.mxu0 %v5573
    %7500 = vmatpush1.bf16.msra.mxu0 %v5572
    %7501 = vmatprep.subr.bf16.mxu0 %v5581
    %7502 = vmatpush1.bf16.msra.mxu0 %v5580
    %7503 = vmatprep.subr.bf16.mxu0 %v5589
    %7504 = vmatpush1.bf16.msra.mxu0 %v5588
    %7505 = vmatprep.subr.bf16.mxu0 %v5597
    %7506 = vmatpush1.bf16.msra.mxu0 %v5596
    %7507 = vmatprep.subr.bf16.mxu0 %v5605
    %7508 = vmatpush1.bf16.msra.mxu0 %v5604
    %7509 = vmatprep.subr.bf16.mxu0 %v5613
    %7510 = vmatpush1.bf16.msra.mxu0 %v5612
    %7511 = vmatprep.subr.bf16.mxu0 %v5621
    %7512 = vmatpush1.bf16.msra.mxu0 %v5620
    %7513 = vmatprep.subr.bf16.mxu0 %v5629
    %7514 = vmatpush1.bf16.msra.mxu0 %v5628
    %7515 = vmatprep.subr.bf16.mxu0 %v5637
    %7516 = vmatpush1.bf16.msra.mxu0 %v5636
    %7517 = vmatprep.subr.bf16.mxu0 %v5645
    %7518 = vmatpush1.bf16.msra.mxu0 %v5644
    %7519 = vmatprep.subr.bf16.mxu0 %v5653
    %7520 = vmatpush1.bf16.msra.mxu0 %v5652
    %7521 = vmatprep.subr.bf16.mxu0 %v5661
    %7522 = vmatpush1.bf16.msra.mxu0 %v5660
    %7523 = vmatprep.subr.bf16.mxu0 %v5669
    %7524 = vmatpush1.bf16.msra.mxu0 %v5668
    %7525 = vmatprep.subr.bf16.mxu0 %v5677
    %7526 = vmatpush1.bf16.msra.mxu0 %v5676
    %7527 = vmatprep.mubr.bf16.mxu0 %v771
    %7528 = vmatmul.mubr.bf16.gmra.mrb[0].mxu0 %v770
    %v7529 = vpop.f32.mrb[0].mxu0
    %v7530 = vadd.f32 %v7489, %v7529
    %v7531 = vpop.f32.mrb[0].mxu0
    %v7532 = vadd.f32 %v7491, %v7531
    %v7533 = vpop.f32.mrb[0].mxu0
    %v7534 = vpop.f32.mrb[0].mxu0
    %7535 = vdwg.mxu0
    %7536 = vmatprep.subr.bf16.mxu0 %v5685
    %7537 = vmatpush1.bf16.msra.mxu0 %v5684
    %7538 = vmatprep.subr.bf16.mxu0 %v5693
    %7539 = vmatpush1.bf16.msra.mxu0 %v5692
    %7540 = vmatprep.subr.bf16.mxu0 %v5701
    %7541 = vmatpush1.bf16.msra.mxu0 %v5700
    %7542 = vmatprep.subr.bf16.mxu0 %v5709
    %7543 = vmatpush1.bf16.msra.mxu0 %v5708
    %7544 = vmatprep.subr.bf16.mxu0 %v5717
    %7545 = vmatpush1.bf16.msra.mxu0 %v5716
    %7546 = vmatprep.subr.bf16.mxu0 %v5725
    %7547 = vmatpush1.bf16.msra.mxu0 %v5724
    %7548 = vmatprep.subr.bf16.mxu0 %v5733
    %7549 = vmatpush1.bf16.msra.mxu0 %v5732
    %7550 = vmatprep.subr.bf16.mxu0 %v5741
    %7551 = vmatpush1.bf16.msra.mxu0 %v5740
    %7552 = vmatprep.subr.bf16.mxu0 %v5749
    %7553 = vmatpush1.bf16.msra.mxu0 %v5748
    %7554 = vmatprep.subr.bf16.mxu0 %v5757
    %7555 = vmatpush1.bf16.msra.mxu0 %v5756
    %7556 = vmatprep.subr.bf16.mxu0 %v5765
    %7557 = vmatpush1.bf16.msra.mxu0 %v5764
    %7558 = vmatprep.subr.bf16.mxu0 %v5773
    %7559 = vmatpush1.bf16.msra.mxu0 %v5772
    %7560 = vmatprep.subr.bf16.mxu0 %v5781
    %7561 = vmatpush1.bf16.msra.mxu0 %v5780
    %7562 = vmatprep.subr.bf16.mxu0 %v5789
    %7563 = vmatpush1.bf16.msra.mxu0 %v5788
    %7564 = vmatprep.subr.bf16.mxu0 %v5797
    %7565 = vmatpush1.bf16.msra.mxu0 %v5796
    %7566 = vmatprep.subr.bf16.mxu0 %v5805
    %7567 = vmatpush1.bf16.msra.mxu0 %v5804
    %7568 = vmatprep.mubr.bf16.mxu0 %v773
    %7569 = vmatmul.mubr.bf16.gmra.mrb[0].mxu0 %v772
    %v7570 = vpop.f32.mrb[0].mxu0
    %v7571 = vadd.f32 %v7530, %v7570
    %v7572 = vpop.f32.mrb[0].mxu0
    %v7573 = vadd.f32 %v7532, %v7572
    %v7574 = vpop.f32.mrb[0].mxu0
    %v7575 = vpop.f32.mrb[0].mxu0
    %7576 = vdwg.mxu0
    %7577 = vmatprep.subr.bf16.mxu0 %v5813
    %7578 = vmatpush1.bf16.msra.mxu0 %v5812
    %7579 = vmatprep.subr.bf16.mxu0 %v5821
    %7580 = vmatpush1.bf16.msra.mxu0 %v5820
    %7581 = vmatprep.subr.bf16.mxu0 %v5829
    %7582 = vmatpush1.bf16.msra.mxu0 %v5828
    %7583 = vmatprep.subr.bf16.mxu0 %v5837
    %7584 = vmatpush1.bf16.msra.mxu0 %v5836
    %7585 = vmatprep.subr.bf16.mxu0 %v5845
    %7586 = vmatpush1.bf16.msra.mxu0 %v5844
    %7587 = vmatprep.subr.bf16.mxu0 %v5853
    %7588 = vmatpush1.bf16.msra.mxu0 %v5852
    %7589 = vmatprep.subr.bf16.mxu0 %v5861
    %7590 = vmatpush1.bf16.msra.mxu0 %v5860
    %7591 = vmatprep.subr.bf16.mxu0 %v5869
    %7592 = vmatpush1.bf16.msra.mxu0 %v5868
    %7593 = vmatprep.subr.bf16.mxu0 %v5877
    %7594 = vmatpush1.bf16.msra.mxu0 %v5876
    %7595 = vmatprep.subr.bf16.mxu0 %v5885
    %7596 = vmatpush1.bf16.msra.mxu0 %v5884
    %7597 = vmatprep.subr.bf16.mxu0 %v5893
    %7598 = vmatpush1.bf16.msra.mxu0 %v5892
    %7599 = vmatprep.subr.bf16.mxu0 %v5901
    %7600 = vmatpush1.bf16.msra.mxu0 %v5900
    %7601 = vmatprep.subr.bf16.mxu0 %v5909
    %7602 = vmatpush1.bf16.msra.mxu0 %v5908
    %7603 = vmatprep.subr.bf16.mxu0 %v5917
    %7604 = vmatpush1.bf16.msra.mxu0 %v5916
    %7605 = vmatprep.subr.bf16.mxu0 %v5925
    %7606 = vmatpush1.bf16.msra.mxu0 %v5924
    %7607 = vmatprep.subr.bf16.mxu0 %v5933
    %7608 = vmatpush1.bf16.msra.mxu0 %v5932
    %7609 = vmatprep.mubr.bf16.mxu0 %v775
    %7610 = vmatmul.mubr.bf16.gmra.mrb[0].mxu0 %v774
    %v7611 = vpop.f32.mrb[0].mxu0
    %v7612 = vadd.f32 %v7571, %v7611
    %v7613 = vpop.f32.mrb[0].mxu0
    %v7614 = vadd.f32 %v7573, %v7613
    %v7615 = vpop.f32.mrb[0].mxu0
    %v7616 = vpop.f32.mrb[0].mxu0
    %7617 = vdwg.mxu0
    %7618 = vmatprep.subr.bf16.mxu0 %v4919
    %7619 = vmatpush1.bf16.msra.mxu0 %v4918
    %7620 = vmatprep.subr.bf16.mxu0 %v4927
    %7621 = vmatpush1.bf16.msra.mxu0 %v4926
    %7622 = vmatprep.subr.bf16.mxu0 %v4935
    %7623 = vmatpush1.bf16.msra.mxu0 %v4934
    %7624 = vmatprep.subr.bf16.mxu0 %v4943
    %7625 = vmatpush1.bf16.msra.mxu0 %v4942
    %7626 = vmatprep.subr.bf16.mxu0 %v4951
    %7627 = vmatpush1.bf16.msra.mxu0 %v4950
    %7628 = vmatprep.subr.bf16.mxu0 %v4959
    %7629 = vmatpush1.bf16.msra.mxu0 %v4958
    %7630 = vmatprep.subr.bf16.mxu0 %v4967
    %7631 = vmatpush1.bf16.msra.mxu0 %v4966
    %7632 = vmatprep.subr.bf16.mxu0 %v4975
    %7633 = vmatpush1.bf16.msra.mxu0 %v4974
    %7634 = vmatprep.subr.bf16.mxu0 %v4983
    %7635 = vmatpush1.bf16.msra.mxu0 %v4982
    %7636 = vmatprep.subr.bf16.mxu0 %v4991
    %7637 = vmatpush1.bf16.msra.mxu0 %v4990
    %7638 = vmatprep.subr.bf16.mxu0 %v4999
    %7639 = vmatpush1.bf16.msra.mxu0 %v4998
    %7640 = vmatprep.subr.bf16.mxu0 %v5007
    %7641 = vmatpush1.bf16.msra.mxu0 %v5006
    %7642 = vmatprep.subr.bf16.mxu0 %v5015
    %7643 = vmatpush1.bf16.msra.mxu0 %v5014
    %7644 = vmatprep.subr.bf16.mxu0 %v5023
    %7645 = vmatpush1.bf16.msra.mxu0 %v5022
    %7646 = vmatprep.subr.bf16.mxu0 %v5031
    %7647 = vmatpush1.bf16.msra.mxu0 %v5030
    %7648 = vmatprep.subr.bf16.mxu0 %v5039
    %7649 = vmatpush1.bf16.msra.mxu0 %v5038
    %7650 = vmatprep.mubr.bf16.mxu0 %v761
    %7651 = vmatmul.mubr.bf16.gmra.mrb[0].mxu0 %v760
    %v7652 = vpop.f32.mrb[0].mxu0
    %v7653 = vadd.f32 %v1821, %v7652
    %v7654 = vpop.f32.mrb[0].mxu0
    %v7655 = vadd.f32 %v1825, %v7654
    %v7656 = vpop.f32.mrb[0].mxu0
    %v7657 = vpop.f32.mrb[0].mxu0
    %7658 = vdwg.mxu0
    %7659 = vmatprep.subr.bf16.mxu0 %v5047
    %7660 = vmatpush1.bf16.msra.mxu0 %v5046
    %7661 = vmatprep.subr.bf16.mxu0 %v5055
    %7662 = vmatpush1.bf16.msra.mxu0 %v5054
    %7663 = vmatprep.subr.bf16.mxu0 %v5063
    %7664 = vmatpush1.bf16.msra.mxu0 %v5062
    %7665 = vmatprep.subr.bf16.mxu0 %v5071
    %7666 = vmatpush1.bf16.msra.mxu0 %v5070
    %7667 = vmatprep.subr.bf16.mxu0 %v5079
    %7668 = vmatpush1.bf16.msra.mxu0 %v5078
    %7669 = vmatprep.subr.bf16.mxu0 %v5087
    %7670 = vmatpush1.bf16.msra.mxu0 %v5086
    %7671 = vmatprep.subr.bf16.mxu0 %v5095
    %7672 = vmatpush1.bf16.msra.mxu0 %v5094
    %7673 = vmatprep.subr.bf16.mxu0 %v5103
    %7674 = vmatpush1.bf16.msra.mxu0 %v5102
    %7675 = vmatprep.subr.bf16.mxu0 %v5111
    %7676 = vmatpush1.bf16.msra.mxu0 %v5110
    %7677 = vmatprep.subr.bf16.mxu0 %v5119
    %7678 = vmatpush1.bf16.msra.mxu0 %v5118
    %7679 = vmatprep.subr.bf16.mxu0 %v5127
    %7680 = vmatpush1.bf16.msra.mxu0 %v5126
    %7681 = vmatprep.subr.bf16.mxu0 %v5135
    %7682 = vmatpush1.bf16.msra.mxu0 %v5134
    %7683 = vmatprep.subr.bf16.mxu0 %v5143
    %7684 = vmatpush1.bf16.msra.mxu0 %v5142
    %7685 = vmatprep.subr.bf16.mxu0 %v5151
    %7686 = vmatpush1.bf16.msra.mxu0 %v5150
    %7687 = vmatprep.subr.bf16.mxu0 %v5159
    %7688 = vmatpush1.bf16.msra.mxu0 %v5158
    %7689 = vmatprep.subr.bf16.mxu0 %v5167
    %7690 = vmatpush1.bf16.msra.mxu0 %v5166
    %7691 = vmatprep.mubr.bf16.mxu0 %v763
    %7692 = vmatmul.mubr.bf16.gmra.mrb[0].mxu0 %v762
    %v7693 = vpop.f32.mrb[0].mxu0
    %v7694 = vadd.f32 %v7653, %v7693
    %v7695 = vpop.f32.mrb[0].mxu0
    %v7696 = vadd.f32 %v7655, %v7695
    %v7697 = vpop.f32.mrb[0].mxu0
    %v7698 = vpop.f32.mrb[0].mxu0
    %7699 = vdwg.mxu0
    %7700 = vmatprep.subr.bf16.mxu0 %v5175
    %7701 = vmatpush1.bf16.msra.mxu0 %v5174
    %7702 = vmatprep.subr.bf16.mxu0 %v5183
    %7703 = vmatpush1.bf16.msra.mxu0 %v5182
    %7704 = vmatprep.subr.bf16.mxu0 %v5191
    %7705 = vmatpush1.bf16.msra.mxu0 %v5190
    %7706 = vmatprep.subr.bf16.mxu0 %v5199
    %7707 = vmatpush1.bf16.msra.mxu0 %v5198
    %7708 = vmatprep.subr.bf16.mxu0 %v5207
    %7709 = vmatpush1.bf16.msra.mxu0 %v5206
    %7710 = vmatprep.subr.bf16.mxu0 %v5215
    %7711 = vmatpush1.bf16.msra.mxu0 %v5214
    %7712 = vmatprep.subr.bf16.mxu0 %v5223
    %7713 = vmatpush1.bf16.msra.mxu0 %v5222
    %7714 = vmatprep.subr.bf16.mxu0 %v5231
    %7715 = vmatpush1.bf16.msra.mxu0 %v5230
    %7716 = vmatprep.subr.bf16.mxu0 %v5239
    %7717 = vmatpush1.bf16.msra.mxu0 %v5238
    %7718 = vmatprep.subr.bf16.mxu0 %v5247
    %7719 = vmatpush1.bf16.msra.mxu0 %v5246
    %7720 = vmatprep.subr.bf16.mxu0 %v5255
    %7721 = vmatpush1.bf16.msra.mxu0 %v5254
    %7722 = vmatprep.subr.bf16.mxu0 %v5263
    %7723 = vmatpush1.bf16.msra.mxu0 %v5262
    %7724 = vmatprep.subr.bf16.mxu0 %v5271
    %7725 = vmatpush1.bf16.msra.mxu0 %v5270
    %7726 = vmatprep.subr.bf16.mxu0 %v5279
    %7727 = vmatpush1.bf16.msra.mxu0 %v5278
    %7728 = vmatprep.subr.bf16.mxu0 %v5287
    %7729 = vmatpush1.bf16.msra.mxu0 %v5286
    %7730 = vmatprep.subr.bf16.mxu0 %v5295
    %7731 = vmatpush1.bf16.msra.mxu0 %v5294
    %7732 = vmatprep.mubr.bf16.mxu0 %v765
    %7733 = vmatmul.mubr.bf16.gmra.mrb[0].mxu0 %v764
    %v7734 = vpop.f32.mrb[0].mxu0
    %v7735 = vadd.f32 %v7694, %v7734
    %v7736 = vpop.f32.mrb[0].mxu0
    %v7737 = vadd.f32 %v7696, %v7736
    %v7738 = vpop.f32.mrb[0].mxu0
    %v7739 = vpop.f32.mrb[0].mxu0
    %7740 = vdwg.mxu0
    %7741 = vmatprep.subr.bf16.mxu0 %v5303
    %7742 = vmatpush1.bf16.msra.mxu0 %v5302
    %7743 = vmatprep.subr.bf16.mxu0 %v5311
    %7744 = vmatpush1.bf16.msra.mxu0 %v5310
    %7745 = vmatprep.subr.bf16.mxu0 %v5319
    %7746 = vmatpush1.bf16.msra.mxu0 %v5318
    %7747 = vmatprep.subr.bf16.mxu0 %v5327
    %7748 = vmatpush1.bf16.msra.mxu0 %v5326
    %7749 = vmatprep.subr.bf16.mxu0 %v5335
    %7750 = vmatpush1.bf16.msra.mxu0 %v5334
    %7751 = vmatprep.subr.bf16.mxu0 %v5343
    %7752 = vmatpush1.bf16.msra.mxu0 %v5342
    %7753 = vmatprep.subr.bf16.mxu0 %v5351
    %7754 = vmatpush1.bf16.msra.mxu0 %v5350
    %7755 = vmatprep.subr.bf16.mxu0 %v5359
    %7756 = vmatpush1.bf16.msra.mxu0 %v5358
    %7757 = vmatprep.subr.bf16.mxu0 %v5367
    %7758 = vmatpush1.bf16.msra.mxu0 %v5366
    %7759 = vmatprep.subr.bf16.mxu0 %v5375
    %7760 = vmatpush1.bf16.msra.mxu0 %v5374
    %7761 = vmatprep.subr.bf16.mxu0 %v5383
    %7762 = vmatpush1.bf16.msra.mxu0 %v5382
    %7763 = vmatprep.subr.bf16.mxu0 %v5391
    %7764 = vmatpush1.bf16.msra.mxu0 %v5390
    %7765 = vmatprep.subr.bf16.mxu0 %v5399
    %7766 = vmatpush1.bf16.msra.mxu0 %v5398
    %7767 = vmatprep.subr.bf16.mxu0 %v5407
    %7768 = vmatpush1.bf16.msra.mxu0 %v5406
    %7769 = vmatprep.subr.bf16.mxu0 %v5415
    %7770 = vmatpush1.bf16.msra.mxu0 %v5414
    %7771 = vmatprep.subr.bf16.mxu0 %v5423
    %7772 = vmatpush1.bf16.msra.mxu0 %v5422
    %7773 = vmatprep.mubr.bf16.mxu0 %v767
    %7774 = vmatmul.mubr.bf16.gmra.mrb[0].mxu0 %v766
    %v7775 = vpop.f32.mrb[0].mxu0
    %v7776 = vadd.f32 %v7735, %v7775
    %v7777 = vpop.f32.mrb[0].mxu0
    %v7778 = vadd.f32 %v7737, %v7777
    %v7779 = vpop.f32.mrb[0].mxu0
    %v7780 = vpop.f32.mrb[0].mxu0
    %7781 = vdwg.mxu0
    %7782 = vmatprep.subr.bf16.mxu0 %v5431
    %7783 = vmatpush1.bf16.msra.mxu0 %v5430
    %7784 = vmatprep.subr.bf16.mxu0 %v5439
    %7785 = vmatpush1.bf16.msra.mxu0 %v5438
    %7786 = vmatprep.subr.bf16.mxu0 %v5447
    %7787 = vmatpush1.bf16.msra.mxu0 %v5446
    %7788 = vmatprep.subr.bf16.mxu0 %v5455
    %7789 = vmatpush1.bf16.msra.mxu0 %v5454
    %7790 = vmatprep.subr.bf16.mxu0 %v5463
    %7791 = vmatpush1.bf16.msra.mxu0 %v5462
    %7792 = vmatprep.subr.bf16.mxu0 %v5471
    %7793 = vmatpush1.bf16.msra.mxu0 %v5470
    %7794 = vmatprep.subr.bf16.mxu0 %v5479
    %7795 = vmatpush1.bf16.msra.mxu0 %v5478
    %7796 = vmatprep.subr.bf16.mxu0 %v5487
    %7797 = vmatpush1.bf16.msra.mxu0 %v5486
    %7798 = vmatprep.subr.bf16.mxu0 %v5495
    %7799 = vmatpush1.bf16.msra.mxu0 %v5494
    %7800 = vmatprep.subr.bf16.mxu0 %v5503
    %7801 = vmatpush1.bf16.msra.mxu0 %v5502
    %7802 = vmatprep.subr.bf16.mxu0 %v5511
    %7803 = vmatpush1.bf16.msra.mxu0 %v5510
    %7804 = vmatprep.subr.bf16.mxu0 %v5519
    %7805 = vmatpush1.bf16.msra.mxu0 %v5518
    %7806 = vmatprep.subr.bf16.mxu0 %v5527
    %7807 = vmatpush1.bf16.msra.mxu0 %v5526
    %7808 = vmatprep.subr.bf16.mxu0 %v5535
    %7809 = vmatpush1.bf16.msra.mxu0 %v5534
    %7810 = vmatprep.subr.bf16.mxu0 %v5543
    %7811 = vmatpush1.bf16.msra.mxu0 %v5542
    %7812 = vmatprep.subr.bf16.mxu0 %v5551
    %7813 = vmatpush1.bf16.msra.mxu0 %v5550
    %7814 = vmatprep.mubr.bf16.mxu0 %v769
    %7815 = vmatmul.mubr.bf16.gmra.mrb[0].mxu0 %v768
    %v7816 = vpop.f32.mrb[0].mxu0
    %v7817 = vadd.f32 %v7776, %v7816
    %v7818 = vpop.f32.mrb[0].mxu0
    %v7819 = vadd.f32 %v7778, %v7818
    %v7820 = vpop.f32.mrb[0].mxu0
    %v7821 = vpop.f32.mrb[0].mxu0
    %7822 = vdwg.mxu0
    %7823 = vmatprep.subr.bf16.mxu0 %v5559
    %7824 = vmatpush1.bf16.msra.mxu0 %v5558
    %7825 = vmatprep.subr.bf16.mxu0 %v5567
    %7826 = vmatpush1.bf16.msra.mxu0 %v5566
    %7827 = vmatprep.subr.bf16.mxu0 %v5575
    %7828 = vmatpush1.bf16.msra.mxu0 %v5574
    %7829 = vmatprep.subr.bf16.mxu0 %v5583
    %7830 = vmatpush1.bf16.msra.mxu0 %v5582
    %7831 = vmatprep.subr.bf16.mxu0 %v5591
    %7832 = vmatpush1.bf16.msra.mxu0 %v5590
    %7833 = vmatprep.subr.bf16.mxu0 %v5599
    %7834 = vmatpush1.bf16.msra.mxu0 %v5598
    %7835 = vmatprep.subr.bf16.mxu0 %v5607
    %7836 = vmatpush1.bf16.msra.mxu0 %v5606
    %7837 = vmatprep.subr.bf16.mxu0 %v5615
    %7838 = vmatpush1.bf16.msra.mxu0 %v5614
    %7839 = vmatprep.subr.bf16.mxu0 %v5623
    %7840 = vmatpush1.bf16.msra.mxu0 %v5622
    %7841 = vmatprep.subr.bf16.mxu0 %v5631
    %7842 = vmatpush1.bf16.msra.mxu0 %v5630
    %7843 = vmatprep.subr.bf16.mxu0 %v5639
    %7844 = vmatpush1.bf16.msra.mxu0 %v5638
    %7845 = vmatprep.subr.bf16.mxu0 %v5647
    %7846 = vmatpush1.bf16.msra.mxu0 %v5646
    %7847 = vmatprep.subr.bf16.mxu0 %v5655
    %7848 = vmatpush1.bf16.msra.mxu0 %v5654
    %7849 = vmatprep.subr.bf16.mxu0 %v5663
    %7850 = vmatpush1.bf16.msra.mxu0 %v5662
    %7851 = vmatprep.subr.bf16.mxu0 %v5671
    %7852 = vmatpush1.bf16.msra.mxu0 %v5670
    %7853 = vmatprep.subr.bf16.mxu0 %v5679
    %7854 = vmatpush1.bf16.msra.mxu0 %v5678
    %7855 = vmatprep.mubr.bf16.mxu0 %v771
    %7856 = vmatmul.mubr.bf16.gmra.mrb[0].mxu0 %v770
    %v7857 = vpop.f32.mrb[0].mxu0
    %v7858 = vadd.f32 %v7817, %v7857
    %v7859 = vpop.f32.mrb[0].mxu0
    %v7860 = vadd.f32 %v7819, %v7859
    %v7861 = vpop.f32.mrb[0].mxu0
    %v7862 = vpop.f32.mrb[0].mxu0
    %7863 = vdwg.mxu0
    %7864 = vmatprep.subr.bf16.mxu0 %v5687
    %7865 = vmatpush1.bf16.msra.mxu0 %v5686
    %7866 = vmatprep.subr.bf16.mxu0 %v5695
    %7867 = vmatpush1.bf16.msra.mxu0 %v5694
    %7868 = vmatprep.subr.bf16.mxu0 %v5703
    %7869 = vmatpush1.bf16.msra.mxu0 %v5702
    %7870 = vmatprep.subr.bf16.mxu0 %v5711
    %7871 = vmatpush1.bf16.msra.mxu0 %v5710
    %7872 = vmatprep.subr.bf16.mxu0 %v5719
    %7873 = vmatpush1.bf16.msra.mxu0 %v5718
    %7874 = vmatprep.subr.bf16.mxu0 %v5727
    %7875 = vmatpush1.bf16.msra.mxu0 %v5726
    %7876 = vmatprep.subr.bf16.mxu0 %v5735
    %7877 = vmatpush1.bf16.msra.mxu0 %v5734
    %7878 = vmatprep.subr.bf16.mxu0 %v5743
    %7879 = vmatpush1.bf16.msra.mxu0 %v5742
    %7880 = vmatprep.subr.bf16.mxu0 %v5751
    %7881 = vmatpush1.bf16.msra.mxu0 %v5750
    %7882 = vmatprep.subr.bf16.mxu0 %v5759
    %7883 = vmatpush1.bf16.msra.mxu0 %v5758
    %7884 = vmatprep.subr.bf16.mxu0 %v5767
    %7885 = vmatpush1.bf16.msra.mxu0 %v5766
    %7886 = vmatprep.subr.bf16.mxu0 %v5775
    %7887 = vmatpush1.bf16.msra.mxu0 %v5774
    %7888 = vmatprep.subr.bf16.mxu0 %v5783
    %7889 = vmatpush1.bf16.msra.mxu0 %v5782
    %7890 = vmatprep.subr.bf16.mxu0 %v5791
    %7891 = vmatpush1.bf16.msra.mxu0 %v5790
    %7892 = vmatprep.subr.bf16.mxu0 %v5799
    %7893 = vmatpush1.bf16.msra.mxu0 %v5798
    %7894 = vmatprep.subr.bf16.mxu0 %v5807
    %7895 = vmatpush1.bf16.msra.mxu0 %v5806
    %7896 = vmatprep.mubr.bf16.mxu0 %v773
    %7897 = vmatmul.mubr.bf16.gmra.mrb[0].mxu0 %v772
    %v7898 = vpop.f32.mrb[0].mxu0
    %v7899 = vadd.f32 %v7858, %v7898
    %v7900 = vpop.f32.mrb[0].mxu0
    %v7901 = vadd.f32 %v7860, %v7900
    %v7902 = vpop.f32.mrb[0].mxu0
    %v7903 = vpop.f32.mrb[0].mxu0
    %7904 = vdwg.mxu0
    %7905 = vmatprep.subr.bf16.mxu0 %v5815
    %7906 = vmatpush1.bf16.msra.mxu0 %v5814
    %7907 = vmatprep.subr.bf16.mxu0 %v5823
    %7908 = vmatpush1.bf16.msra.mxu0 %v5822
    %7909 = vmatprep.subr.bf16.mxu0 %v5831
    %7910 = vmatpush1.bf16.msra.mxu0 %v5830
    %7911 = vmatprep.subr.bf16.mxu0 %v5839
    %7912 = vmatpush1.bf16.msra.mxu0 %v5838
    %7913 = vmatprep.subr.bf16.mxu0 %v5847
    %7914 = vmatpush1.bf16.msra.mxu0 %v5846
    %7915 = vmatprep.subr.bf16.mxu0 %v5855
    %7916 = vmatpush1.bf16.msra.mxu0 %v5854
    %7917 = vmatprep.subr.bf16.mxu0 %v5863
    %7918 = vmatpush1.bf16.msra.mxu0 %v5862
    %7919 = vmatprep.subr.bf16.mxu0 %v5871
    %7920 = vmatpush1.bf16.msra.mxu0 %v5870
    %7921 = vmatprep.subr.bf16.mxu0 %v5879
    %7922 = vmatpush1.bf16.msra.mxu0 %v5878
    %7923 = vmatprep.subr.bf16.mxu0 %v5887
    %7924 = vmatpush1.bf16.msra.mxu0 %v5886
    %7925 = vmatprep.subr.bf16.mxu0 %v5895
    %7926 = vmatpush1.bf16.msra.mxu0 %v5894
    %7927 = vmatprep.subr.bf16.mxu0 %v5903
    %7928 = vmatpush1.bf16.msra.mxu0 %v5902
    %7929 = vmatprep.subr.bf16.mxu0 %v5911
    %7930 = vmatpush1.bf16.msra.mxu0 %v5910
    %7931 = vmatprep.subr.bf16.mxu0 %v5919
    %7932 = vmatpush1.bf16.msra.mxu0 %v5918
    %7933 = vmatprep.subr.bf16.mxu0 %v5927
    %7934 = vmatpush1.bf16.msra.mxu0 %v5926
    %7935 = vmatprep.subr.bf16.mxu0 %v5935
    %7936 = vmatpush1.bf16.msra.mxu0 %v5934
    %7937 = vmatprep.mubr.bf16.mxu0 %v775
    %7938 = vmatmul.mubr.bf16.gmra.mrb[0].mxu0 %v774
    %v7939 = vpop.f32.mrb[0].mxu0
    %v7940 = vadd.f32 %v7899, %v7939
    %v7941 = vpop.f32.mrb[0].mxu0
    %v7942 = vadd.f32 %v7901, %v7941
    %v7943 = vpop.f32.mrb[0].mxu0
    %v7944 = vpop.f32.mrb[0].mxu0
    %7945 = vdwg.mxu0
    %7946 = vmatprep.subr.bf16.mxu0 %v4921
    %7947 = vmatpush1.bf16.msra.mxu0 %v4920
    %7948 = vmatprep.subr.bf16.mxu0 %v4929
    %7949 = vmatpush1.bf16.msra.mxu0 %v4928
    %7950 = vmatprep.subr.bf16.mxu0 %v4937
    %7951 = vmatpush1.bf16.msra.mxu0 %v4936
    %7952 = vmatprep.subr.bf16.mxu0 %v4945
    %7953 = vmatpush1.bf16.msra.mxu0 %v4944
    %7954 = vmatprep.subr.bf16.mxu0 %v4953
    %7955 = vmatpush1.bf16.msra.mxu0 %v4952
    %7956 = vmatprep.subr.bf16.mxu0 %v4961
    %7957 = vmatpush1.bf16.msra.mxu0 %v4960
    %7958 = vmatprep.subr.bf16.mxu0 %v4969
    %7959 = vmatpush1.bf16.msra.mxu0 %v4968
    %7960 = vmatprep.subr.bf16.mxu0 %v4977
    %7961 = vmatpush1.bf16.msra.mxu0 %v4976
    %7962 = vmatprep.subr.bf16.mxu0 %v4985
    %7963 = vmatpush1.bf16.msra.mxu0 %v4984
    %7964 = vmatprep.subr.bf16.mxu0 %v4993
    %7965 = vmatpush1.bf16.msra.mxu0 %v4992
    %7966 = vmatprep.subr.bf16.mxu0 %v5001
    %7967 = vmatpush1.bf16.msra.mxu0 %v5000
    %7968 = vmatprep.subr.bf16.mxu0 %v5009
    %7969 = vmatpush1.bf16.msra.mxu0 %v5008
    %7970 = vmatprep.subr.bf16.mxu0 %v5017
    %7971 = vmatpush1.bf16.msra.mxu0 %v5016
    %7972 = vmatprep.subr.bf16.mxu0 %v5025
    %7973 = vmatpush1.bf16.msra.mxu0 %v5024
    %7974 = vmatprep.subr.bf16.mxu0 %v5033
    %7975 = vmatpush1.bf16.msra.mxu0 %v5032
    %7976 = vmatprep.subr.bf16.mxu0 %v5041
    %7977 = vmatpush1.bf16.msra.mxu0 %v5040
    %7978 = vmatprep.mubr.bf16.mxu0 %v761
    %7979 = vmatmul.mubr.bf16.gmra.mrb[0].mxu0 %v760
    %v7980 = vpop.f32.mrb[0].mxu0
    %v7981 = vadd.f32 %v1829, %v7980
    %v7982 = vpop.f32.mrb[0].mxu0
    %v7983 = vadd.f32 %v1833, %v7982
    %v7984 = vpop.f32.mrb[0].mxu0
    %v7985 = vpop.f32.mrb[0].mxu0
    %7986 = vdwg.mxu0
    %7987 = vmatprep.subr.bf16.mxu0 %v5049
    %7988 = vmatpush1.bf16.msra.mxu0 %v5048
    %7989 = vmatprep.subr.bf16.mxu0 %v5057
    %7990 = vmatpush1.bf16.msra.mxu0 %v5056
    %7991 = vmatprep.subr.bf16.mxu0 %v5065
    %7992 = vmatpush1.bf16.msra.mxu0 %v5064
    %7993 = vmatprep.subr.bf16.mxu0 %v5073
    %7994 = vmatpush1.bf16.msra.mxu0 %v5072
    %7995 = vmatprep.subr.bf16.mxu0 %v5081
    %7996 = vmatpush1.bf16.msra.mxu0 %v5080
    %7997 = vmatprep.subr.bf16.mxu0 %v5089
    %7998 = vmatpush1.bf16.msra.mxu0 %v5088
    %7999 = vmatprep.subr.bf16.mxu0 %v5097
    %8000 = vmatpush1.bf16.msra.mxu0 %v5096
    %8001 = vmatprep.subr.bf16.mxu0 %v5105
    %8002 = vmatpush1.bf16.msra.mxu0 %v5104
    %8003 = vmatprep.subr.bf16.mxu0 %v5113
    %8004 = vmatpush1.bf16.msra.mxu0 %v5112
    %8005 = vmatprep.subr.bf16.mxu0 %v5121
    %8006 = vmatpush1.bf16.msra.mxu0 %v5120
    %8007 = vmatprep.subr.bf16.mxu0 %v5129
    %8008 = vmatpush1.bf16.msra.mxu0 %v5128
    %8009 = vmatprep.subr.bf16.mxu0 %v5137
    %8010 = vmatpush1.bf16.msra.mxu0 %v5136
    %8011 = vmatprep.subr.bf16.mxu0 %v5145
    %8012 = vmatpush1.bf16.msra.mxu0 %v5144
    %8013 = vmatprep.subr.bf16.mxu0 %v5153
    %8014 = vmatpush1.bf16.msra.mxu0 %v5152
    %8015 = vmatprep.subr.bf16.mxu0 %v5161
    %8016 = vmatpush1.bf16.msra.mxu0 %v5160
    %8017 = vmatprep.subr.bf16.mxu0 %v5169
    %8018 = vmatpush1.bf16.msra.mxu0 %v5168
    %8019 = vmatprep.mubr.bf16.mxu0 %v763
    %8020 = vmatmul.mubr.bf16.gmra.mrb[0].mxu0 %v762
    %v8021 = vpop.f32.mrb[0].mxu0
    %v8022 = vadd.f32 %v7981, %v8021
    %v8023 = vpop.f32.mrb[0].mxu0
    %v8024 = vadd.f32 %v7983, %v8023
    %v8025 = vpop.f32.mrb[0].mxu0
    %v8026 = vpop.f32.mrb[0].mxu0
    %8027 = vdwg.mxu0
    %8028 = vmatprep.subr.bf16.mxu0 %v5177
    %8029 = vmatpush1.bf16.msra.mxu0 %v5176
    %8030 = vmatprep.subr.bf16.mxu0 %v5185
    %8031 = vmatpush1.bf16.msra.mxu0 %v5184
    %8032 = vmatprep.subr.bf16.mxu0 %v5193
    %8033 = vmatpush1.bf16.msra.mxu0 %v5192
    %8034 = vmatprep.subr.bf16.mxu0 %v5201
    %8035 = vmatpush1.bf16.msra.mxu0 %v5200
    %8036 = vmatprep.subr.bf16.mxu0 %v5209
    %8037 = vmatpush1.bf16.msra.mxu0 %v5208
    %8038 = vmatprep.subr.bf16.mxu0 %v5217
    %8039 = vmatpush1.bf16.msra.mxu0 %v5216
    %8040 = vmatprep.subr.bf16.mxu0 %v5225
    %8041 = vmatpush1.bf16.msra.mxu0 %v5224
    %8042 = vmatprep.subr.bf16.mxu0 %v5233
    %8043 = vmatpush1.bf16.msra.mxu0 %v5232
    %8044 = vmatprep.subr.bf16.mxu0 %v5241
    %8045 = vmatpush1.bf16.msra.mxu0 %v5240
    %8046 = vmatprep.subr.bf16.mxu0 %v5249
    %8047 = vmatpush1.bf16.msra.mxu0 %v5248
    %8048 = vmatprep.subr.bf16.mxu0 %v5257
    %8049 = vmatpush1.bf16.msra.mxu0 %v5256
    %8050 = vmatprep.subr.bf16.mxu0 %v5265
    %8051 = vmatpush1.bf16.msra.mxu0 %v5264
    %8052 = vmatprep.subr.bf16.mxu0 %v5273
    %8053 = vmatpush1.bf16.msra.mxu0 %v5272
    %8054 = vmatprep.subr.bf16.mxu0 %v5281
    %8055 = vmatpush1.bf16.msra.mxu0 %v5280
    %8056 = vmatprep.subr.bf16.mxu0 %v5289
    %8057 = vmatpush1.bf16.msra.mxu0 %v5288
    %8058 = vmatprep.subr.bf16.mxu0 %v5297
    %8059 = vmatpush1.bf16.msra.mxu0 %v5296
    %8060 = vmatprep.mubr.bf16.mxu0 %v765
    %8061 = vmatmul.mubr.bf16.gmra.mrb[0].mxu0 %v764
    %v8062 = vpop.f32.mrb[0].mxu0
    %v8063 = vadd.f32 %v8022, %v8062
    %v8064 = vpop.f32.mrb[0].mxu0
    %v8065 = vadd.f32 %v8024, %v8064
    %v8066 = vpop.f32.mrb[0].mxu0
    %v8067 = vpop.f32.mrb[0].mxu0
    %8068 = vdwg.mxu0
    %8069 = vmatprep.subr.bf16.mxu0 %v5305
    %8070 = vmatpush1.bf16.msra.mxu0 %v5304
    %8071 = vmatprep.subr.bf16.mxu0 %v5313
    %8072 = vmatpush1.bf16.msra.mxu0 %v5312
    %8073 = vmatprep.subr.bf16.mxu0 %v5321
    %8074 = vmatpush1.bf16.msra.mxu0 %v5320
    %8075 = vmatprep.subr.bf16.mxu0 %v5329
    %8076 = vmatpush1.bf16.msra.mxu0 %v5328
    %8077 = vmatprep.subr.bf16.mxu0 %v5337
    %8078 = vmatpush1.bf16.msra.mxu0 %v5336
    %8079 = vmatprep.subr.bf16.mxu0 %v5345
    %8080 = vmatpush1.bf16.msra.mxu0 %v5344
    %8081 = vmatprep.subr.bf16.mxu0 %v5353
    %8082 = vmatpush1.bf16.msra.mxu0 %v5352
    %8083 = vmatprep.subr.bf16.mxu0 %v5361
    %8084 = vmatpush1.bf16.msra.mxu0 %v5360
    %8085 = vmatprep.subr.bf16.mxu0 %v5369
    %8086 = vmatpush1.bf16.msra.mxu0 %v5368
    %8087 = vmatprep.subr.bf16.mxu0 %v5377
    %8088 = vmatpush1.bf16.msra.mxu0 %v5376
    %8089 = vmatprep.subr.bf16.mxu0 %v5385
    %8090 = vmatpush1.bf16.msra.mxu0 %v5384
    %8091 = vmatprep.subr.bf16.mxu0 %v5393
    %8092 = vmatpush1.bf16.msra.mxu0 %v5392
    %8093 = vmatprep.subr.bf16.mxu0 %v5401
    %8094 = vmatpush1.bf16.msra.mxu0 %v5400
    %8095 = vmatprep.subr.bf16.mxu0 %v5409
    %8096 = vmatpush1.bf16.msra.mxu0 %v5408
    %8097 = vmatprep.subr.bf16.mxu0 %v5417
    %8098 = vmatpush1.bf16.msra.mxu0 %v5416
    %8099 = vmatprep.subr.bf16.mxu0 %v5425
    %8100 = vmatpush1.bf16.msra.mxu0 %v5424
    %8101 = vmatprep.mubr.bf16.mxu0 %v767
    %8102 = vmatmul.mubr.bf16.gmra.mrb[0].mxu0 %v766
    %v8103 = vpop.f32.mrb[0].mxu0
    %v8104 = vadd.f32 %v8063, %v8103
    %v8105 = vpop.f32.mrb[0].mxu0
    %v8106 = vadd.f32 %v8065, %v8105
    %v8107 = vpop.f32.mrb[0].mxu0
    %v8108 = vpop.f32.mrb[0].mxu0
    %8109 = vdwg.mxu0
    %8110 = vmatprep.subr.bf16.mxu0 %v5433
    %8111 = vmatpush1.bf16.msra.mxu0 %v5432
    %8112 = vmatprep.subr.bf16.mxu0 %v5441
    %8113 = vmatpush1.bf16.msra.mxu0 %v5440
    %8114 = vmatprep.subr.bf16.mxu0 %v5449
    %8115 = vmatpush1.bf16.msra.mxu0 %v5448
    %8116 = vmatprep.subr.bf16.mxu0 %v5457
    %8117 = vmatpush1.bf16.msra.mxu0 %v5456
    %8118 = vmatprep.subr.bf16.mxu0 %v5465
    %8119 = vmatpush1.bf16.msra.mxu0 %v5464
    %8120 = vmatprep.subr.bf16.mxu0 %v5473
    %8121 = vmatpush1.bf16.msra.mxu0 %v5472
    %8122 = vmatprep.subr.bf16.mxu0 %v5481
    %8123 = vmatpush1.bf16.msra.mxu0 %v5480
    %8124 = vmatprep.subr.bf16.mxu0 %v5489
    %8125 = vmatpush1.bf16.msra.mxu0 %v5488
    %8126 = vmatprep.subr.bf16.mxu0 %v5497
    %8127 = vmatpush1.bf16.msra.mxu0 %v5496
    %8128 = vmatprep.subr.bf16.mxu0 %v5505
    %8129 = vmatpush1.bf16.msra.mxu0 %v5504
    %8130 = vmatprep.subr.bf16.mxu0 %v5513
    %8131 = vmatpush1.bf16.msra.mxu0 %v5512
    %8132 = vmatprep.subr.bf16.mxu0 %v5521
    %8133 = vmatpush1.bf16.msra.mxu0 %v5520
    %8134 = vmatprep.subr.bf16.mxu0 %v5529
    %8135 = vmatpush1.bf16.msra.mxu0 %v5528
    %8136 = vmatprep.subr.bf16.mxu0 %v5537
    %8137 = vmatpush1.bf16.msra.mxu0 %v5536
    %8138 = vmatprep.subr.bf16.mxu0 %v5545
    %8139 = vmatpush1.bf16.msra.mxu0 %v5544
    %8140 = vmatprep.subr.bf16.mxu0 %v5553
    %8141 = vmatpush1.bf16.msra.mxu0 %v5552
    %8142 = vmatprep.mubr.bf16.mxu0 %v769
    %8143 = vmatmul.mubr.bf16.gmra.mrb[0].mxu0 %v768
    %v8144 = vpop.f32.mrb[0].mxu0
    %v8145 = vadd.f32 %v8104, %v8144
    %v8146 = vpop.f32.mrb[0].mxu0
    %v8147 = vadd.f32 %v8106, %v8146
    %v8148 = vpop.f32.mrb[0].mxu0
    %v8149 = vpop.f32.mrb[0].mxu0
    %8150 = vdwg.mxu0
    %8151 = vmatprep.subr.bf16.mxu0 %v5561
    %8152 = vmatpush1.bf16.msra.mxu0 %v5560
    %8153 = vmatprep.subr.bf16.mxu0 %v5569
    %8154 = vmatpush1.bf16.msra.mxu0 %v5568
    %8155 = vmatprep.subr.bf16.mxu0 %v5577
    %8156 = vmatpush1.bf16.msra.mxu0 %v5576
    %8157 = vmatprep.subr.bf16.mxu0 %v5585
    %8158 = vmatpush1.bf16.msra.mxu0 %v5584
    %8159 = vmatprep.subr.bf16.mxu0 %v5593
    %8160 = vmatpush1.bf16.msra.mxu0 %v5592
    %8161 = vmatprep.subr.bf16.mxu0 %v5601
    %8162 = vmatpush1.bf16.msra.mxu0 %v5600
    %8163 = vmatprep.subr.bf16.mxu0 %v5609
    %8164 = vmatpush1.bf16.msra.mxu0 %v5608
    %8165 = vmatprep.subr.bf16.mxu0 %v5617
    %8166 = vmatpush1.bf16.msra.mxu0 %v5616
    %8167 = vmatprep.subr.bf16.mxu0 %v5625
    %8168 = vmatpush1.bf16.msra.mxu0 %v5624
    %8169 = vmatprep.subr.bf16.mxu0 %v5633
    %8170 = vmatpush1.bf16.msra.mxu0 %v5632
    %8171 = vmatprep.subr.bf16.mxu0 %v5641
    %8172 = vmatpush1.bf16.msra.mxu0 %v5640
    %8173 = vmatprep.subr.bf16.mxu0 %v5649
    %8174 = vmatpush1.bf16.msra.mxu0 %v5648
    %8175 = vmatprep.subr.bf16.mxu0 %v5657
    %8176 = vmatpush1.bf16.msra.mxu0 %v5656
    %8177 = vmatprep.subr.bf16.mxu0 %v5665
    %8178 = vmatpush1.bf16.msra.mxu0 %v5664
    %8179 = vmatprep.subr.bf16.mxu0 %v5673
    %8180 = vmatpush1.bf16.msra.mxu0 %v5672
    %8181 = vmatprep.subr.bf16.mxu0 %v5681
    %8182 = vmatpush1.bf16.msra.mxu0 %v5680
    %8183 = vmatprep.mubr.bf16.mxu0 %v771
    %8184 = vmatmul.mubr.bf16.gmra.mrb[0].mxu0 %v770
    %v8185 = vpop.f32.mrb[0].mxu0
    %v8186 = vadd.f32 %v8145, %v8185
    %v8187 = vpop.f32.mrb[0].mxu0
    %v8188 = vadd.f32 %v8147, %v8187
    %v8189 = vpop.f32.mrb[0].mxu0
    %v8190 = vpop.f32.mrb[0].mxu0
    %8191 = vdwg.mxu0
    %8192 = vmatprep.subr.bf16.mxu0 %v5689
    %8193 = vmatpush1.bf16.msra.mxu0 %v5688
    %8194 = vmatprep.subr.bf16.mxu0 %v5697
    %8195 = vmatpush1.bf16.msra.mxu0 %v5696
    %8196 = vmatprep.subr.bf16.mxu0 %v5705
    %8197 = vmatpush1.bf16.msra.mxu0 %v5704
    %8198 = vmatprep.subr.bf16.mxu0 %v5713
    %8199 = vmatpush1.bf16.msra.mxu0 %v5712
    %8200 = vmatprep.subr.bf16.mxu0 %v5721
    %8201 = vmatpush1.bf16.msra.mxu0 %v5720
    %8202 = vmatprep.subr.bf16.mxu0 %v5729
    %8203 = vmatpush1.bf16.msra.mxu0 %v5728
    %8204 = vmatprep.subr.bf16.mxu0 %v5737
    %8205 = vmatpush1.bf16.msra.mxu0 %v5736
    %8206 = vmatprep.subr.bf16.mxu0 %v5745
    %8207 = vmatpush1.bf16.msra.mxu0 %v5744
    %8208 = vmatprep.subr.bf16.mxu0 %v5753
    %8209 = vmatpush1.bf16.msra.mxu0 %v5752
    %8210 = vmatprep.subr.bf16.mxu0 %v5761
    %8211 = vmatpush1.bf16.msra.mxu0 %v5760
    %8212 = vmatprep.subr.bf16.mxu0 %v5769
    %8213 = vmatpush1.bf16.msra.mxu0 %v5768
    %8214 = vmatprep.subr.bf16.mxu0 %v5777
    %8215 = vmatpush1.bf16.msra.mxu0 %v5776
    %8216 = vmatprep.subr.bf16.mxu0 %v5785
    %8217 = vmatpush1.bf16.msra.mxu0 %v5784
    %8218 = vmatprep.subr.bf16.mxu0 %v5793
    %8219 = vmatpush1.bf16.msra.mxu0 %v5792
    %8220 = vmatprep.subr.bf16.mxu0 %v5801
    %8221 = vmatpush1.bf16.msra.mxu0 %v5800
    %8222 = vmatprep.subr.bf16.mxu0 %v5809
    %8223 = vmatpush1.bf16.msra.mxu0 %v5808
    %8224 = vmatprep.mubr.bf16.mxu0 %v773
    %8225 = vmatmul.mubr.bf16.gmra.mrb[0].mxu0 %v772
    %v8226 = vpop.f32.mrb[0].mxu0
    %v8227 = vadd.f32 %v8186, %v8226
    %v8228 = vpop.f32.mrb[0].mxu0
    %v8229 = vadd.f32 %v8188, %v8228
    %v8230 = vpop.f32.mrb[0].mxu0
    %v8231 = vpop.f32.mrb[0].mxu0
    %8232 = vdwg.mxu0
    %8233 = vmatprep.subr.bf16.mxu0 %v5817
    %8234 = vmatpush1.bf16.msra.mxu0 %v5816
    %8235 = vmatprep.subr.bf16.mxu0 %v5825
    %8236 = vmatpush1.bf16.msra.mxu0 %v5824
    %8237 = vmatprep.subr.bf16.mxu0 %v5833
    %8238 = vmatpush1.bf16.msra.mxu0 %v5832
    %8239 = vmatprep.subr.bf16.mxu0 %v5841
    %8240 = vmatpush1.bf16.msra.mxu0 %v5840
    %8241 = vmatprep.subr.bf16.mxu0 %v5849
    %8242 = vmatpush1.bf16.msra.mxu0 %v5848
    %8243 = vmatprep.subr.bf16.mxu0 %v5857
    %8244 = vmatpush1.bf16.msra.mxu0 %v5856
    %8245 = vmatprep.subr.bf16.mxu0 %v5865
    %8246 = vmatpush1.bf16.msra.mxu0 %v5864
    %8247 = vmatprep.subr.bf16.mxu0 %v5873
    %8248 = vmatpush1.bf16.msra.mxu0 %v5872
    %8249 = vmatprep.subr.bf16.mxu0 %v5881
    %8250 = vmatpush1.bf16.msra.mxu0 %v5880
    %8251 = vmatprep.subr.bf16.mxu0 %v5889
    %8252 = vmatpush1.bf16.msra.mxu0 %v5888
    %8253 = vmatprep.subr.bf16.mxu0 %v5897
    %8254 = vmatpush1.bf16.msra.mxu0 %v5896
    %8255 = vmatprep.subr.bf16.mxu0 %v5905
    %8256 = vmatpush1.bf16.msra.mxu0 %v5904
    %8257 = vmatprep.subr.bf16.mxu0 %v5913
    %8258 = vmatpush1.bf16.msra.mxu0 %v5912
    %8259 = vmatprep.subr.bf16.mxu0 %v5921
    %8260 = vmatpush1.bf16.msra.mxu0 %v5920
    %8261 = vmatprep.subr.bf16.mxu0 %v5929
    %8262 = vmatpush1.bf16.msra.mxu0 %v5928
    %8263 = vmatprep.subr.bf16.mxu0 %v5937
    %8264 = vmatpush1.bf16.msra.mxu0 %v5936
    %8265 = vmatprep.mubr.bf16.mxu0 %v775
    %8266 = vmatmul.mubr.bf16.gmra.mrb[0].mxu0 %v774
    %v8267 = vpop.f32.mrb[0].mxu0
    %v8268 = vadd.f32 %v8227, %v8267
    %v8269 = vpop.f32.mrb[0].mxu0
    %v8270 = vadd.f32 %v8229, %v8269
    %v8271 = vpop.f32.mrb[0].mxu0
    %v8272 = vpop.f32.mrb[0].mxu0
    %8273 = vdwg.mxu0
    %v8274 = vmax.f32 %v7284, 0.0
    %v8275 = vmax.f32 %v7286, 0.0
    %v8276 = vmax.f32 %v7612, 0.0
    %v8277 = vmax.f32 %v7614, 0.0
    %v8278 = vmax.f32 %v7940, 0.0
    %v8279 = vmax.f32 %v7942, 0.0
    %v8280 = vmax.f32 %v8268, 0.0
    %v8281 = vmax.f32 %v8270, 0.0
    %v8282 = vpack.c.bf16 %v8274, %v8274
    %v8283 = vpack.c.bf16 %v8275, %v8275
    %v8284 = vpack.c.bf16 %v8276, %v8276
    %v8285 = vpack.c.bf16 %v8277, %v8277
    %v8286 = vpack.c.bf16 %v8278, %v8278
    %v8287 = vpack.c.bf16 %v8279, %v8279
    %v8288 = vpack.c.bf16 %v8280, %v8280
    %v8289 = vpack.c.bf16 %v8281, %v8281
    %v8290 = vld [vmem:[#allocation9] sm:$0xff]
    %v8291 = vld [vmem:[#allocation9 + $0x8] sm:$0xff]
    %v8292 = vld [vmem:[#allocation9 + $0x10] sm:$0xff]
    %v8293 = vld [vmem:[#allocation9 + $0x18] sm:$0xff]
    %v8294 = vld [vmem:[#allocation9 + $0x20] sm:$0xff]
    %v8295 = vld [vmem:[#allocation9 + $0x28] sm:$0xff]
    %v8296 = vld [vmem:[#allocation9 + $0x30] sm:$0xff]
    %v8297 = vld [vmem:[#allocation9 + $0x38] sm:$0xff]
    %v8298 = vld [vmem:[#allocation9 + $0x40] sm:$0xff]
    %v8299 = vld [vmem:[#allocation9 + $0x48] sm:$0xff]
    %v8300 = vld [vmem:[#allocation9 + $0x50] sm:$0xff]
    %v8301 = vld [vmem:[#allocation9 + $0x58] sm:$0xff]
    %v8302 = vld [vmem:[#allocation9 + $0x60] sm:$0xff]
    %v8303 = vld [vmem:[#allocation9 + $0x68] sm:$0xff]
    %v8304 = vld [vmem:[#allocation9 + $0x70] sm:$0xff]
    %v8305 = vld [vmem:[#allocation9 + $0x78] sm:$0xff]
    %v8306 = vld [vmem:[#allocation9 + $0x80] sm:$0xff]
    %v8307 = vld [vmem:[#allocation9 + $0x88] sm:$0xff]
    %v8308 = vld [vmem:[#allocation9 + $0x90] sm:$0xff]
    %v8309 = vld [vmem:[#allocation9 + $0x98] sm:$0xff]
    %v8310 = vld [vmem:[#allocation9 + $0xa0] sm:$0xff]
    %v8311 = vld [vmem:[#allocation9 + $0xa8] sm:$0xff]
    %v8312 = vld [vmem:[#allocation9 + $0xb0] sm:$0xff]
    %v8313 = vld [vmem:[#allocation9 + $0xb8] sm:$0xff]
    %v8314 = vld [vmem:[#allocation9 + $0xc0] sm:$0xff]
    %v8315 = vld [vmem:[#allocation9 + $0xc8] sm:$0xff]
    %v8316 = vld [vmem:[#allocation9 + $0xd0] sm:$0xff]
    %v8317 = vld [vmem:[#allocation9 + $0xd8] sm:$0xff]
    %v8318 = vld [vmem:[#allocation9 + $0xe0] sm:$0xff]
    %v8319 = vld [vmem:[#allocation9 + $0xe8] sm:$0xff]
    %v8320 = vld [vmem:[#allocation9 + $0xf0] sm:$0xff]
    %v8321 = vld [vmem:[#allocation9 + $0xf8] sm:$0xff]
    %v8322 = vld [vmem:[#allocation9 + $0x100] sm:$0xff]
    %v8323 = vld [vmem:[#allocation9 + $0x108] sm:$0xff]
    %v8324 = vld [vmem:[#allocation9 + $0x110] sm:$0xff]
    %v8325 = vld [vmem:[#allocation9 + $0x118] sm:$0xff]
    %v8326 = vld [vmem:[#allocation9 + $0x120] sm:$0xff]
    %v8327 = vld [vmem:[#allocation9 + $0x128] sm:$0xff]
    %v8328 = vld [vmem:[#allocation9 + $0x130] sm:$0xff]
    %v8329 = vld [vmem:[#allocation9 + $0x138] sm:$0xff]
    %v8330 = vld [vmem:[#allocation9 + $0x140] sm:$0xff]
    %v8331 = vld [vmem:[#allocation9 + $0x148] sm:$0xff]
    %v8332 = vld [vmem:[#allocation9 + $0x150] sm:$0xff]
    %v8333 = vld [vmem:[#allocation9 + $0x158] sm:$0xff]
    %v8334 = vld [vmem:[#allocation9 + $0x160] sm:$0xff]
    %v8335 = vld [vmem:[#allocation9 + $0x168] sm:$0xff]
    %v8336 = vld [vmem:[#allocation9 + $0x170] sm:$0xff]
    %v8337 = vld [vmem:[#allocation9 + $0x178] sm:$0xff]
    %v8338 = vld [vmem:[#allocation9 + $0x180] sm:$0xff]
    %v8339 = vld [vmem:[#allocation9 + $0x188] sm:$0xff]
    %v8340 = vld [vmem:[#allocation9 + $0x190] sm:$0xff]
    %v8341 = vld [vmem:[#allocation9 + $0x198] sm:$0xff]
    %v8342 = vld [vmem:[#allocation9 + $0x1a0] sm:$0xff]
    %v8343 = vld [vmem:[#allocation9 + $0x1a8] sm:$0xff]
    %v8344 = vld [vmem:[#allocation9 + $0x1b0] sm:$0xff]
    %v8345 = vld [vmem:[#allocation9 + $0x1b8] sm:$0xff]
    %v8346 = vld [vmem:[#allocation9 + $0x1c0] sm:$0xff]
    %v8347 = vld [vmem:[#allocation9 + $0x1c8] sm:$0xff]
    %v8348 = vld [vmem:[#allocation9 + $0x1d0] sm:$0xff]
    %v8349 = vld [vmem:[#allocation9 + $0x1d8] sm:$0xff]
    %v8350 = vld [vmem:[#allocation9 + $0x1e0] sm:$0xff]
    %v8351 = vld [vmem:[#allocation9 + $0x1e8] sm:$0xff]
    %v8352 = vld [vmem:[#allocation9 + $0x1f0] sm:$0xff]
    %v8353 = vld [vmem:[#allocation9 + $0x1f8] sm:$0xff]
    %v8354 = vld [vmem:[#allocation9 + $0x200] sm:$0xff]
    %v8355 = vld [vmem:[#allocation9 + $0x208] sm:$0xff]
    %v8356 = vld [vmem:[#allocation9 + $0x210] sm:$0xff]
    %v8357 = vld [vmem:[#allocation9 + $0x218] sm:$0xff]
    %v8358 = vld [vmem:[#allocation9 + $0x220] sm:$0xff]
    %v8359 = vld [vmem:[#allocation9 + $0x228] sm:$0xff]
    %v8360 = vld [vmem:[#allocation9 + $0x230] sm:$0xff]
    %v8361 = vld [vmem:[#allocation9 + $0x238] sm:$0xff]
    %v8362 = vld [vmem:[#allocation9 + $0x240] sm:$0xff]
    %v8363 = vld [vmem:[#allocation9 + $0x248] sm:$0xff]
    %v8364 = vld [vmem:[#allocation9 + $0x250] sm:$0xff]
    %v8365 = vld [vmem:[#allocation9 + $0x258] sm:$0xff]
    %v8366 = vld [vmem:[#allocation9 + $0x260] sm:$0xff]
    %v8367 = vld [vmem:[#allocation9 + $0x268] sm:$0xff]
    %v8368 = vld [vmem:[#allocation9 + $0x270] sm:$0xff]
    %v8369 = vld [vmem:[#allocation9 + $0x278] sm:$0xff]
    %v8370 = vld [vmem:[#allocation9 + $0x280] sm:$0xff]
    %v8371 = vld [vmem:[#allocation9 + $0x288] sm:$0xff]
    %v8372 = vld [vmem:[#allocation9 + $0x290] sm:$0xff]
    %v8373 = vld [vmem:[#allocation9 + $0x298] sm:$0xff]
    %v8374 = vld [vmem:[#allocation9 + $0x2a0] sm:$0xff]
    %v8375 = vld [vmem:[#allocation9 + $0x2a8] sm:$0xff]
    %v8376 = vld [vmem:[#allocation9 + $0x2b0] sm:$0xff]
    %v8377 = vld [vmem:[#allocation9 + $0x2b8] sm:$0xff]
    %v8378 = vld [vmem:[#allocation9 + $0x2c0] sm:$0xff]
    %v8379 = vld [vmem:[#allocation9 + $0x2c8] sm:$0xff]
    %v8380 = vld [vmem:[#allocation9 + $0x2d0] sm:$0xff]
    %v8381 = vld [vmem:[#allocation9 + $0x2d8] sm:$0xff]
    %v8382 = vld [vmem:[#allocation9 + $0x2e0] sm:$0xff]
    %v8383 = vld [vmem:[#allocation9 + $0x2e8] sm:$0xff]
    %v8384 = vld [vmem:[#allocation9 + $0x2f0] sm:$0xff]
    %v8385 = vld [vmem:[#allocation9 + $0x2f8] sm:$0xff]
    %v8386 = vld [vmem:[#allocation9 + $0x300] sm:$0xff]
    %v8387 = vld [vmem:[#allocation9 + $0x308] sm:$0xff]
    %v8388 = vld [vmem:[#allocation9 + $0x310] sm:$0xff]
    %v8389 = vld [vmem:[#allocation9 + $0x318] sm:$0xff]
    %v8390 = vld [vmem:[#allocation9 + $0x320] sm:$0xff]
    %v8391 = vld [vmem:[#allocation9 + $0x328] sm:$0xff]
    %v8392 = vld [vmem:[#allocation9 + $0x330] sm:$0xff]
    %v8393 = vld [vmem:[#allocation9 + $0x338] sm:$0xff]
    %v8394 = vld [vmem:[#allocation9 + $0x340] sm:$0xff]
    %v8395 = vld [vmem:[#allocation9 + $0x348] sm:$0xff]
    %v8396 = vld [vmem:[#allocation9 + $0x350] sm:$0xff]
    %v8397 = vld [vmem:[#allocation9 + $0x358] sm:$0xff]
    %v8398 = vld [vmem:[#allocation9 + $0x360] sm:$0xff]
    %v8399 = vld [vmem:[#allocation9 + $0x368] sm:$0xff]
    %v8400 = vld [vmem:[#allocation9 + $0x370] sm:$0xff]
    %v8401 = vld [vmem:[#allocation9 + $0x378] sm:$0xff]
    %v8402 = vld [vmem:[#allocation9 + $0x380] sm:$0xff]
    %v8403 = vld [vmem:[#allocation9 + $0x388] sm:$0xff]
    %v8404 = vld [vmem:[#allocation9 + $0x390] sm:$0xff]
    %v8405 = vld [vmem:[#allocation9 + $0x398] sm:$0xff]
    %v8406 = vld [vmem:[#allocation9 + $0x3a0] sm:$0xff]
    %v8407 = vld [vmem:[#allocation9 + $0x3a8] sm:$0xff]
    %v8408 = vld [vmem:[#allocation9 + $0x3b0] sm:$0xff]
    %v8409 = vld [vmem:[#allocation9 + $0x3b8] sm:$0xff]
    %v8410 = vld [vmem:[#allocation9 + $0x3c0] sm:$0xff]
    %v8411 = vld [vmem:[#allocation9 + $0x3c8] sm:$0xff]
    %v8412 = vld [vmem:[#allocation9 + $0x3d0] sm:$0xff]
    %v8413 = vld [vmem:[#allocation9 + $0x3d8] sm:$0xff]
    %v8414 = vld [vmem:[#allocation9 + $0x3e0] sm:$0xff]
    %v8415 = vld [vmem:[#allocation9 + $0x3e8] sm:$0xff]
    %v8416 = vld [vmem:[#allocation9 + $0x3f0] sm:$0xff]
    %v8417 = vld [vmem:[#allocation9 + $0x3f8] sm:$0xff]
    %v8418 = vld [vmem:[#allocation9 + $0x400] sm:$0xff]
    %v8419 = vld [vmem:[#allocation9 + $0x408] sm:$0xff]
    %v8420 = vld [vmem:[#allocation9 + $0x410] sm:$0xff]
    %v8421 = vld [vmem:[#allocation9 + $0x418] sm:$0xff]
    %v8422 = vld [vmem:[#allocation9 + $0x420] sm:$0xff]
    %v8423 = vld [vmem:[#allocation9 + $0x428] sm:$0xff]
    %v8424 = vld [vmem:[#allocation9 + $0x430] sm:$0xff]
    %v8425 = vld [vmem:[#allocation9 + $0x438] sm:$0xff]
    %v8426 = vld [vmem:[#allocation9 + $0x440] sm:$0xff]
    %v8427 = vld [vmem:[#allocation9 + $0x448] sm:$0xff]
    %v8428 = vld [vmem:[#allocation9 + $0x450] sm:$0xff]
    %v8429 = vld [vmem:[#allocation9 + $0x458] sm:$0xff]
    %v8430 = vld [vmem:[#allocation9 + $0x460] sm:$0xff]
    %v8431 = vld [vmem:[#allocation9 + $0x468] sm:$0xff]
    %v8432 = vld [vmem:[#allocation9 + $0x470] sm:$0xff]
    %v8433 = vld [vmem:[#allocation9 + $0x478] sm:$0xff]
    %v8434 = vld [vmem:[#allocation9 + $0x480] sm:$0xff]
    %v8435 = vld [vmem:[#allocation9 + $0x488] sm:$0xff]
    %v8436 = vld [vmem:[#allocation9 + $0x490] sm:$0xff]
    %v8437 = vld [vmem:[#allocation9 + $0x498] sm:$0xff]
    %v8438 = vld [vmem:[#allocation9 + $0x4a0] sm:$0xff]
    %v8439 = vld [vmem:[#allocation9 + $0x4a8] sm:$0xff]
    %v8440 = vld [vmem:[#allocation9 + $0x4b0] sm:$0xff]
    %v8441 = vld [vmem:[#allocation9 + $0x4b8] sm:$0xff]
    %v8442 = vld [vmem:[#allocation9 + $0x4c0] sm:$0xff]
    %v8443 = vld [vmem:[#allocation9 + $0x4c8] sm:$0xff]
    %v8444 = vld [vmem:[#allocation9 + $0x4d0] sm:$0xff]
    %v8445 = vld [vmem:[#allocation9 + $0x4d8] sm:$0xff]
    %v8446 = vld [vmem:[#allocation9 + $0x4e0] sm:$0xff]
    %v8447 = vld [vmem:[#allocation9 + $0x4e8] sm:$0xff]
    %v8448 = vld [vmem:[#allocation9 + $0x4f0] sm:$0xff]
    %v8449 = vld [vmem:[#allocation9 + $0x4f8] sm:$0xff]
    %v8450 = vld [vmem:[#allocation9 + $0x500] sm:$0xff]
    %v8451 = vld [vmem:[#allocation9 + $0x508] sm:$0xff]
    %v8452 = vld [vmem:[#allocation9 + $0x510] sm:$0xff]
    %v8453 = vld [vmem:[#allocation9 + $0x518] sm:$0xff]
    %v8454 = vld [vmem:[#allocation9 + $0x520] sm:$0xff]
    %v8455 = vld [vmem:[#allocation9 + $0x528] sm:$0xff]
    %v8456 = vld [vmem:[#allocation9 + $0x530] sm:$0xff]
    %v8457 = vld [vmem:[#allocation9 + $0x538] sm:$0xff]
    %v8458 = vld [vmem:[#allocation9 + $0x540] sm:$0xff]
    %v8459 = vld [vmem:[#allocation9 + $0x548] sm:$0xff]
    %v8460 = vld [vmem:[#allocation9 + $0x550] sm:$0xff]
    %v8461 = vld [vmem:[#allocation9 + $0x558] sm:$0xff]
    %v8462 = vld [vmem:[#allocation9 + $0x560] sm:$0xff]
    %v8463 = vld [vmem:[#allocation9 + $0x568] sm:$0xff]
    %v8464 = vld [vmem:[#allocation9 + $0x570] sm:$0xff]
    %v8465 = vld [vmem:[#allocation9 + $0x578] sm:$0xff]
    %v8466 = vld [vmem:[#allocation9 + $0x580] sm:$0xff]
    %v8467 = vld [vmem:[#allocation9 + $0x588] sm:$0xff]
    %v8468 = vld [vmem:[#allocation9 + $0x590] sm:$0xff]
    %v8469 = vld [vmem:[#allocation9 + $0x598] sm:$0xff]
    %v8470 = vld [vmem:[#allocation9 + $0x5a0] sm:$0xff]
    %v8471 = vld [vmem:[#allocation9 + $0x5a8] sm:$0xff]
    %v8472 = vld [vmem:[#allocation9 + $0x5b0] sm:$0xff]
    %v8473 = vld [vmem:[#allocation9 + $0x5b8] sm:$0xff]
    %v8474 = vld [vmem:[#allocation9 + $0x5c0] sm:$0xff]
    %v8475 = vld [vmem:[#allocation9 + $0x5c8] sm:$0xff]
    %v8476 = vld [vmem:[#allocation9 + $0x5d0] sm:$0xff]
    %v8477 = vld [vmem:[#allocation9 + $0x5d8] sm:$0xff]
    %v8478 = vld [vmem:[#allocation9 + $0x5e0] sm:$0xff]
    %v8479 = vld [vmem:[#allocation9 + $0x5e8] sm:$0xff]
    %v8480 = vld [vmem:[#allocation9 + $0x5f0] sm:$0xff]
    %v8481 = vld [vmem:[#allocation9 + $0x5f8] sm:$0xff]
    %v8482 = vld [vmem:[#allocation9 + $0x600] sm:$0xff]
    %v8483 = vld [vmem:[#allocation9 + $0x608] sm:$0xff]
    %v8484 = vld [vmem:[#allocation9 + $0x610] sm:$0xff]
    %v8485 = vld [vmem:[#allocation9 + $0x618] sm:$0xff]
    %v8486 = vld [vmem:[#allocation9 + $0x620] sm:$0xff]
    %v8487 = vld [vmem:[#allocation9 + $0x628] sm:$0xff]
    %v8488 = vld [vmem:[#allocation9 + $0x630] sm:$0xff]
    %v8489 = vld [vmem:[#allocation9 + $0x638] sm:$0xff]
    %v8490 = vld [vmem:[#allocation9 + $0x640] sm:$0xff]
    %v8491 = vld [vmem:[#allocation9 + $0x648] sm:$0xff]
    %v8492 = vld [vmem:[#allocation9 + $0x650] sm:$0xff]
    %v8493 = vld [vmem:[#allocation9 + $0x658] sm:$0xff]
    %v8494 = vld [vmem:[#allocation9 + $0x660] sm:$0xff]
    %v8495 = vld [vmem:[#allocation9 + $0x668] sm:$0xff]
    %v8496 = vld [vmem:[#allocation9 + $0x670] sm:$0xff]
    %v8497 = vld [vmem:[#allocation9 + $0x678] sm:$0xff]
    %v8498 = vld [vmem:[#allocation9 + $0x680] sm:$0xff]
    %v8499 = vld [vmem:[#allocation9 + $0x688] sm:$0xff]
    %v8500 = vld [vmem:[#allocation9 + $0x690] sm:$0xff]
    %v8501 = vld [vmem:[#allocation9 + $0x698] sm:$0xff]
    %v8502 = vld [vmem:[#allocation9 + $0x6a0] sm:$0xff]
    %v8503 = vld [vmem:[#allocation9 + $0x6a8] sm:$0xff]
    %v8504 = vld [vmem:[#allocation9 + $0x6b0] sm:$0xff]
    %v8505 = vld [vmem:[#allocation9 + $0x6b8] sm:$0xff]
    %v8506 = vld [vmem:[#allocation9 + $0x6c0] sm:$0xff]
    %v8507 = vld [vmem:[#allocation9 + $0x6c8] sm:$0xff]
    %v8508 = vld [vmem:[#allocation9 + $0x6d0] sm:$0xff]
    %v8509 = vld [vmem:[#allocation9 + $0x6d8] sm:$0xff]
    %v8510 = vld [vmem:[#allocation9 + $0x6e0] sm:$0xff]
    %v8511 = vld [vmem:[#allocation9 + $0x6e8] sm:$0xff]
    %v8512 = vld [vmem:[#allocation9 + $0x6f0] sm:$0xff]
    %v8513 = vld [vmem:[#allocation9 + $0x6f8] sm:$0xff]
    %v8514 = vld [vmem:[#allocation9 + $0x700] sm:$0xff]
    %v8515 = vld [vmem:[#allocation9 + $0x708] sm:$0xff]
    %v8516 = vld [vmem:[#allocation9 + $0x710] sm:$0xff]
    %v8517 = vld [vmem:[#allocation9 + $0x718] sm:$0xff]
    %v8518 = vld [vmem:[#allocation9 + $0x720] sm:$0xff]
    %v8519 = vld [vmem:[#allocation9 + $0x728] sm:$0xff]
    %v8520 = vld [vmem:[#allocation9 + $0x730] sm:$0xff]
    %v8521 = vld [vmem:[#allocation9 + $0x738] sm:$0xff]
    %v8522 = vld [vmem:[#allocation9 + $0x740] sm:$0xff]
    %v8523 = vld [vmem:[#allocation9 + $0x748] sm:$0xff]
    %v8524 = vld [vmem:[#allocation9 + $0x750] sm:$0xff]
    %v8525 = vld [vmem:[#allocation9 + $0x758] sm:$0xff]
    %v8526 = vld [vmem:[#allocation9 + $0x760] sm:$0xff]
    %v8527 = vld [vmem:[#allocation9 + $0x768] sm:$0xff]
    %v8528 = vld [vmem:[#allocation9 + $0x770] sm:$0xff]
    %v8529 = vld [vmem:[#allocation9 + $0x778] sm:$0xff]
    %v8530 = vld [vmem:[#allocation9 + $0x780] sm:$0xff]
    %v8531 = vld [vmem:[#allocation9 + $0x788] sm:$0xff]
    %v8532 = vld [vmem:[#allocation9 + $0x790] sm:$0xff]
    %v8533 = vld [vmem:[#allocation9 + $0x798] sm:$0xff]
    %v8534 = vld [vmem:[#allocation9 + $0x7a0] sm:$0xff]
    %v8535 = vld [vmem:[#allocation9 + $0x7a8] sm:$0xff]
    %v8536 = vld [vmem:[#allocation9 + $0x7b0] sm:$0xff]
    %v8537 = vld [vmem:[#allocation9 + $0x7b8] sm:$0xff]
    %v8538 = vld [vmem:[#allocation9 + $0x7c0] sm:$0xff]
    %v8539 = vld [vmem:[#allocation9 + $0x7c8] sm:$0xff]
    %v8540 = vld [vmem:[#allocation9 + $0x7d0] sm:$0xff]
    %v8541 = vld [vmem:[#allocation9 + $0x7d8] sm:$0xff]
    %v8542 = vld [vmem:[#allocation9 + $0x7e0] sm:$0xff]
    %v8543 = vld [vmem:[#allocation9 + $0x7e8] sm:$0xff]
    %v8544 = vld [vmem:[#allocation9 + $0x7f0] sm:$0xff]
    %v8545 = vld [vmem:[#allocation9 + $0x7f8] sm:$0xff]
    %v8546 = vld [vmem:[#allocation10] sm:$0xf]
    %v8548 = vlaneseq
    %v8549 = vshrl.u32 %v8548, 7
    %v8550 = vsub.s32 0, %v8549
    %v8551 = vrot.slane %v8546, %v8550
    %v8552 = vlaneseq
    %v8553 = vshrl.u32 %v8552, 7
    %v8554 = vsub.s32 1, %v8553
    %v8555 = vrot.slane %v8546, %v8554
    %v8556 = vlaneseq
    %v8557 = vshrl.u32 %v8556, 7
    %v8558 = vsub.s32 2, %v8557
    %v8559 = vrot.slane %v8546, %v8558
    %v8560 = vlaneseq
    %v8561 = vshrl.u32 %v8560, 7
    %v8562 = vsub.s32 3, %v8561
    %v8563 = vrot.slane %v8546, %v8562
    %v8824 = vunpack.c.l.b16 %v8290
    %v8825 = vunpack.c.h.b16 %v8290
    %v8826 = vunpack.c.l.b16 %v8291
    %v8827 = vunpack.c.h.b16 %v8291
    %v8828 = vunpack.c.l.b16 %v8292
    %v8829 = vunpack.c.h.b16 %v8292
    %v8830 = vunpack.c.l.b16 %v8293
    %v8831 = vunpack.c.h.b16 %v8293
    %v8832 = vunpack.c.l.b16 %v8294
    %v8833 = vunpack.c.h.b16 %v8294
    %v8834 = vunpack.c.l.b16 %v8295
    %v8835 = vunpack.c.h.b16 %v8295
    %v8836 = vunpack.c.l.b16 %v8296
    %v8837 = vunpack.c.h.b16 %v8296
    %v8838 = vunpack.c.l.b16 %v8297
    %v8839 = vunpack.c.h.b16 %v8297
    %v8840 = vunpack.c.l.b16 %v8298
    %v8841 = vunpack.c.h.b16 %v8298
    %v8842 = vunpack.c.l.b16 %v8299
    %v8843 = vunpack.c.h.b16 %v8299
    %v8844 = vunpack.c.l.b16 %v8300
    %v8845 = vunpack.c.h.b16 %v8300
    %v8846 = vunpack.c.l.b16 %v8301
    %v8847 = vunpack.c.h.b16 %v8301
    %v8848 = vunpack.c.l.b16 %v8302
    %v8849 = vunpack.c.h.b16 %v8302
    %v8850 = vunpack.c.l.b16 %v8303
    %v8851 = vunpack.c.h.b16 %v8303
    %v8852 = vunpack.c.l.b16 %v8304
    %v8853 = vunpack.c.h.b16 %v8304
    %v8854 = vunpack.c.l.b16 %v8305
    %v8855 = vunpack.c.h.b16 %v8305
    %v8856 = vunpack.c.l.b16 %v8306
    %v8857 = vunpack.c.h.b16 %v8306
    %v8858 = vunpack.c.l.b16 %v8307
    %v8859 = vunpack.c.h.b16 %v8307
    %v8860 = vunpack.c.l.b16 %v8308
    %v8861 = vunpack.c.h.b16 %v8308
    %v8862 = vunpack.c.l.b16 %v8309
    %v8863 = vunpack.c.h.b16 %v8309
    %v8864 = vunpack.c.l.b16 %v8310
    %v8865 = vunpack.c.h.b16 %v8310
    %v8866 = vunpack.c.l.b16 %v8311
    %v8867 = vunpack.c.h.b16 %v8311
    %v8868 = vunpack.c.l.b16 %v8312
    %v8869 = vunpack.c.h.b16 %v8312
    %v8870 = vunpack.c.l.b16 %v8313
    %v8871 = vunpack.c.h.b16 %v8313
    %v8872 = vunpack.c.l.b16 %v8314
    %v8873 = vunpack.c.h.b16 %v8314
    %v8874 = vunpack.c.l.b16 %v8315
    %v8875 = vunpack.c.h.b16 %v8315
    %v8876 = vunpack.c.l.b16 %v8316
    %v8877 = vunpack.c.h.b16 %v8316
    %v8878 = vunpack.c.l.b16 %v8317
    %v8879 = vunpack.c.h.b16 %v8317
    %v8880 = vunpack.c.l.b16 %v8318
    %v8881 = vunpack.c.h.b16 %v8318
    %v8882 = vunpack.c.l.b16 %v8319
    %v8883 = vunpack.c.h.b16 %v8319
    %v8884 = vunpack.c.l.b16 %v8320
    %v8885 = vunpack.c.h.b16 %v8320
    %v8886 = vunpack.c.l.b16 %v8321
    %v8887 = vunpack.c.h.b16 %v8321
    %v8888 = vunpack.c.l.b16 %v8322
    %v8889 = vunpack.c.h.b16 %v8322
    %v8890 = vunpack.c.l.b16 %v8323
    %v8891 = vunpack.c.h.b16 %v8323
    %v8892 = vunpack.c.l.b16 %v8324
    %v8893 = vunpack.c.h.b16 %v8324
    %v8894 = vunpack.c.l.b16 %v8325
    %v8895 = vunpack.c.h.b16 %v8325
    %v8896 = vunpack.c.l.b16 %v8326
    %v8897 = vunpack.c.h.b16 %v8326
    %v8898 = vunpack.c.l.b16 %v8327
    %v8899 = vunpack.c.h.b16 %v8327
    %v8900 = vunpack.c.l.b16 %v8328
    %v8901 = vunpack.c.h.b16 %v8328
    %v8902 = vunpack.c.l.b16 %v8329
    %v8903 = vunpack.c.h.b16 %v8329
    %v8904 = vunpack.c.l.b16 %v8330
    %v8905 = vunpack.c.h.b16 %v8330
    %v8906 = vunpack.c.l.b16 %v8331
    %v8907 = vunpack.c.h.b16 %v8331
    %v8908 = vunpack.c.l.b16 %v8332
    %v8909 = vunpack.c.h.b16 %v8332
    %v8910 = vunpack.c.l.b16 %v8333
    %v8911 = vunpack.c.h.b16 %v8333
    %v8912 = vunpack.c.l.b16 %v8334
    %v8913 = vunpack.c.h.b16 %v8334
    %v8914 = vunpack.c.l.b16 %v8335
    %v8915 = vunpack.c.h.b16 %v8335
    %v8916 = vunpack.c.l.b16 %v8336
    %v8917 = vunpack.c.h.b16 %v8336
    %v8918 = vunpack.c.l.b16 %v8337
    %v8919 = vunpack.c.h.b16 %v8337
    %v8920 = vunpack.c.l.b16 %v8338
    %v8921 = vunpack.c.h.b16 %v8338
    %v8922 = vunpack.c.l.b16 %v8339
    %v8923 = vunpack.c.h.b16 %v8339
    %v8924 = vunpack.c.l.b16 %v8340
    %v8925 = vunpack.c.h.b16 %v8340
    %v8926 = vunpack.c.l.b16 %v8341
    %v8927 = vunpack.c.h.b16 %v8341
    %v8928 = vunpack.c.l.b16 %v8342
    %v8929 = vunpack.c.h.b16 %v8342
    %v8930 = vunpack.c.l.b16 %v8343
    %v8931 = vunpack.c.h.b16 %v8343
    %v8932 = vunpack.c.l.b16 %v8344
    %v8933 = vunpack.c.h.b16 %v8344
    %v8934 = vunpack.c.l.b16 %v8345
    %v8935 = vunpack.c.h.b16 %v8345
    %v8936 = vunpack.c.l.b16 %v8346
    %v8937 = vunpack.c.h.b16 %v8346
    %v8938 = vunpack.c.l.b16 %v8347
    %v8939 = vunpack.c.h.b16 %v8347
    %v8940 = vunpack.c.l.b16 %v8348
    %v8941 = vunpack.c.h.b16 %v8348
    %v8942 = vunpack.c.l.b16 %v8349
    %v8943 = vunpack.c.h.b16 %v8349
    %v8944 = vunpack.c.l.b16 %v8350
    %v8945 = vunpack.c.h.b16 %v8350
    %v8946 = vunpack.c.l.b16 %v8351
    %v8947 = vunpack.c.h.b16 %v8351
    %v8948 = vunpack.c.l.b16 %v8352
    %v8949 = vunpack.c.h.b16 %v8352
    %v8950 = vunpack.c.l.b16 %v8353
    %v8951 = vunpack.c.h.b16 %v8353
    %v8952 = vunpack.c.l.b16 %v8354
    %v8953 = vunpack.c.h.b16 %v8354
    %v8954 = vunpack.c.l.b16 %v8355
    %v8955 = vunpack.c.h.b16 %v8355
    %v8956 = vunpack.c.l.b16 %v8356
    %v8957 = vunpack.c.h.b16 %v8356
    %v8958 = vunpack.c.l.b16 %v8357
    %v8959 = vunpack.c.h.b16 %v8357
    %v8960 = vunpack.c.l.b16 %v8358
    %v8961 = vunpack.c.h.b16 %v8358
    %v8962 = vunpack.c.l.b16 %v8359
    %v8963 = vunpack.c.h.b16 %v8359
    %v8964 = vunpack.c.l.b16 %v8360
    %v8965 = vunpack.c.h.b16 %v8360
    %v8966 = vunpack.c.l.b16 %v8361
    %v8967 = vunpack.c.h.b16 %v8361
    %v8968 = vunpack.c.l.b16 %v8362
    %v8969 = vunpack.c.h.b16 %v8362
    %v8970 = vunpack.c.l.b16 %v8363
    %v8971 = vunpack.c.h.b16 %v8363
    %v8972 = vunpack.c.l.b16 %v8364
    %v8973 = vunpack.c.h.b16 %v8364
    %v8974 = vunpack.c.l.b16 %v8365
    %v8975 = vunpack.c.h.b16 %v8365
    %v8976 = vunpack.c.l.b16 %v8366
    %v8977 = vunpack.c.h.b16 %v8366
    %v8978 = vunpack.c.l.b16 %v8367
    %v8979 = vunpack.c.h.b16 %v8367
    %v8980 = vunpack.c.l.b16 %v8368
    %v8981 = vunpack.c.h.b16 %v8368
    %v8982 = vunpack.c.l.b16 %v8369
    %v8983 = vunpack.c.h.b16 %v8369
    %v8984 = vunpack.c.l.b16 %v8370
    %v8985 = vunpack.c.h.b16 %v8370
    %v8986 = vunpack.c.l.b16 %v8371
    %v8987 = vunpack.c.h.b16 %v8371
    %v8988 = vunpack.c.l.b16 %v8372
    %v8989 = vunpack.c.h.b16 %v8372
    %v8990 = vunpack.c.l.b16 %v8373
    %v8991 = vunpack.c.h.b16 %v8373
    %v8992 = vunpack.c.l.b16 %v8374
    %v8993 = vunpack.c.h.b16 %v8374
    %v8994 = vunpack.c.l.b16 %v8375
    %v8995 = vunpack.c.h.b16 %v8375
    %v8996 = vunpack.c.l.b16 %v8376
    %v8997 = vunpack.c.h.b16 %v8376
    %v8998 = vunpack.c.l.b16 %v8377
    %v8999 = vunpack.c.h.b16 %v8377
    %v9000 = vunpack.c.l.b16 %v8378
    %v9001 = vunpack.c.h.b16 %v8378
    %v9002 = vunpack.c.l.b16 %v8379
    %v9003 = vunpack.c.h.b16 %v8379
    %v9004 = vunpack.c.l.b16 %v8380
    %v9005 = vunpack.c.h.b16 %v8380
    %v9006 = vunpack.c.l.b16 %v8381
    %v9007 = vunpack.c.h.b16 %v8381
    %v9008 = vunpack.c.l.b16 %v8382
    %v9009 = vunpack.c.h.b16 %v8382
    %v9010 = vunpack.c.l.b16 %v8383
    %v9011 = vunpack.c.h.b16 %v8383
    %v9012 = vunpack.c.l.b16 %v8384
    %v9013 = vunpack.c.h.b16 %v8384
    %v9014 = vunpack.c.l.b16 %v8385
    %v9015 = vunpack.c.h.b16 %v8385
    %v9016 = vunpack.c.l.b16 %v8386
    %v9017 = vunpack.c.h.b16 %v8386
    %v9018 = vunpack.c.l.b16 %v8387
    %v9019 = vunpack.c.h.b16 %v8387
    %v9020 = vunpack.c.l.b16 %v8388
    %v9021 = vunpack.c.h.b16 %v8388
    %v9022 = vunpack.c.l.b16 %v8389
    %v9023 = vunpack.c.h.b16 %v8389
    %v9024 = vunpack.c.l.b16 %v8390
    %v9025 = vunpack.c.h.b16 %v8390
    %v9026 = vunpack.c.l.b16 %v8391
    %v9027 = vunpack.c.h.b16 %v8391
    %v9028 = vunpack.c.l.b16 %v8392
    %v9029 = vunpack.c.h.b16 %v8392
    %v9030 = vunpack.c.l.b16 %v8393
    %v9031 = vunpack.c.h.b16 %v8393
    %v9032 = vunpack.c.l.b16 %v8394
    %v9033 = vunpack.c.h.b16 %v8394
    %v9034 = vunpack.c.l.b16 %v8395
    %v9035 = vunpack.c.h.b16 %v8395
    %v9036 = vunpack.c.l.b16 %v8396
    %v9037 = vunpack.c.h.b16 %v8396
    %v9038 = vunpack.c.l.b16 %v8397
    %v9039 = vunpack.c.h.b16 %v8397
    %v9040 = vunpack.c.l.b16 %v8398
    %v9041 = vunpack.c.h.b16 %v8398
    %v9042 = vunpack.c.l.b16 %v8399
    %v9043 = vunpack.c.h.b16 %v8399
    %v9044 = vunpack.c.l.b16 %v8400
    %v9045 = vunpack.c.h.b16 %v8400
    %v9046 = vunpack.c.l.b16 %v8401
    %v9047 = vunpack.c.h.b16 %v8401
    %v9048 = vunpack.c.l.b16 %v8402
    %v9049 = vunpack.c.h.b16 %v8402
    %v9050 = vunpack.c.l.b16 %v8403
    %v9051 = vunpack.c.h.b16 %v8403
    %v9052 = vunpack.c.l.b16 %v8404
    %v9053 = vunpack.c.h.b16 %v8404
    %v9054 = vunpack.c.l.b16 %v8405
    %v9055 = vunpack.c.h.b16 %v8405
    %v9056 = vunpack.c.l.b16 %v8406
    %v9057 = vunpack.c.h.b16 %v8406
    %v9058 = vunpack.c.l.b16 %v8407
    %v9059 = vunpack.c.h.b16 %v8407
    %v9060 = vunpack.c.l.b16 %v8408
    %v9061 = vunpack.c.h.b16 %v8408
    %v9062 = vunpack.c.l.b16 %v8409
    %v9063 = vunpack.c.h.b16 %v8409
    %v9064 = vunpack.c.l.b16 %v8410
    %v9065 = vunpack.c.h.b16 %v8410
    %v9066 = vunpack.c.l.b16 %v8411
    %v9067 = vunpack.c.h.b16 %v8411
    %v9068 = vunpack.c.l.b16 %v8412
    %v9069 = vunpack.c.h.b16 %v8412
    %v9070 = vunpack.c.l.b16 %v8413
    %v9071 = vunpack.c.h.b16 %v8413
    %v9072 = vunpack.c.l.b16 %v8414
    %v9073 = vunpack.c.h.b16 %v8414
    %v9074 = vunpack.c.l.b16 %v8415
    %v9075 = vunpack.c.h.b16 %v8415
    %v9076 = vunpack.c.l.b16 %v8416
    %v9077 = vunpack.c.h.b16 %v8416
    %v9078 = vunpack.c.l.b16 %v8417
    %v9079 = vunpack.c.h.b16 %v8417
    %v9080 = vunpack.c.l.b16 %v8418
    %v9081 = vunpack.c.h.b16 %v8418
    %v9082 = vunpack.c.l.b16 %v8419
    %v9083 = vunpack.c.h.b16 %v8419
    %v9084 = vunpack.c.l.b16 %v8420
    %v9085 = vunpack.c.h.b16 %v8420
    %v9086 = vunpack.c.l.b16 %v8421
    %v9087 = vunpack.c.h.b16 %v8421
    %v9088 = vunpack.c.l.b16 %v8422
    %v9089 = vunpack.c.h.b16 %v8422
    %v9090 = vunpack.c.l.b16 %v8423
    %v9091 = vunpack.c.h.b16 %v8423
    %v9092 = vunpack.c.l.b16 %v8424
    %v9093 = vunpack.c.h.b16 %v8424
    %v9094 = vunpack.c.l.b16 %v8425
    %v9095 = vunpack.c.h.b16 %v8425
    %v9096 = vunpack.c.l.b16 %v8426
    %v9097 = vunpack.c.h.b16 %v8426
    %v9098 = vunpack.c.l.b16 %v8427
    %v9099 = vunpack.c.h.b16 %v8427
    %v9100 = vunpack.c.l.b16 %v8428
    %v9101 = vunpack.c.h.b16 %v8428
    %v9102 = vunpack.c.l.b16 %v8429
    %v9103 = vunpack.c.h.b16 %v8429
    %v9104 = vunpack.c.l.b16 %v8430
    %v9105 = vunpack.c.h.b16 %v8430
    %v9106 = vunpack.c.l.b16 %v8431
    %v9107 = vunpack.c.h.b16 %v8431
    %v9108 = vunpack.c.l.b16 %v8432
    %v9109 = vunpack.c.h.b16 %v8432
    %v9110 = vunpack.c.l.b16 %v8433
    %v9111 = vunpack.c.h.b16 %v8433
    %v9112 = vunpack.c.l.b16 %v8434
    %v9113 = vunpack.c.h.b16 %v8434
    %v9114 = vunpack.c.l.b16 %v8435
    %v9115 = vunpack.c.h.b16 %v8435
    %v9116 = vunpack.c.l.b16 %v8436
    %v9117 = vunpack.c.h.b16 %v8436
    %v9118 = vunpack.c.l.b16 %v8437
    %v9119 = vunpack.c.h.b16 %v8437
    %v9120 = vunpack.c.l.b16 %v8438
    %v9121 = vunpack.c.h.b16 %v8438
    %v9122 = vunpack.c.l.b16 %v8439
    %v9123 = vunpack.c.h.b16 %v8439
    %v9124 = vunpack.c.l.b16 %v8440
    %v9125 = vunpack.c.h.b16 %v8440
    %v9126 = vunpack.c.l.b16 %v8441
    %v9127 = vunpack.c.h.b16 %v8441
    %v9128 = vunpack.c.l.b16 %v8442
    %v9129 = vunpack.c.h.b16 %v8442
    %v9130 = vunpack.c.l.b16 %v8443
    %v9131 = vunpack.c.h.b16 %v8443
    %v9132 = vunpack.c.l.b16 %v8444
    %v9133 = vunpack.c.h.b16 %v8444
    %v9134 = vunpack.c.l.b16 %v8445
    %v9135 = vunpack.c.h.b16 %v8445
    %v9136 = vunpack.c.l.b16 %v8446
    %v9137 = vunpack.c.h.b16 %v8446
    %v9138 = vunpack.c.l.b16 %v8447
    %v9139 = vunpack.c.h.b16 %v8447
    %v9140 = vunpack.c.l.b16 %v8448
    %v9141 = vunpack.c.h.b16 %v8448
    %v9142 = vunpack.c.l.b16 %v8449
    %v9143 = vunpack.c.h.b16 %v8449
    %v9144 = vunpack.c.l.b16 %v8450
    %v9145 = vunpack.c.h.b16 %v8450
    %v9146 = vunpack.c.l.b16 %v8451
    %v9147 = vunpack.c.h.b16 %v8451
    %v9148 = vunpack.c.l.b16 %v8452
    %v9149 = vunpack.c.h.b16 %v8452
    %v9150 = vunpack.c.l.b16 %v8453
    %v9151 = vunpack.c.h.b16 %v8453
    %v9152 = vunpack.c.l.b16 %v8454
    %v9153 = vunpack.c.h.b16 %v8454
    %v9154 = vunpack.c.l.b16 %v8455
    %v9155 = vunpack.c.h.b16 %v8455
    %v9156 = vunpack.c.l.b16 %v8456
    %v9157 = vunpack.c.h.b16 %v8456
    %v9158 = vunpack.c.l.b16 %v8457
    %v9159 = vunpack.c.h.b16 %v8457
    %v9160 = vunpack.c.l.b16 %v8458
    %v9161 = vunpack.c.h.b16 %v8458
    %v9162 = vunpack.c.l.b16 %v8459
    %v9163 = vunpack.c.h.b16 %v8459
    %v9164 = vunpack.c.l.b16 %v8460
    %v9165 = vunpack.c.h.b16 %v8460
    %v9166 = vunpack.c.l.b16 %v8461
    %v9167 = vunpack.c.h.b16 %v8461
    %v9168 = vunpack.c.l.b16 %v8462
    %v9169 = vunpack.c.h.b16 %v8462
    %v9170 = vunpack.c.l.b16 %v8463
    %v9171 = vunpack.c.h.b16 %v8463
    %v9172 = vunpack.c.l.b16 %v8464
    %v9173 = vunpack.c.h.b16 %v8464
    %v9174 = vunpack.c.l.b16 %v8465
    %v9175 = vunpack.c.h.b16 %v8465
    %v9176 = vunpack.c.l.b16 %v8466
    %v9177 = vunpack.c.h.b16 %v8466
    %v9178 = vunpack.c.l.b16 %v8467
    %v9179 = vunpack.c.h.b16 %v8467
    %v9180 = vunpack.c.l.b16 %v8468
    %v9181 = vunpack.c.h.b16 %v8468
    %v9182 = vunpack.c.l.b16 %v8469
    %v9183 = vunpack.c.h.b16 %v8469
    %v9184 = vunpack.c.l.b16 %v8470
    %v9185 = vunpack.c.h.b16 %v8470
    %v9186 = vunpack.c.l.b16 %v8471
    %v9187 = vunpack.c.h.b16 %v8471
    %v9188 = vunpack.c.l.b16 %v8472
    %v9189 = vunpack.c.h.b16 %v8472
    %v9190 = vunpack.c.l.b16 %v8473
    %v9191 = vunpack.c.h.b16 %v8473
    %v9192 = vunpack.c.l.b16 %v8474
    %v9193 = vunpack.c.h.b16 %v8474
    %v9194 = vunpack.c.l.b16 %v8475
    %v9195 = vunpack.c.h.b16 %v8475
    %v9196 = vunpack.c.l.b16 %v8476
    %v9197 = vunpack.c.h.b16 %v8476
    %v9198 = vunpack.c.l.b16 %v8477
    %v9199 = vunpack.c.h.b16 %v8477
    %v9200 = vunpack.c.l.b16 %v8478
    %v9201 = vunpack.c.h.b16 %v8478
    %v9202 = vunpack.c.l.b16 %v8479
    %v9203 = vunpack.c.h.b16 %v8479
    %v9204 = vunpack.c.l.b16 %v8480
    %v9205 = vunpack.c.h.b16 %v8480
    %v9206 = vunpack.c.l.b16 %v8481
    %v9207 = vunpack.c.h.b16 %v8481
    %v9208 = vunpack.c.l.b16 %v8482
    %v9209 = vunpack.c.h.b16 %v8482
    %v9210 = vunpack.c.l.b16 %v8483
    %v9211 = vunpack.c.h.b16 %v8483
    %v9212 = vunpack.c.l.b16 %v8484
    %v9213 = vunpack.c.h.b16 %v8484
    %v9214 = vunpack.c.l.b16 %v8485
    %v9215 = vunpack.c.h.b16 %v8485
    %v9216 = vunpack.c.l.b16 %v8486
    %v9217 = vunpack.c.h.b16 %v8486
    %v9218 = vunpack.c.l.b16 %v8487
    %v9219 = vunpack.c.h.b16 %v8487
    %v9220 = vunpack.c.l.b16 %v8488
    %v9221 = vunpack.c.h.b16 %v8488
    %v9222 = vunpack.c.l.b16 %v8489
    %v9223 = vunpack.c.h.b16 %v8489
    %v9224 = vunpack.c.l.b16 %v8490
    %v9225 = vunpack.c.h.b16 %v8490
    %v9226 = vunpack.c.l.b16 %v8491
    %v9227 = vunpack.c.h.b16 %v8491
    %v9228 = vunpack.c.l.b16 %v8492
    %v9229 = vunpack.c.h.b16 %v8492
    %v9230 = vunpack.c.l.b16 %v8493
    %v9231 = vunpack.c.h.b16 %v8493
    %v9232 = vunpack.c.l.b16 %v8494
    %v9233 = vunpack.c.h.b16 %v8494
    %v9234 = vunpack.c.l.b16 %v8495
    %v9235 = vunpack.c.h.b16 %v8495
    %v9236 = vunpack.c.l.b16 %v8496
    %v9237 = vunpack.c.h.b16 %v8496
    %v9238 = vunpack.c.l.b16 %v8497
    %v9239 = vunpack.c.h.b16 %v8497
    %v9240 = vunpack.c.l.b16 %v8498
    %v9241 = vunpack.c.h.b16 %v8498
    %v9242 = vunpack.c.l.b16 %v8499
    %v9243 = vunpack.c.h.b16 %v8499
    %v9244 = vunpack.c.l.b16 %v8500
    %v9245 = vunpack.c.h.b16 %v8500
    %v9246 = vunpack.c.l.b16 %v8501
    %v9247 = vunpack.c.h.b16 %v8501
    %v9248 = vunpack.c.l.b16 %v8502
    %v9249 = vunpack.c.h.b16 %v8502
    %v9250 = vunpack.c.l.b16 %v8503
    %v9251 = vunpack.c.h.b16 %v8503
    %v9252 = vunpack.c.l.b16 %v8504
    %v9253 = vunpack.c.h.b16 %v8504
    %v9254 = vunpack.c.l.b16 %v8505
    %v9255 = vunpack.c.h.b16 %v8505
    %v9256 = vunpack.c.l.b16 %v8506
    %v9257 = vunpack.c.h.b16 %v8506
    %v9258 = vunpack.c.l.b16 %v8507
    %v9259 = vunpack.c.h.b16 %v8507
    %v9260 = vunpack.c.l.b16 %v8508
    %v9261 = vunpack.c.h.b16 %v8508
    %v9262 = vunpack.c.l.b16 %v8509
    %v9263 = vunpack.c.h.b16 %v8509
    %v9264 = vunpack.c.l.b16 %v8510
    %v9265 = vunpack.c.h.b16 %v8510
    %v9266 = vunpack.c.l.b16 %v8511
    %v9267 = vunpack.c.h.b16 %v8511
    %v9268 = vunpack.c.l.b16 %v8512
    %v9269 = vunpack.c.h.b16 %v8512
    %v9270 = vunpack.c.l.b16 %v8513
    %v9271 = vunpack.c.h.b16 %v8513
    %v9272 = vunpack.c.l.b16 %v8514
    %v9273 = vunpack.c.h.b16 %v8514
    %v9274 = vunpack.c.l.b16 %v8515
    %v9275 = vunpack.c.h.b16 %v8515
    %v9276 = vunpack.c.l.b16 %v8516
    %v9277 = vunpack.c.h.b16 %v8516
    %v9278 = vunpack.c.l.b16 %v8517
    %v9279 = vunpack.c.h.b16 %v8517
    %v9280 = vunpack.c.l.b16 %v8518
    %v9281 = vunpack.c.h.b16 %v8518
    %v9282 = vunpack.c.l.b16 %v8519
    %v9283 = vunpack.c.h.b16 %v8519
    %v9284 = vunpack.c.l.b16 %v8520
    %v9285 = vunpack.c.h.b16 %v8520
    %v9286 = vunpack.c.l.b16 %v8521
    %v9287 = vunpack.c.h.b16 %v8521
    %v9288 = vunpack.c.l.b16 %v8522
    %v9289 = vunpack.c.h.b16 %v8522
    %v9290 = vunpack.c.l.b16 %v8523
    %v9291 = vunpack.c.h.b16 %v8523
    %v9292 = vunpack.c.l.b16 %v8524
    %v9293 = vunpack.c.h.b16 %v8524
    %v9294 = vunpack.c.l.b16 %v8525
    %v9295 = vunpack.c.h.b16 %v8525
    %v9296 = vunpack.c.l.b16 %v8526
    %v9297 = vunpack.c.h.b16 %v8526
    %v9298 = vunpack.c.l.b16 %v8527
    %v9299 = vunpack.c.h.b16 %v8527
    %v9300 = vunpack.c.l.b16 %v8528
    %v9301 = vunpack.c.h.b16 %v8528
    %v9302 = vunpack.c.l.b16 %v8529
    %v9303 = vunpack.c.h.b16 %v8529
    %v9304 = vunpack.c.l.b16 %v8530
    %v9305 = vunpack.c.h.b16 %v8530
    %v9306 = vunpack.c.l.b16 %v8531
    %v9307 = vunpack.c.h.b16 %v8531
    %v9308 = vunpack.c.l.b16 %v8532
    %v9309 = vunpack.c.h.b16 %v8532
    %v9310 = vunpack.c.l.b16 %v8533
    %v9311 = vunpack.c.h.b16 %v8533
    %v9312 = vunpack.c.l.b16 %v8534
    %v9313 = vunpack.c.h.b16 %v8534
    %v9314 = vunpack.c.l.b16 %v8535
    %v9315 = vunpack.c.h.b16 %v8535
    %v9316 = vunpack.c.l.b16 %v8536
    %v9317 = vunpack.c.h.b16 %v8536
    %v9318 = vunpack.c.l.b16 %v8537
    %v9319 = vunpack.c.h.b16 %v8537
    %v9320 = vunpack.c.l.b16 %v8538
    %v9321 = vunpack.c.h.b16 %v8538
    %v9322 = vunpack.c.l.b16 %v8539
    %v9323 = vunpack.c.h.b16 %v8539
    %v9324 = vunpack.c.l.b16 %v8540
    %v9325 = vunpack.c.h.b16 %v8540
    %v9326 = vunpack.c.l.b16 %v8541
    %v9327 = vunpack.c.h.b16 %v8541
    %v9328 = vunpack.c.l.b16 %v8542
    %v9329 = vunpack.c.h.b16 %v8542
    %v9330 = vunpack.c.l.b16 %v8543
    %v9331 = vunpack.c.h.b16 %v8543
    %v9332 = vunpack.c.l.b16 %v8544
    %v9333 = vunpack.c.h.b16 %v8544
    %v9334 = vunpack.c.l.b16 %v8545
    %v9335 = vunpack.c.h.b16 %v8545
    %v9336 = vpack.c.b16 %v8828, %v8824
    %v9337 = vpack.c.b16 %v8829, %v8825
    %v9338 = vpack.c.b16 %v8830, %v8826
    %v9339 = vpack.c.b16 %v8831, %v8827
    %v9340 = vpack.c.b16 %v8836, %v8832
    %v9341 = vpack.c.b16 %v8837, %v8833
    %v9342 = vpack.c.b16 %v8838, %v8834
    %v9343 = vpack.c.b16 %v8839, %v8835
    %v9344 = vpack.c.b16 %v8844, %v8840
    %v9345 = vpack.c.b16 %v8845, %v8841
    %v9346 = vpack.c.b16 %v8846, %v8842
    %v9347 = vpack.c.b16 %v8847, %v8843
    %v9348 = vpack.c.b16 %v8852, %v8848
    %v9349 = vpack.c.b16 %v8853, %v8849
    %v9350 = vpack.c.b16 %v8854, %v8850
    %v9351 = vpack.c.b16 %v8855, %v8851
    %v9352 = vpack.c.b16 %v8860, %v8856
    %v9353 = vpack.c.b16 %v8861, %v8857
    %v9354 = vpack.c.b16 %v8862, %v8858
    %v9355 = vpack.c.b16 %v8863, %v8859
    %v9356 = vpack.c.b16 %v8868, %v8864
    %v9357 = vpack.c.b16 %v8869, %v8865
    %v9358 = vpack.c.b16 %v8870, %v8866
    %v9359 = vpack.c.b16 %v8871, %v8867
    %v9360 = vpack.c.b16 %v8876, %v8872
    %v9361 = vpack.c.b16 %v8877, %v8873
    %v9362 = vpack.c.b16 %v8878, %v8874
    %v9363 = vpack.c.b16 %v8879, %v8875
    %v9364 = vpack.c.b16 %v8884, %v8880
    %v9365 = vpack.c.b16 %v8885, %v8881
    %v9366 = vpack.c.b16 %v8886, %v8882
    %v9367 = vpack.c.b16 %v8887, %v8883
    %v9368 = vpack.c.b16 %v8892, %v8888
    %v9369 = vpack.c.b16 %v8893, %v8889
    %v9370 = vpack.c.b16 %v8894, %v8890
    %v9371 = vpack.c.b16 %v8895, %v8891
    %v9372 = vpack.c.b16 %v8900, %v8896
    %v9373 = vpack.c.b16 %v8901, %v8897
    %v9374 = vpack.c.b16 %v8902, %v8898
    %v9375 = vpack.c.b16 %v8903, %v8899
    %v9376 = vpack.c.b16 %v8908, %v8904
    %v9377 = vpack.c.b16 %v8909, %v8905
    %v9378 = vpack.c.b16 %v8910, %v8906
    %v9379 = vpack.c.b16 %v8911, %v8907
    %v9380 = vpack.c.b16 %v8916, %v8912
    %v9381 = vpack.c.b16 %v8917, %v8913
    %v9382 = vpack.c.b16 %v8918, %v8914
    %v9383 = vpack.c.b16 %v8919, %v8915
    %v9384 = vpack.c.b16 %v8924, %v8920
    %v9385 = vpack.c.b16 %v8925, %v8921
    %v9386 = vpack.c.b16 %v8926, %v8922
    %v9387 = vpack.c.b16 %v8927, %v8923
    %v9388 = vpack.c.b16 %v8932, %v8928
    %v9389 = vpack.c.b16 %v8933, %v8929
    %v9390 = vpack.c.b16 %v8934, %v8930
    %v9391 = vpack.c.b16 %v8935, %v8931
    %v9392 = vpack.c.b16 %v8940, %v8936
    %v9393 = vpack.c.b16 %v8941, %v8937
    %v9394 = vpack.c.b16 %v8942, %v8938
    %v9395 = vpack.c.b16 %v8943, %v8939
    %v9396 = vpack.c.b16 %v8948, %v8944
    %v9397 = vpack.c.b16 %v8949, %v8945
    %v9398 = vpack.c.b16 %v8950, %v8946
    %v9399 = vpack.c.b16 %v8951, %v8947
    %v9400 = vpack.c.b16 %v8956, %v8952
    %v9401 = vpack.c.b16 %v8957, %v8953
    %v9402 = vpack.c.b16 %v8958, %v8954
    %v9403 = vpack.c.b16 %v8959, %v8955
    %v9404 = vpack.c.b16 %v8964, %v8960
    %v9405 = vpack.c.b16 %v8965, %v8961
    %v9406 = vpack.c.b16 %v8966, %v8962
    %v9407 = vpack.c.b16 %v8967, %v8963
    %v9408 = vpack.c.b16 %v8972, %v8968
    %v9409 = vpack.c.b16 %v8973, %v8969
    %v9410 = vpack.c.b16 %v8974, %v8970
    %v9411 = vpack.c.b16 %v8975, %v8971
    %v9412 = vpack.c.b16 %v8980, %v8976
    %v9413 = vpack.c.b16 %v8981, %v8977
    %v9414 = vpack.c.b16 %v8982, %v8978
    %v9415 = vpack.c.b16 %v8983, %v8979
    %v9416 = vpack.c.b16 %v8988, %v8984
    %v9417 = vpack.c.b16 %v8989, %v8985
    %v9418 = vpack.c.b16 %v8990, %v8986
    %v9419 = vpack.c.b16 %v8991, %v8987
    %v9420 = vpack.c.b16 %v8996, %v8992
    %v9421 = vpack.c.b16 %v8997, %v8993
    %v9422 = vpack.c.b16 %v8998, %v8994
    %v9423 = vpack.c.b16 %v8999, %v8995
    %v9424 = vpack.c.b16 %v9004, %v9000
    %v9425 = vpack.c.b16 %v9005, %v9001
    %v9426 = vpack.c.b16 %v9006, %v9002
    %v9427 = vpack.c.b16 %v9007, %v9003
    %v9428 = vpack.c.b16 %v9012, %v9008
    %v9429 = vpack.c.b16 %v9013, %v9009
    %v9430 = vpack.c.b16 %v9014, %v9010
    %v9431 = vpack.c.b16 %v9015, %v9011
    %v9432 = vpack.c.b16 %v9020, %v9016
    %v9433 = vpack.c.b16 %v9021, %v9017
    %v9434 = vpack.c.b16 %v9022, %v9018
    %v9435 = vpack.c.b16 %v9023, %v9019
    %v9436 = vpack.c.b16 %v9028, %v9024
    %v9437 = vpack.c.b16 %v9029, %v9025
    %v9438 = vpack.c.b16 %v9030, %v9026
    %v9439 = vpack.c.b16 %v9031, %v9027
    %v9440 = vpack.c.b16 %v9036, %v9032
    %v9441 = vpack.c.b16 %v9037, %v9033
    %v9442 = vpack.c.b16 %v9038, %v9034
    %v9443 = vpack.c.b16 %v9039, %v9035
    %v9444 = vpack.c.b16 %v9044, %v9040
    %v9445 = vpack.c.b16 %v9045, %v9041
    %v9446 = vpack.c.b16 %v9046, %v9042
    %v9447 = vpack.c.b16 %v9047, %v9043
    %v9448 = vpack.c.b16 %v9052, %v9048
    %v9449 = vpack.c.b16 %v9053, %v9049
    %v9450 = vpack.c.b16 %v9054, %v9050
    %v9451 = vpack.c.b16 %v9055, %v9051
    %v9452 = vpack.c.b16 %v9060, %v9056
    %v9453 = vpack.c.b16 %v9061, %v9057
    %v9454 = vpack.c.b16 %v9062, %v9058
    %v9455 = vpack.c.b16 %v9063, %v9059
    %v9456 = vpack.c.b16 %v9068, %v9064
    %v9457 = vpack.c.b16 %v9069, %v9065
    %v9458 = vpack.c.b16 %v9070, %v9066
    %v9459 = vpack.c.b16 %v9071, %v9067
    %v9460 = vpack.c.b16 %v9076, %v9072
    %v9461 = vpack.c.b16 %v9077, %v9073
    %v9462 = vpack.c.b16 %v9078, %v9074
    %v9463 = vpack.c.b16 %v9079, %v9075
    %v9464 = vpack.c.b16 %v9084, %v9080
    %v9465 = vpack.c.b16 %v9085, %v9081
    %v9466 = vpack.c.b16 %v9086, %v9082
    %v9467 = vpack.c.b16 %v9087, %v9083
    %v9468 = vpack.c.b16 %v9092, %v9088
    %v9469 = vpack.c.b16 %v9093, %v9089
    %v9470 = vpack.c.b16 %v9094, %v9090
    %v9471 = vpack.c.b16 %v9095, %v9091
    %v9472 = vpack.c.b16 %v9100, %v9096
    %v9473 = vpack.c.b16 %v9101, %v9097
    %v9474 = vpack.c.b16 %v9102, %v9098
    %v9475 = vpack.c.b16 %v9103, %v9099
    %v9476 = vpack.c.b16 %v9108, %v9104
    %v9477 = vpack.c.b16 %v9109, %v9105
    %v9478 = vpack.c.b16 %v9110, %v9106
    %v9479 = vpack.c.b16 %v9111, %v9107
    %v9480 = vpack.c.b16 %v9116, %v9112
    %v9481 = vpack.c.b16 %v9117, %v9113
    %v9482 = vpack.c.b16 %v9118, %v9114
    %v9483 = vpack.c.b16 %v9119, %v9115
    %v9484 = vpack.c.b16 %v9124, %v9120
    %v9485 = vpack.c.b16 %v9125, %v9121
    %v9486 = vpack.c.b16 %v9126, %v9122
    %v9487 = vpack.c.b16 %v9127, %v9123
    %v9488 = vpack.c.b16 %v9132, %v9128
    %v9489 = vpack.c.b16 %v9133, %v9129
    %v9490 = vpack.c.b16 %v9134, %v9130
    %v9491 = vpack.c.b16 %v9135, %v9131
    %v9492 = vpack.c.b16 %v9140, %v9136
    %v9493 = vpack.c.b16 %v9141, %v9137
    %v9494 = vpack.c.b16 %v9142, %v9138
    %v9495 = vpack.c.b16 %v9143, %v9139
    %v9496 = vpack.c.b16 %v9148, %v9144
    %v9497 = vpack.c.b16 %v9149, %v9145
    %v9498 = vpack.c.b16 %v9150, %v9146
    %v9499 = vpack.c.b16 %v9151, %v9147
    %v9500 = vpack.c.b16 %v9156, %v9152
    %v9501 = vpack.c.b16 %v9157, %v9153
    %v9502 = vpack.c.b16 %v9158, %v9154
    %v9503 = vpack.c.b16 %v9159, %v9155
    %v9504 = vpack.c.b16 %v9164, %v9160
    %v9505 = vpack.c.b16 %v9165, %v9161
    %v9506 = vpack.c.b16 %v9166, %v9162
    %v9507 = vpack.c.b16 %v9167, %v9163
    %v9508 = vpack.c.b16 %v9172, %v9168
    %v9509 = vpack.c.b16 %v9173, %v9169
    %v9510 = vpack.c.b16 %v9174, %v9170
    %v9511 = vpack.c.b16 %v9175, %v9171
    %v9512 = vpack.c.b16 %v9180, %v9176
    %v9513 = vpack.c.b16 %v9181, %v9177
    %v9514 = vpack.c.b16 %v9182, %v9178
    %v9515 = vpack.c.b16 %v9183, %v9179
    %v9516 = vpack.c.b16 %v9188, %v9184
    %v9517 = vpack.c.b16 %v9189, %v9185
    %v9518 = vpack.c.b16 %v9190, %v9186
    %v9519 = vpack.c.b16 %v9191, %v9187
    %v9520 = vpack.c.b16 %v9196, %v9192
    %v9521 = vpack.c.b16 %v9197, %v9193
    %v9522 = vpack.c.b16 %v9198, %v9194
    %v9523 = vpack.c.b16 %v9199, %v9195
    %v9524 = vpack.c.b16 %v9204, %v9200
    %v9525 = vpack.c.b16 %v9205, %v9201
    %v9526 = vpack.c.b16 %v9206, %v9202
    %v9527 = vpack.c.b16 %v9207, %v9203
    %v9528 = vpack.c.b16 %v9212, %v9208
    %v9529 = vpack.c.b16 %v9213, %v9209
    %v9530 = vpack.c.b16 %v9214, %v9210
    %v9531 = vpack.c.b16 %v9215, %v9211
    %v9532 = vpack.c.b16 %v9220, %v9216
    %v9533 = vpack.c.b16 %v9221, %v9217
    %v9534 = vpack.c.b16 %v9222, %v9218
    %v9535 = vpack.c.b16 %v9223, %v9219
    %v9536 = vpack.c.b16 %v9228, %v9224
    %v9537 = vpack.c.b16 %v9229, %v9225
    %v9538 = vpack.c.b16 %v9230, %v9226
    %v9539 = vpack.c.b16 %v9231, %v9227
    %v9540 = vpack.c.b16 %v9236, %v9232
    %v9541 = vpack.c.b16 %v9237, %v9233
    %v9542 = vpack.c.b16 %v9238, %v9234
    %v9543 = vpack.c.b16 %v9239, %v9235
    %v9544 = vpack.c.b16 %v9244, %v9240
    %v9545 = vpack.c.b16 %v9245, %v9241
    %v9546 = vpack.c.b16 %v9246, %v9242
    %v9547 = vpack.c.b16 %v9247, %v9243
    %v9548 = vpack.c.b16 %v9252, %v9248
    %v9549 = vpack.c.b16 %v9253, %v9249
    %v9550 = vpack.c.b16 %v9254, %v9250
    %v9551 = vpack.c.b16 %v9255, %v9251
    %v9552 = vpack.c.b16 %v9260, %v9256
    %v9553 = vpack.c.b16 %v9261, %v9257
    %v9554 = vpack.c.b16 %v9262, %v9258
    %v9555 = vpack.c.b16 %v9263, %v9259
    %v9556 = vpack.c.b16 %v9268, %v9264
    %v9557 = vpack.c.b16 %v9269, %v9265
    %v9558 = vpack.c.b16 %v9270, %v9266
    %v9559 = vpack.c.b16 %v9271, %v9267
    %v9560 = vpack.c.b16 %v9276, %v9272
    %v9561 = vpack.c.b16 %v9277, %v9273
    %v9562 = vpack.c.b16 %v9278, %v9274
    %v9563 = vpack.c.b16 %v9279, %v9275
    %v9564 = vpack.c.b16 %v9284, %v9280
    %v9565 = vpack.c.b16 %v9285, %v9281
    %v9566 = vpack.c.b16 %v9286, %v9282
    %v9567 = vpack.c.b16 %v9287, %v9283
    %v9568 = vpack.c.b16 %v9292, %v9288
    %v9569 = vpack.c.b16 %v9293, %v9289
    %v9570 = vpack.c.b16 %v9294, %v9290
    %v9571 = vpack.c.b16 %v9295, %v9291
    %v9572 = vpack.c.b16 %v9300, %v9296
    %v9573 = vpack.c.b16 %v9301, %v9297
    %v9574 = vpack.c.b16 %v9302, %v9298
    %v9575 = vpack.c.b16 %v9303, %v9299
    %v9576 = vpack.c.b16 %v9308, %v9304
    %v9577 = vpack.c.b16 %v9309, %v9305
    %v9578 = vpack.c.b16 %v9310, %v9306
    %v9579 = vpack.c.b16 %v9311, %v9307
    %v9580 = vpack.c.b16 %v9316, %v9312
    %v9581 = vpack.c.b16 %v9317, %v9313
    %v9582 = vpack.c.b16 %v9318, %v9314
    %v9583 = vpack.c.b16 %v9319, %v9315
    %v9584 = vpack.c.b16 %v9324, %v9320
    %v9585 = vpack.c.b16 %v9325, %v9321
    %v9586 = vpack.c.b16 %v9326, %v9322
    %v9587 = vpack.c.b16 %v9327, %v9323
    %v9588 = vpack.c.b16 %v9332, %v9328
    %v9589 = vpack.c.b16 %v9333, %v9329
    %v9590 = vpack.c.b16 %v9334, %v9330
    %v9591 = vpack.c.b16 %v9335, %v9331
    %9848 = vmatprep.subr.bf16.mxu0 %v9337
    %9849 = vmatpush1.bf16.msra.mxu0 %v9336
    %9850 = vmatprep.subr.bf16.mxu0 %v9341
    %9851 = vmatpush1.bf16.msra.mxu0 %v9340
    %9852 = vmatprep.subr.bf16.mxu0 %v9345
    %9853 = vmatpush1.bf16.msra.mxu0 %v9344
    %9854 = vmatprep.subr.bf16.mxu0 %v9349
    %9855 = vmatpush1.bf16.msra.mxu0 %v9348
    %9856 = vmatprep.subr.bf16.mxu0 %v9353
    %9857 = vmatpush1.bf16.msra.mxu0 %v9352
    %9858 = vmatprep.subr.bf16.mxu0 %v9357
    %9859 = vmatpush1.bf16.msra.mxu0 %v9356
    %9860 = vmatprep.subr.bf16.mxu0 %v9361
    %9861 = vmatpush1.bf16.msra.mxu0 %v9360
    %9862 = vmatprep.subr.bf16.mxu0 %v9365
    %9863 = vmatpush1.bf16.msra.mxu0 %v9364
    %9864 = vmatprep.subr.bf16.mxu0 %v9369
    %9865 = vmatpush1.bf16.msra.mxu0 %v9368
    %9866 = vmatprep.subr.bf16.mxu0 %v9373
    %9867 = vmatpush1.bf16.msra.mxu0 %v9372
    %9868 = vmatprep.subr.bf16.mxu0 %v9377
    %9869 = vmatpush1.bf16.msra.mxu0 %v9376
    %9870 = vmatprep.subr.bf16.mxu0 %v9381
    %9871 = vmatpush1.bf16.msra.mxu0 %v9380
    %9872 = vmatprep.subr.bf16.mxu0 %v9385
    %9873 = vmatpush1.bf16.msra.mxu0 %v9384
    %9874 = vmatprep.subr.bf16.mxu0 %v9389
    %9875 = vmatpush1.bf16.msra.mxu0 %v9388
    %9876 = vmatprep.subr.bf16.mxu0 %v9393
    %9877 = vmatpush1.bf16.msra.mxu0 %v9392
    %9878 = vmatprep.subr.bf16.mxu0 %v9397
    %9879 = vmatpush1.bf16.msra.mxu0 %v9396
    %9880 = vmatprep.mubr.bf16.mxu0 %v8283
    %9881 = vmatmul.mubr.bf16.gmra.mrb[0].mxu0 %v8282
    %v9882 = vpop.f32.mrb[0].mxu0
    %v9883 = vadd.f32 %v8551, %v9882
    %v9884 = vpop.f32.mrb[0].mxu0
    %v9885 = vadd.f32 %v8555, %v9884
    %v9886 = vpop.f32.mrb[0].mxu0
    %v9887 = vpop.f32.mrb[0].mxu0
    %9888 = vdwg.mxu0
    %9889 = vmatprep.subr.bf16.mxu0 %v9401
    %9890 = vmatpush1.bf16.msra.mxu0 %v9400
    %9891 = vmatprep.subr.bf16.mxu0 %v9405
    %9892 = vmatpush1.bf16.msra.mxu0 %v9404
    %9893 = vmatprep.subr.bf16.mxu0 %v9409
    %9894 = vmatpush1.bf16.msra.mxu0 %v9408
    %9895 = vmatprep.subr.bf16.mxu0 %v9413
    %9896 = vmatpush1.bf16.msra.mxu0 %v9412
    %9897 = vmatprep.subr.bf16.mxu0 %v9417
    %9898 = vmatpush1.bf16.msra.mxu0 %v9416
    %9899 = vmatprep.subr.bf16.mxu0 %v9421
    %9900 = vmatpush1.bf16.msra.mxu0 %v9420
    %9901 = vmatprep.subr.bf16.mxu0 %v9425
    %9902 = vmatpush1.bf16.msra.mxu0 %v9424
    %9903 = vmatprep.subr.bf16.mxu0 %v9429
    %9904 = vmatpush1.bf16.msra.mxu0 %v9428
    %9905 = vmatprep.subr.bf16.mxu0 %v9433
    %9906 = vmatpush1.bf16.msra.mxu0 %v9432
    %9907 = vmatprep.subr.bf16.mxu0 %v9437
    %9908 = vmatpush1.bf16.msra.mxu0 %v9436
    %9909 = vmatprep.subr.bf16.mxu0 %v9441
    %9910 = vmatpush1.bf16.msra.mxu0 %v9440
    %9911 = vmatprep.subr.bf16.mxu0 %v9445
    %9912 = vmatpush1.bf16.msra.mxu0 %v9444
    %9913 = vmatprep.subr.bf16.mxu0 %v9449
    %9914 = vmatpush1.bf16.msra.mxu0 %v9448
    %9915 = vmatprep.subr.bf16.mxu0 %v9453
    %9916 = vmatpush1.bf16.msra.mxu0 %v9452
    %9917 = vmatprep.subr.bf16.mxu0 %v9457
    %9918 = vmatpush1.bf16.msra.mxu0 %v9456
    %9919 = vmatprep.subr.bf16.mxu0 %v9461
    %9920 = vmatpush1.bf16.msra.mxu0 %v9460
    %9921 = vmatprep.mubr.bf16.mxu0 %v8285
    %9922 = vmatmul.mubr.bf16.gmra.mrb[0].mxu0 %v8284
    %v9923 = vpop.f32.mrb[0].mxu0
    %v9924 = vadd.f32 %v9883, %v9923
    %v9925 = vpop.f32.mrb[0].mxu0
    %v9926 = vadd.f32 %v9885, %v9925
    %v9927 = vpop.f32.mrb[0].mxu0
    %v9928 = vpop.f32.mrb[0].mxu0
    %9929 = vdwg.mxu0
    %9930 = vmatprep.subr.bf16.mxu0 %v9465
    %9931 = vmatpush1.bf16.msra.mxu0 %v9464
    %9932 = vmatprep.subr.bf16.mxu0 %v9469
    %9933 = vmatpush1.bf16.msra.mxu0 %v9468
    %9934 = vmatprep.subr.bf16.mxu0 %v9473
    %9935 = vmatpush1.bf16.msra.mxu0 %v9472
    %9936 = vmatprep.subr.bf16.mxu0 %v9477
    %9937 = vmatpush1.bf16.msra.mxu0 %v9476
    %9938 = vmatprep.subr.bf16.mxu0 %v9481
    %9939 = vmatpush1.bf16.msra.mxu0 %v9480
    %9940 = vmatprep.subr.bf16.mxu0 %v9485
    %9941 = vmatpush1.bf16.msra.mxu0 %v9484
    %9942 = vmatprep.subr.bf16.mxu0 %v9489
    %9943 = vmatpush1.bf16.msra.mxu0 %v9488
    %9944 = vmatprep.subr.bf16.mxu0 %v9493
    %9945 = vmatpush1.bf16.msra.mxu0 %v9492
    %9946 = vmatprep.subr.bf16.mxu0 %v9497
    %9947 = vmatpush1.bf16.msra.mxu0 %v9496
    %9948 = vmatprep.subr.bf16.mxu0 %v9501
    %9949 = vmatpush1.bf16.msra.mxu0 %v9500
    %9950 = vmatprep.subr.bf16.mxu0 %v9505
    %9951 = vmatpush1.bf16.msra.mxu0 %v9504
    %9952 = vmatprep.subr.bf16.mxu0 %v9509
    %9953 = vmatpush1.bf16.msra.mxu0 %v9508
    %9954 = vmatprep.subr.bf16.mxu0 %v9513
    %9955 = vmatpush1.bf16.msra.mxu0 %v9512
    %9956 = vmatprep.subr.bf16.mxu0 %v9517
    %9957 = vmatpush1.bf16.msra.mxu0 %v9516
    %9958 = vmatprep.subr.bf16.mxu0 %v9521
    %9959 = vmatpush1.bf16.msra.mxu0 %v9520
    %9960 = vmatprep.subr.bf16.mxu0 %v9525
    %9961 = vmatpush1.bf16.msra.mxu0 %v9524
    %9962 = vmatprep.mubr.bf16.mxu0 %v8287
    %9963 = vmatmul.mubr.bf16.gmra.mrb[0].mxu0 %v8286
    %v9964 = vpop.f32.mrb[0].mxu0
    %v9965 = vadd.f32 %v9924, %v9964
    %v9966 = vpop.f32.mrb[0].mxu0
    %v9967 = vadd.f32 %v9926, %v9966
    %v9968 = vpop.f32.mrb[0].mxu0
    %v9969 = vpop.f32.mrb[0].mxu0
    %9970 = vdwg.mxu0
    %9971 = vmatprep.subr.bf16.mxu0 %v9529
    %9972 = vmatpush1.bf16.msra.mxu0 %v9528
    %9973 = vmatprep.subr.bf16.mxu0 %v9533
    %9974 = vmatpush1.bf16.msra.mxu0 %v9532
    %9975 = vmatprep.subr.bf16.mxu0 %v9537
    %9976 = vmatpush1.bf16.msra.mxu0 %v9536
    %9977 = vmatprep.subr.bf16.mxu0 %v9541
    %9978 = vmatpush1.bf16.msra.mxu0 %v9540
    %9979 = vmatprep.subr.bf16.mxu0 %v9545
    %9980 = vmatpush1.bf16.msra.mxu0 %v9544
    %9981 = vmatprep.subr.bf16.mxu0 %v9549
    %9982 = vmatpush1.bf16.msra.mxu0 %v9548
    %9983 = vmatprep.subr.bf16.mxu0 %v9553
    %9984 = vmatpush1.bf16.msra.mxu0 %v9552
    %9985 = vmatprep.subr.bf16.mxu0 %v9557
    %9986 = vmatpush1.bf16.msra.mxu0 %v9556
    %9987 = vmatprep.subr.bf16.mxu0 %v9561
    %9988 = vmatpush1.bf16.msra.mxu0 %v9560
    %9989 = vmatprep.subr.bf16.mxu0 %v9565
    %9990 = vmatpush1.bf16.msra.mxu0 %v9564
    %9991 = vmatprep.subr.bf16.mxu0 %v9569
    %9992 = vmatpush1.bf16.msra.mxu0 %v9568
    %9993 = vmatprep.subr.bf16.mxu0 %v9573
    %9994 = vmatpush1.bf16.msra.mxu0 %v9572
    %9995 = vmatprep.subr.bf16.mxu0 %v9577
    %9996 = vmatpush1.bf16.msra.mxu0 %v9576
    %9997 = vmatprep.subr.bf16.mxu0 %v9581
    %9998 = vmatpush1.bf16.msra.mxu0 %v9580
    %9999 = vmatprep.subr.bf16.mxu0 %v9585
    %10000 = vmatpush1.bf16.msra.mxu0 %v9584
    %10001 = vmatprep.subr.bf16.mxu0 %v9589
    %10002 = vmatpush1.bf16.msra.mxu0 %v9588
    %10003 = vmatprep.mubr.bf16.mxu0 %v8289
    %10004 = vmatmul.mubr.bf16.gmra.mrb[0].mxu0 %v8288
    %v10005 = vpop.f32.mrb[0].mxu0
    %v10006 = vadd.f32 %v9965, %v10005
    %v10007 = vpop.f32.mrb[0].mxu0
    %v10008 = vadd.f32 %v9967, %v10007
    %v10009 = vpop.f32.mrb[0].mxu0
    %v10010 = vpop.f32.mrb[0].mxu0
    %10011 = vdwg.mxu0
    %10012 = vmatprep.subr.bf16.mxu0 %v9339
    %10013 = vmatpush1.bf16.msra.mxu0 %v9338
    %10014 = vmatprep.subr.bf16.mxu0 %v9343
    %10015 = vmatpush1.bf16.msra.mxu0 %v9342
    %10016 = vmatprep.subr.bf16.mxu0 %v9347
    %10017 = vmatpush1.bf16.msra.mxu0 %v9346
    %10018 = vmatprep.subr.bf16.mxu0 %v9351
    %10019 = vmatpush1.bf16.msra.mxu0 %v9350
    %10020 = vmatprep.subr.bf16.mxu0 %v9355
    %10021 = vmatpush1.bf16.msra.mxu0 %v9354
    %10022 = vmatprep.subr.bf16.mxu0 %v9359
    %10023 = vmatpush1.bf16.msra.mxu0 %v9358
    %10024 = vmatprep.subr.bf16.mxu0 %v9363
    %10025 = vmatpush1.bf16.msra.mxu0 %v9362
    %10026 = vmatprep.subr.bf16.mxu0 %v9367
    %10027 = vmatpush1.bf16.msra.mxu0 %v9366
    %10028 = vmatprep.subr.bf16.mxu0 %v9371
    %10029 = vmatpush1.bf16.msra.mxu0 %v9370
    %10030 = vmatprep.subr.bf16.mxu0 %v9375
    %10031 = vmatpush1.bf16.msra.mxu0 %v9374
    %10032 = vmatprep.subr.bf16.mxu0 %v9379
    %10033 = vmatpush1.bf16.msra.mxu0 %v9378
    %10034 = vmatprep.subr.bf16.mxu0 %v9383
    %10035 = vmatpush1.bf16.msra.mxu0 %v9382
    %10036 = vmatprep.subr.bf16.mxu0 %v9387
    %10037 = vmatpush1.bf16.msra.mxu0 %v9386
    %10038 = vmatprep.subr.bf16.mxu0 %v9391
    %10039 = vmatpush1.bf16.msra.mxu0 %v9390
    %10040 = vmatprep.subr.bf16.mxu0 %v9395
    %10041 = vmatpush1.bf16.msra.mxu0 %v9394
    %10042 = vmatprep.subr.bf16.mxu0 %v9399
    %10043 = vmatpush1.bf16.msra.mxu0 %v9398
    %10044 = vmatprep.mubr.bf16.mxu0 %v8283
    %10045 = vmatmul.mubr.bf16.gmra.mrb[0].mxu0 %v8282
    %v10046 = vpop.f32.mrb[0].mxu0
    %v10047 = vadd.f32 %v8559, %v10046
    %v10048 = vpop.f32.mrb[0].mxu0
    %v10049 = vadd.f32 %v8563, %v10048
    %v10050 = vpop.f32.mrb[0].mxu0
    %v10051 = vpop.f32.mrb[0].mxu0
    %10052 = vdwg.mxu0
    %10053 = vmatprep.subr.bf16.mxu0 %v9403
    %10054 = vmatpush1.bf16.msra.mxu0 %v9402
    %10055 = vmatprep.subr.bf16.mxu0 %v9407
    %10056 = vmatpush1.bf16.msra.mxu0 %v9406
    %10057 = vmatprep.subr.bf16.mxu0 %v9411
    %10058 = vmatpush1.bf16.msra.mxu0 %v9410
    %10059 = vmatprep.subr.bf16.mxu0 %v9415
    %10060 = vmatpush1.bf16.msra.mxu0 %v9414
    %10061 = vmatprep.subr.bf16.mxu0 %v9419
    %10062 = vmatpush1.bf16.msra.mxu0 %v9418
    %10063 = vmatprep.subr.bf16.mxu0 %v9423
    %10064 = vmatpush1.bf16.msra.mxu0 %v9422
    %10065 = vmatprep.subr.bf16.mxu0 %v9427
    %10066 = vmatpush1.bf16.msra.mxu0 %v9426
    %10067 = vmatprep.subr.bf16.mxu0 %v9431
    %10068 = vmatpush1.bf16.msra.mxu0 %v9430
    %10069 = vmatprep.subr.bf16.mxu0 %v9435
    %10070 = vmatpush1.bf16.msra.mxu0 %v9434
    %10071 = vmatprep.subr.bf16.mxu0 %v9439
    %10072 = vmatpush1.bf16.msra.mxu0 %v9438
    %10073 = vmatprep.subr.bf16.mxu0 %v9443
    %10074 = vmatpush1.bf16.msra.mxu0 %v9442
    %10075 = vmatprep.subr.bf16.mxu0 %v9447
    %10076 = vmatpush1.bf16.msra.mxu0 %v9446
    %10077 = vmatprep.subr.bf16.mxu0 %v9451
    %10078 = vmatpush1.bf16.msra.mxu0 %v9450
    %10079 = vmatprep.subr.bf16.mxu0 %v9455
    %10080 = vmatpush1.bf16.msra.mxu0 %v9454
    %10081 = vmatprep.subr.bf16.mxu0 %v9459
    %10082 = vmatpush1.bf16.msra.mxu0 %v9458
    %10083 = vmatprep.subr.bf16.mxu0 %v9463
    %10084 = vmatpush1.bf16.msra.mxu0 %v9462
    %10085 = vmatprep.mubr.bf16.mxu0 %v8285
    %10086 = vmatmul.mubr.bf16.gmra.mrb[0].mxu0 %v8284
    %v10087 = vpop.f32.mrb[0].mxu0
    %v10088 = vadd.f32 %v10047, %v10087
    %v10089 = vpop.f32.mrb[0].mxu0
    %v10090 = vadd.f32 %v10049, %v10089
    %v10091 = vpop.f32.mrb[0].mxu0
    %v10092 = vpop.f32.mrb[0].mxu0
    %10093 = vdwg.mxu0
    %10094 = vmatprep.subr.bf16.mxu0 %v9467
    %10095 = vmatpush1.bf16.msra.mxu0 %v9466
    %10096 = vmatprep.subr.bf16.mxu0 %v9471
    %10097 = vmatpush1.bf16.msra.mxu0 %v9470
    %10098 = vmatprep.subr.bf16.mxu0 %v9475
    %10099 = vmatpush1.bf16.msra.mxu0 %v9474
    %10100 = vmatprep.subr.bf16.mxu0 %v9479
    %10101 = vmatpush1.bf16.msra.mxu0 %v9478
    %10102 = vmatprep.subr.bf16.mxu0 %v9483
    %10103 = vmatpush1.bf16.msra.mxu0 %v9482
    %10104 = vmatprep.subr.bf16.mxu0 %v9487
    %10105 = vmatpush1.bf16.msra.mxu0 %v9486
    %10106 = vmatprep.subr.bf16.mxu0 %v9491
    %10107 = vmatpush1.bf16.msra.mxu0 %v9490
    %10108 = vmatprep.subr.bf16.mxu0 %v9495
    %10109 = vmatpush1.bf16.msra.mxu0 %v9494
    %10110 = vmatprep.subr.bf16.mxu0 %v9499
    %10111 = vmatpush1.bf16.msra.mxu0 %v9498
    %10112 = vmatprep.subr.bf16.mxu0 %v9503
    %10113 = vmatpush1.bf16.msra.mxu0 %v9502
    %10114 = vmatprep.subr.bf16.mxu0 %v9507
    %10115 = vmatpush1.bf16.msra.mxu0 %v9506
    %10116 = vmatprep.subr.bf16.mxu0 %v9511
    %10117 = vmatpush1.bf16.msra.mxu0 %v9510
    %10118 = vmatprep.subr.bf16.mxu0 %v9515
    %10119 = vmatpush1.bf16.msra.mxu0 %v9514
    %10120 = vmatprep.subr.bf16.mxu0 %v9519
    %10121 = vmatpush1.bf16.msra.mxu0 %v9518
    %10122 = vmatprep.subr.bf16.mxu0 %v9523
    %10123 = vmatpush1.bf16.msra.mxu0 %v9522
    %10124 = vmatprep.subr.bf16.mxu0 %v9527
    %10125 = vmatpush1.bf16.msra.mxu0 %v9526
    %10126 = vmatprep.mubr.bf16.mxu0 %v8287
    %10127 = vmatmul.mubr.bf16.gmra.mrb[0].mxu0 %v8286
    %v10128 = vpop.f32.mrb[0].mxu0
    %v10129 = vadd.f32 %v10088, %v10128
    %v10130 = vpop.f32.mrb[0].mxu0
    %v10131 = vadd.f32 %v10090, %v10130
    %v10132 = vpop.f32.mrb[0].mxu0
    %v10133 = vpop.f32.mrb[0].mxu0
    %10134 = vdwg.mxu0
    %10135 = vmatprep.subr.bf16.mxu0 %v9531
    %10136 = vmatpush1.bf16.msra.mxu0 %v9530
    %10137 = vmatprep.subr.bf16.mxu0 %v9535
    %10138 = vmatpush1.bf16.msra.mxu0 %v9534
    %10139 = vmatprep.subr.bf16.mxu0 %v9539
    %10140 = vmatpush1.bf16.msra.mxu0 %v9538
    %10141 = vmatprep.subr.bf16.mxu0 %v9543
    %10142 = vmatpush1.bf16.msra.mxu0 %v9542
    %10143 = vmatprep.subr.bf16.mxu0 %v9547
    %10144 = vmatpush1.bf16.msra.mxu0 %v9546
    %10145 = vmatprep.subr.bf16.mxu0 %v9551
    %10146 = vmatpush1.bf16.msra.mxu0 %v9550
    %10147 = vmatprep.subr.bf16.mxu0 %v9555
    %10148 = vmatpush1.bf16.msra.mxu0 %v9554
    %10149 = vmatprep.subr.bf16.mxu0 %v9559
    %10150 = vmatpush1.bf16.msra.mxu0 %v9558
    %10151 = vmatprep.subr.bf16.mxu0 %v9563
    %10152 = vmatpush1.bf16.msra.mxu0 %v9562
    %10153 = vmatprep.subr.bf16.mxu0 %v9567
    %10154 = vmatpush1.bf16.msra.mxu0 %v9566
    %10155 = vmatprep.subr.bf16.mxu0 %v9571
    %10156 = vmatpush1.bf16.msra.mxu0 %v9570
    %10157 = vmatprep.subr.bf16.mxu0 %v9575
    %10158 = vmatpush1.bf16.msra.mxu0 %v9574
    %10159 = vmatprep.subr.bf16.mxu0 %v9579
    %10160 = vmatpush1.bf16.msra.mxu0 %v9578
    %10161 = vmatprep.subr.bf16.mxu0 %v9583
    %10162 = vmatpush1.bf16.msra.mxu0 %v9582
    %10163 = vmatprep.subr.bf16.mxu0 %v9587
    %10164 = vmatpush1.bf16.msra.mxu0 %v9586
    %10165 = vmatprep.subr.bf16.mxu0 %v9591
    %10166 = vmatpush1.bf16.msra.mxu0 %v9590
    %10167 = vmatprep.mubr.bf16.mxu0 %v8289
    %10168 = vmatmul.mubr.bf16.gmra.mrb[0].mxu0 %v8288
    %v10169 = vpop.f32.mrb[0].mxu0
    %v10170 = vadd.f32 %v10129, %v10169
    %v10171 = vpop.f32.mrb[0].mxu0
    %v10172 = vadd.f32 %v10131, %v10171
    %v10173 = vpop.f32.mrb[0].mxu0
    %v10174 = vpop.f32.mrb[0].mxu0
    %10175 = vdwg.mxu0
    %v10176 = vmax.f32 %v10006, 0.0
    %v10177 = vmax.f32 %v10008, 0.0
    %v10178 = vmax.f32 %v10170, 0.0
    %v10179 = vmax.f32 %v10172, 0.0
    %v10180 = vpack.c.bf16 %v10176, %v10176
    %v10181 = vpack.c.bf16 %v10177, %v10177
    %v10182 = vpack.c.bf16 %v10178, %v10178
    %v10183 = vpack.c.bf16 %v10179, %v10179
    %v10184 = vld [vmem:[#allocation12] sm:$0xf]
    %v10185 = vld [vmem:[#allocation12 + $0x4] sm:$0xf]
    %v10186 = vld [vmem:[#allocation12 + $0x8] sm:$0xf]
    %v10187 = vld [vmem:[#allocation12 + $0xc] sm:$0xf]
    %v10188 = vld [vmem:[#allocation12 + $0x10] sm:$0xf]
    %v10189 = vld [vmem:[#allocation12 + $0x14] sm:$0xf]
    %v10190 = vld [vmem:[#allocation12 + $0x18] sm:$0xf]
    %v10191 = vld [vmem:[#allocation12 + $0x1c] sm:$0xf]
    %v10192 = vld [vmem:[#allocation12 + $0x20] sm:$0xf]
    %v10193 = vld [vmem:[#allocation12 + $0x24] sm:$0xf]
    %v10194 = vld [vmem:[#allocation12 + $0x28] sm:$0xf]
    %v10195 = vld [vmem:[#allocation12 + $0x2c] sm:$0xf]
    %v10196 = vld [vmem:[#allocation12 + $0x30] sm:$0xf]
    %v10197 = vld [vmem:[#allocation12 + $0x34] sm:$0xf]
    %v10198 = vld [vmem:[#allocation12 + $0x38] sm:$0xf]
    %v10199 = vld [vmem:[#allocation12 + $0x3c] sm:$0xf]
    %v10200 = vld [vmem:[#allocation12 + $0x40] sm:$0xf]
    %v10201 = vld [vmem:[#allocation12 + $0x44] sm:$0xf]
    %v10202 = vld [vmem:[#allocation12 + $0x48] sm:$0xf]
    %v10203 = vld [vmem:[#allocation12 + $0x4c] sm:$0xf]
    %v10204 = vld [vmem:[#allocation12 + $0x50] sm:$0xf]
    %v10205 = vld [vmem:[#allocation12 + $0x54] sm:$0xf]
    %v10206 = vld [vmem:[#allocation12 + $0x58] sm:$0xf]
    %v10207 = vld [vmem:[#allocation12 + $0x5c] sm:$0xf]
    %v10208 = vld [vmem:[#allocation12 + $0x60] sm:$0xf]
    %v10209 = vld [vmem:[#allocation12 + $0x64] sm:$0xf]
    %v10210 = vld [vmem:[#allocation12 + $0x68] sm:$0xf]
    %v10211 = vld [vmem:[#allocation12 + $0x6c] sm:$0xf]
    %v10212 = vld [vmem:[#allocation12 + $0x70] sm:$0xf]
    %v10213 = vld [vmem:[#allocation12 + $0x74] sm:$0xf]
    %v10214 = vld [vmem:[#allocation12 + $0x78] sm:$0xf]
    %v10215 = vld [vmem:[#allocation12 + $0x7c] sm:$0xf]
    %v10216 = vld [vmem:[#allocation12 + $0x80] sm:$0xf]
    %v10217 = vld [vmem:[#allocation12 + $0x84] sm:$0xf]
    %v10218 = vld [vmem:[#allocation12 + $0x88] sm:$0xf]
    %v10219 = vld [vmem:[#allocation12 + $0x8c] sm:$0xf]
    %v10220 = vld [vmem:[#allocation12 + $0x90] sm:$0xf]
    %v10221 = vld [vmem:[#allocation12 + $0x94] sm:$0xf]
    %v10222 = vld [vmem:[#allocation12 + $0x98] sm:$0xf]
    %v10223 = vld [vmem:[#allocation12 + $0x9c] sm:$0xf]
    %v10224 = vld [vmem:[#allocation12 + $0xa0] sm:$0xf]
    %v10225 = vld [vmem:[#allocation12 + $0xa4] sm:$0xf]
    %v10226 = vld [vmem:[#allocation12 + $0xa8] sm:$0xf]
    %v10227 = vld [vmem:[#allocation12 + $0xac] sm:$0xf]
    %v10228 = vld [vmem:[#allocation12 + $0xb0] sm:$0xf]
    %v10229 = vld [vmem:[#allocation12 + $0xb4] sm:$0xf]
    %v10230 = vld [vmem:[#allocation12 + $0xb8] sm:$0xf]
    %v10231 = vld [vmem:[#allocation12 + $0xbc] sm:$0xf]
    %v10232 = vld [vmem:[#allocation12 + $0xc0] sm:$0xf]
    %v10233 = vld [vmem:[#allocation12 + $0xc4] sm:$0xf]
    %v10234 = vld [vmem:[#allocation12 + $0xc8] sm:$0xf]
    %v10235 = vld [vmem:[#allocation12 + $0xcc] sm:$0xf]
    %v10236 = vld [vmem:[#allocation12 + $0xd0] sm:$0xf]
    %v10237 = vld [vmem:[#allocation12 + $0xd4] sm:$0xf]
    %v10238 = vld [vmem:[#allocation12 + $0xd8] sm:$0xf]
    %v10239 = vld [vmem:[#allocation12 + $0xdc] sm:$0xf]
    %v10240 = vld [vmem:[#allocation12 + $0xe0] sm:$0xf]
    %v10241 = vld [vmem:[#allocation12 + $0xe4] sm:$0xf]
    %v10242 = vld [vmem:[#allocation12 + $0xe8] sm:$0xf]
    %v10243 = vld [vmem:[#allocation12 + $0xec] sm:$0xf]
    %v10244 = vld [vmem:[#allocation12 + $0xf0] sm:$0xf]
    %v10245 = vld [vmem:[#allocation12 + $0xf4] sm:$0xf]
    %v10246 = vld [vmem:[#allocation12 + $0xf8] sm:$0xf]
    %v10247 = vld [vmem:[#allocation12 + $0xfc] sm:$0xf]
    %v10248 = vld [vmem:[#allocation13] sm:$0x1]
    %v10250 = vlaneseq
    %v10251 = vshrl.u32 %v10250, 7
    %v10252 = vsub.s32 0, %v10251
    %v10253 = vrot.slane %v10248, %v10252
    %v10319 = vunpack.c.l.b16 %v10184
    %v10320 = vunpack.c.l.b16 %v10185
    %v10321 = vunpack.c.l.b16 %v10186
    %v10322 = vunpack.c.l.b16 %v10187
    %v10323 = vunpack.c.l.b16 %v10188
    %v10324 = vunpack.c.l.b16 %v10189
    %v10325 = vunpack.c.l.b16 %v10190
    %v10326 = vunpack.c.l.b16 %v10191
    %v10327 = vunpack.c.l.b16 %v10192
    %v10328 = vunpack.c.l.b16 %v10193
    %v10329 = vunpack.c.l.b16 %v10194
    %v10330 = vunpack.c.l.b16 %v10195
    %v10331 = vunpack.c.l.b16 %v10196
    %v10332 = vunpack.c.l.b16 %v10197
    %v10333 = vunpack.c.l.b16 %v10198
    %v10334 = vunpack.c.l.b16 %v10199
    %v10335 = vunpack.c.l.b16 %v10200
    %v10336 = vunpack.c.l.b16 %v10201
    %v10337 = vunpack.c.l.b16 %v10202
    %v10338 = vunpack.c.l.b16 %v10203
    %v10339 = vunpack.c.l.b16 %v10204
    %v10340 = vunpack.c.l.b16 %v10205
    %v10341 = vunpack.c.l.b16 %v10206
    %v10342 = vunpack.c.l.b16 %v10207
    %v10343 = vunpack.c.l.b16 %v10208
    %v10344 = vunpack.c.l.b16 %v10209
    %v10345 = vunpack.c.l.b16 %v10210
    %v10346 = vunpack.c.l.b16 %v10211
    %v10347 = vunpack.c.l.b16 %v10212
    %v10348 = vunpack.c.l.b16 %v10213
    %v10349 = vunpack.c.l.b16 %v10214
    %v10350 = vunpack.c.l.b16 %v10215
    %v10351 = vunpack.c.l.b16 %v10216
    %v10352 = vunpack.c.l.b16 %v10217
    %v10353 = vunpack.c.l.b16 %v10218
    %v10354 = vunpack.c.l.b16 %v10219
    %v10355 = vunpack.c.l.b16 %v10220
    %v10356 = vunpack.c.l.b16 %v10221
    %v10357 = vunpack.c.l.b16 %v10222
    %v10358 = vunpack.c.l.b16 %v10223
    %v10359 = vunpack.c.l.b16 %v10224
    %v10360 = vunpack.c.l.b16 %v10225
    %v10361 = vunpack.c.l.b16 %v10226
    %v10362 = vunpack.c.l.b16 %v10227
    %v10363 = vunpack.c.l.b16 %v10228
    %v10364 = vunpack.c.l.b16 %v10229
    %v10365 = vunpack.c.l.b16 %v10230
    %v10366 = vunpack.c.l.b16 %v10231
    %v10367 = vunpack.c.l.b16 %v10232
    %v10368 = vunpack.c.l.b16 %v10233
    %v10369 = vunpack.c.l.b16 %v10234
    %v10370 = vunpack.c.l.b16 %v10235
    %v10371 = vunpack.c.l.b16 %v10236
    %v10372 = vunpack.c.l.b16 %v10237
    %v10373 = vunpack.c.l.b16 %v10238
    %v10374 = vunpack.c.l.b16 %v10239
    %v10375 = vunpack.c.l.b16 %v10240
    %v10376 = vunpack.c.l.b16 %v10241
    %v10377 = vunpack.c.l.b16 %v10242
    %v10378 = vunpack.c.l.b16 %v10243
    %v10379 = vunpack.c.l.b16 %v10244
    %v10380 = vunpack.c.l.b16 %v10245
    %v10381 = vunpack.c.l.b16 %v10246
    %v10382 = vunpack.c.l.b16 %v10247
    %v10383 = vpack.c.b16 %v10320, %v10319
    %v10384 = vpack.c.b16 %v10322, %v10321
    %v10385 = vpack.c.b16 %v10324, %v10323
    %v10386 = vpack.c.b16 %v10326, %v10325
    %v10387 = vpack.c.b16 %v10328, %v10327
    %v10388 = vpack.c.b16 %v10330, %v10329
    %v10389 = vpack.c.b16 %v10332, %v10331
    %v10390 = vpack.c.b16 %v10334, %v10333
    %v10391 = vpack.c.b16 %v10336, %v10335
    %v10392 = vpack.c.b16 %v10338, %v10337
    %v10393 = vpack.c.b16 %v10340, %v10339
    %v10394 = vpack.c.b16 %v10342, %v10341
    %v10395 = vpack.c.b16 %v10344, %v10343
    %v10396 = vpack.c.b16 %v10346, %v10345
    %v10397 = vpack.c.b16 %v10348, %v10347
    %v10398 = vpack.c.b16 %v10350, %v10349
    %v10399 = vpack.c.b16 %v10352, %v10351
    %v10400 = vpack.c.b16 %v10354, %v10353
    %v10401 = vpack.c.b16 %v10356, %v10355
    %v10402 = vpack.c.b16 %v10358, %v10357
    %v10403 = vpack.c.b16 %v10360, %v10359
    %v10404 = vpack.c.b16 %v10362, %v10361
    %v10405 = vpack.c.b16 %v10364, %v10363
    %v10406 = vpack.c.b16 %v10366, %v10365
    %v10407 = vpack.c.b16 %v10368, %v10367
    %v10408 = vpack.c.b16 %v10370, %v10369
    %v10409 = vpack.c.b16 %v10372, %v10371
    %v10410 = vpack.c.b16 %v10374, %v10373
    %v10411 = vpack.c.b16 %v10376, %v10375
    %v10412 = vpack.c.b16 %v10378, %v10377
    %v10413 = vpack.c.b16 %v10380, %v10379
    %v10414 = vpack.c.b16 %v10382, %v10381
    %10447 = vmatprep.subr.bf16.mxu0 0
    %10448 = vmatpush1.bf16.msra.mxu0 %v10383
    %10449 = vmatprep.subr.bf16.mxu0 0
    %10450 = vmatpush1.bf16.msra.mxu0 %v10384
    %10451 = vmatprep.subr.bf16.mxu0 0
    %10452 = vmatpush1.bf16.msra.mxu0 %v10385
    %10453 = vmatprep.subr.bf16.mxu0 0
    %10454 = vmatpush1.bf16.msra.mxu0 %v10386
    %10455 = vmatprep.subr.bf16.mxu0 0
    %10456 = vmatpush1.bf16.msra.mxu0 %v10387
    %10457 = vmatprep.subr.bf16.mxu0 0
    %10458 = vmatpush1.bf16.msra.mxu0 %v10388
    %10459 = vmatprep.subr.bf16.mxu0 0
    %10460 = vmatpush1.bf16.msra.mxu0 %v10389
    %10461 = vmatprep.subr.bf16.mxu0 0
    %10462 = vmatpush1.bf16.msra.mxu0 %v10390
    %10463 = vmatprep.subr.bf16.mxu0 0
    %10464 = vmatpush1.bf16.msra.mxu0 %v10391
    %10465 = vmatprep.subr.bf16.mxu0 0
    %10466 = vmatpush1.bf16.msra.mxu0 %v10392
    %10467 = vmatprep.subr.bf16.mxu0 0
    %10468 = vmatpush1.bf16.msra.mxu0 %v10393
    %10469 = vmatprep.subr.bf16.mxu0 0
    %10470 = vmatpush1.bf16.msra.mxu0 %v10394
    %10471 = vmatprep.subr.bf16.mxu0 0
    %10472 = vmatpush1.bf16.msra.mxu0 %v10395
    %10473 = vmatprep.subr.bf16.mxu0 0
    %10474 = vmatpush1.bf16.msra.mxu0 %v10396
    %10475 = vmatprep.subr.bf16.mxu0 0
    %10476 = vmatpush1.bf16.msra.mxu0 %v10397
    %10477 = vmatprep.subr.bf16.mxu0 0
    %10478 = vmatpush1.bf16.msra.mxu0 %v10398
    %10479 = vmatprep.mubr.bf16.mxu0 %v10181
    %10480 = vmatmul.mubr.bf16.gmra.mrb[0].mxu0 %v10180
    %v10481 = vpop.f32.mrb[0].mxu0
    %v10482 = vadd.f32 %v10253, %v10481
    %v10483 = vpop.f32.mrb[0].mxu0
    %v10484 = vpop.f32.mrb[0].mxu0
    %v10485 = vpop.f32.mrb[0].mxu0
    %10486 = vdwg.mxu0
    %10487 = vmatprep.subr.bf16.mxu0 0
    %10488 = vmatpush1.bf16.msra.mxu0 %v10399
    %10489 = vmatprep.subr.bf16.mxu0 0
    %10490 = vmatpush1.bf16.msra.mxu0 %v10400
    %10491 = vmatprep.subr.bf16.mxu0 0
    %10492 = vmatpush1.bf16.msra.mxu0 %v10401
    %10493 = vmatprep.subr.bf16.mxu0 0
    %10494 = vmatpush1.bf16.msra.mxu0 %v10402
    %10495 = vmatprep.subr.bf16.mxu0 0
    %10496 = vmatpush1.bf16.msra.mxu0 %v10403
    %10497 = vmatprep.subr.bf16.mxu0 0
    %10498 = vmatpush1.bf16.msra.mxu0 %v10404
    %10499 = vmatprep.subr.bf16.mxu0 0
    %10500 = vmatpush1.bf16.msra.mxu0 %v10405
    %10501 = vmatprep.subr.bf16.mxu0 0
    %10502 = vmatpush1.bf16.msra.mxu0 %v10406
    %10503 = vmatprep.subr.bf16.mxu0 0
    %10504 = vmatpush1.bf16.msra.mxu0 %v10407
    %10505 = vmatprep.subr.bf16.mxu0 0
    %10506 = vmatpush1.bf16.msra.mxu0 %v10408
    %10507 = vmatprep.subr.bf16.mxu0 0
    %10508 = vmatpush1.bf16.msra.mxu0 %v10409
    %10509 = vmatprep.subr.bf16.mxu0 0
    %10510 = vmatpush1.bf16.msra.mxu0 %v10410
    %10511 = vmatprep.subr.bf16.mxu0 0
    %10512 = vmatpush1.bf16.msra.mxu0 %v10411
    %10513 = vmatprep.subr.bf16.mxu0 0
    %10514 = vmatpush1.bf16.msra.mxu0 %v10412
    %10515 = vmatprep.subr.bf16.mxu0 0
    %10516 = vmatpush1.bf16.msra.mxu0 %v10413
    %10517 = vmatprep.subr.bf16.mxu0 0
    %10518 = vmatpush1.bf16.msra.mxu0 %v10414
    %10519 = vmatprep.mubr.bf16.mxu0 %v10183
    %10520 = vmatmul.mubr.bf16.gmra.mrb[0].mxu0 %v10182
    %v10521 = vpop.f32.mrb[0].mxu0
    %v10522 = vadd.f32 %v10482, %v10521
    %v10523 = vpop.f32.mrb[0].mxu0
    %v10524 = vpop.f32.mrb[0].mxu0
    %v10525 = vpop.f32.mrb[0].mxu0
    %10526 = vdwg.mxu0
    %10527 = vst [vmem:[%s9] sm:$0xff] %v10522
    // Predicated region
    $region70: #{_dqn_forward_pallas.1} parent=1 // pred_check
      _
    $region71: #{_dqn_forward_pallas.1} parent=1 // pred_check_branch
      %10529 = sbr.rel (0) target = $region73
    $region72: #{_dqn_forward_pallas.1} parent=1 // pred_region
      _
    $region73: #{_dqn_forward_pallas.1} parent=1 // pred_fallthru
      _
    // Predicated region
    $region74: #{_dqn_forward_pallas.1} parent=1 // pred_check
      _
    $region75: #{_dqn_forward_pallas.1} parent=1 // pred_check_branch
      %10531 = sbr.rel (0) target = $region77
    $region76: #{_dqn_forward_pallas.1} parent=1 // pred_region
      _
    $region77: #{_dqn_forward_pallas.1} parent=1 // pred_fallthru
      _
    %10532 = vsyncpa [#allocation3], 1
    %10533 = vsyncpa [#allocation5], 1
    %10534 = vsyncpa [#allocation8], 1
    %10535 = vsyncpa [#allocation11], 1
    %10536 = vsyncpa [#allocation14], 1

</llo_original>
